<compile_context>
chip_gen: v6e
topology: v6e:2x2x1
jax: 0.10.0
libtpu: 0.0.40
codegen_flags: <defaults>
</compile_context>

<pallas_src>
import functools
import math

import jax
import jax.numpy as jnp
from jax.experimental import pallas as pl
from jax.experimental.pallas import tpu as pltpu


# ----------------------------------------------------------------------------
# In-kernel helpers (traced inside the Pallas kernels)
# ----------------------------------------------------------------------------
def _layernorm(z, gamma, beta, eps=1e-5):
    mu = jnp.mean(z, axis=-1, keepdims=True)
    var = jnp.mean((z - mu) ** 2, axis=-1, keepdims=True)
    return (z - mu) * jax.lax.rsqrt(var + eps) * gamma + beta


def _attn_core(qp, kp, vp, wo, bo, mask_add, n_heads, scale):
    """Head-batched scaled-dot-product attention + output projection.

    qp:(Lq,D) kp,vp:(Lk,D) f32 projected inputs; wo bf16 (D,D); bo f32 (1,D);
    mask_add: f32 (1,Lk) additive key-padding mask or None.
    """
    Lq, D = qp.shape
    Lk = kp.shape[0]
    dh = D // n_heads
    # establish head-batched layout once, then one batched matmul per stage
    qh = jnp.transpose((qp * scale).reshape(Lq, n_heads, dh), (1, 0, 2))   # (H,Lq,dh)
    kh = jnp.transpose(kp.reshape(Lk, n_heads, dh), (1, 0, 2))             # (H,Lk,dh)
    vh = jnp.transpose(vp.reshape(Lk, n_heads, dh), (1, 0, 2))             # (H,Lk,dh)

    s = jnp.einsum('hqd,hkd->hqk', qh.astype(jnp.bfloat16), kh.astype(jnp.bfloat16),
                   preferred_element_type=jnp.float32)                     # (H,Lq,Lk)
    if mask_add is not None:
        s = s + mask_add
    m = jnp.max(s, axis=-1, keepdims=True)
    e = jnp.exp(s - m)
    p = e * pl.reciprocal(jnp.sum(e, axis=-1, keepdims=True), approx=True)

    ctx = jnp.einsum('hqk,hkd->hqd', p.astype(jnp.bfloat16), vh.astype(jnp.bfloat16),
                     preferred_element_type=jnp.float32)                   # (H,Lq,dh)
    ctx = jnp.transpose(ctx, (1, 0, 2)).reshape(Lq, D)
    return jnp.dot(ctx.astype(jnp.bfloat16), wo,
                   preferred_element_type=jnp.float32) + bo


# ----------------------------------------------------------------------------
# Stage-1 kernel: range-MHA -> LN -> self-MHA -> LN -> deform projections
# ----------------------------------------------------------------------------
def _stage1_kernel(tgt_ref, qpos_ref, rng_ref, maskr_ref, src_ref, keep_ref,
                   wq_r, bq_r, wkv_r, bkv_r, wo_r, bo_r, g_nr, b_nr,
                   wqk_s, bqk_s, wv_s, bv_s, wo_s, bo_s, g_n2, b_n2,
                   w_val, b_val, w_sa, b_sa,
                   tgt_out, sa_out, val_out, *, n_heads):
    D = tgt_ref.shape[-1]
    scale = 1.0 / math.sqrt(D // n_heads)

    tgt = tgt_ref[0].astype(jnp.float32)          # (Lq, D)
    qpos = qpos_ref[0].astype(jnp.float32)        # (Lq, D)
    rng = rng_ref[0]                              # (Lr, D) bf16
    mask_add = maskr_ref[0]                       # (1, Lr) f32 additive mask

    # ---- cross attention over range embedding (q=tgt, k=v=range_pos_embed) ----
    qp = jnp.dot(tgt.astype(jnp.bfloat16), wq_r[...],
                 preferred_element_type=jnp.float32) + bq_r[...]
    kvp = jnp.dot(rng, wkv_r[...],
                  preferred_element_type=jnp.float32) + bkv_r[...]          # (Lr, 2D)
    attn = _attn_core(qp, kvp[:, :D], kvp[:, D:], wo_r[...], bo_r[...],
                      mask_add, n_heads, scale)
    tgt = _layernorm(tgt + attn, g_nr[...], b_nr[...])

    # ---- self attention (q = k = tgt + query_pos, v = tgt, no mask) ----
    qk = tgt + qpos
    qkp = jnp.dot(qk.astype(jnp.bfloat16), wqk_s[...],
                  preferred_element_type=jnp.float32) + bqk_s[...]          # (Lq, 2D)
    vps = jnp.dot(tgt.astype(jnp.bfloat16), wv_s[...],
                  preferred_element_type=jnp.float32) + bv_s[...]
    attn = _attn_core(qkp[:, :D], qkp[:, D:], vps, wo_s[...], bo_s[...],
                      None, n_heads, scale)
    tgt = _layernorm(tgt + attn, g_n2[...], b_n2[...])

    # ---- MSDeformAttn projections: value, fused [sampling_offsets | attn_weights] ----
    query = tgt + qpos
    sa = jnp.dot(query.astype(jnp.bfloat16), w_sa[...],
                 preferred_element_type=jnp.float32) + b_sa[...]            # (Lq, 3HLP)
    val = jnp.dot(src_ref[0], w_val[...],
                  preferred_element_type=jnp.float32) + b_val[...]          # (Li, D)
    val = val * keep_ref[0]                       # masked_fill(padding, 0) + Li padding

    tgt_out[0] = tgt.astype(tgt_out.dtype)
    sa_out[0] = sa.astype(sa_out.dtype)
    val_out[0] = val.astype(val_out.dtype)


# ----------------------------------------------------------------------------
# Stage-2 kernel: deform aggregation -> out-proj -> LN -> FFN -> LN
# ----------------------------------------------------------------------------
def _stage2_kernel(tgt_ref, wagg_ref, val_ref,
                   w_do, b_do, g_n1, b_n1,
                   w1, b1, w2, b2, g_n3, b_n3,
                   o_ref, *, n_heads):
    tgt = tgt_ref[0].astype(jnp.float32)          # (Lq, D)
    wagg = wagg_ref[0]                            # (H, Lq, Li) bf16
    val = val_ref[0]                              # (Li, D) bf16
    Li, D = val.shape
    dh = D // n_heads

    vh = jnp.transpose(val.reshape(Li, n_heads, dh), (1, 0, 2))             # (H, Li, dh)
    ctx = jnp.einsum('hqi,hid->hqd', wagg, vh,
                     preferred_element_type=jnp.float32)                    # (H, Lq, dh)
    ctx = jnp.transpose(ctx, (1, 0, 2)).reshape(-1, D)                      # (Lq, D)

    tgt2 = jnp.dot(ctx.astype(jnp.bfloat16), w_do[...],
                   preferred_element_type=jnp.float32) + b_do[...]
    tgt = _layernorm(tgt + tgt2, g_n1[...], b_n1[...])

    # FFN (relu), d_ffn zero-padded to a lane-full width (exact)
    h = jnp.dot(tgt.astype(jnp.bfloat16), w1[...],
                preferred_element_type=jnp.float32) + b1[...]
    h = jnp.maximum(h, 0.0)
    t2 = jnp.dot(h.astype(jnp.bfloat16), w2[...],
                 preferred_element_type=jnp.float32) + b2[...]
    o_ref[0] = _layernorm(tgt + t2, g_n3[...], b_n3[...]).astype(o_ref.dtype)


# ----------------------------------------------------------------------------
# Pallas wrappers
# ----------------------------------------------------------------------------
_PAR = pltpu.CompilerParams(dimension_semantics=("parallel",))


def _wspec(shape):
    n = len(shape)
    return pl.BlockSpec(shape, lambda b, _n=n: (0,) * _n)


def _bspec(shape):
    n = len(shape)
    return pl.BlockSpec(shape, lambda b, _n=n: (b,) + (0,) * (_n - 1))


def stage1(tgt, qpos, rng_pe, mask_add, src_pad, keep_pad, p, *, n_heads):
    B, Lq, D = tgt.shape
    Lr = rng_pe.shape[1]
    Li = src_pad.shape[1]
    n_sa = p['w_sa'].shape[1]
    kernel = functools.partial(_stage1_kernel, n_heads=n_heads)
    return pl.pallas_call(
        kernel,
        grid=(B,),
        in_specs=[
            _bspec((1, Lq, D)), _bspec((1, Lq, D)), _bspec((1, Lr, D)),
            _bspec((1, 1, Lr)), _bspec((1, Li, D)), _bspec((1, Li, 1)),
            _wspec(p['wq_r'].shape), _wspec(p['bq_r'].shape),
            _wspec(p['wkv_r'].shape), _wspec(p['bkv_r'].shape),
            _wspec(p['wo_r'].shape), _wspec(p['bo_r'].shape),
            _wspec(p['g_nr'].shape), _wspec(p['b_nr'].shape),
            _wspec(p['wqk_s'].shape), _wspec(p['bqk_s'].shape),
            _wspec(p['wv_s'].shape), _wspec(p['bv_s'].shape),
            _wspec(p['wo_s'].shape), _wspec(p['bo_s'].shape),
            _wspec(p['g_n2'].shape), _wspec(p['b_n2'].shape),
            _wspec(p['w_val'].shape), _wspec(p['b_val'].shape),
            _wspec(p['w_sa'].shape), _wspec(p['b_sa'].shape),
        ],
        out_specs=[_bspec((1, Lq, D)), _bspec((1, Lq, n_sa)), _bspec((1, Li, D))],
        out_shape=[
            jax.ShapeDtypeStruct((B, Lq, D), jnp.float32),
            jax.ShapeDtypeStruct((B, Lq, n_sa), jnp.float32),
            jax.ShapeDtypeStruct((B, Li, D), jnp.bfloat16),
        ],
        compiler_params=_PAR,
    )(tgt, qpos, rng_pe, mask_add, src_pad, keep_pad,
      p['wq_r'], p['bq_r'], p['wkv_r'], p['bkv_r'], p['wo_r'], p['bo_r'],
      p['g_nr'], p['b_nr'],
      p['wqk_s'], p['bqk_s'], p['wv_s'], p['bv_s'], p['wo_s'], p['bo_s'],
      p['g_n2'], p['b_n2'],
      p['w_val'], p['b_val'], p['w_sa'], p['b_sa'])


def stage2(tgt, wagg, value, p, *, n_heads):
    B, Lq, D = tgt.shape
    H = wagg.shape[1]
    Li = value.shape[1]
    kernel = functools.partial(_stage2_kernel, n_heads=n_heads)
    return pl.pallas_call(
        kernel,
        grid=(B,),
        in_specs=[
            _bspec((1, Lq, D)), _bspec((1, H, Lq, Li)), _bspec((1, Li, D)),
            _wspec(p['w_do'].shape), _wspec(p['b_do'].shape),
            _wspec(p['g_n1'].shape), _wspec(p['b_n1'].shape),
            _wspec(p['w1'].shape), _wspec(p['b1'].shape),
            _wspec(p['w2'].shape), _wspec(p['b2'].shape),
            _wspec(p['g_n3'].shape), _wspec(p['b_n3'].shape),
        ],
        out_specs=_bspec((1, Lq, D)),
        out_shape=jax.ShapeDtypeStruct((B, Lq, D), jnp.float32),
        compiler_params=_PAR,
    )(tgt, wagg, value,
      p['w_do'], p['b_do'], p['g_n1'], p['b_n1'],
      p['w1'], p['b1'], p['w2'], p['b2'], p['g_n3'], p['b_n3'])


# ----------------------------------------------------------------------------
# MSDeformAttn sampling glue: bilinear scatter-add into a (B,H,Lq,Li) matrix
# (matches F.grid_sample bilinear, zero padding, align_corners=False)
# ----------------------------------------------------------------------------
def build_deform_wagg(attn_w, sampling_locations, spatial_shapes,
                      level_start_index, li_pad):
    B, Lq, H, L, P = attn_w.shape
    Ws = spatial_shapes[:, 1].astype(jnp.float32)
    Hs = spatial_shapes[:, 0].astype(jnp.float32)
    start = level_start_index.astype(jnp.float32)
    lvl = lambda a: a[None, None, None, :, None]

    x = sampling_locations[..., 0] * lvl(Ws) - 0.5
    y = sampling_locations[..., 1] * lvl(Hs) - 0.5
    x0 = jnp.floor(x)
    y0 = jnp.floor(y)
    fx = x - x0
    fy = y - y0

    idx_list, w_list = [], []
    for dx in (0, 1):
        for dy in (0, 1):
            xi = x0 + dx
            yi = y0 + dy
            wx = fx if dx == 1 else (1.0 - fx)
            wy = fy if dy == 1 else (1.0 - fy)
            valid = (xi >= 0) & (xi < lvl(Ws)) & (yi >= 0) & (yi < lvl(Hs))
            xi_c = jnp.clip(xi, 0.0, lvl(Ws) - 1.0)
            yi_c = jnp.clip(yi, 0.0, lvl(Hs) - 1.0)
            idx_list.append((lvl(start) + yi_c * lvl(Ws) + xi_c).astype(jnp.int32))
            w_list.append(attn_w * wx * wy * valid.astype(jnp.float32))
    idx = jnp.stack(idx_list, axis=-1)            # (B,Lq,H,L,P,4)
    wts = jnp.stack(w_list, axis=-1)              # (B,Lq,H,L,P,4)

    b_ix = jnp.arange(B)[:, None, None, None, None, None]
    q_ix = jnp.arange(Lq)[None, :, None, None, None, None]
    h_ix = jnp.arange(H)[None, None, :, None, None, None]
    wagg = jnp.zeros((B, H, Lq, li_pad), jnp.float32)
    return wagg.at[b_ix, h_ix, q_ix, idx].add(wts)


# ----------------------------------------------------------------------------
# Full forward (eval mode)
# ----------------------------------------------------------------------------
def decoder_layer_forward(params, tgt, query_pos, reference_points, src,
                          src_spatial_shapes, level_start_index,
                          src_padding_mask, range_pos_embed, mask_range,
                          *, n_heads, n_levels, n_points):
    B, Lq, D = tgt.shape
    Lr = range_pos_embed.shape[1]
    Li = src.shape[1]
    Li_pad = ((Li + 127) // 128) * 128

    mask_add = jnp.where(mask_range, -1e9, 0.0).astype(jnp.float32).reshape(B, 1, Lr)

    # lane-pad the flattened multi-scale source (Li -> multiple of 128)
    src_pad = jnp.pad(src, ((0, 0), (0, Li_pad - Li), (0, 0))).astype(jnp.bfloat16)
    keep = 1.0 - src_padding_mask.astype(jnp.float32)
    keep_pad = jnp.pad(keep, ((0, 0), (0, Li_pad - Li))).reshape(B, Li_pad, 1)

    tgt1, sa, value = stage1(tgt, query_pos, range_pos_embed.astype(jnp.bfloat16),
                             mask_add, src_pad, keep_pad, params, n_heads=n_heads)

    # split fused sampling-offset / attention-weight projection (tiny, plain JAX)
    n_so = n_heads * n_levels * n_points * 2
    so = sa[..., :n_so].reshape(B, Lq, n_heads, n_levels, n_points, 2)
    aw = jax.nn.softmax(
        sa[..., n_so:].reshape(B, Lq, n_heads, n_levels * n_points), axis=-1
    ).reshape(B, Lq, n_heads, n_levels, n_points)

    normalizer = jnp.stack([src_spatial_shapes[:, 1], src_spatial_shapes[:, 0]],
                           axis=-1).astype(jnp.float32)          # (L, 2) = (W, H)
    sampling_locations = (reference_points[:, :, None, :, None, :]
                          + so / normalizer[None, None, None, :, None, :])

    wagg = build_deform_wagg(aw, sampling_locations, src_spatial_shapes,
                             level_start_index, Li_pad).astype(jnp.bfloat16)

    return stage2(tgt1, wagg, value, params, n_heads=n_heads)


# ----------------------------------------------------------------------------
# Deterministic synthetic parameters (kernel-ready fused/padded/bf16 layout).
# Weights are (D_in, D_out): x @ W.  PyTorch checkpoints must be transposed.
# ----------------------------------------------------------------------------
def init_params(key, d_model, d_ffn, n_heads, n_levels, n_points):
    d_ffn_pad = ((d_ffn + 127) // 128) * 128
    keys = iter(jax.random.split(key, 64))

    def w(shape):
        return jax.random.normal(next(keys), shape, jnp.float32) * 0.02

    bf = lambda a: a.astype(jnp.bfloat16)
    ones = lambda: jnp.ones((1, d_model), jnp.float32)
    zeros = lambda: jnp.zeros((1, d_model), jnp.float32)
    n_sa = n_heads * n_levels * n_points * 3     # 2*HLP offsets + HLP weights

    # FFN with d_ffn zero-padded to a lane-full width (exact: relu(0)=0, zero rows in w2)
    w1 = jnp.zeros((d_model, d_ffn_pad), jnp.float32).at[:, :d_ffn].set(w((d_model, d_ffn)))
    b1 = jnp.zeros((1, d_ffn_pad), jnp.float32).at[:, :d_ffn].set(w((1, d_ffn)))
    w2 = jnp.zeros((d_ffn_pad, d_model), jnp.float32).at[:d_ffn, :].set(w((d_ffn, d_model)))

    return dict(
        # range cross-attention: q from tgt, fused [k|v] from range_pos_embed
        wq_r=bf(w((d_model, d_model))), bq_r=w((1, d_model)),
        wkv_r=bf(w((d_model, 2 * d_model))), bkv_r=w((1, 2 * d_model)),
        wo_r=bf(w((d_model, d_model))), bo_r=w((1, d_model)),
        g_nr=ones(), b_nr=zeros(),
        # self attention: fused [q|k] from tgt+pos, v from tgt
        wqk_s=bf(w((d_model, 2 * d_model))), bqk_s=w((1, 2 * d_model)),
        wv_s=bf(w((d_model, d_model))), bv_s=w((1, d_model)),
        wo_s=bf(w((d_model, d_model))), bo_s=w((1, d_model)),
        g_n2=ones(), b_n2=zeros(),
        # MSDeformAttn: value proj + fused [sampling_offsets | attention_weights] + out proj
        w_val=bf(w((d_model, d_model))), b_val=w((1, d_model)),
        w_sa=bf(w((d_model, n_sa))), b_sa=w((1, n_sa)),
        w_do=bf(w((d_model, d_model))), b_do=w((1, d_model)),
        g_n1=ones(), b_n1=zeros(),
        # FFN + norm3
        w1=bf(w1), b1=b1, w2=bf(w2), b2=w((1, d_model)),
        g_n3=ones(), b_n3=zeros(),
    )


# ----------------------------------------------------------------------------
if __name__ == "__main__":
    d_model, d_ffn, n_heads, n_levels, n_points = 32, 64, 4, 2, 2
    B, Lq, Lr = 2, 8, 8
    src_spatial_shapes = jnp.array([[8, 8], [4, 4]], jnp.int32)   # (H, W) per level
    level_start_index = jnp.array([0, 64], jnp.int32)
    Li = 8 * 8 + 4 * 4                                             # 80

    key = jax.random.PRNGKey(0)
    keys = jax.random.split(key, 8)
    tgt = jax.random.normal(keys[0], (B, Lq, d_model), jnp.float32)
    query_pos = jax.random.normal(keys[1], (B, Lq, d_model), jnp.float32)
    reference_points = jax.random.uniform(keys[2], (B, Lq, n_levels, 2), jnp.float32)
    src = jax.random.normal(keys[3], (B, Li, d_model), jnp.float32)
    src_padding_mask = jnp.zeros((B, Li), bool).at[:, -4:].set(True)
    range_pos_embed = jax.random.normal(keys[4], (B, Lr, d_model), jnp.float32)
    mask_range = jnp.zeros((B, Lr), bool).at[:, -2:].set(True)

    params = init_params(keys[5], d_model, d_ffn, n_heads, n_levels, n_points)

    fwd = jax.jit(functools.partial(decoder_layer_forward,
                                    n_heads=n_heads, n_levels=n_levels,
                                    n_points=n_points))
    out = fwd(params, tgt, query_pos, reference_points, src, src_spatial_shapes,
              level_start_index, src_padding_mask, range_pos_embed, mask_range)
    jax.block_until_ready(out)
    assert out.shape == (B, Lq, d_model)
    print("KERNEL_OK")
</pallas_src>

<mosaic_0001>
module attributes {stable_mosaic.version = 11 : i64} {
  func.func private @main(%arg0: i32) attributes {dimension_semantics = [#tpu.dimension_semantics<core_parallel>], iteration_bounds = array<i64: 2>, tpu.core_type = #tpu.core_type<sc_scalar_subcore>, window_params = []} {
    return
  }
}

module attributes {stable_mosaic.version = 11 : i64} {
  func.func private @main(%arg0: i32) attributes {dimension_semantics = [#tpu.dimension_semantics<core_parallel>], iteration_bounds = array<i64: 2>, tpu.core_type = #tpu.core_type<sc_scalar_subcore>, window_params = []} {
    return
  }
}

module attributes {stable_mosaic.version = 11 : i64} {
  func.func @_stage1_kernel(%arg0: i32, %arg1: memref<1x8x32xf32, #tpu.memory_space<vmem>>, %arg2: memref<1x8x32xf32, #tpu.memory_space<vmem>>, %arg3: memref<1x8x32xbf16, #tpu.memory_space<vmem>>, %arg4: memref<1x1x8xf32, #tpu.memory_space<vmem>>, %arg5: memref<1x128x32xbf16, #tpu.memory_space<vmem>>, %arg6: memref<1x128x1xf32, #tpu.memory_space<vmem>>, %arg7: memref<32x32xbf16, #tpu.memory_space<vmem>>, %arg8: memref<1x32xf32, #tpu.memory_space<vmem>>, %arg9: memref<32x64xbf16, #tpu.memory_space<vmem>>, %arg10: memref<1x64xf32, #tpu.memory_space<vmem>>, %arg11: memref<32x32xbf16, #tpu.memory_space<vmem>>, %arg12: memref<1x32xf32, #tpu.memory_space<vmem>>, %arg13: memref<1x32xf32, #tpu.memory_space<vmem>>, %arg14: memref<1x32xf32, #tpu.memory_space<vmem>>, %arg15: memref<32x64xbf16, #tpu.memory_space<vmem>>, %arg16: memref<1x64xf32, #tpu.memory_space<vmem>>, %arg17: memref<32x32xbf16, #tpu.memory_space<vmem>>, %arg18: memref<1x32xf32, #tpu.memory_space<vmem>>, %arg19: memref<32x32xbf16, #tpu.memory_space<vmem>>, %arg20: memref<1x32xf32, #tpu.memory_space<vmem>>, %arg21: memref<1x32xf32, #tpu.memory_space<vmem>>, %arg22: memref<1x32xf32, #tpu.memory_space<vmem>>, %arg23: memref<32x32xbf16, #tpu.memory_space<vmem>>, %arg24: memref<1x32xf32, #tpu.memory_space<vmem>>, %arg25: memref<32x48xbf16, #tpu.memory_space<vmem>>, %arg26: memref<1x48xf32, #tpu.memory_space<vmem>>, %arg27: memref<1x8x32xf32, #tpu.memory_space<vmem>>, %arg28: memref<1x8x48xf32, #tpu.memory_space<vmem>>, %arg29: memref<1x128x32xbf16, #tpu.memory_space<vmem>>) attributes {dimension_semantics = [#tpu.dimension_semantics<parallel>], iteration_bounds = array<i64: 2>, scalar_prefetch = 0 : i64, scratch_operands = 0 : i64, tpu.core_type = #tpu.core_type<tc>, window_params = [{transform_indices = @transform_0, window_bounds = array<i64: 1, 8, 32>}, {transform_indices = @transform_1, window_bounds = array<i64: 1, 8, 32>}, {transform_indices = @transform_2, window_bounds = array<i64: 1, 8, 32>}, {transform_indices = @transform_3, window_bounds = array<i64: 1, 1, 8>}, {transform_indices = @transform_4, window_bounds = array<i64: 1, 128, 32>}, {transform_indices = @transform_5, window_bounds = array<i64: 1, 128, 1>}, {pipeline_mode = #tpu.pipeline_mode<synchronous>, transform_indices = @transform_6, window_bounds = array<i64: 32, 32>}, {pipeline_mode = #tpu.pipeline_mode<synchronous>, transform_indices = @transform_7, window_bounds = array<i64: 1, 32>}, {pipeline_mode = #tpu.pipeline_mode<synchronous>, transform_indices = @transform_8, window_bounds = array<i64: 32, 64>}, {pipeline_mode = #tpu.pipeline_mode<synchronous>, transform_indices = @transform_9, window_bounds = array<i64: 1, 64>}, {pipeline_mode = #tpu.pipeline_mode<synchronous>, transform_indices = @transform_10, window_bounds = array<i64: 32, 32>}, {pipeline_mode = #tpu.pipeline_mode<synchronous>, transform_indices = @transform_11, window_bounds = array<i64: 1, 32>}, {pipeline_mode = #tpu.pipeline_mode<synchronous>, transform_indices = @transform_12, window_bounds = array<i64: 1, 32>}, {pipeline_mode = #tpu.pipeline_mode<synchronous>, transform_indices = @transform_13, window_bounds = array<i64: 1, 32>}, {pipeline_mode = #tpu.pipeline_mode<synchronous>, transform_indices = @transform_14, window_bounds = array<i64: 32, 64>}, {pipeline_mode = #tpu.pipeline_mode<synchronous>, transform_indices = @transform_15, window_bounds = array<i64: 1, 64>}, {pipeline_mode = #tpu.pipeline_mode<synchronous>, transform_indices = @transform_16, window_bounds = array<i64: 32, 32>}, {pipeline_mode = #tpu.pipeline_mode<synchronous>, transform_indices = @transform_17, window_bounds = array<i64: 1, 32>}, {pipeline_mode = #tpu.pipeline_mode<synchronous>, transform_indices = @transform_18, window_bounds = array<i64: 32, 32>}, {pipeline_mode = #tpu.pipeline_mode<synchronous>, transform_indices = @transform_19, window_bounds = array<i64: 1, 32>}, {pipeline_mode = #tpu.pipeline_mode<synchronous>, transform_indices = @transform_20, window_bounds = array<i64: 1, 32>}, {pipeline_mode = #tpu.pipeline_mode<synchronous>, transform_indices = @transform_21, window_bounds = array<i64: 1, 32>}, {pipeline_mode = #tpu.pipeline_mode<synchronous>, transform_indices = @transform_22, window_bounds = array<i64: 32, 32>}, {pipeline_mode = #tpu.pipeline_mode<synchronous>, transform_indices = @transform_23, window_bounds = array<i64: 1, 32>}, {pipeline_mode = #tpu.pipeline_mode<synchronous>, transform_indices = @transform_24, window_bounds = array<i64: 32, 48>}, {pipeline_mode = #tpu.pipeline_mode<synchronous>, transform_indices = @transform_25, window_bounds = array<i64: 1, 48>}, {transform_indices = @transform_26, window_bounds = array<i64: 1, 8, 32>}, {transform_indices = @transform_27, window_bounds = array<i64: 1, 8, 48>}, {transform_indices = @transform_28, window_bounds = array<i64: 1, 128, 32>}]} {
    %c0 = arith.constant 0 : index
    %c0_0 = arith.constant 0 : index
    %c0_1 = arith.constant 0 : index
    %0 = vector.load %arg1[%c0, %c0_0, %c0_1] : memref<1x8x32xf32, #tpu.memory_space<vmem>>, vector<1x8x32xf32>
    %1 = vector.shape_cast %0 : vector<1x8x32xf32> to vector<8x32xf32>
    %c0_2 = arith.constant 0 : index
    %c0_3 = arith.constant 0 : index
    %c0_4 = arith.constant 0 : index
    %2 = vector.load %arg2[%c0_2, %c0_3, %c0_4] : memref<1x8x32xf32, #tpu.memory_space<vmem>>, vector<1x8x32xf32>
    %3 = vector.shape_cast %2 : vector<1x8x32xf32> to vector<8x32xf32>
    %c0_5 = arith.constant 0 : index
    %c0_6 = arith.constant 0 : index
    %c0_7 = arith.constant 0 : index
    %4 = vector.load %arg3[%c0_5, %c0_6, %c0_7] : memref<1x8x32xbf16, #tpu.memory_space<vmem>>, vector<1x8x32xbf16>
    %5 = vector.shape_cast %4 : vector<1x8x32xbf16> to vector<8x32xbf16>
    %c0_8 = arith.constant 0 : index
    %c0_9 = arith.constant 0 : index
    %c0_10 = arith.constant 0 : index
    %6 = vector.load %arg4[%c0_8, %c0_9, %c0_10] : memref<1x1x8xf32, #tpu.memory_space<vmem>>, vector<1x1x8xf32>
    %7 = vector.shape_cast %6 : vector<1x1x8xf32> to vector<1x8xf32>
    %8 = arith.truncf %1 : vector<8x32xf32> to vector<8x32xbf16>
    %c0_11 = arith.constant 0 : index
    %c0_12 = arith.constant 0 : index
    %9 = vector.load %arg7[%c0_11, %c0_12] : memref<32x32xbf16, #tpu.memory_space<vmem>>, vector<32x32xbf16>
    %cst = arith.constant dense<0.000000e+00> : vector<8x32xf32>
    %10 = tpu.matmul %8, %9, %cst {dimension_numbers = #tpu.dot_dimension_numbers<[1], [0], [0], [1], [0, 0, 1, 1], [], []>} : vector<8x32xbf16>, vector<32x32xbf16>, vector<8x32xf32> -> vector<8x32xf32>
    %c0_13 = arith.constant 0 : index
    %c0_14 = arith.constant 0 : index
    %11 = vector.load %arg8[%c0_13, %c0_14] : memref<1x32xf32, #tpu.memory_space<vmem>>, vector<1x32xf32>
    %12 = vector.broadcast %11 : vector<1x32xf32> to vector<8x32xf32>
    %13 = arith.addf %10, %12 : vector<8x32xf32>
    %c0_15 = arith.constant 0 : index
    %c0_16 = arith.constant 0 : index
    %14 = vector.load %arg9[%c0_15, %c0_16] : memref<32x64xbf16, #tpu.memory_space<vmem>>, vector<32x64xbf16>
    %cst_17 = arith.constant dense<0.000000e+00> : vector<8x64xf32>
    %15 = tpu.matmul %5, %14, %cst_17 {dimension_numbers = #tpu.dot_dimension_numbers<[1], [0], [0], [1], [0, 0, 1, 1], [], []>} : vector<8x32xbf16>, vector<32x64xbf16>, vector<8x64xf32> -> vector<8x64xf32>
    %c0_18 = arith.constant 0 : index
    %c0_19 = arith.constant 0 : index
    %16 = vector.load %arg10[%c0_18, %c0_19] : memref<1x64xf32, #tpu.memory_space<vmem>>, vector<1x64xf32>
    %17 = vector.broadcast %16 : vector<1x64xf32> to vector<8x64xf32>
    %18 = arith.addf %15, %17 : vector<8x64xf32>
    %19 = vector.extract_strided_slice %18 {offsets = [0, 0], sizes = [8, 32], strides = [1, 1]} : vector<8x64xf32> to vector<8x32xf32>
    %20 = vector.extract_strided_slice %18 {offsets = [0, 32], sizes = [8, 32], strides = [1, 1]} : vector<8x64xf32> to vector<8x32xf32>
    %c0_20 = arith.constant 0 : index
    %c0_21 = arith.constant 0 : index
    %21 = vector.load %arg11[%c0_20, %c0_21] : memref<32x32xbf16, #tpu.memory_space<vmem>>, vector<32x32xbf16>
    %c0_22 = arith.constant 0 : index
    %c0_23 = arith.constant 0 : index
    %22 = vector.load %arg12[%c0_22, %c0_23] : memref<1x32xf32, #tpu.memory_space<vmem>>, vector<1x32xf32>
    %cst_24 = arith.constant 0.353553385 : f32
    %23 = vector.broadcast %cst_24 : f32 to vector<8x32xf32>
    %24 = arith.mulf %13, %23 : vector<8x32xf32>
    %25 = vector.shape_cast %24 : vector<8x32xf32> to vector<8x4x8xf32>
    %26 = tpu.transpose %25, [1, 0, 2] : vector<8x4x8xf32> -> vector<4x8x8xf32>
    %27 = vector.shape_cast %19 : vector<8x32xf32> to vector<8x4x8xf32>
    %28 = tpu.transpose %27, [1, 0, 2] : vector<8x4x8xf32> -> vector<4x8x8xf32>
    %29 = vector.shape_cast %20 : vector<8x32xf32> to vector<8x4x8xf32>
    %30 = tpu.transpose %29, [1, 0, 2] : vector<8x4x8xf32> -> vector<4x8x8xf32>
    %31 = arith.truncf %26 : vector<4x8x8xf32> to vector<4x8x8xbf16>
    %32 = arith.truncf %28 : vector<4x8x8xf32> to vector<4x8x8xbf16>
    "tpu.trace_start"() <{level = 10 : i32, message = "hqd,hkd->hqk"}> : () -> ()
    %cst_25 = arith.constant dense<0.000000e+00> : vector<4x8x8xf32>
    %33 = tpu.matmul %31, %32, %cst_25 {dimension_numbers = #tpu.dot_dimension_numbers<[2], [2], [1], [1], [0, 0, 0, 1, 1, 1], [0], [0]>} : vector<4x8x8xbf16>, vector<4x8x8xbf16>, vector<4x8x8xf32> -> vector<4x8x8xf32>
    "tpu.trace_stop"() : () -> ()
    %34 = vector.shape_cast %7 : vector<1x8xf32> to vector<1x1x8xf32>
    %35 = vector.broadcast %34 : vector<1x1x8xf32> to vector<4x8x8xf32>
    %36 = arith.addf %33, %35 : vector<4x8x8xf32>
    %cst_26 = arith.constant dense<0xFF800000> : vector<4x8xf32>
    %37 = vector.multi_reduction <maximumf>, %36, %cst_26 [2] : vector<4x8x8xf32> to vector<4x8xf32>
    %38 = vector.shape_cast %37 : vector<4x8xf32> to vector<4x8x1xf32>
    %39 = vector.broadcast %38 : vector<4x8x1xf32> to vector<4x8x8xf32>
    %40 = arith.subf %36, %39 : vector<4x8x8xf32>
    %41 = math.exp %40 : vector<4x8x8xf32>
    %cst_27 = arith.constant dense<0.000000e+00> : vector<4x8xf32>
    %42 = vector.multi_reduction <add>, %41, %cst_27 [2] : vector<4x8x8xf32> to vector<4x8xf32>
    %43 = vector.shape_cast %42 : vector<4x8xf32> to vector<4x8x1xf32>
    %44 = tpu.reciprocal %43 {approx = true} : vector<4x8x1xf32> -> vector<4x8x1xf32>
    %45 = vector.broadcast %44 : vector<4x8x1xf32> to vector<4x8x8xf32>
    %46 = arith.mulf %41, %45 : vector<4x8x8xf32>
    %47 = arith.truncf %46 : vector<4x8x8xf32> to vector<4x8x8xbf16>
    %48 = arith.truncf %30 : vector<4x8x8xf32> to vector<4x8x8xbf16>
    "tpu.trace_start"() <{level = 10 : i32, message = "hqk,hkd->hqd"}> : () -> ()
    %cst_28 = arith.constant dense<0.000000e+00> : vector<4x8x8xf32>
    %49 = tpu.matmul %47, %48, %cst_28 {dimension_numbers = #tpu.dot_dimension_numbers<[2], [1], [1], [2], [0, 0, 0, 1, 1, 2], [0], [0]>} : vector<4x8x8xbf16>, vector<4x8x8xbf16>, vector<4x8x8xf32> -> vector<4x8x8xf32>
    "tpu.trace_stop"() : () -> ()
    %50 = tpu.transpose %49, [1, 0, 2] : vector<4x8x8xf32> -> vector<8x4x8xf32>
    %51 = vector.shape_cast %50 : vector<8x4x8xf32> to vector<8x32xf32>
    %52 = arith.truncf %51 : vector<8x32xf32> to vector<8x32xbf16>
    %cst_29 = arith.constant dense<0.000000e+00> : vector<8x32xf32>
    %53 = tpu.matmul %52, %21, %cst_29 {dimension_numbers = #tpu.dot_dimension_numbers<[1], [0], [0], [1], [0, 0, 1, 1], [], []>} : vector<8x32xbf16>, vector<32x32xbf16>, vector<8x32xf32> -> vector<8x32xf32>
    %54 = vector.broadcast %22 : vector<1x32xf32> to vector<8x32xf32>
    %55 = arith.addf %53, %54 : vector<8x32xf32>
    %56 = arith.addf %1, %55 : vector<8x32xf32>
    %c0_30 = arith.constant 0 : index
    %c0_31 = arith.constant 0 : index
    %57 = vector.load %arg13[%c0_30, %c0_31] : memref<1x32xf32, #tpu.memory_space<vmem>>, vector<1x32xf32>
    %c0_32 = arith.constant 0 : index
    %c0_33 = arith.constant 0 : index
    %58 = vector.load %arg14[%c0_32, %c0_33] : memref<1x32xf32, #tpu.memory_space<vmem>>, vector<1x32xf32>
    %cst_34 = arith.constant dense<0.000000e+00> : vector<8xf32>
    %59 = vector.multi_reduction <add>, %56, %cst_34 [1] : vector<8x32xf32> to vector<8xf32>
    %60 = vector.shape_cast %59 : vector<8xf32> to vector<8x1xf32>
    %cst_35 = arith.constant 3.200000e+01 : f32
    %61 = vector.broadcast %cst_35 : f32 to vector<8x1xf32>
    %62 = arith.divf %60, %61 : vector<8x1xf32>
    %63 = vector.broadcast %62 : vector<8x1xf32> to vector<8x32xf32>
    %64 = arith.subf %56, %63 : vector<8x32xf32>
    %65 = arith.mulf %64, %64 : vector<8x32xf32>
    %cst_36 = arith.constant dense<0.000000e+00> : vector<8xf32>
    %66 = vector.multi_reduction <add>, %65, %cst_36 [1] : vector<8x32xf32> to vector<8xf32>
    %67 = vector.shape_cast %66 : vector<8xf32> to vector<8x1xf32>
    %cst_37 = arith.constant 3.200000e+01 : f32
    %68 = vector.broadcast %cst_37 : f32 to vector<8x1xf32>
    %69 = arith.divf %67, %68 : vector<8x1xf32>
    %70 = vector.broadcast %62 : vector<8x1xf32> to vector<8x32xf32>
    %71 = arith.subf %56, %70 : vector<8x32xf32>
    %cst_38 = arith.constant 9.99999974E-6 : f32
    %72 = vector.broadcast %cst_38 : f32 to vector<8x1xf32>
    %73 = arith.addf %69, %72 : vector<8x1xf32>
    %74 = math.rsqrt %73 : vector<8x1xf32>
    %75 = vector.broadcast %74 : vector<8x1xf32> to vector<8x32xf32>
    %76 = arith.mulf %71, %75 : vector<8x32xf32>
    %77 = vector.broadcast %57 : vector<1x32xf32> to vector<8x32xf32>
    %78 = arith.mulf %76, %77 : vector<8x32xf32>
    %79 = vector.broadcast %58 : vector<1x32xf32> to vector<8x32xf32>
    %80 = arith.addf %78, %79 : vector<8x32xf32>
    %81 = arith.addf %80, %3 : vector<8x32xf32>
    %82 = arith.truncf %81 : vector<8x32xf32> to vector<8x32xbf16>
    %c0_39 = arith.constant 0 : index
    %c0_40 = arith.constant 0 : index
    %83 = vector.load %arg15[%c0_39, %c0_40] : memref<32x64xbf16, #tpu.memory_space<vmem>>, vector<32x64xbf16>
    %cst_41 = arith.constant dense<0.000000e+00> : vector<8x64xf32>
    %84 = tpu.matmul %82, %83, %cst_41 {dimension_numbers = #tpu.dot_dimension_numbers<[1], [0], [0], [1], [0, 0, 1, 1], [], []>} : vector<8x32xbf16>, vector<32x64xbf16>, vector<8x64xf32> -> vector<8x64xf32>
    %c0_42 = arith.constant 0 : index
    %c0_43 = arith.constant 0 : index
    %85 = vector.load %arg16[%c0_42, %c0_43] : memref<1x64xf32, #tpu.memory_space<vmem>>, vector<1x64xf32>
    %86 = vector.broadcast %85 : vector<1x64xf32> to vector<8x64xf32>
    %87 = arith.addf %84, %86 : vector<8x64xf32>
    %88 = arith.truncf %80 : vector<8x32xf32> to vector<8x32xbf16>
    %c0_44 = arith.constant 0 : index
    %c0_45 = arith.constant 0 : index
    %89 = vector.load %arg17[%c0_44, %c0_45] : memref<32x32xbf16, #tpu.memory_space<vmem>>, vector<32x32xbf16>
    %cst_46 = arith.constant dense<0.000000e+00> : vector<8x32xf32>
    %90 = tpu.matmul %88, %89, %cst_46 {dimension_numbers = #tpu.dot_dimension_numbers<[1], [0], [0], [1], [0, 0, 1, 1], [], []>} : vector<8x32xbf16>, vector<32x32xbf16>, vector<8x32xf32> -> vector<8x32xf32>
    %c0_47 = arith.constant 0 : index
    %c0_48 = arith.constant 0 : index
    %91 = vector.load %arg18[%c0_47, %c0_48] : memref<1x32xf32, #tpu.memory_space<vmem>>, vector<1x32xf32>
    %92 = vector.broadcast %91 : vector<1x32xf32> to vector<8x32xf32>
    %93 = arith.addf %90, %92 : vector<8x32xf32>
    %94 = vector.extract_strided_slice %87 {offsets = [0, 0], sizes = [8, 32], strides = [1, 1]} : vector<8x64xf32> to vector<8x32xf32>
    %95 = vector.extract_strided_slice %87 {offsets = [0, 32], sizes = [8, 32], strides = [1, 1]} : vector<8x64xf32> to vector<8x32xf32>
    %c0_49 = arith.constant 0 : index
    %c0_50 = arith.constant 0 : index
    %96 = vector.load %arg19[%c0_49, %c0_50] : memref<32x32xbf16, #tpu.memory_space<vmem>>, vector<32x32xbf16>
    %c0_51 = arith.constant 0 : index
    %c0_52 = arith.constant 0 : index
    %97 = vector.load %arg20[%c0_51, %c0_52] : memref<1x32xf32, #tpu.memory_space<vmem>>, vector<1x32xf32>
    %cst_53 = arith.constant 0.353553385 : f32
    %98 = vector.broadcast %cst_53 : f32 to vector<8x32xf32>
    %99 = arith.mulf %94, %98 : vector<8x32xf32>
    %100 = vector.shape_cast %99 : vector<8x32xf32> to vector<8x4x8xf32>
    %101 = tpu.transpose %100, [1, 0, 2] : vector<8x4x8xf32> -> vector<4x8x8xf32>
    %102 = vector.shape_cast %95 : vector<8x32xf32> to vector<8x4x8xf32>
    %103 = tpu.transpose %102, [1, 0, 2] : vector<8x4x8xf32> -> vector<4x8x8xf32>
    %104 = vector.shape_cast %93 : vector<8x32xf32> to vector<8x4x8xf32>
    %105 = tpu.transpose %104, [1, 0, 2] : vector<8x4x8xf32> -> vector<4x8x8xf32>
    %106 = arith.truncf %101 : vector<4x8x8xf32> to vector<4x8x8xbf16>
    %107 = arith.truncf %103 : vector<4x8x8xf32> to vector<4x8x8xbf16>
    "tpu.trace_start"() <{level = 10 : i32, message = "hqd,hkd->hqk"}> : () -> ()
    %cst_54 = arith.constant dense<0.000000e+00> : vector<4x8x8xf32>
    %108 = tpu.matmul %106, %107, %cst_54 {dimension_numbers = #tpu.dot_dimension_numbers<[2], [2], [1], [1], [0, 0, 0, 1, 1, 1], [0], [0]>} : vector<4x8x8xbf16>, vector<4x8x8xbf16>, vector<4x8x8xf32> -> vector<4x8x8xf32>
    "tpu.trace_stop"() : () -> ()
    %cst_55 = arith.constant dense<0xFF800000> : vector<4x8xf32>
    %109 = vector.multi_reduction <maximumf>, %108, %cst_55 [2] : vector<4x8x8xf32> to vector<4x8xf32>
    %110 = vector.shape_cast %109 : vector<4x8xf32> to vector<4x8x1xf32>
    %111 = vector.broadcast %110 : vector<4x8x1xf32> to vector<4x8x8xf32>
    %112 = arith.subf %108, %111 : vector<4x8x8xf32>
    %113 = math.exp %112 : vector<4x8x8xf32>
    %cst_56 = arith.constant dense<0.000000e+00> : vector<4x8xf32>
    %114 = vector.multi_reduction <add>, %113, %cst_56 [2] : vector<4x8x8xf32> to vector<4x8xf32>
    %115 = vector.shape_cast %114 : vector<4x8xf32> to vector<4x8x1xf32>
    %116 = tpu.reciprocal %115 {approx = true} : vector<4x8x1xf32> -> vector<4x8x1xf32>
    %117 = vector.broadcast %116 : vector<4x8x1xf32> to vector<4x8x8xf32>
    %118 = arith.mulf %113, %117 : vector<4x8x8xf32>
    %119 = arith.truncf %118 : vector<4x8x8xf32> to vector<4x8x8xbf16>
    %120 = arith.truncf %105 : vector<4x8x8xf32> to vector<4x8x8xbf16>
    "tpu.trace_start"() <{level = 10 : i32, message = "hqk,hkd->hqd"}> : () -> ()
    %cst_57 = arith.constant dense<0.000000e+00> : vector<4x8x8xf32>
    %121 = tpu.matmul %119, %120, %cst_57 {dimension_numbers = #tpu.dot_dimension_numbers<[2], [1], [1], [2], [0, 0, 0, 1, 1, 2], [0], [0]>} : vector<4x8x8xbf16>, vector<4x8x8xbf16>, vector<4x8x8xf32> -> vector<4x8x8xf32>
    "tpu.trace_stop"() : () -> ()
    %122 = tpu.transpose %121, [1, 0, 2] : vector<4x8x8xf32> -> vector<8x4x8xf32>
    %123 = vector.shape_cast %122 : vector<8x4x8xf32> to vector<8x32xf32>
    %124 = arith.truncf %123 : vector<8x32xf32> to vector<8x32xbf16>
    %cst_58 = arith.constant dense<0.000000e+00> : vector<8x32xf32>
    %125 = tpu.matmul %124, %96, %cst_58 {dimension_numbers = #tpu.dot_dimension_numbers<[1], [0], [0], [1], [0, 0, 1, 1], [], []>} : vector<8x32xbf16>, vector<32x32xbf16>, vector<8x32xf32> -> vector<8x32xf32>
    %126 = vector.broadcast %97 : vector<1x32xf32> to vector<8x32xf32>
    %127 = arith.addf %125, %126 : vector<8x32xf32>
    %128 = arith.addf %80, %127 : vector<8x32xf32>
    %c0_59 = arith.constant 0 : index
    %c0_60 = arith.constant 0 : index
    %129 = vector.load %arg21[%c0_59, %c0_60] : memref<1x32xf32, #tpu.memory_space<vmem>>, vector<1x32xf32>
    %c0_61 = arith.constant 0 : index
    %c0_62 = arith.constant 0 : index
    %130 = vector.load %arg22[%c0_61, %c0_62] : memref<1x32xf32, #tpu.memory_space<vmem>>, vector<1x32xf32>
    %cst_63 = arith.constant dense<0.000000e+00> : vector<8xf32>
    %131 = vector.multi_reduction <add>, %128, %cst_63 [1] : vector<8x32xf32> to vector<8xf32>
    %132 = vector.shape_cast %131 : vector<8xf32> to vector<8x1xf32>
    %cst_64 = arith.constant 3.200000e+01 : f32
    %133 = vector.broadcast %cst_64 : f32 to vector<8x1xf32>
    %134 = arith.divf %132, %133 : vector<8x1xf32>
    %135 = vector.broadcast %134 : vector<8x1xf32> to vector<8x32xf32>
    %136 = arith.subf %128, %135 : vector<8x32xf32>
    %137 = arith.mulf %136, %136 : vector<8x32xf32>
    %cst_65 = arith.constant dense<0.000000e+00> : vector<8xf32>
    %138 = vector.multi_reduction <add>, %137, %cst_65 [1] : vector<8x32xf32> to vector<8xf32>
    %139 = vector.shape_cast %138 : vector<8xf32> to vector<8x1xf32>
    %cst_66 = arith.constant 3.200000e+01 : f32
    %140 = vector.broadcast %cst_66 : f32 to vector<8x1xf32>
    %141 = arith.divf %139, %140 : vector<8x1xf32>
    %142 = vector.broadcast %134 : vector<8x1xf32> to vector<8x32xf32>
    %143 = arith.subf %128, %142 : vector<8x32xf32>
    %cst_67 = arith.constant 9.99999974E-6 : f32
    %144 = vector.broadcast %cst_67 : f32 to vector<8x1xf32>
    %145 = arith.addf %141, %144 : vector<8x1xf32>
    %146 = math.rsqrt %145 : vector<8x1xf32>
    %147 = vector.broadcast %146 : vector<8x1xf32> to vector<8x32xf32>
    %148 = arith.mulf %143, %147 : vector<8x32xf32>
    %149 = vector.broadcast %129 : vector<1x32xf32> to vector<8x32xf32>
    %150 = arith.mulf %148, %149 : vector<8x32xf32>
    %151 = vector.broadcast %130 : vector<1x32xf32> to vector<8x32xf32>
    %152 = arith.addf %150, %151 : vector<8x32xf32>
    %153 = arith.addf %152, %3 : vector<8x32xf32>
    %154 = arith.truncf %153 : vector<8x32xf32> to vector<8x32xbf16>
    %c0_68 = arith.constant 0 : index
    %c0_69 = arith.constant 0 : index
    %155 = vector.load %arg25[%c0_68, %c0_69] : memref<32x48xbf16, #tpu.memory_space<vmem>>, vector<32x48xbf16>
    %cst_70 = arith.constant dense<0.000000e+00> : vector<8x48xf32>
    %156 = tpu.matmul %154, %155, %cst_70 {dimension_numbers = #tpu.dot_dimension_numbers<[1], [0], [0], [1], [0, 0, 1, 1], [], []>} : vector<8x32xbf16>, vector<32x48xbf16>, vector<8x48xf32> -> vector<8x48xf32>
    %c0_71 = arith.constant 0 : index
    %c0_72 = arith.constant 0 : index
    %157 = vector.load %arg26[%c0_71, %c0_72] : memref<1x48xf32, #tpu.memory_space<vmem>>, vector<1x48xf32>
    %158 = vector.broadcast %157 : vector<1x48xf32> to vector<8x48xf32>
    %159 = arith.addf %156, %158 : vector<8x48xf32>
    %c0_73 = arith.constant 0 : index
    %c0_74 = arith.constant 0 : index
    %c0_75 = arith.constant 0 : index
    %160 = vector.load %arg5[%c0_73, %c0_74, %c0_75] : memref<1x128x32xbf16, #tpu.memory_space<vmem>>, vector<1x128x32xbf16>
    %161 = vector.shape_cast %160 : vector<1x128x32xbf16> to vector<128x32xbf16>
    %c0_76 = arith.constant 0 : index
    %c0_77 = arith.constant 0 : index
    %162 = vector.load %arg23[%c0_76, %c0_77] : memref<32x32xbf16, #tpu.memory_space<vmem>>, vector<32x32xbf16>
    %cst_78 = arith.constant dense<0.000000e+00> : vector<128x32xf32>
    %163 = tpu.matmul %161, %162, %cst_78 {dimension_numbers = #tpu.dot_dimension_numbers<[1], [0], [0], [1], [0, 0, 1, 1], [], []>} : vector<128x32xbf16>, vector<32x32xbf16>, vector<128x32xf32> -> vector<128x32xf32>
    %c0_79 = arith.constant 0 : index
    %c0_80 = arith.constant 0 : index
    %164 = vector.load %arg24[%c0_79, %c0_80] : memref<1x32xf32, #tpu.memory_space<vmem>>, vector<1x32xf32>
    %165 = vector.broadcast %164 : vector<1x32xf32> to vector<128x32xf32>
    %166 = arith.addf %163, %165 : vector<128x32xf32>
    %c0_81 = arith.constant 0 : index
    %c0_82 = arith.constant 0 : index
    %c0_83 = arith.constant 0 : index
    %167 = vector.load %arg6[%c0_81, %c0_82, %c0_83] : memref<1x128x1xf32, #tpu.memory_space<vmem>>, vector<1x128x1xf32>
    %168 = vector.shape_cast %167 : vector<1x128x1xf32> to vector<128x1xf32>
    %169 = vector.broadcast %168 : vector<128x1xf32> to vector<128x32xf32>
    %170 = arith.mulf %166, %169 : vector<128x32xf32>
    %c0_84 = arith.constant 0 : index
    %c0_85 = arith.constant 0 : index
    %c0_86 = arith.constant 0 : index
    %171 = vector.load %arg27[%c0_84, %c0_85, %c0_86] : memref<1x8x32xf32, #tpu.memory_space<vmem>>, vector<1x8x32xf32>
    %172 = vector.shape_cast %171 : vector<1x8x32xf32> to vector<8x32xf32>
    %173 = vector.shape_cast %152 : vector<8x32xf32> to vector<1x8x32xf32>
    tpu.vector_store %arg27[%c0_84, %c0_85, %c0_86], %173 {strides = array<i32>} : memref<1x8x32xf32, #tpu.memory_space<vmem>>, vector<1x8x32xf32>,
    %c0_87 = arith.constant 0 : index
    %c0_88 = arith.constant 0 : index
    %c0_89 = arith.constant 0 : index
    %174 = vector.load %arg28[%c0_87, %c0_88, %c0_89] : memref<1x8x48xf32, #tpu.memory_space<vmem>>, vector<1x8x48xf32>
    %175 = vector.shape_cast %174 : vector<1x8x48xf32> to vector<8x48xf32>
    %176 = vector.shape_cast %159 : vector<8x48xf32> to vector<1x8x48xf32>
    tpu.vector_store %arg28[%c0_87, %c0_88, %c0_89], %176 {strides = array<i32>} : memref<1x8x48xf32, #tpu.memory_space<vmem>>, vector<1x8x48xf32>,
    %177 = arith.truncf %170 : vector<128x32xf32> to vector<128x32xbf16>
    %c0_90 = arith.constant 0 : index
    %c0_91 = arith.constant 0 : index
    %c0_92 = arith.constant 0 : index
    %178 = vector.load %arg29[%c0_90, %c0_91, %c0_92] : memref<1x128x32xbf16, #tpu.memory_space<vmem>>, vector<1x128x32xbf16>
    %179 = vector.shape_cast %178 : vector<1x128x32xbf16> to vector<128x32xbf16>
    %180 = vector.shape_cast %177 : vector<128x32xbf16> to vector<1x128x32xbf16>
    tpu.vector_store %arg29[%c0_90, %c0_91, %c0_92], %180 {strides = array<i32>} : memref<1x128x32xbf16, #tpu.memory_space<vmem>>, vector<1x128x32xbf16>,
    return
  }
  func.func @transform_0(%arg0: i32) -> (i32, i32, i32) {
    %c0_i32 = arith.constant 0 : i32
    %c0_i32_0 = arith.constant 0 : i32
    %c0_i32_1 = arith.constant 0 : i32
    return %arg0, %c0_i32, %c0_i32_0 : i32, i32, i32
  }
  func.func @transform_1(%arg0: i32) -> (i32, i32, i32) {
    %c0_i32 = arith.constant 0 : i32
    %c0_i32_0 = arith.constant 0 : i32
    %c0_i32_1 = arith.constant 0 : i32
    return %arg0, %c0_i32, %c0_i32_0 : i32, i32, i32
  }
  func.func @transform_2(%arg0: i32) -> (i32, i32, i32) {
    %c0_i32 = arith.constant 0 : i32
    %c0_i32_0 = arith.constant 0 : i32
    %c0_i32_1 = arith.constant 0 : i32
    return %arg0, %c0_i32, %c0_i32_0 : i32, i32, i32
  }
  func.func @transform_3(%arg0: i32) -> (i32, i32, i32) {
    %c0_i32 = arith.constant 0 : i32
    %c0_i32_0 = arith.constant 0 : i32
    %c0_i32_1 = arith.constant 0 : i32
    return %arg0, %c0_i32, %c0_i32_0 : i32, i32, i32
  }
  func.func @transform_4(%arg0: i32) -> (i32, i32, i32) {
    %c0_i32 = arith.constant 0 : i32
    %c0_i32_0 = arith.constant 0 : i32
    %c0_i32_1 = arith.constant 0 : i32
    return %arg0, %c0_i32, %c0_i32_0 : i32, i32, i32
  }
  func.func @transform_5(%arg0: i32) -> (i32, i32, i32) {
    %c0_i32 = arith.constant 0 : i32
    %c0_i32_0 = arith.constant 0 : i32
    %c0_i32_1 = arith.constant 0 : i32
    return %arg0, %c0_i32, %c0_i32_0 : i32, i32, i32
  }
  func.func @transform_6(%arg0: i32) -> (i32, i32) {
    %c0_i32 = arith.constant 0 : i32
    %c0_i32_0 = arith.constant 0 : i32
    %c0_i32_1 = arith.constant 0 : i32
    return %c0_i32, %c0_i32_0 : i32, i32
  }
  func.func @transform_7(%arg0: i32) -> (i32, i32) {
    %c0_i32 = arith.constant 0 : i32
    %c0_i32_0 = arith.constant 0 : i32
    %c0_i32_1 = arith.constant 0 : i32
    return %c0_i32, %c0_i32_0 : i32, i32
  }
  func.func @transform_8(%arg0: i32) -> (i32, i32) {
    %c0_i32 = arith.constant 0 : i32
    %c0_i32_0 = arith.constant 0 : i32
    %c0_i32_1 = arith.constant 0 : i32
    return %c0_i32, %c0_i32_0 : i32, i32
  }
  func.func @transform_9(%arg0: i32) -> (i32, i32) {
    %c0_i32 = arith.constant 0 : i32
    %c0_i32_0 = arith.constant 0 : i32
    %c0_i32_1 = arith.constant 0 : i32
    return %c0_i32, %c0_i32_0 : i32, i32
  }
  func.func @transform_10(%arg0: i32) -> (i32, i32) {
    %c0_i32 = arith.constant 0 : i32
    %c0_i32_0 = arith.constant 0 : i32
    %c0_i32_1 = arith.constant 0 : i32
    return %c0_i32, %c0_i32_0 : i32, i32
  }
  func.func @transform_11(%arg0: i32) -> (i32, i32) {
    %c0_i32 = arith.constant 0 : i32
    %c0_i32_0 = arith.constant 0 : i32
    %c0_i32_1 = arith.constant 0 : i32
    return %c0_i32, %c0_i32_0 : i32, i32
  }
  func.func @transform_12(%arg0: i32) -> (i32, i32) {
    %c0_i32 = arith.constant 0 : i32
    %c0_i32_0 = arith.constant 0 : i32
    %c0_i32_1 = arith.constant 0 : i32
    return %c0_i32, %c0_i32_0 : i32, i32
  }
  func.func @transform_13(%arg0: i32) -> (i32, i32) {
    %c0_i32 = arith.constant 0 : i32
    %c0_i32_0 = arith.constant 0 : i32
    %c0_i32_1 = arith.constant 0 : i32
    return %c0_i32, %c0_i32_0 : i32, i32
  }
  func.func @transform_14(%arg0: i32) -> (i32, i32) {
    %c0_i32 = arith.constant 0 : i32
    %c0_i32_0 = arith.constant 0 : i32
    %c0_i32_1 = arith.constant 0 : i32
    return %c0_i32, %c0_i32_0 : i32, i32
  }
  func.func @transform_15(%arg0: i32) -> (i32, i32) {
    %c0_i32 = arith.constant 0 : i32
    %c0_i32_0 = arith.constant 0 : i32
    %c0_i32_1 = arith.constant 0 : i32
    return %c0_i32, %c0_i32_0 : i32, i32
  }
  func.func @transform_16(%arg0: i32) -> (i32, i32) {
    %c0_i32 = arith.constant 0 : i32
    %c0_i32_0 = arith.constant 0 : i32
    %c0_i32_1 = arith.constant 0 : i32
    return %c0_i32, %c0_i32_0 : i32, i32
  }
  func.func @transform_17(%arg0: i32) -> (i32, i32) {
    %c0_i32 = arith.constant 0 : i32
    %c0_i32_0 = arith.constant 0 : i32
    %c0_i32_1 = arith.constant 0 : i32
    return %c0_i32, %c0_i32_0 : i32, i32
  }
  func.func @transform_18(%arg0: i32) -> (i32, i32) {
    %c0_i32 = arith.constant 0 : i32
    %c0_i32_0 = arith.constant 0 : i32
    %c0_i32_1 = arith.constant 0 : i32
    return %c0_i32, %c0_i32_0 : i32, i32
  }
  func.func @transform_19(%arg0: i32) -> (i32, i32) {
    %c0_i32 = arith.constant 0 : i32
    %c0_i32_0 = arith.constant 0 : i32
    %c0_i32_1 = arith.constant 0 : i32
    return %c0_i32, %c0_i32_0 : i32, i32
  }
  func.func @transform_20(%arg0: i32) -> (i32, i32) {
    %c0_i32 = arith.constant 0 : i32
    %c0_i32_0 = arith.constant 0 : i32
    %c0_i32_1 = arith.constant 0 : i32
    return %c0_i32, %c0_i32_0 : i32, i32
  }
  func.func @transform_21(%arg0: i32) -> (i32, i32) {
    %c0_i32 = arith.constant 0 : i32
    %c0_i32_0 = arith.constant 0 : i32
    %c0_i32_1 = arith.constant 0 : i32
    return %c0_i32, %c0_i32_0 : i32, i32
  }
  func.func @transform_22(%arg0: i32) -> (i32, i32) {
    %c0_i32 = arith.constant 0 : i32
    %c0_i32_0 = arith.constant 0 : i32
    %c0_i32_1 = arith.constant 0 : i32
    return %c0_i32, %c0_i32_0 : i32, i32
  }
  func.func @transform_23(%arg0: i32) -> (i32, i32) {
    %c0_i32 = arith.constant 0 : i32
    %c0_i32_0 = arith.constant 0 : i32
    %c0_i32_1 = arith.constant 0 : i32
    return %c0_i32, %c0_i32_0 : i32, i32
  }
  func.func @transform_24(%arg0: i32) -> (i32, i32) {
    %c0_i32 = arith.constant 0 : i32
    %c0_i32_0 = arith.constant 0 : i32
    %c0_i32_1 = arith.constant 0 : i32
    return %c0_i32, %c0_i32_0 : i32, i32
  }
  func.func @transform_25(%arg0: i32) -> (i32, i32) {
    %c0_i32 = arith.constant 0 : i32
    %c0_i32_0 = arith.constant 0 : i32
    %c0_i32_1 = arith.constant 0 : i32
    return %c0_i32, %c0_i32_0 : i32, i32
  }
  func.func @transform_26(%arg0: i32) -> (i32, i32, i32) {
    %c0_i32 = arith.constant 0 : i32
    %c0_i32_0 = arith.constant 0 : i32
    %c0_i32_1 = arith.constant 0 : i32
    return %arg0, %c0_i32, %c0_i32_0 : i32, i32, i32
  }
  func.func @transform_27(%arg0: i32) -> (i32, i32, i32) {
    %c0_i32 = arith.constant 0 : i32
    %c0_i32_0 = arith.constant 0 : i32
    %c0_i32_1 = arith.constant 0 : i32
    return %arg0, %c0_i32, %c0_i32_0 : i32, i32, i32
  }
  func.func @transform_28(%arg0: i32) -> (i32, i32, i32) {
    %c0_i32 = arith.constant 0 : i32
    %c0_i32_0 = arith.constant 0 : i32
    %c0_i32_1 = arith.constant 0 : i32
    return %arg0, %c0_i32, %c0_i32_0 : i32, i32, i32
  }
}

module attributes {stable_mosaic.version = 11 : i64} {
  func.func @_stage2_kernel(%arg0: i32, %arg1: memref<1x8x32xf32, #tpu.memory_space<vmem>>, %arg2: memref<1x4x8x128xbf16, #tpu.memory_space<vmem>>, %arg3: memref<1x128x32xbf16, #tpu.memory_space<vmem>>, %arg4: memref<32x32xbf16, #tpu.memory_space<vmem>>, %arg5: memref<1x32xf32, #tpu.memory_space<vmem>>, %arg6: memref<1x32xf32, #tpu.memory_space<vmem>>, %arg7: memref<1x32xf32, #tpu.memory_space<vmem>>, %arg8: memref<32x128xbf16, #tpu.memory_space<vmem>>, %arg9: memref<1x128xf32, #tpu.memory_space<vmem>>, %arg10: memref<128x32xbf16, #tpu.memory_space<vmem>>, %arg11: memref<1x32xf32, #tpu.memory_space<vmem>>, %arg12: memref<1x32xf32, #tpu.memory_space<vmem>>, %arg13: memref<1x32xf32, #tpu.memory_space<vmem>>, %arg14: memref<1x8x32xf32, #tpu.memory_space<vmem>>) attributes {dimension_semantics = [#tpu.dimension_semantics<parallel>], iteration_bounds = array<i64: 2>, scalar_prefetch = 0 : i64, scratch_operands = 0 : i64, tpu.core_type = #tpu.core_type<tc>, window_params = [{transform_indices = @transform_0, window_bounds = array<i64: 1, 8, 32>}, {transform_indices = @transform_1, window_bounds = array<i64: 1, 4, 8, 128>}, {transform_indices = @transform_2, window_bounds = array<i64: 1, 128, 32>}, {pipeline_mode = #tpu.pipeline_mode<synchronous>, transform_indices = @transform_3, window_bounds = array<i64: 32, 32>}, {pipeline_mode = #tpu.pipeline_mode<synchronous>, transform_indices = @transform_4, window_bounds = array<i64: 1, 32>}, {pipeline_mode = #tpu.pipeline_mode<synchronous>, transform_indices = @transform_5, window_bounds = array<i64: 1, 32>}, {pipeline_mode = #tpu.pipeline_mode<synchronous>, transform_indices = @transform_6, window_bounds = array<i64: 1, 32>}, {pipeline_mode = #tpu.pipeline_mode<synchronous>, transform_indices = @transform_7, window_bounds = array<i64: 32, 128>}, {pipeline_mode = #tpu.pipeline_mode<synchronous>, transform_indices = @transform_8, window_bounds = array<i64: 1, 128>}, {pipeline_mode = #tpu.pipeline_mode<synchronous>, transform_indices = @transform_9, window_bounds = array<i64: 128, 32>}, {pipeline_mode = #tpu.pipeline_mode<synchronous>, transform_indices = @transform_10, window_bounds = array<i64: 1, 32>}, {pipeline_mode = #tpu.pipeline_mode<synchronous>, transform_indices = @transform_11, window_bounds = array<i64: 1, 32>}, {pipeline_mode = #tpu.pipeline_mode<synchronous>, transform_indices = @transform_12, window_bounds = array<i64: 1, 32>}, {transform_indices = @transform_13, window_bounds = array<i64: 1, 8, 32>}]} {
    %c0 = arith.constant 0 : index
    %c0_0 = arith.constant 0 : index
    %c0_1 = arith.constant 0 : index
    %0 = vector.load %arg1[%c0, %c0_0, %c0_1] : memref<1x8x32xf32, #tpu.memory_space<vmem>>, vector<1x8x32xf32>
    %1 = vector.shape_cast %0 : vector<1x8x32xf32> to vector<8x32xf32>
    %c0_2 = arith.constant 0 : index
    %c0_3 = arith.constant 0 : index
    %c0_4 = arith.constant 0 : index
    %c0_5 = arith.constant 0 : index
    %2 = vector.load %arg2[%c0_2, %c0_3, %c0_4, %c0_5] : memref<1x4x8x128xbf16, #tpu.memory_space<vmem>>, vector<1x4x8x128xbf16>
    %3 = vector.shape_cast %2 : vector<1x4x8x128xbf16> to vector<4x8x128xbf16>
    %c0_6 = arith.constant 0 : index
    %c0_7 = arith.constant 0 : index
    %c0_8 = arith.constant 0 : index
    %4 = vector.load %arg3[%c0_6, %c0_7, %c0_8] : memref<1x128x32xbf16, #tpu.memory_space<vmem>>, vector<1x128x32xbf16>
    %5 = vector.shape_cast %4 : vector<1x128x32xbf16> to vector<128x32xbf16>
    %6 = vector.shape_cast %5 : vector<128x32xbf16> to vector<128x4x8xbf16>
    %7 = tpu.transpose %6, [1, 0, 2] : vector<128x4x8xbf16> -> vector<4x128x8xbf16>
    "tpu.trace_start"() <{level = 10 : i32, message = "hqi,hid->hqd"}> : () -> ()
    %cst = arith.constant dense<0.000000e+00> : vector<4x8x8xf32>
    %8 = tpu.matmul %3, %7, %cst {dimension_numbers = #tpu.dot_dimension_numbers<[2], [1], [1], [2], [0, 0, 0, 1, 1, 2], [0], [0]>} : vector<4x8x128xbf16>, vector<4x128x8xbf16>, vector<4x8x8xf32> -> vector<4x8x8xf32>
    "tpu.trace_stop"() : () -> ()
    %9 = tpu.transpose %8, [1, 0, 2] : vector<4x8x8xf32> -> vector<8x4x8xf32>
    %10 = vector.shape_cast %9 : vector<8x4x8xf32> to vector<8x32xf32>
    %11 = arith.truncf %10 : vector<8x32xf32> to vector<8x32xbf16>
    %c0_9 = arith.constant 0 : index
    %c0_10 = arith.constant 0 : index
    %12 = vector.load %arg4[%c0_9, %c0_10] : memref<32x32xbf16, #tpu.memory_space<vmem>>, vector<32x32xbf16>
    %cst_11 = arith.constant dense<0.000000e+00> : vector<8x32xf32>
    %13 = tpu.matmul %11, %12, %cst_11 {dimension_numbers = #tpu.dot_dimension_numbers<[1], [0], [0], [1], [0, 0, 1, 1], [], []>} : vector<8x32xbf16>, vector<32x32xbf16>, vector<8x32xf32> -> vector<8x32xf32>
    %c0_12 = arith.constant 0 : index
    %c0_13 = arith.constant 0 : index
    %14 = vector.load %arg5[%c0_12, %c0_13] : memref<1x32xf32, #tpu.memory_space<vmem>>, vector<1x32xf32>
    %15 = vector.broadcast %14 : vector<1x32xf32> to vector<8x32xf32>
    %16 = arith.addf %13, %15 : vector<8x32xf32>
    %17 = arith.addf %1, %16 : vector<8x32xf32>
    %c0_14 = arith.constant 0 : index
    %c0_15 = arith.constant 0 : index
    %18 = vector.load %arg6[%c0_14, %c0_15] : memref<1x32xf32, #tpu.memory_space<vmem>>, vector<1x32xf32>
    %c0_16 = arith.constant 0 : index
    %c0_17 = arith.constant 0 : index
    %19 = vector.load %arg7[%c0_16, %c0_17] : memref<1x32xf32, #tpu.memory_space<vmem>>, vector<1x32xf32>
    %cst_18 = arith.constant dense<0.000000e+00> : vector<8xf32>
    %20 = vector.multi_reduction <add>, %17, %cst_18 [1] : vector<8x32xf32> to vector<8xf32>
    %21 = vector.shape_cast %20 : vector<8xf32> to vector<8x1xf32>
    %cst_19 = arith.constant 3.200000e+01 : f32
    %22 = vector.broadcast %cst_19 : f32 to vector<8x1xf32>
    %23 = arith.divf %21, %22 : vector<8x1xf32>
    %24 = vector.broadcast %23 : vector<8x1xf32> to vector<8x32xf32>
    %25 = arith.subf %17, %24 : vector<8x32xf32>
    %26 = arith.mulf %25, %25 : vector<8x32xf32>
    %cst_20 = arith.constant dense<0.000000e+00> : vector<8xf32>
    %27 = vector.multi_reduction <add>, %26, %cst_20 [1] : vector<8x32xf32> to vector<8xf32>
    %28 = vector.shape_cast %27 : vector<8xf32> to vector<8x1xf32>
    %cst_21 = arith.constant 3.200000e+01 : f32
    %29 = vector.broadcast %cst_21 : f32 to vector<8x1xf32>
    %30 = arith.divf %28, %29 : vector<8x1xf32>
    %31 = vector.broadcast %23 : vector<8x1xf32> to vector<8x32xf32>
    %32 = arith.subf %17, %31 : vector<8x32xf32>
    %cst_22 = arith.constant 9.99999974E-6 : f32
    %33 = vector.broadcast %cst_22 : f32 to vector<8x1xf32>
    %34 = arith.addf %30, %33 : vector<8x1xf32>
    %35 = math.rsqrt %34 : vector<8x1xf32>
    %36 = vector.broadcast %35 : vector<8x1xf32> to vector<8x32xf32>
    %37 = arith.mulf %32, %36 : vector<8x32xf32>
    %38 = vector.broadcast %18 : vector<1x32xf32> to vector<8x32xf32>
    %39 = arith.mulf %37, %38 : vector<8x32xf32>
    %40 = vector.broadcast %19 : vector<1x32xf32> to vector<8x32xf32>
    %41 = arith.addf %39, %40 : vector<8x32xf32>
    %42 = arith.truncf %41 : vector<8x32xf32> to vector<8x32xbf16>
    %c0_23 = arith.constant 0 : index
    %c0_24 = arith.constant 0 : index
    %43 = vector.load %arg8[%c0_23, %c0_24] : memref<32x128xbf16, #tpu.memory_space<vmem>>, vector<32x128xbf16>
    %cst_25 = arith.constant dense<0.000000e+00> : vector<8x128xf32>
    %44 = tpu.matmul %42, %43, %cst_25 {dimension_numbers = #tpu.dot_dimension_numbers<[1], [0], [0], [1], [0, 0, 1, 1], [], []>} : vector<8x32xbf16>, vector<32x128xbf16>, vector<8x128xf32> -> vector<8x128xf32>
    %c0_26 = arith.constant 0 : index
    %c0_27 = arith.constant 0 : index
    %45 = vector.load %arg9[%c0_26, %c0_27] : memref<1x128xf32, #tpu.memory_space<vmem>>, vector<1x128xf32>
    %46 = vector.broadcast %45 : vector<1x128xf32> to vector<8x128xf32>
    %47 = arith.addf %44, %46 : vector<8x128xf32>
    %cst_28 = arith.constant 0.000000e+00 : f32
    %48 = vector.broadcast %cst_28 : f32 to vector<8x128xf32>
    %49 = arith.maximumf %47, %48 : vector<8x128xf32>
    %50 = arith.truncf %49 : vector<8x128xf32> to vector<8x128xbf16>
    %c0_29 = arith.constant 0 : index
    %c0_30 = arith.constant 0 : index
    %51 = vector.load %arg10[%c0_29, %c0_30] : memref<128x32xbf16, #tpu.memory_space<vmem>>, vector<128x32xbf16>
    %cst_31 = arith.constant dense<0.000000e+00> : vector<8x32xf32>
    %52 = tpu.matmul %50, %51, %cst_31 {dimension_numbers = #tpu.dot_dimension_numbers<[1], [0], [0], [1], [0, 0, 1, 1], [], []>} : vector<8x128xbf16>, vector<128x32xbf16>, vector<8x32xf32> -> vector<8x32xf32>
    %c0_32 = arith.constant 0 : index
    %c0_33 = arith.constant 0 : index
    %53 = vector.load %arg11[%c0_32, %c0_33] : memref<1x32xf32, #tpu.memory_space<vmem>>, vector<1x32xf32>
    %54 = vector.broadcast %53 : vector<1x32xf32> to vector<8x32xf32>
    %55 = arith.addf %52, %54 : vector<8x32xf32>
    %56 = arith.addf %41, %55 : vector<8x32xf32>
    %c0_34 = arith.constant 0 : index
    %c0_35 = arith.constant 0 : index
    %57 = vector.load %arg12[%c0_34, %c0_35] : memref<1x32xf32, #tpu.memory_space<vmem>>, vector<1x32xf32>
    %c0_36 = arith.constant 0 : index
    %c0_37 = arith.constant 0 : index
    %58 = vector.load %arg13[%c0_36, %c0_37] : memref<1x32xf32, #tpu.memory_space<vmem>>, vector<1x32xf32>
    %cst_38 = arith.constant dense<0.000000e+00> : vector<8xf32>
    %59 = vector.multi_reduction <add>, %56, %cst_38 [1] : vector<8x32xf32> to vector<8xf32>
    %60 = vector.shape_cast %59 : vector<8xf32> to vector<8x1xf32>
    %cst_39 = arith.constant 3.200000e+01 : f32
    %61 = vector.broadcast %cst_39 : f32 to vector<8x1xf32>
    %62 = arith.divf %60, %61 : vector<8x1xf32>
    %63 = vector.broadcast %62 : vector<8x1xf32> to vector<8x32xf32>
    %64 = arith.subf %56, %63 : vector<8x32xf32>
    %65 = arith.mulf %64, %64 : vector<8x32xf32>
    %cst_40 = arith.constant dense<0.000000e+00> : vector<8xf32>
    %66 = vector.multi_reduction <add>, %65, %cst_40 [1] : vector<8x32xf32> to vector<8xf32>
    %67 = vector.shape_cast %66 : vector<8xf32> to vector<8x1xf32>
    %cst_41 = arith.constant 3.200000e+01 : f32
    %68 = vector.broadcast %cst_41 : f32 to vector<8x1xf32>
    %69 = arith.divf %67, %68 : vector<8x1xf32>
    %70 = vector.broadcast %62 : vector<8x1xf32> to vector<8x32xf32>
    %71 = arith.subf %56, %70 : vector<8x32xf32>
    %cst_42 = arith.constant 9.99999974E-6 : f32
    %72 = vector.broadcast %cst_42 : f32 to vector<8x1xf32>
    %73 = arith.addf %69, %72 : vector<8x1xf32>
    %74 = math.rsqrt %73 : vector<8x1xf32>
    %75 = vector.broadcast %74 : vector<8x1xf32> to vector<8x32xf32>
    %76 = arith.mulf %71, %75 : vector<8x32xf32>
    %77 = vector.broadcast %57 : vector<1x32xf32> to vector<8x32xf32>
    %78 = arith.mulf %76, %77 : vector<8x32xf32>
    %79 = vector.broadcast %58 : vector<1x32xf32> to vector<8x32xf32>
    %80 = arith.addf %78, %79 : vector<8x32xf32>
    %c0_43 = arith.constant 0 : index
    %c0_44 = arith.constant 0 : index
    %c0_45 = arith.constant 0 : index
    %81 = vector.load %arg14[%c0_43, %c0_44, %c0_45] : memref<1x8x32xf32, #tpu.memory_space<vmem>>, vector<1x8x32xf32>
    %82 = vector.shape_cast %81 : vector<1x8x32xf32> to vector<8x32xf32>
    %83 = vector.shape_cast %80 : vector<8x32xf32> to vector<1x8x32xf32>
    tpu.vector_store %arg14[%c0_43, %c0_44, %c0_45], %83 {strides = array<i32>} : memref<1x8x32xf32, #tpu.memory_space<vmem>>, vector<1x8x32xf32>,
    return
  }
  func.func @transform_0(%arg0: i32) -> (i32, i32, i32) {
    %c0_i32 = arith.constant 0 : i32
    %c0_i32_0 = arith.constant 0 : i32
    %c0_i32_1 = arith.constant 0 : i32
    return %arg0, %c0_i32, %c0_i32_0 : i32, i32, i32
  }
  func.func @transform_1(%arg0: i32) -> (i32, i32, i32, i32) {
    %c0_i32 = arith.constant 0 : i32
    %c0_i32_0 = arith.constant 0 : i32
    %c0_i32_1 = arith.constant 0 : i32
    %c0_i32_2 = arith.constant 0 : i32
    return %arg0, %c0_i32, %c0_i32_0, %c0_i32_1 : i32, i32, i32, i32
  }
  func.func @transform_2(%arg0: i32) -> (i32, i32, i32) {
    %c0_i32 = arith.constant 0 : i32
    %c0_i32_0 = arith.constant 0 : i32
    %c0_i32_1 = arith.constant 0 : i32
    return %arg0, %c0_i32, %c0_i32_0 : i32, i32, i32
  }
  func.func @transform_3(%arg0: i32) -> (i32, i32) {
    %c0_i32 = arith.constant 0 : i32
    %c0_i32_0 = arith.constant 0 : i32
    %c0_i32_1 = arith.constant 0 : i32
    return %c0_i32, %c0_i32_0 : i32, i32
  }
  func.func @transform_4(%arg0: i32) -> (i32, i32) {
    %c0_i32 = arith.constant 0 : i32
    %c0_i32_0 = arith.constant 0 : i32
    %c0_i32_1 = arith.constant 0 : i32
    return %c0_i32, %c0_i32_0 : i32, i32
  }
  func.func @transform_5(%arg0: i32) -> (i32, i32) {
    %c0_i32 = arith.constant 0 : i32
    %c0_i32_0 = arith.constant 0 : i32
    %c0_i32_1 = arith.constant 0 : i32
    return %c0_i32, %c0_i32_0 : i32, i32
  }
  func.func @transform_6(%arg0: i32) -> (i32, i32) {
    %c0_i32 = arith.constant 0 : i32
    %c0_i32_0 = arith.constant 0 : i32
    %c0_i32_1 = arith.constant 0 : i32
    return %c0_i32, %c0_i32_0 : i32, i32
  }
  func.func @transform_7(%arg0: i32) -> (i32, i32) {
    %c0_i32 = arith.constant 0 : i32
    %c0_i32_0 = arith.constant 0 : i32
    %c0_i32_1 = arith.constant 0 : i32
    return %c0_i32, %c0_i32_0 : i32, i32
  }
  func.func @transform_8(%arg0: i32) -> (i32, i32) {
    %c0_i32 = arith.constant 0 : i32
    %c0_i32_0 = arith.constant 0 : i32
    %c0_i32_1 = arith.constant 0 : i32
    return %c0_i32, %c0_i32_0 : i32, i32
  }
  func.func @transform_9(%arg0: i32) -> (i32, i32) {
    %c0_i32 = arith.constant 0 : i32
    %c0_i32_0 = arith.constant 0 : i32
    %c0_i32_1 = arith.constant 0 : i32
    return %c0_i32, %c0_i32_0 : i32, i32
  }
  func.func @transform_10(%arg0: i32) -> (i32, i32) {
    %c0_i32 = arith.constant 0 : i32
    %c0_i32_0 = arith.constant 0 : i32
    %c0_i32_1 = arith.constant 0 : i32
    return %c0_i32, %c0_i32_0 : i32, i32
  }
  func.func @transform_11(%arg0: i32) -> (i32, i32) {
    %c0_i32 = arith.constant 0 : i32
    %c0_i32_0 = arith.constant 0 : i32
    %c0_i32_1 = arith.constant 0 : i32
    return %c0_i32, %c0_i32_0 : i32, i32
  }
  func.func @transform_12(%arg0: i32) -> (i32, i32) {
    %c0_i32 = arith.constant 0 : i32
    %c0_i32_0 = arith.constant 0 : i32
    %c0_i32_1 = arith.constant 0 : i32
    return %c0_i32, %c0_i32_0 : i32, i32
  }
  func.func @transform_13(%arg0: i32) -> (i32, i32, i32) {
    %c0_i32 = arith.constant 0 : i32
    %c0_i32_0 = arith.constant 0 : i32
    %c0_i32_1 = arith.constant 0 : i32
    return %arg0, %c0_i32, %c0_i32_0 : i32, i32, i32
  }
}

</mosaic_0001>

<llo_original>
// kernel: decoder_layer_forward.2
$region0: #{decoder_layer_forward.2}
  #allocation0 [shape = 'u32[]', space=smem, size = 0x4, offset = 0x4, fixed_abs, tag = 'smem constant byte address 0x4 - core index']
  #allocation1 [shape = 'u32[144,128]{1,0:T(1,128)}', space=vmem, size = 0x12000, scoped, tag = 'internal scratch']
  %s0 = inlined_call_operand.vmem [shape: f32[2,8,32], index: 0, kind: input, shape index: {}]
  %s1 = inlined_call_operand.vmem [shape: f32[2,8,32], index: 1, kind: input, shape index: {}]
  %s2 = inlined_call_operand.vmem [shape: bf16[2,8,32], index: 2, kind: input, shape index: {}]
  %s3 = inlined_call_operand.vmem [shape: f32[2,1,8], index: 3, kind: input, shape index: {}]
  %s4 = inlined_call_operand.vmem [shape: bf16[2,128,32], index: 4, kind: input, shape index: {}]
  %s5 = inlined_call_operand.vmem [shape: f32[2,128,1], index: 5, kind: input, shape index: {}]
  %s6 = inlined_call_operand.vmem [shape: bf16[32,32], index: 6, kind: input, shape index: {}]
  %s7 = inlined_call_operand.vmem [shape: f32[1,32], index: 7, kind: input, shape index: {}]
  %s8 = inlined_call_operand.vmem [shape: bf16[32,64], index: 8, kind: input, shape index: {}]
  %s9 = inlined_call_operand.vmem [shape: f32[1,64], index: 9, kind: input, shape index: {}]
  %s10 = inlined_call_operand.vmem [shape: bf16[32,32], index: 10, kind: input, shape index: {}]
  %s11 = inlined_call_operand.vmem [shape: f32[1,32], index: 11, kind: input, shape index: {}]
  %s12 = inlined_call_operand.vmem [shape: f32[1,32], index: 12, kind: input, shape index: {}]
  %s13 = inlined_call_operand.vmem [shape: f32[1,32], index: 13, kind: input, shape index: {}]
  %s14 = inlined_call_operand.vmem [shape: bf16[32,64], index: 14, kind: input, shape index: {}]
  %s15 = inlined_call_operand.vmem [shape: f32[1,64], index: 15, kind: input, shape index: {}]
  %s16 = inlined_call_operand.vmem [shape: bf16[32,32], index: 16, kind: input, shape index: {}]
  %s17 = inlined_call_operand.vmem [shape: f32[1,32], index: 17, kind: input, shape index: {}]
  %s18 = inlined_call_operand.vmem [shape: bf16[32,32], index: 18, kind: input, shape index: {}]
  %s19 = inlined_call_operand.vmem [shape: f32[1,32], index: 19, kind: input, shape index: {}]
  %s20 = inlined_call_operand.vmem [shape: f32[1,32], index: 20, kind: input, shape index: {}]
  %s21 = inlined_call_operand.vmem [shape: f32[1,32], index: 21, kind: input, shape index: {}]
  %s22 = inlined_call_operand.vmem [shape: bf16[32,32], index: 22, kind: input, shape index: {}]
  %s23 = inlined_call_operand.vmem [shape: f32[1,32], index: 23, kind: input, shape index: {}]
  %s24 = inlined_call_operand.vmem [shape: bf16[32,48], index: 24, kind: input, shape index: {}]
  %s25 = inlined_call_operand.vmem [shape: f32[1,48], index: 25, kind: input, shape index: {}]
  %s26 = inlined_call_operand.hbm [shape: f32[2,8,32], index: 26, kind: output, shape index: {0}]
  %s27 = inlined_call_operand.vmem [shape: f32[2,8,48], index: 27, kind: output, shape index: {1}]
  %s28 = inlined_call_operand.hbm [shape: bf16[2,128,32], index: 28, kind: output, shape index: {2}]
  %29 = xla_tuple %s26, %s27, %s28
  %s30 = sld [smem:[#allocation0]]
  $region153: #{decoder_layer_forward.2} parent=0
    _
  %s32 = ssub.s32 1, %s30
  %s33 = scalar_select 0, %s32, %s30
  $region1: #{decoder_layer_forward.2} parent=0
    #allocation2 [shape = 'u8[8192]{0}', space=vmem, size = 0x2000, scoped, tag = 'output window, operand 0']
    #allocation3 [shape = 's32[2]{0}', space=sflag, size = 0x8, scoped, tag = 'scoped memory for decoder_layer_forward.2']
    #allocation4 [shape = 'u8[65536]{0}', space=vmem, size = 0x10000, scoped, tag = 'output window, operand 2']
    #allocation5 [shape = 's32[2]{0}', space=sflag, size = 0x8, scoped, tag = 'scoped memory for decoder_layer_forward.2']
    %34 = vsyncpa [#allocation3], 0
    %s35 = scalar_lea.sflag [#allocation3], 1
    %36 = vsyncpa %s35, 0
    %37 = vsyncpa [#allocation5], 0
    %s38 = scalar_lea.sflag [#allocation5], 1
    %39 = vsyncpa %s38, 0
    loop: start=0, step=1, limit=4
    $region2: #{decoder_layer_forward.2} parent=1 // loop_pre_header
      _
    $region3: #{decoder_layer_forward.2} parent=1 // loop_header
      %s41 = sphi 0, %s45
      %p42 = scmp.ge.s32.totalorder %s41, 4
      %s51 = sphi 0, %s53
      %s54 = sphi 0, %s51
      %s55 = sphi 0, %s54
      %s71 = sphi 0, %s55
      %s77 = sphi 0, %s79
      %s80 = sphi 0, %s77
      %s81 = sphi 0, %s80
      %s97 = sphi 0, %s81
      %s103 = sphi 0, %s105
      %s106 = sphi 0, %s103
      %s107 = sphi 0, %s106
      %s123 = sphi 0, %s107
      %s129 = sphi 0, %s131
      %s132 = sphi 0, %s129
      %s133 = sphi 0, %s132
      %s149 = sphi 0, %s133
      %s155 = sphi 0, %s157
      %s158 = sphi 0, %s155
      %s159 = sphi 0, %s158
      %s175 = sphi 0, %s159
      %s181 = sphi 0, %s183
      %s184 = sphi 0, %s181
      %s185 = sphi 0, %s184
      %s201 = sphi 0, %s185
      %s205 = sphi 0, %s205
      %s207 = sphi 0, %s205
      %s208 = sphi 0, %s207
      %s222 = sphi 0, %s208
      %s226 = sphi 0, %s226
      %s228 = sphi 0, %s226
      %s229 = sphi 0, %s228
      %s243 = sphi 0, %s229
      %s247 = sphi 0, %s247
      %s249 = sphi 0, %s247
      %s250 = sphi 0, %s249
      %s264 = sphi 0, %s250
      %s268 = sphi 0, %s268
      %s270 = sphi 0, %s268
      %s271 = sphi 0, %s270
      %s285 = sphi 0, %s271
      %s289 = sphi 0, %s289
      %s291 = sphi 0, %s289
      %s292 = sphi 0, %s291
      %s306 = sphi 0, %s292
      %s310 = sphi 0, %s310
      %s312 = sphi 0, %s310
      %s313 = sphi 0, %s312
      %s327 = sphi 0, %s313
      %s331 = sphi 0, %s331
      %s333 = sphi 0, %s331
      %s334 = sphi 0, %s333
      %s348 = sphi 0, %s334
      %s352 = sphi 0, %s352
      %s354 = sphi 0, %s352
      %s355 = sphi 0, %s354
      %s369 = sphi 0, %s355
      %s373 = sphi 0, %s373
      %s375 = sphi 0, %s373
      %s376 = sphi 0, %s375
      %s390 = sphi 0, %s376
      %s394 = sphi 0, %s394
      %s396 = sphi 0, %s394
      %s397 = sphi 0, %s396
      %s411 = sphi 0, %s397
      %s415 = sphi 0, %s415
      %s417 = sphi 0, %s415
      %s418 = sphi 0, %s417
      %s432 = sphi 0, %s418
      %s436 = sphi 0, %s436
      %s438 = sphi 0, %s436
      %s439 = sphi 0, %s438
      %s453 = sphi 0, %s439
      %s457 = sphi 0, %s457
      %s459 = sphi 0, %s457
      %s460 = sphi 0, %s459
      %s474 = sphi 0, %s460
      %s478 = sphi 0, %s478
      %s480 = sphi 0, %s478
      %s481 = sphi 0, %s480
      %s495 = sphi 0, %s481
      %s499 = sphi 0, %s499
      %s501 = sphi 0, %s499
      %s502 = sphi 0, %s501
      %s516 = sphi 0, %s502
      %s520 = sphi 0, %s520
      %s522 = sphi 0, %s520
      %s523 = sphi 0, %s522
      %s537 = sphi 0, %s523
      %s541 = sphi 0, %s541
      %s543 = sphi 0, %s541
      %s544 = sphi 0, %s543
      %s558 = sphi 0, %s544
      %s562 = sphi 0, %s562
      %s564 = sphi 0, %s562
      %s565 = sphi 0, %s564
      %s579 = sphi 0, %s565
      %s583 = sphi 0, %s583
      %s585 = sphi 0, %s583
      %s586 = sphi 0, %s585
      %s600 = sphi 0, %s586
      %s604 = sphi 0, %s604
      %s606 = sphi 0, %s604
      %s607 = sphi 0, %s606
      %s621 = sphi 0, %s607
      %s627 = sphi 0, %s629
      %s630 = sphi 0, %s627
      %s631 = sphi 0, %s630
      %s647 = sphi 0, %s631
      %s653 = sphi 0, %s655
      %s656 = sphi 0, %s653
      %s657 = sphi 0, %s656
      %s673 = sphi 0, %s657
      %s679 = sphi 0, %s681
      %s682 = sphi 0, %s679
      %s683 = sphi 0, %s682
      %s699 = sphi 0, %s683
    $region4: #{decoder_layer_forward.2} parent=1 // loop_header_branch
      %44 = sbr.rel (%p42) target = $region8
    $region5: #{decoder_layer_forward.2} parent=1 // loop_body
      %s46 = ssub.s32 %s41, 1
      %s47 = ssub.s32 %s41, 2
      %s48 = sadd.s32 %s41, 1
      %s49 = ssub.s32 %s41, %s48
      %p50 = scmp.eq.s32.totalorder %s49, 0
      %s52 = sadd.s32 %s51, 1
      %s53 = scalar_select %p50, %s51, %s52
      %p56 = pneg %p50
      %p57 = scmp.eq.s32.totalorder %s41, 1
      %p58 = por %p56, %p57
      %p59 = scmp.ne.s32.totalorder %s51, %s54
      %p60 = scmp.eq.s32.totalorder %s41, 0
      %p61 = por %p59, %p60
      %p62 = scmp.ne.s32.totalorder %s51, %s54
      %p63 = scmp.eq.s32.totalorder %s46, 1
      %p64 = por %p62, %p63
      %p65 = scmp.ne.s32.totalorder %s54, %s55
      %p66 = scmp.eq.s32.totalorder %s46, 0
      %p67 = por %p65, %p66
      %p68 = scmp.ne.s32.totalorder %s54, %s55
      %p69 = scmp.eq.s32.totalorder %s47, 1
      %p70 = por %p68, %p69
      %p72 = scmp.ne.s32.totalorder %s55, %s71
      %p73 = scmp.eq.s32.totalorder %s47, 0
      %p74 = por %p72, %p73
      %s75 = ssub.s32 %s41, %s48
      %p76 = scmp.eq.s32.totalorder %s75, 0
      %s78 = sadd.s32 %s77, 1
      %s79 = scalar_select %p76, %s77, %s78
      %p82 = pneg %p76
      %p83 = scmp.eq.s32.totalorder %s41, 1
      %p84 = por %p82, %p83
      %p85 = scmp.ne.s32.totalorder %s77, %s80
      %p86 = scmp.eq.s32.totalorder %s41, 0
      %p87 = por %p85, %p86
      %p88 = scmp.ne.s32.totalorder %s77, %s80
      %p89 = scmp.eq.s32.totalorder %s46, 1
      %p90 = por %p88, %p89
      %p91 = scmp.ne.s32.totalorder %s80, %s81
      %p92 = scmp.eq.s32.totalorder %s46, 0
      %p93 = por %p91, %p92
      %p94 = scmp.ne.s32.totalorder %s80, %s81
      %p95 = scmp.eq.s32.totalorder %s47, 1
      %p96 = por %p94, %p95
      %p98 = scmp.ne.s32.totalorder %s81, %s97
      %p99 = scmp.eq.s32.totalorder %s47, 0
      %p100 = por %p98, %p99
      %s101 = ssub.s32 %s41, %s48
      %p102 = scmp.eq.s32.totalorder %s101, 0
      %s104 = sadd.s32 %s103, 1
      %s105 = scalar_select %p102, %s103, %s104
      %p108 = pneg %p102
      %p109 = scmp.eq.s32.totalorder %s41, 1
      %p110 = por %p108, %p109
      %p111 = scmp.ne.s32.totalorder %s103, %s106
      %p112 = scmp.eq.s32.totalorder %s41, 0
      %p113 = por %p111, %p112
      %p114 = scmp.ne.s32.totalorder %s103, %s106
      %p115 = scmp.eq.s32.totalorder %s46, 1
      %p116 = por %p114, %p115
      %p117 = scmp.ne.s32.totalorder %s106, %s107
      %p118 = scmp.eq.s32.totalorder %s46, 0
      %p119 = por %p117, %p118
      %p120 = scmp.ne.s32.totalorder %s106, %s107
      %p121 = scmp.eq.s32.totalorder %s47, 1
      %p122 = por %p120, %p121
      %p124 = scmp.ne.s32.totalorder %s107, %s123
      %p125 = scmp.eq.s32.totalorder %s47, 0
      %p126 = por %p124, %p125
      %s127 = ssub.s32 %s41, %s48
      %p128 = scmp.eq.s32.totalorder %s127, 0
      %s130 = sadd.s32 %s129, 1
      %s131 = scalar_select %p128, %s129, %s130
      %p134 = pneg %p128
      %p135 = scmp.eq.s32.totalorder %s41, 1
      %p136 = por %p134, %p135
      %p137 = scmp.ne.s32.totalorder %s129, %s132
      %p138 = scmp.eq.s32.totalorder %s41, 0
      %p139 = por %p137, %p138
      %p140 = scmp.ne.s32.totalorder %s129, %s132
      %p141 = scmp.eq.s32.totalorder %s46, 1
      %p142 = por %p140, %p141
      %p143 = scmp.ne.s32.totalorder %s132, %s133
      %p144 = scmp.eq.s32.totalorder %s46, 0
      %p145 = por %p143, %p144
      %p146 = scmp.ne.s32.totalorder %s132, %s133
      %p147 = scmp.eq.s32.totalorder %s47, 1
      %p148 = por %p146, %p147
      %p150 = scmp.ne.s32.totalorder %s133, %s149
      %p151 = scmp.eq.s32.totalorder %s47, 0
      %p152 = por %p150, %p151
      %s153 = ssub.s32 %s41, %s48
      %p154 = scmp.eq.s32.totalorder %s153, 0
      %s156 = sadd.s32 %s155, 1
      %s157 = scalar_select %p154, %s155, %s156
      %p160 = pneg %p154
      %p161 = scmp.eq.s32.totalorder %s41, 1
      %p162 = por %p160, %p161
      %p163 = scmp.ne.s32.totalorder %s155, %s158
      %p164 = scmp.eq.s32.totalorder %s41, 0
      %p165 = por %p163, %p164
      %p166 = scmp.ne.s32.totalorder %s155, %s158
      %p167 = scmp.eq.s32.totalorder %s46, 1
      %p168 = por %p166, %p167
      %p169 = scmp.ne.s32.totalorder %s158, %s159
      %p170 = scmp.eq.s32.totalorder %s46, 0
      %p171 = por %p169, %p170
      %p172 = scmp.ne.s32.totalorder %s158, %s159
      %p173 = scmp.eq.s32.totalorder %s47, 1
      %p174 = por %p172, %p173
      %p176 = scmp.ne.s32.totalorder %s159, %s175
      %p177 = scmp.eq.s32.totalorder %s47, 0
      %p178 = por %p176, %p177
      %s179 = ssub.s32 %s41, %s48
      %p180 = scmp.eq.s32.totalorder %s179, 0
      %s182 = sadd.s32 %s181, 1
      %s183 = scalar_select %p180, %s181, %s182
      %p186 = pneg %p180
      %p187 = scmp.eq.s32.totalorder %s41, 1
      %p188 = por %p186, %p187
      %p189 = scmp.ne.s32.totalorder %s181, %s184
      %p190 = scmp.eq.s32.totalorder %s41, 0
      %p191 = por %p189, %p190
      %p192 = scmp.ne.s32.totalorder %s181, %s184
      %p193 = scmp.eq.s32.totalorder %s46, 1
      %p194 = por %p192, %p193
      %p195 = scmp.ne.s32.totalorder %s184, %s185
      %p196 = scmp.eq.s32.totalorder %s46, 0
      %p197 = por %p195, %p196
      %p198 = scmp.ne.s32.totalorder %s184, %s185
      %p199 = scmp.eq.s32.totalorder %s47, 1
      %p200 = por %p198, %p199
      %p202 = scmp.ne.s32.totalorder %s185, %s201
      %p203 = scmp.eq.s32.totalorder %s47, 0
      %p204 = por %p202, %p203
      %s206 = sadd.s32 %s205, 1
      %p209 = scmp.eq.s32.totalorder %s41, 1
      %p210 = scmp.ne.s32.totalorder %s205, %s207
      %p211 = scmp.eq.s32.totalorder %s41, 0
      %p212 = por %p210, %p211
      %p213 = scmp.ne.s32.totalorder %s205, %s207
      %p214 = scmp.eq.s32.totalorder %s46, 1
      %p215 = por %p213, %p214
      %p216 = scmp.ne.s32.totalorder %s207, %s208
      %p217 = scmp.eq.s32.totalorder %s46, 0
      %p218 = por %p216, %p217
      %p219 = scmp.ne.s32.totalorder %s207, %s208
      %p220 = scmp.eq.s32.totalorder %s47, 1
      %p221 = por %p219, %p220
      %p223 = scmp.ne.s32.totalorder %s208, %s222
      %p224 = scmp.eq.s32.totalorder %s47, 0
      %p225 = por %p223, %p224
      %s227 = sadd.s32 %s226, 1
      %p230 = scmp.eq.s32.totalorder %s41, 1
      %p231 = scmp.ne.s32.totalorder %s226, %s228
      %p232 = scmp.eq.s32.totalorder %s41, 0
      %p233 = por %p231, %p232
      %p234 = scmp.ne.s32.totalorder %s226, %s228
      %p235 = scmp.eq.s32.totalorder %s46, 1
      %p236 = por %p234, %p235
      %p237 = scmp.ne.s32.totalorder %s228, %s229
      %p238 = scmp.eq.s32.totalorder %s46, 0
      %p239 = por %p237, %p238
      %p240 = scmp.ne.s32.totalorder %s228, %s229
      %p241 = scmp.eq.s32.totalorder %s47, 1
      %p242 = por %p240, %p241
      %p244 = scmp.ne.s32.totalorder %s229, %s243
      %p245 = scmp.eq.s32.totalorder %s47, 0
      %p246 = por %p244, %p245
      %s248 = sadd.s32 %s247, 1
      %p251 = scmp.eq.s32.totalorder %s41, 1
      %p252 = scmp.ne.s32.totalorder %s247, %s249
      %p253 = scmp.eq.s32.totalorder %s41, 0
      %p254 = por %p252, %p253
      %p255 = scmp.ne.s32.totalorder %s247, %s249
      %p256 = scmp.eq.s32.totalorder %s46, 1
      %p257 = por %p255, %p256
      %p258 = scmp.ne.s32.totalorder %s249, %s250
      %p259 = scmp.eq.s32.totalorder %s46, 0
      %p260 = por %p258, %p259
      %p261 = scmp.ne.s32.totalorder %s249, %s250
      %p262 = scmp.eq.s32.totalorder %s47, 1
      %p263 = por %p261, %p262
      %p265 = scmp.ne.s32.totalorder %s250, %s264
      %p266 = scmp.eq.s32.totalorder %s47, 0
      %p267 = por %p265, %p266
      %s269 = sadd.s32 %s268, 1
      %p272 = scmp.eq.s32.totalorder %s41, 1
      %p273 = scmp.ne.s32.totalorder %s268, %s270
      %p274 = scmp.eq.s32.totalorder %s41, 0
      %p275 = por %p273, %p274
      %p276 = scmp.ne.s32.totalorder %s268, %s270
      %p277 = scmp.eq.s32.totalorder %s46, 1
      %p278 = por %p276, %p277
      %p279 = scmp.ne.s32.totalorder %s270, %s271
      %p280 = scmp.eq.s32.totalorder %s46, 0
      %p281 = por %p279, %p280
      %p282 = scmp.ne.s32.totalorder %s270, %s271
      %p283 = scmp.eq.s32.totalorder %s47, 1
      %p284 = por %p282, %p283
      %p286 = scmp.ne.s32.totalorder %s271, %s285
      %p287 = scmp.eq.s32.totalorder %s47, 0
      %p288 = por %p286, %p287
      %s290 = sadd.s32 %s289, 1
      %p293 = scmp.eq.s32.totalorder %s41, 1
      %p294 = scmp.ne.s32.totalorder %s289, %s291
      %p295 = scmp.eq.s32.totalorder %s41, 0
      %p296 = por %p294, %p295
      %p297 = scmp.ne.s32.totalorder %s289, %s291
      %p298 = scmp.eq.s32.totalorder %s46, 1
      %p299 = por %p297, %p298
      %p300 = scmp.ne.s32.totalorder %s291, %s292
      %p301 = scmp.eq.s32.totalorder %s46, 0
      %p302 = por %p300, %p301
      %p303 = scmp.ne.s32.totalorder %s291, %s292
      %p304 = scmp.eq.s32.totalorder %s47, 1
      %p305 = por %p303, %p304
      %p307 = scmp.ne.s32.totalorder %s292, %s306
      %p308 = scmp.eq.s32.totalorder %s47, 0
      %p309 = por %p307, %p308
      %s311 = sadd.s32 %s310, 1
      %p314 = scmp.eq.s32.totalorder %s41, 1
      %p315 = scmp.ne.s32.totalorder %s310, %s312
      %p316 = scmp.eq.s32.totalorder %s41, 0
      %p317 = por %p315, %p316
      %p318 = scmp.ne.s32.totalorder %s310, %s312
      %p319 = scmp.eq.s32.totalorder %s46, 1
      %p320 = por %p318, %p319
      %p321 = scmp.ne.s32.totalorder %s312, %s313
      %p322 = scmp.eq.s32.totalorder %s46, 0
      %p323 = por %p321, %p322
      %p324 = scmp.ne.s32.totalorder %s312, %s313
      %p325 = scmp.eq.s32.totalorder %s47, 1
      %p326 = por %p324, %p325
      %p328 = scmp.ne.s32.totalorder %s313, %s327
      %p329 = scmp.eq.s32.totalorder %s47, 0
      %p330 = por %p328, %p329
      %s332 = sadd.s32 %s331, 1
      %p335 = scmp.eq.s32.totalorder %s41, 1
      %p336 = scmp.ne.s32.totalorder %s331, %s333
      %p337 = scmp.eq.s32.totalorder %s41, 0
      %p338 = por %p336, %p337
      %p339 = scmp.ne.s32.totalorder %s331, %s333
      %p340 = scmp.eq.s32.totalorder %s46, 1
      %p341 = por %p339, %p340
      %p342 = scmp.ne.s32.totalorder %s333, %s334
      %p343 = scmp.eq.s32.totalorder %s46, 0
      %p344 = por %p342, %p343
      %p345 = scmp.ne.s32.totalorder %s333, %s334
      %p346 = scmp.eq.s32.totalorder %s47, 1
      %p347 = por %p345, %p346
      %p349 = scmp.ne.s32.totalorder %s334, %s348
      %p350 = scmp.eq.s32.totalorder %s47, 0
      %p351 = por %p349, %p350
      %s353 = sadd.s32 %s352, 1
      %p356 = scmp.eq.s32.totalorder %s41, 1
      %p357 = scmp.ne.s32.totalorder %s352, %s354
      %p358 = scmp.eq.s32.totalorder %s41, 0
      %p359 = por %p357, %p358
      %p360 = scmp.ne.s32.totalorder %s352, %s354
      %p361 = scmp.eq.s32.totalorder %s46, 1
      %p362 = por %p360, %p361
      %p363 = scmp.ne.s32.totalorder %s354, %s355
      %p364 = scmp.eq.s32.totalorder %s46, 0
      %p365 = por %p363, %p364
      %p366 = scmp.ne.s32.totalorder %s354, %s355
      %p367 = scmp.eq.s32.totalorder %s47, 1
      %p368 = por %p366, %p367
      %p370 = scmp.ne.s32.totalorder %s355, %s369
      %p371 = scmp.eq.s32.totalorder %s47, 0
      %p372 = por %p370, %p371
      %s374 = sadd.s32 %s373, 1
      %p377 = scmp.eq.s32.totalorder %s41, 1
      %p378 = scmp.ne.s32.totalorder %s373, %s375
      %p379 = scmp.eq.s32.totalorder %s41, 0
      %p380 = por %p378, %p379
      %p381 = scmp.ne.s32.totalorder %s373, %s375
      %p382 = scmp.eq.s32.totalorder %s46, 1
      %p383 = por %p381, %p382
      %p384 = scmp.ne.s32.totalorder %s375, %s376
      %p385 = scmp.eq.s32.totalorder %s46, 0
      %p386 = por %p384, %p385
      %p387 = scmp.ne.s32.totalorder %s375, %s376
      %p388 = scmp.eq.s32.totalorder %s47, 1
      %p389 = por %p387, %p388
      %p391 = scmp.ne.s32.totalorder %s376, %s390
      %p392 = scmp.eq.s32.totalorder %s47, 0
      %p393 = por %p391, %p392
      %s395 = sadd.s32 %s394, 1
      %p398 = scmp.eq.s32.totalorder %s41, 1
      %p399 = scmp.ne.s32.totalorder %s394, %s396
      %p400 = scmp.eq.s32.totalorder %s41, 0
      %p401 = por %p399, %p400
      %p402 = scmp.ne.s32.totalorder %s394, %s396
      %p403 = scmp.eq.s32.totalorder %s46, 1
      %p404 = por %p402, %p403
      %p405 = scmp.ne.s32.totalorder %s396, %s397
      %p406 = scmp.eq.s32.totalorder %s46, 0
      %p407 = por %p405, %p406
      %p408 = scmp.ne.s32.totalorder %s396, %s397
      %p409 = scmp.eq.s32.totalorder %s47, 1
      %p410 = por %p408, %p409
      %p412 = scmp.ne.s32.totalorder %s397, %s411
      %p413 = scmp.eq.s32.totalorder %s47, 0
      %p414 = por %p412, %p413
      %s416 = sadd.s32 %s415, 1
      %p419 = scmp.eq.s32.totalorder %s41, 1
      %p420 = scmp.ne.s32.totalorder %s415, %s417
      %p421 = scmp.eq.s32.totalorder %s41, 0
      %p422 = por %p420, %p421
      %p423 = scmp.ne.s32.totalorder %s415, %s417
      %p424 = scmp.eq.s32.totalorder %s46, 1
      %p425 = por %p423, %p424
      %p426 = scmp.ne.s32.totalorder %s417, %s418
      %p427 = scmp.eq.s32.totalorder %s46, 0
      %p428 = por %p426, %p427
      %p429 = scmp.ne.s32.totalorder %s417, %s418
      %p430 = scmp.eq.s32.totalorder %s47, 1
      %p431 = por %p429, %p430
      %p433 = scmp.ne.s32.totalorder %s418, %s432
      %p434 = scmp.eq.s32.totalorder %s47, 0
      %p435 = por %p433, %p434
      %s437 = sadd.s32 %s436, 1
      %p440 = scmp.eq.s32.totalorder %s41, 1
      %p441 = scmp.ne.s32.totalorder %s436, %s438
      %p442 = scmp.eq.s32.totalorder %s41, 0
      %p443 = por %p441, %p442
      %p444 = scmp.ne.s32.totalorder %s436, %s438
      %p445 = scmp.eq.s32.totalorder %s46, 1
      %p446 = por %p444, %p445
      %p447 = scmp.ne.s32.totalorder %s438, %s439
      %p448 = scmp.eq.s32.totalorder %s46, 0
      %p449 = por %p447, %p448
      %p450 = scmp.ne.s32.totalorder %s438, %s439
      %p451 = scmp.eq.s32.totalorder %s47, 1
      %p452 = por %p450, %p451
      %p454 = scmp.ne.s32.totalorder %s439, %s453
      %p455 = scmp.eq.s32.totalorder %s47, 0
      %p456 = por %p454, %p455
      %s458 = sadd.s32 %s457, 1
      %p461 = scmp.eq.s32.totalorder %s41, 1
      %p462 = scmp.ne.s32.totalorder %s457, %s459
      %p463 = scmp.eq.s32.totalorder %s41, 0
      %p464 = por %p462, %p463
      %p465 = scmp.ne.s32.totalorder %s457, %s459
      %p466 = scmp.eq.s32.totalorder %s46, 1
      %p467 = por %p465, %p466
      %p468 = scmp.ne.s32.totalorder %s459, %s460
      %p469 = scmp.eq.s32.totalorder %s46, 0
      %p470 = por %p468, %p469
      %p471 = scmp.ne.s32.totalorder %s459, %s460
      %p472 = scmp.eq.s32.totalorder %s47, 1
      %p473 = por %p471, %p472
      %p475 = scmp.ne.s32.totalorder %s460, %s474
      %p476 = scmp.eq.s32.totalorder %s47, 0
      %p477 = por %p475, %p476
      %s479 = sadd.s32 %s478, 1
      %p482 = scmp.eq.s32.totalorder %s41, 1
      %p483 = scmp.ne.s32.totalorder %s478, %s480
      %p484 = scmp.eq.s32.totalorder %s41, 0
      %p485 = por %p483, %p484
      %p486 = scmp.ne.s32.totalorder %s478, %s480
      %p487 = scmp.eq.s32.totalorder %s46, 1
      %p488 = por %p486, %p487
      %p489 = scmp.ne.s32.totalorder %s480, %s481
      %p490 = scmp.eq.s32.totalorder %s46, 0
      %p491 = por %p489, %p490
      %p492 = scmp.ne.s32.totalorder %s480, %s481
      %p493 = scmp.eq.s32.totalorder %s47, 1
      %p494 = por %p492, %p493
      %p496 = scmp.ne.s32.totalorder %s481, %s495
      %p497 = scmp.eq.s32.totalorder %s47, 0
      %p498 = por %p496, %p497
      %s500 = sadd.s32 %s499, 1
      %p503 = scmp.eq.s32.totalorder %s41, 1
      %p504 = scmp.ne.s32.totalorder %s499, %s501
      %p505 = scmp.eq.s32.totalorder %s41, 0
      %p506 = por %p504, %p505
      %p507 = scmp.ne.s32.totalorder %s499, %s501
      %p508 = scmp.eq.s32.totalorder %s46, 1
      %p509 = por %p507, %p508
      %p510 = scmp.ne.s32.totalorder %s501, %s502
      %p511 = scmp.eq.s32.totalorder %s46, 0
      %p512 = por %p510, %p511
      %p513 = scmp.ne.s32.totalorder %s501, %s502
      %p514 = scmp.eq.s32.totalorder %s47, 1
      %p515 = por %p513, %p514
      %p517 = scmp.ne.s32.totalorder %s502, %s516
      %p518 = scmp.eq.s32.totalorder %s47, 0
      %p519 = por %p517, %p518
      %s521 = sadd.s32 %s520, 1
      %p524 = scmp.eq.s32.totalorder %s41, 1
      %p525 = scmp.ne.s32.totalorder %s520, %s522
      %p526 = scmp.eq.s32.totalorder %s41, 0
      %p527 = por %p525, %p526
      %p528 = scmp.ne.s32.totalorder %s520, %s522
      %p529 = scmp.eq.s32.totalorder %s46, 1
      %p530 = por %p528, %p529
      %p531 = scmp.ne.s32.totalorder %s522, %s523
      %p532 = scmp.eq.s32.totalorder %s46, 0
      %p533 = por %p531, %p532
      %p534 = scmp.ne.s32.totalorder %s522, %s523
      %p535 = scmp.eq.s32.totalorder %s47, 1
      %p536 = por %p534, %p535
      %p538 = scmp.ne.s32.totalorder %s523, %s537
      %p539 = scmp.eq.s32.totalorder %s47, 0
      %p540 = por %p538, %p539
      %s542 = sadd.s32 %s541, 1
      %p545 = scmp.eq.s32.totalorder %s41, 1
      %p546 = scmp.ne.s32.totalorder %s541, %s543
      %p547 = scmp.eq.s32.totalorder %s41, 0
      %p548 = por %p546, %p547
      %p549 = scmp.ne.s32.totalorder %s541, %s543
      %p550 = scmp.eq.s32.totalorder %s46, 1
      %p551 = por %p549, %p550
      %p552 = scmp.ne.s32.totalorder %s543, %s544
      %p553 = scmp.eq.s32.totalorder %s46, 0
      %p554 = por %p552, %p553
      %p555 = scmp.ne.s32.totalorder %s543, %s544
      %p556 = scmp.eq.s32.totalorder %s47, 1
      %p557 = por %p555, %p556
      %p559 = scmp.ne.s32.totalorder %s544, %s558
      %p560 = scmp.eq.s32.totalorder %s47, 0
      %p561 = por %p559, %p560
      %s563 = sadd.s32 %s562, 1
      %p566 = scmp.eq.s32.totalorder %s41, 1
      %p567 = scmp.ne.s32.totalorder %s562, %s564
      %p568 = scmp.eq.s32.totalorder %s41, 0
      %p569 = por %p567, %p568
      %p570 = scmp.ne.s32.totalorder %s562, %s564
      %p571 = scmp.eq.s32.totalorder %s46, 1
      %p572 = por %p570, %p571
      %p573 = scmp.ne.s32.totalorder %s564, %s565
      %p574 = scmp.eq.s32.totalorder %s46, 0
      %p575 = por %p573, %p574
      %p576 = scmp.ne.s32.totalorder %s564, %s565
      %p577 = scmp.eq.s32.totalorder %s47, 1
      %p578 = por %p576, %p577
      %p580 = scmp.ne.s32.totalorder %s565, %s579
      %p581 = scmp.eq.s32.totalorder %s47, 0
      %p582 = por %p580, %p581
      %s584 = sadd.s32 %s583, 1
      %p587 = scmp.eq.s32.totalorder %s41, 1
      %p588 = scmp.ne.s32.totalorder %s583, %s585
      %p589 = scmp.eq.s32.totalorder %s41, 0
      %p590 = por %p588, %p589
      %p591 = scmp.ne.s32.totalorder %s583, %s585
      %p592 = scmp.eq.s32.totalorder %s46, 1
      %p593 = por %p591, %p592
      %p594 = scmp.ne.s32.totalorder %s585, %s586
      %p595 = scmp.eq.s32.totalorder %s46, 0
      %p596 = por %p594, %p595
      %p597 = scmp.ne.s32.totalorder %s585, %s586
      %p598 = scmp.eq.s32.totalorder %s47, 1
      %p599 = por %p597, %p598
      %p601 = scmp.ne.s32.totalorder %s586, %s600
      %p602 = scmp.eq.s32.totalorder %s47, 0
      %p603 = por %p601, %p602
      %s605 = sadd.s32 %s604, 1
      %p608 = scmp.eq.s32.totalorder %s41, 1
      %p609 = scmp.ne.s32.totalorder %s604, %s606
      %p610 = scmp.eq.s32.totalorder %s41, 0
      %p611 = por %p609, %p610
      %p612 = scmp.ne.s32.totalorder %s604, %s606
      %p613 = scmp.eq.s32.totalorder %s46, 1
      %p614 = por %p612, %p613
      %p615 = scmp.ne.s32.totalorder %s606, %s607
      %p616 = scmp.eq.s32.totalorder %s46, 0
      %p617 = por %p615, %p616
      %p618 = scmp.ne.s32.totalorder %s606, %s607
      %p619 = scmp.eq.s32.totalorder %s47, 1
      %p620 = por %p618, %p619
      %p622 = scmp.ne.s32.totalorder %s607, %s621
      %p623 = scmp.eq.s32.totalorder %s47, 0
      %p624 = por %p622, %p623
      %s625 = ssub.s32 %s41, %s48
      %p626 = scmp.eq.s32.totalorder %s625, 0
      %s628 = sadd.s32 %s627, 1
      %s629 = scalar_select %p626, %s627, %s628
      %p632 = pneg %p626
      %p633 = scmp.eq.s32.totalorder %s41, 1
      %p634 = por %p632, %p633
      %p635 = scmp.ne.s32.totalorder %s627, %s630
      %p636 = scmp.eq.s32.totalorder %s41, 0
      %p637 = por %p635, %p636
      %p638 = scmp.ne.s32.totalorder %s627, %s630
      %p639 = scmp.eq.s32.totalorder %s46, 1
      %p640 = por %p638, %p639
      %p641 = scmp.ne.s32.totalorder %s630, %s631
      %p642 = scmp.eq.s32.totalorder %s46, 0
      %p643 = por %p641, %p642
      %p644 = scmp.ne.s32.totalorder %s630, %s631
      %p645 = scmp.eq.s32.totalorder %s47, 1
      %p646 = por %p644, %p645
      %p648 = scmp.ne.s32.totalorder %s631, %s647
      %p649 = scmp.eq.s32.totalorder %s47, 0
      %p650 = por %p648, %p649
      %s651 = ssub.s32 %s41, %s48
      %p652 = scmp.eq.s32.totalorder %s651, 0
      %s654 = sadd.s32 %s653, 1
      %s655 = scalar_select %p652, %s653, %s654
      %p658 = pneg %p652
      %p659 = scmp.eq.s32.totalorder %s41, 1
      %p660 = por %p658, %p659
      %p661 = scmp.ne.s32.totalorder %s653, %s656
      %p662 = scmp.eq.s32.totalorder %s41, 0
      %p663 = por %p661, %p662
      %p664 = scmp.ne.s32.totalorder %s653, %s656
      %p665 = scmp.eq.s32.totalorder %s46, 1
      %p666 = por %p664, %p665
      %p667 = scmp.ne.s32.totalorder %s656, %s657
      %p668 = scmp.eq.s32.totalorder %s46, 0
      %p669 = por %p667, %p668
      %p670 = scmp.ne.s32.totalorder %s656, %s657
      %p671 = scmp.eq.s32.totalorder %s47, 1
      %p672 = por %p670, %p671
      %p674 = scmp.ne.s32.totalorder %s657, %s673
      %p675 = scmp.eq.s32.totalorder %s47, 0
      %p676 = por %p674, %p675
      %s677 = ssub.s32 %s41, %s48
      %p678 = scmp.eq.s32.totalorder %s677, 0
      %s680 = sadd.s32 %s679, 1
      %s681 = scalar_select %p678, %s679, %s680
      %p684 = pneg %p678
      %p685 = scmp.eq.s32.totalorder %s41, 1
      %p686 = por %p684, %p685
      %p687 = scmp.ne.s32.totalorder %s679, %s682
      %p688 = scmp.eq.s32.totalorder %s41, 0
      %p689 = por %p687, %p688
      %p690 = scmp.ne.s32.totalorder %s679, %s682
      %p691 = scmp.eq.s32.totalorder %s46, 1
      %p692 = por %p690, %p691
      %p693 = scmp.ne.s32.totalorder %s682, %s683
      %p694 = scmp.eq.s32.totalorder %s46, 0
      %p695 = por %p693, %p694
      %p696 = scmp.ne.s32.totalorder %s682, %s683
      %p697 = scmp.eq.s32.totalorder %s47, 1
      %p698 = por %p696, %p697
      %p700 = scmp.ne.s32.totalorder %s683, %s699
      %p701 = scmp.eq.s32.totalorder %s47, 0
      %p702 = por %p700, %p701
      %p703 = scmp.le.s32.totalorder 1, %s41
      %p704 = scmp.lt.s32.totalorder %s41, 3
      %p705 = pnand %p703, %p704
      %p706 = pneg %p705
      // Predicated region
      $region9: #{decoder_layer_forward.2} parent=5 // pred_check
        _
      $region10: #{decoder_layer_forward.2} parent=5 // pred_check_branch
        %708 = sbr.rel (%p705) target = $region12
      $region11: #{decoder_layer_forward.2} parent=5 // pred_region
        %s709 = ssub.s32 %s41, 1
        // Predicated region
        $region13: #{decoder_layer_forward.2} parent=11 // pred_check
          %p710 = pneg %p218
        $region14: #{decoder_layer_forward.2} parent=11 // pred_check_branch
          %712 = sbr.rel (%p710) target = $region16
        $region15: #{decoder_layer_forward.2} parent=11 // pred_region
          _
        $region16: #{decoder_layer_forward.2} parent=11 // pred_fallthru
          _
        // Predicated region
        $region17: #{decoder_layer_forward.2} parent=11 // pred_check
          %p713 = pneg %p239
        $region18: #{decoder_layer_forward.2} parent=11 // pred_check_branch
          %715 = sbr.rel (%p713) target = $region20
        $region19: #{decoder_layer_forward.2} parent=11 // pred_region
          _
        $region20: #{decoder_layer_forward.2} parent=11 // pred_fallthru
          _
        // Predicated region
        $region21: #{decoder_layer_forward.2} parent=11 // pred_check
          %p716 = pneg %p260
        $region22: #{decoder_layer_forward.2} parent=11 // pred_check_branch
          %718 = sbr.rel (%p716) target = $region24
        $region23: #{decoder_layer_forward.2} parent=11 // pred_region
          _
        $region24: #{decoder_layer_forward.2} parent=11 // pred_fallthru
          _
        // Predicated region
        $region25: #{decoder_layer_forward.2} parent=11 // pred_check
          %p719 = pneg %p281
        $region26: #{decoder_layer_forward.2} parent=11 // pred_check_branch
          %721 = sbr.rel (%p719) target = $region28
        $region27: #{decoder_layer_forward.2} parent=11 // pred_region
          _
        $region28: #{decoder_layer_forward.2} parent=11 // pred_fallthru
          _
        // Predicated region
        $region29: #{decoder_layer_forward.2} parent=11 // pred_check
          %p722 = pneg %p302
        $region30: #{decoder_layer_forward.2} parent=11 // pred_check_branch
          %724 = sbr.rel (%p722) target = $region32
        $region31: #{decoder_layer_forward.2} parent=11 // pred_region
          _
        $region32: #{decoder_layer_forward.2} parent=11 // pred_fallthru
          _
        // Predicated region
        $region33: #{decoder_layer_forward.2} parent=11 // pred_check
          %p725 = pneg %p323
        $region34: #{decoder_layer_forward.2} parent=11 // pred_check_branch
          %727 = sbr.rel (%p725) target = $region36
        $region35: #{decoder_layer_forward.2} parent=11 // pred_region
          _
        $region36: #{decoder_layer_forward.2} parent=11 // pred_fallthru
          _
        // Predicated region
        $region37: #{decoder_layer_forward.2} parent=11 // pred_check
          %p728 = pneg %p344
        $region38: #{decoder_layer_forward.2} parent=11 // pred_check_branch
          %730 = sbr.rel (%p728) target = $region40
        $region39: #{decoder_layer_forward.2} parent=11 // pred_region
          _
        $region40: #{decoder_layer_forward.2} parent=11 // pred_fallthru
          _
        // Predicated region
        $region41: #{decoder_layer_forward.2} parent=11 // pred_check
          %p731 = pneg %p365
        $region42: #{decoder_layer_forward.2} parent=11 // pred_check_branch
          %733 = sbr.rel (%p731) target = $region44
        $region43: #{decoder_layer_forward.2} parent=11 // pred_region
          _
        $region44: #{decoder_layer_forward.2} parent=11 // pred_fallthru
          _
        // Predicated region
        $region45: #{decoder_layer_forward.2} parent=11 // pred_check
          %p734 = pneg %p386
        $region46: #{decoder_layer_forward.2} parent=11 // pred_check_branch
          %736 = sbr.rel (%p734) target = $region48
        $region47: #{decoder_layer_forward.2} parent=11 // pred_region
          _
        $region48: #{decoder_layer_forward.2} parent=11 // pred_fallthru
          _
        // Predicated region
        $region49: #{decoder_layer_forward.2} parent=11 // pred_check
          %p737 = pneg %p407
        $region50: #{decoder_layer_forward.2} parent=11 // pred_check_branch
          %739 = sbr.rel (%p737) target = $region52
        $region51: #{decoder_layer_forward.2} parent=11 // pred_region
          _
        $region52: #{decoder_layer_forward.2} parent=11 // pred_fallthru
          _
        // Predicated region
        $region53: #{decoder_layer_forward.2} parent=11 // pred_check
          %p740 = pneg %p428
        $region54: #{decoder_layer_forward.2} parent=11 // pred_check_branch
          %742 = sbr.rel (%p740) target = $region56
        $region55: #{decoder_layer_forward.2} parent=11 // pred_region
          _
        $region56: #{decoder_layer_forward.2} parent=11 // pred_fallthru
          _
        // Predicated region
        $region57: #{decoder_layer_forward.2} parent=11 // pred_check
          %p743 = pneg %p449
        $region58: #{decoder_layer_forward.2} parent=11 // pred_check_branch
          %745 = sbr.rel (%p743) target = $region60
        $region59: #{decoder_layer_forward.2} parent=11 // pred_region
          _
        $region60: #{decoder_layer_forward.2} parent=11 // pred_fallthru
          _
        // Predicated region
        $region61: #{decoder_layer_forward.2} parent=11 // pred_check
          %p746 = pneg %p470
        $region62: #{decoder_layer_forward.2} parent=11 // pred_check_branch
          %748 = sbr.rel (%p746) target = $region64
        $region63: #{decoder_layer_forward.2} parent=11 // pred_region
          _
        $region64: #{decoder_layer_forward.2} parent=11 // pred_fallthru
          _
        // Predicated region
        $region65: #{decoder_layer_forward.2} parent=11 // pred_check
          %p749 = pneg %p491
        $region66: #{decoder_layer_forward.2} parent=11 // pred_check_branch
          %751 = sbr.rel (%p749) target = $region68
        $region67: #{decoder_layer_forward.2} parent=11 // pred_region
          _
        $region68: #{decoder_layer_forward.2} parent=11 // pred_fallthru
          _
        // Predicated region
        $region69: #{decoder_layer_forward.2} parent=11 // pred_check
          %p752 = pneg %p512
        $region70: #{decoder_layer_forward.2} parent=11 // pred_check_branch
          %754 = sbr.rel (%p752) target = $region72
        $region71: #{decoder_layer_forward.2} parent=11 // pred_region
          _
        $region72: #{decoder_layer_forward.2} parent=11 // pred_fallthru
          _
        // Predicated region
        $region73: #{decoder_layer_forward.2} parent=11 // pred_check
          %p755 = pneg %p533
        $region74: #{decoder_layer_forward.2} parent=11 // pred_check_branch
          %757 = sbr.rel (%p755) target = $region76
        $region75: #{decoder_layer_forward.2} parent=11 // pred_region
          _
        $region76: #{decoder_layer_forward.2} parent=11 // pred_fallthru
          _
        // Predicated region
        $region77: #{decoder_layer_forward.2} parent=11 // pred_check
          %p758 = pneg %p554
        $region78: #{decoder_layer_forward.2} parent=11 // pred_check_branch
          %760 = sbr.rel (%p758) target = $region80
        $region79: #{decoder_layer_forward.2} parent=11 // pred_region
          _
        $region80: #{decoder_layer_forward.2} parent=11 // pred_fallthru
          _
        // Predicated region
        $region81: #{decoder_layer_forward.2} parent=11 // pred_check
          %p761 = pneg %p575
        $region82: #{decoder_layer_forward.2} parent=11 // pred_check_branch
          %763 = sbr.rel (%p761) target = $region84
        $region83: #{decoder_layer_forward.2} parent=11 // pred_region
          _
        $region84: #{decoder_layer_forward.2} parent=11 // pred_fallthru
          _
        // Predicated region
        $region85: #{decoder_layer_forward.2} parent=11 // pred_check
          %p764 = pneg %p596
        $region86: #{decoder_layer_forward.2} parent=11 // pred_check_branch
          %766 = sbr.rel (%p764) target = $region88
        $region87: #{decoder_layer_forward.2} parent=11 // pred_region
          _
        $region88: #{decoder_layer_forward.2} parent=11 // pred_fallthru
          _
        // Predicated region
        $region89: #{decoder_layer_forward.2} parent=11 // pred_check
          %p767 = pneg %p617
        $region90: #{decoder_layer_forward.2} parent=11 // pred_check_branch
          %769 = sbr.rel (%p767) target = $region92
        $region91: #{decoder_layer_forward.2} parent=11 // pred_region
          _
        $region92: #{decoder_layer_forward.2} parent=11 // pred_fallthru
          _
      $region12: #{decoder_layer_forward.2} parent=5 // pred_fallthru
        _
      %p770 = scmp.lt.s32.totalorder %s41, 2
      // Predicated region
      $region93: #{decoder_layer_forward.2} parent=5 // pred_check
        %p771 = pneg %p770
      $region94: #{decoder_layer_forward.2} parent=5 // pred_check_branch
        %773 = sbr.rel (%p771) target = $region96
      $region95: #{decoder_layer_forward.2} parent=5 // pred_region
        // Predicated region
        $region97: #{decoder_layer_forward.2} parent=95 // pred_check
          %p774 = pneg %p61
        $region98: #{decoder_layer_forward.2} parent=95 // pred_check_branch
          %776 = sbr.rel (%p774) target = $region100
        $region99: #{decoder_layer_forward.2} parent=95 // pred_region
          %p777 = scmp.lt.s32.totalorder %s41, 1
          %s778 = scalar_select %p777, %s41, 1
          %s779 = smul.addr %s778, 8
          %s780 = scalar_lea.vmem %s0, %s779
        $region100: #{decoder_layer_forward.2} parent=95 // pred_fallthru
          _
        // Predicated region
        $region101: #{decoder_layer_forward.2} parent=95 // pred_check
          %p781 = pneg %p87
        $region102: #{decoder_layer_forward.2} parent=95 // pred_check_branch
          %783 = sbr.rel (%p781) target = $region104
        $region103: #{decoder_layer_forward.2} parent=95 // pred_region
          %p784 = scmp.lt.s32.totalorder %s41, 1
          %s785 = scalar_select %p784, %s41, 1
          %s786 = smul.addr %s785, 8
          %s787 = scalar_lea.vmem %s1, %s786
        $region104: #{decoder_layer_forward.2} parent=95 // pred_fallthru
          _
        // Predicated region
        $region105: #{decoder_layer_forward.2} parent=95 // pred_check
          %p788 = pneg %p113
        $region106: #{decoder_layer_forward.2} parent=95 // pred_check_branch
          %790 = sbr.rel (%p788) target = $region108
        $region107: #{decoder_layer_forward.2} parent=95 // pred_region
          %p791 = scmp.lt.s32.totalorder %s41, 1
          %s792 = scalar_select %p791, %s41, 1
          %s793 = smul.addr %s792, 4
          %s794 = scalar_lea.vmem %s2, %s793
        $region108: #{decoder_layer_forward.2} parent=95 // pred_fallthru
          _
        // Predicated region
        $region109: #{decoder_layer_forward.2} parent=95 // pred_check
          %p795 = pneg %p139
        $region110: #{decoder_layer_forward.2} parent=95 // pred_check_branch
          %797 = sbr.rel (%p795) target = $region112
        $region111: #{decoder_layer_forward.2} parent=95 // pred_region
          %p798 = scmp.lt.s32.totalorder %s41, 1
          %s799 = scalar_select %p798, %s41, 1
          %s800 = scalar_lea.vmem %s3, %s799
        $region112: #{decoder_layer_forward.2} parent=95 // pred_fallthru
          _
        // Predicated region
        $region113: #{decoder_layer_forward.2} parent=95 // pred_check
          %p801 = pneg %p165
        $region114: #{decoder_layer_forward.2} parent=95 // pred_check_branch
          %803 = sbr.rel (%p801) target = $region116
        $region115: #{decoder_layer_forward.2} parent=95 // pred_region
          %p804 = scmp.lt.s32.totalorder %s41, 1
          %s805 = scalar_select %p804, %s41, 1
          %s806 = smul.addr %s805, 16
          %s807 = smul.addr %s806, 4
          %s808 = scalar_lea.vmem %s4, %s807
        $region116: #{decoder_layer_forward.2} parent=95 // pred_fallthru
          _
        // Predicated region
        $region117: #{decoder_layer_forward.2} parent=95 // pred_check
          %p809 = pneg %p191
        $region118: #{decoder_layer_forward.2} parent=95 // pred_check_branch
          %811 = sbr.rel (%p809) target = $region120
        $region119: #{decoder_layer_forward.2} parent=95 // pred_region
          %p812 = scmp.lt.s32.totalorder %s41, 1
          %s813 = scalar_select %p812, %s41, 1
          %s814 = smul.addr %s813, 16
          %s815 = smul.addr %s814, 8
          %s816 = scalar_lea.vmem %s5, %s815
        $region120: #{decoder_layer_forward.2} parent=95 // pred_fallthru
          _
      $region96: #{decoder_layer_forward.2} parent=5 // pred_fallthru
        _
      %p817 = scmp.le.s32.totalorder 1, %s41
      %p818 = scmp.lt.s32.totalorder %s41, 3
      %p819 = pnand %p817, %p818
      %p820 = pneg %p819
      // Predicated region
      $region121: #{decoder_layer_forward.2} parent=5 // pred_check
        _
      $region122: #{decoder_layer_forward.2} parent=5 // pred_check_branch
        %822 = sbr.rel (%p819) target = $region124
      $region123: #{decoder_layer_forward.2} parent=5 // pred_region
        %s823 = ssub.s32 %s41, 1
        %p824 = scmp.lt.s32.totalorder %s46, 1
        %s825 = scalar_select %p824, %s46, 1
        %s826 = smul.addr %s825, 8
        %s827 = scalar_lea.vmem %s0, %s826
        %p828 = pneg %p67
        %p829 = pneg %p64
        %p830 = scmp.lt.s32.totalorder %s46, 1
        %s831 = scalar_select %p830, %s46, 1
        %s832 = smul.addr %s831, 8
        %s833 = scalar_lea.vmem %s1, %s832
        %p834 = pneg %p93
        %p835 = pneg %p90
        %p836 = scmp.lt.s32.totalorder %s46, 1
        %s837 = scalar_select %p836, %s46, 1
        %s838 = smul.addr %s837, 4
        %s839 = scalar_lea.vmem %s2, %s838
        %p840 = pneg %p119
        %p841 = pneg %p116
        %p842 = scmp.lt.s32.totalorder %s46, 1
        %s843 = scalar_select %p842, %s46, 1
        %s844 = scalar_lea.vmem %s3, %s843
        %p845 = pneg %p145
        %p846 = pneg %p142
        %p847 = scmp.lt.s32.totalorder %s46, 1
        %s848 = scalar_select %p847, %s46, 1
        %s849 = smul.addr %s848, 16
        %s850 = smul.addr %s849, 4
        %s851 = scalar_lea.vmem %s4, %s850
        %p852 = pneg %p171
        %p853 = pneg %p168
        %p854 = scmp.lt.s32.totalorder %s46, 1
        %s855 = scalar_select %p854, %s46, 1
        %s856 = smul.addr %s855, 16
        %s857 = smul.addr %s856, 8
        %s858 = scalar_lea.vmem %s5, %s857
        %p859 = pneg %p197
        %p860 = pneg %p194
        %p861 = pneg %p218
        %p862 = pneg %p215
        %p863 = pneg %p239
        %p864 = pneg %p236
        %p865 = pneg %p260
        %p866 = pneg %p257
        %p867 = pneg %p281
        %p868 = pneg %p278
        %p869 = pneg %p302
        %p870 = pneg %p299
        %p871 = pneg %p323
        %p872 = pneg %p320
        %p873 = pneg %p344
        %p874 = pneg %p341
        %p875 = pneg %p365
        %p876 = pneg %p362
        %p877 = pneg %p386
        %p878 = pneg %p383
        %p879 = pneg %p407
        %p880 = pneg %p404
        %p881 = pneg %p428
        %p882 = pneg %p425
        %p883 = pneg %p449
        %p884 = pneg %p446
        %p885 = pneg %p470
        %p886 = pneg %p467
        %p887 = pneg %p491
        %p888 = pneg %p488
        %p889 = pneg %p512
        %p890 = pneg %p509
        %p891 = pneg %p533
        %p892 = pneg %p530
        %p893 = pneg %p554
        %p894 = pneg %p551
        %p895 = pneg %p575
        %p896 = pneg %p572
        %p897 = pneg %p596
        %p898 = pneg %p593
        %p899 = pneg %p617
        %p900 = pneg %p614
        %p901 = pneg %p643
        %p902 = pneg %p640
        %s903 = sand.u32 %s630, 1
        %s904 = scalar_lea.sflag [#allocation3], %s903
        %s905 = sand.u32 %s630, 1
        %s906 = smul.addr %s905, 8
        %s907 = scalar_lea.vmem [#allocation2], %s906
        %p908 = pneg %p669
        %p909 = pneg %p666
        %p910 = scmp.lt.s32.totalorder %s46, 1
        %s911 = scalar_select %p910, %s46, 1
        %s912 = smul.addr %s911, 8
        %s913 = scalar_lea.vmem %s27, %s912
        %p914 = pneg %p695
        %p915 = pneg %p692
        %s916 = sand.u32 %s682, 1
        %s917 = scalar_lea.sflag [#allocation5], %s916
        %s918 = sand.u32 %s682, 1
        %s919 = smul.addr %s918, 64
        %s920 = scalar_lea.vmem [#allocation4], %s919
        %p921 = scmp.lt.s32.totalorder %s46, 1
        %s922 = scalar_select %p921, %s46, 1
        %s923 = smul.addr %s922, 8
        %s924 = scalar_lea.vmem %s0, %s923
        %p925 = scmp.lt.s32.totalorder %s46, 1
        %s926 = scalar_select %p925, %s46, 1
        %s927 = smul.addr %s926, 8
        %s928 = scalar_lea.vmem %s1, %s927
        %p929 = scmp.lt.s32.totalorder %s46, 1
        %s930 = scalar_select %p929, %s46, 1
        %s931 = smul.addr %s930, 4
        %s932 = scalar_lea.vmem %s2, %s931
        %p933 = scmp.lt.s32.totalorder %s46, 1
        %s934 = scalar_select %p933, %s46, 1
        %s935 = scalar_lea.vmem %s3, %s934
        %p936 = scmp.lt.s32.totalorder %s46, 1
        %s937 = scalar_select %p936, %s46, 1
        %s938 = smul.addr %s937, 16
        %s939 = smul.addr %s938, 4
        %s940 = scalar_lea.vmem %s4, %s939
        %p941 = scmp.lt.s32.totalorder %s46, 1
        %s942 = scalar_select %p941, %s46, 1
        %s943 = smul.addr %s942, 16
        %s944 = smul.addr %s943, 8
        %s945 = scalar_lea.vmem %s5, %s944
        %p946 = scmp.lt.s32.totalorder %s46, 1
        %s947 = scalar_select %p946, %s46, 1
        %s948 = smul.addr %s947, 8
        %s949 = scalar_lea.vmem %s27, %s948
        %v951 = vld [vmem:[%s924] sm:$0xff]
        %v952 = vld [vmem:[%s928] sm:$0xff]
        %v953 = vld [vmem:[%s932] sm:$0xf]
        %v954 = vld [vmem:[%s935] sm:$0x1]
        %v955 = vpack.c.bf16 %v951, %v951
        %v956 = vld [vmem:[%s6] sm:$0xf]
        %v957 = vld [vmem:[%s6 + $0x4] sm:$0xf]
        %v958 = vld [vmem:[%s6 + $0x8] sm:$0xf]
        %v959 = vld [vmem:[%s6 + $0xc] sm:$0xf]
        %v960 = vld [vmem:[%s7] sm:$0x1]
        %v962 = vlaneseq
        %v963 = vshrl.u32 %v962, 7
        %v964 = vsub.s32 0, %v963
        %v965 = vrot.slane %v960, %v964
        %v971 = vunpack.c.l.b16 %v956
        %v972 = vunpack.c.l.b16 %v957
        %v973 = vunpack.c.l.b16 %v958
        %v974 = vunpack.c.l.b16 %v959
        %v975 = vpack.c.b16 %v972, %v971
        %v976 = vpack.c.b16 %v974, %v973
        %vm979 = vcmask 261120
        %v981 = vsel %vm979, %v955, 0
        %983 = vmatprep.subr.bf16.mxu0 0
        %984 = vmatpush1.bf16.msra.mxu0 0
        %985 = vmatprep.subr.bf16.mxu0 0
        %986 = vmatpush1.bf16.msra.mxu0 0
        %987 = vmatprep.subr.bf16.mxu0 0
        %988 = vmatpush1.bf16.msra.mxu0 0
        %989 = vmatprep.subr.bf16.mxu0 0
        %990 = vmatpush1.bf16.msra.mxu0 0
        %991 = vmatprep.subr.bf16.mxu0 0
        %992 = vmatpush1.bf16.msra.mxu0 0
        %993 = vmatprep.subr.bf16.mxu0 0
        %994 = vmatpush1.bf16.msra.mxu0 0
        %995 = vmatprep.subr.bf16.mxu0 0
        %996 = vmatpush1.bf16.msra.mxu0 %v976
        %997 = vmatprep.subr.bf16.mxu0 0
        %998 = vmatpush1.bf16.msra.mxu0 %v975
        %999 = vmatprep.subr.bf16.mxu0 0
        %1000 = vmatpush2.bf16.msra.mxu0 0
        %1001 = vmatprep.subr.bf16.mxu0 0
        %1002 = vmatpush2.bf16.msra.mxu0 0
        %1003 = vmatprep.subr.bf16.mxu0 0
        %1004 = vmatpush2.bf16.msra.mxu0 0
        %1005 = vmatprep.subr.bf16.mxu0 0
        %1006 = vmatpush2.bf16.msra.mxu0 0
        %1007 = vmatprep.subr.bf16.mxu0 0
        %1008 = vmatpush2.bf16.msra.mxu0 0
        %1009 = vmatprep.subr.bf16.mxu0 0
        %1010 = vmatpush2.bf16.msra.mxu0 0
        %1011 = vmatprep.subr.bf16.mxu0 0
        %1012 = vmatpush2.bf16.msra.mxu0 0
        %1013 = vmatprep.subr.bf16.mxu0 0
        %1014 = vmatpush2.bf16.msra.mxu0 0
        %1015 = vmatprep.mubr.bf16.mxu0 0
        %1016 = vmatmul.mubr.bf16.gmra.mxu0 %v981
        %v1017 = vpop.f32.mrf.mxu0
        %v1018 = vadd.f32 %v965, %v1017
        %v1019 = vpop.f32.mrf.mxu0
        %v1020 = vpop.f32.mrf.mxu0
        %v1021 = vpop.f32.mrf.mxu0
        %1022 = vdwg.mxu0
        %v1023 = vld [vmem:[%s8] sm:$0xf]
        %v1024 = vld [vmem:[%s8 + $0x4] sm:$0xf]
        %v1025 = vld [vmem:[%s8 + $0x8] sm:$0xf]
        %v1026 = vld [vmem:[%s8 + $0xc] sm:$0xf]
        %v1027 = vld [vmem:[%s9] sm:$0x1]
        %v1029 = vlaneseq
        %v1030 = vshrl.u32 %v1029, 7
        %v1031 = vsub.s32 0, %v1030
        %v1032 = vrot.slane %v1027, %v1031
        %v1038 = vunpack.c.l.b16 %v1023
        %v1039 = vunpack.c.l.b16 %v1024
        %v1040 = vunpack.c.l.b16 %v1025
        %v1041 = vunpack.c.l.b16 %v1026
        %v1042 = vpack.c.b16 %v1039, %v1038
        %v1043 = vpack.c.b16 %v1041, %v1040
        %v1047 = vsel %vm979, %v953, 0
        %1049 = vmatprep.subr.bf16.mxu0 0
        %1050 = vmatpush1.bf16.msra.mxu0 0
        %1051 = vmatprep.subr.bf16.mxu0 0
        %1052 = vmatpush1.bf16.msra.mxu0 0
        %1053 = vmatprep.subr.bf16.mxu0 0
        %1054 = vmatpush1.bf16.msra.mxu0 0
        %1055 = vmatprep.subr.bf16.mxu0 0
        %1056 = vmatpush1.bf16.msra.mxu0 0
        %1057 = vmatprep.subr.bf16.mxu0 0
        %1058 = vmatpush1.bf16.msra.mxu0 0
        %1059 = vmatprep.subr.bf16.mxu0 0
        %1060 = vmatpush1.bf16.msra.mxu0 0
        %1061 = vmatprep.subr.bf16.mxu0 0
        %1062 = vmatpush1.bf16.msra.mxu0 %v1043
        %1063 = vmatprep.subr.bf16.mxu0 0
        %1064 = vmatpush1.bf16.msra.mxu0 %v1042
        %1065 = vmatprep.subr.bf16.mxu0 0
        %1066 = vmatpush2.bf16.msra.mxu0 0
        %1067 = vmatprep.subr.bf16.mxu0 0
        %1068 = vmatpush2.bf16.msra.mxu0 0
        %1069 = vmatprep.subr.bf16.mxu0 0
        %1070 = vmatpush2.bf16.msra.mxu0 0
        %1071 = vmatprep.subr.bf16.mxu0 0
        %1072 = vmatpush2.bf16.msra.mxu0 0
        %1073 = vmatprep.subr.bf16.mxu0 0
        %1074 = vmatpush2.bf16.msra.mxu0 0
        %1075 = vmatprep.subr.bf16.mxu0 0
        %1076 = vmatpush2.bf16.msra.mxu0 0
        %1077 = vmatprep.subr.bf16.mxu0 0
        %1078 = vmatpush2.bf16.msra.mxu0 0
        %1079 = vmatprep.subr.bf16.mxu0 0
        %1080 = vmatpush2.bf16.msra.mxu0 0
        %1081 = vmatprep.mubr.bf16.mxu0 0
        %1082 = vmatmul.mubr.bf16.gmra.mxu0 %v1047
        %v1083 = vpop.f32.mrf.mxu0
        %v1084 = vadd.f32 %v1032, %v1083
        %v1085 = vpop.f32.mrf.mxu0
        %v1086 = vpop.f32.mrf.mxu0
        %v1087 = vpop.f32.mrf.mxu0
        %1088 = vdwg.mxu0
        %v1089 = vld [vmem:[%s10] sm:$0xf]
        %v1090 = vld [vmem:[%s10 + $0x4] sm:$0xf]
        %v1091 = vld [vmem:[%s10 + $0x8] sm:$0xf]
        %v1092 = vld [vmem:[%s10 + $0xc] sm:$0xf]
        %v1093 = vld [vmem:[%s11] sm:$0x1]
        %v1094 = vmul.f32 %v1018, 0.35355338
        %1096 = vrot.lane.b32.xlu0 %v1094, 120
        %v1097 = vpop.permute.xlu0 %1096
        %1099 = vrot.lane.b32.xlu0 %v1094, 112
        %v1100 = vpop.permute.xlu0 %1099
        %1102 = vrot.lane.b32.xlu0 %v1094, 104
        %v1103 = vpop.permute.xlu0 %1102
        %v1105 = vcombine.low %v1094, %v1100
        %v1106 = vcombine.high %v1094, %v1100
        %v1108 = vunpack.c.l.s4 1983009808
        %v1109 = vunpack.c.0.s8 %v1108
        %v1110 = vlaneseq
        %v1111 = vshrl.u32 %v1110, 7
        %v1112 = vsub.s32 %v1109, %v1111
        %v1113 = vrot.slane %v1105, %v1112
        %v1115 = vunpack.c.l.s4 1983009808
        %v1116 = vunpack.c.0.s8 %v1115
        %v1117 = vlaneseq
        %v1118 = vshrl.u32 %v1117, 7
        %v1119 = vsub.s32 %v1116, %v1118
        %v1120 = vrot.slane %v1106, %v1119
        %v1121 = vcombine.low %v1097, %v1103
        %v1122 = vcombine.high %v1097, %v1103
        %v1124 = vunpack.c.l.s4 1983009808
        %v1125 = vunpack.c.0.s8 %v1124
        %v1126 = vlaneseq
        %v1127 = vshrl.u32 %v1126, 7
        %v1128 = vsub.s32 %v1125, %v1127
        %v1129 = vrot.slane %v1121, %v1128
        %v1131 = vunpack.c.l.s4 1983009808
        %v1132 = vunpack.c.0.s8 %v1131
        %v1133 = vlaneseq
        %v1134 = vshrl.u32 %v1133, 7
        %v1135 = vsub.s32 %v1132, %v1134
        %v1136 = vrot.slane %v1122, %v1135
        %v1137 = vcombine.low %v1113, %v1129
        %v1138 = vcombine.high %v1113, %v1129
        %v1140 = vunpack.c.l.s4 1934713408
        %v1141 = vunpack.c.0.s8 %v1140
        %v1142 = vlaneseq
        %v1143 = vshrl.u32 %v1142, 7
        %v1144 = vsub.s32 %v1141, %v1143
        %v1145 = vrot.slane %v1137, %v1144
        %v1147 = vunpack.c.l.s4 1934713408
        %v1148 = vunpack.c.0.s8 %v1147
        %v1149 = vlaneseq
        %v1150 = vshrl.u32 %v1149, 7
        %v1151 = vsub.s32 %v1148, %v1150
        %v1152 = vrot.slane %v1138, %v1151
        %v1153 = vcombine.low %v1120, %v1136
        %v1154 = vcombine.high %v1120, %v1136
        %v1156 = vunpack.c.l.s4 1934713408
        %v1157 = vunpack.c.0.s8 %v1156
        %v1158 = vlaneseq
        %v1159 = vshrl.u32 %v1158, 7
        %v1160 = vsub.s32 %v1157, %v1159
        %v1161 = vrot.slane %v1153, %v1160
        %v1163 = vunpack.c.l.s4 1934713408
        %v1164 = vunpack.c.0.s8 %v1163
        %v1165 = vlaneseq
        %v1166 = vshrl.u32 %v1165, 7
        %v1167 = vsub.s32 %v1164, %v1166
        %v1168 = vrot.slane %v1154, %v1167
        %v1169 = vcombine.high %v1145, 0.0
        %v1170 = vcombine.high %v1152, 0.0
        %v1171 = vcombine.high %v1161, 0.0
        %v1172 = vcombine.high %v1168, 0.0
        %v1173 = vcombine.low %v1145, %v1152
        %v1175 = vunpack.c.l.s4 1983009808
        %v1176 = vunpack.c.0.s8 %v1175
        %v1177 = vlaneseq
        %v1178 = vshrl.u32 %v1177, 7
        %v1179 = vsub.s32 %v1176, %v1178
        %v1180 = vrot.slane %v1173, %v1179
        %v1181 = vcombine.low %v1169, %v1170
        %v1183 = vunpack.c.l.s4 1983009808
        %v1184 = vunpack.c.0.s8 %v1183
        %v1185 = vlaneseq
        %v1186 = vshrl.u32 %v1185, 7
        %v1187 = vsub.s32 %v1184, %v1186
        %v1188 = vrot.slane %v1181, %v1187
        %v1189 = vcombine.low %v1161, %v1168
        %v1191 = vunpack.c.l.s4 1983009808
        %v1192 = vunpack.c.0.s8 %v1191
        %v1193 = vlaneseq
        %v1194 = vshrl.u32 %v1193, 7
        %v1195 = vsub.s32 %v1192, %v1194
        %v1196 = vrot.slane %v1189, %v1195
        %v1197 = vcombine.low %v1171, %v1172
        %v1199 = vunpack.c.l.s4 1983009808
        %v1200 = vunpack.c.0.s8 %v1199
        %v1201 = vlaneseq
        %v1202 = vshrl.u32 %v1201, 7
        %v1203 = vsub.s32 %v1200, %v1202
        %v1204 = vrot.slane %v1197, %v1203
        %v1205 = vcombine.low %v1180, %v1188
        %v1206 = vcombine.high %v1180, %v1188
        %v1208 = vunpack.c.l.s4 1934713408
        %v1209 = vunpack.c.0.s8 %v1208
        %v1210 = vlaneseq
        %v1211 = vshrl.u32 %v1210, 7
        %v1212 = vsub.s32 %v1209, %v1211
        %v1213 = vrot.slane %v1205, %v1212
        %v1215 = vunpack.c.l.s4 1934713408
        %v1216 = vunpack.c.0.s8 %v1215
        %v1217 = vlaneseq
        %v1218 = vshrl.u32 %v1217, 7
        %v1219 = vsub.s32 %v1216, %v1218
        %v1220 = vrot.slane %v1206, %v1219
        %v1221 = vcombine.low %v1196, %v1204
        %v1222 = vcombine.high %v1196, %v1204
        %v1224 = vunpack.c.l.s4 1934713408
        %v1225 = vunpack.c.0.s8 %v1224
        %v1226 = vlaneseq
        %v1227 = vshrl.u32 %v1226, 7
        %v1228 = vsub.s32 %v1225, %v1227
        %v1229 = vrot.slane %v1221, %v1228
        %v1231 = vunpack.c.l.s4 1934713408
        %v1232 = vunpack.c.0.s8 %v1231
        %v1233 = vlaneseq
        %v1234 = vshrl.u32 %v1233, 7
        %v1235 = vsub.s32 %v1232, %v1234
        %v1236 = vrot.slane %v1222, %v1235
        %v1237 = vcombine.low %v1213, %v1229
        %v1238 = vcombine.high %v1213, %v1229
        %v1239 = vcombine.low %v1220, %v1236
        %v1240 = vcombine.high %v1220, %v1236
        %1242 = vrot.lane.b32.xlu0 %v1084, 120
        %v1243 = vpop.permute.xlu0 %1242
        %1245 = vrot.lane.b32.xlu0 %v1084, 112
        %v1246 = vpop.permute.xlu0 %1245
        %1248 = vrot.lane.b32.xlu0 %v1084, 104
        %v1249 = vpop.permute.xlu0 %1248
        %v1251 = vcombine.low %v1084, %v1246
        %v1252 = vcombine.high %v1084, %v1246
        %v1254 = vunpack.c.l.s4 1983009808
        %v1255 = vunpack.c.0.s8 %v1254
        %v1256 = vlaneseq
        %v1257 = vshrl.u32 %v1256, 7
        %v1258 = vsub.s32 %v1255, %v1257
        %v1259 = vrot.slane %v1251, %v1258
        %v1261 = vunpack.c.l.s4 1983009808
        %v1262 = vunpack.c.0.s8 %v1261
        %v1263 = vlaneseq
        %v1264 = vshrl.u32 %v1263, 7
        %v1265 = vsub.s32 %v1262, %v1264
        %v1266 = vrot.slane %v1252, %v1265
        %v1267 = vcombine.low %v1243, %v1249
        %v1268 = vcombine.high %v1243, %v1249
        %v1270 = vunpack.c.l.s4 1983009808
        %v1271 = vunpack.c.0.s8 %v1270
        %v1272 = vlaneseq
        %v1273 = vshrl.u32 %v1272, 7
        %v1274 = vsub.s32 %v1271, %v1273
        %v1275 = vrot.slane %v1267, %v1274
        %v1277 = vunpack.c.l.s4 1983009808
        %v1278 = vunpack.c.0.s8 %v1277
        %v1279 = vlaneseq
        %v1280 = vshrl.u32 %v1279, 7
        %v1281 = vsub.s32 %v1278, %v1280
        %v1282 = vrot.slane %v1268, %v1281
        %v1283 = vcombine.low %v1259, %v1275
        %v1284 = vcombine.high %v1259, %v1275
        %v1286 = vunpack.c.l.s4 1934713408
        %v1287 = vunpack.c.0.s8 %v1286
        %v1288 = vlaneseq
        %v1289 = vshrl.u32 %v1288, 7
        %v1290 = vsub.s32 %v1287, %v1289
        %v1291 = vrot.slane %v1283, %v1290
        %v1293 = vunpack.c.l.s4 1934713408
        %v1294 = vunpack.c.0.s8 %v1293
        %v1295 = vlaneseq
        %v1296 = vshrl.u32 %v1295, 7
        %v1297 = vsub.s32 %v1294, %v1296
        %v1298 = vrot.slane %v1284, %v1297
        %v1299 = vcombine.low %v1266, %v1282
        %v1300 = vcombine.high %v1266, %v1282
        %v1302 = vunpack.c.l.s4 1934713408
        %v1303 = vunpack.c.0.s8 %v1302
        %v1304 = vlaneseq
        %v1305 = vshrl.u32 %v1304, 7
        %v1306 = vsub.s32 %v1303, %v1305
        %v1307 = vrot.slane %v1299, %v1306
        %v1309 = vunpack.c.l.s4 1934713408
        %v1310 = vunpack.c.0.s8 %v1309
        %v1311 = vlaneseq
        %v1312 = vshrl.u32 %v1311, 7
        %v1313 = vsub.s32 %v1310, %v1312
        %v1314 = vrot.slane %v1300, %v1313
        %v1315 = vcombine.high %v1291, 0.0
        %v1316 = vcombine.high %v1298, 0.0
        %v1317 = vcombine.high %v1307, 0.0
        %v1318 = vcombine.high %v1314, 0.0
        %v1319 = vcombine.low %v1291, %v1298
        %v1321 = vunpack.c.l.s4 1983009808
        %v1322 = vunpack.c.0.s8 %v1321
        %v1323 = vlaneseq
        %v1324 = vshrl.u32 %v1323, 7
        %v1325 = vsub.s32 %v1322, %v1324
        %v1326 = vrot.slane %v1319, %v1325
        %v1327 = vcombine.low %v1315, %v1316
        %v1329 = vunpack.c.l.s4 1983009808
        %v1330 = vunpack.c.0.s8 %v1329
        %v1331 = vlaneseq
        %v1332 = vshrl.u32 %v1331, 7
        %v1333 = vsub.s32 %v1330, %v1332
        %v1334 = vrot.slane %v1327, %v1333
        %v1335 = vcombine.low %v1307, %v1314
        %v1337 = vunpack.c.l.s4 1983009808
        %v1338 = vunpack.c.0.s8 %v1337
        %v1339 = vlaneseq
        %v1340 = vshrl.u32 %v1339, 7
        %v1341 = vsub.s32 %v1338, %v1340
        %v1342 = vrot.slane %v1335, %v1341
        %v1343 = vcombine.low %v1317, %v1318
        %v1345 = vunpack.c.l.s4 1983009808
        %v1346 = vunpack.c.0.s8 %v1345
        %v1347 = vlaneseq
        %v1348 = vshrl.u32 %v1347, 7
        %v1349 = vsub.s32 %v1346, %v1348
        %v1350 = vrot.slane %v1343, %v1349
        %v1351 = vcombine.low %v1326, %v1334
        %v1352 = vcombine.high %v1326, %v1334
        %v1354 = vunpack.c.l.s4 1934713408
        %v1355 = vunpack.c.0.s8 %v1354
        %v1356 = vlaneseq
        %v1357 = vshrl.u32 %v1356, 7
        %v1358 = vsub.s32 %v1355, %v1357
        %v1359 = vrot.slane %v1351, %v1358
        %v1361 = vunpack.c.l.s4 1934713408
        %v1362 = vunpack.c.0.s8 %v1361
        %v1363 = vlaneseq
        %v1364 = vshrl.u32 %v1363, 7
        %v1365 = vsub.s32 %v1362, %v1364
        %v1366 = vrot.slane %v1352, %v1365
        %v1367 = vcombine.low %v1342, %v1350
        %v1368 = vcombine.high %v1342, %v1350
        %v1370 = vunpack.c.l.s4 1934713408
        %v1371 = vunpack.c.0.s8 %v1370
        %v1372 = vlaneseq
        %v1373 = vshrl.u32 %v1372, 7
        %v1374 = vsub.s32 %v1371, %v1373
        %v1375 = vrot.slane %v1367, %v1374
        %v1377 = vunpack.c.l.s4 1934713408
        %v1378 = vunpack.c.0.s8 %v1377
        %v1379 = vlaneseq
        %v1380 = vshrl.u32 %v1379, 7
        %v1381 = vsub.s32 %v1378, %v1380
        %v1382 = vrot.slane %v1368, %v1381
        %v1383 = vcombine.low %v1359, %v1375
        %v1384 = vcombine.high %v1359, %v1375
        %v1385 = vcombine.low %v1366, %v1382
        %v1386 = vcombine.high %v1366, %v1382
        %1387 = vrot.lane.b32.xlu0 %v1084, 96
        %v1388 = vpop.permute.xlu0 %1387
        %1389 = vrot.lane.b32.xlu0 %v1243, 96
        %v1390 = vpop.permute.xlu0 %1389
        %1391 = vrot.lane.b32.xlu0 %v1246, 96
        %v1392 = vpop.permute.xlu0 %1391
        %1393 = vrot.lane.b32.xlu0 %v1249, 96
        %v1394 = vpop.permute.xlu0 %1393
        %v1399 = vcombine.low %v1388, %v1392
        %v1400 = vcombine.high %v1388, %v1392
        %v1402 = vunpack.c.l.s4 1983009808
        %v1403 = vunpack.c.0.s8 %v1402
        %v1404 = vlaneseq
        %v1405 = vshrl.u32 %v1404, 7
        %v1406 = vsub.s32 %v1403, %v1405
        %v1407 = vrot.slane %v1399, %v1406
        %v1409 = vunpack.c.l.s4 1983009808
        %v1410 = vunpack.c.0.s8 %v1409
        %v1411 = vlaneseq
        %v1412 = vshrl.u32 %v1411, 7
        %v1413 = vsub.s32 %v1410, %v1412
        %v1414 = vrot.slane %v1400, %v1413
        %v1415 = vcombine.low %v1390, %v1394
        %v1416 = vcombine.high %v1390, %v1394
        %v1418 = vunpack.c.l.s4 1983009808
        %v1419 = vunpack.c.0.s8 %v1418
        %v1420 = vlaneseq
        %v1421 = vshrl.u32 %v1420, 7
        %v1422 = vsub.s32 %v1419, %v1421
        %v1423 = vrot.slane %v1415, %v1422
        %v1425 = vunpack.c.l.s4 1983009808
        %v1426 = vunpack.c.0.s8 %v1425
        %v1427 = vlaneseq
        %v1428 = vshrl.u32 %v1427, 7
        %v1429 = vsub.s32 %v1426, %v1428
        %v1430 = vrot.slane %v1416, %v1429
        %v1431 = vcombine.low %v1407, %v1423
        %v1432 = vcombine.high %v1407, %v1423
        %v1434 = vunpack.c.l.s4 1934713408
        %v1435 = vunpack.c.0.s8 %v1434
        %v1436 = vlaneseq
        %v1437 = vshrl.u32 %v1436, 7
        %v1438 = vsub.s32 %v1435, %v1437
        %v1439 = vrot.slane %v1431, %v1438
        %v1441 = vunpack.c.l.s4 1934713408
        %v1442 = vunpack.c.0.s8 %v1441
        %v1443 = vlaneseq
        %v1444 = vshrl.u32 %v1443, 7
        %v1445 = vsub.s32 %v1442, %v1444
        %v1446 = vrot.slane %v1432, %v1445
        %v1447 = vcombine.low %v1414, %v1430
        %v1448 = vcombine.high %v1414, %v1430
        %v1450 = vunpack.c.l.s4 1934713408
        %v1451 = vunpack.c.0.s8 %v1450
        %v1452 = vlaneseq
        %v1453 = vshrl.u32 %v1452, 7
        %v1454 = vsub.s32 %v1451, %v1453
        %v1455 = vrot.slane %v1447, %v1454
        %v1457 = vunpack.c.l.s4 1934713408
        %v1458 = vunpack.c.0.s8 %v1457
        %v1459 = vlaneseq
        %v1460 = vshrl.u32 %v1459, 7
        %v1461 = vsub.s32 %v1458, %v1460
        %v1462 = vrot.slane %v1448, %v1461
        %v1463 = vcombine.high %v1439, 0.0
        %v1464 = vcombine.high %v1446, 0.0
        %v1465 = vcombine.high %v1455, 0.0
        %v1466 = vcombine.high %v1462, 0.0
        %v1467 = vcombine.low %v1439, %v1446
        %v1469 = vunpack.c.l.s4 1983009808
        %v1470 = vunpack.c.0.s8 %v1469
        %v1471 = vlaneseq
        %v1472 = vshrl.u32 %v1471, 7
        %v1473 = vsub.s32 %v1470, %v1472
        %v1474 = vrot.slane %v1467, %v1473
        %v1475 = vcombine.low %v1463, %v1464
        %v1477 = vunpack.c.l.s4 1983009808
        %v1478 = vunpack.c.0.s8 %v1477
        %v1479 = vlaneseq
        %v1480 = vshrl.u32 %v1479, 7
        %v1481 = vsub.s32 %v1478, %v1480
        %v1482 = vrot.slane %v1475, %v1481
        %v1483 = vcombine.low %v1455, %v1462
        %v1485 = vunpack.c.l.s4 1983009808
        %v1486 = vunpack.c.0.s8 %v1485
        %v1487 = vlaneseq
        %v1488 = vshrl.u32 %v1487, 7
        %v1489 = vsub.s32 %v1486, %v1488
        %v1490 = vrot.slane %v1483, %v1489
        %v1491 = vcombine.low %v1465, %v1466
        %v1493 = vunpack.c.l.s4 1983009808
        %v1494 = vunpack.c.0.s8 %v1493
        %v1495 = vlaneseq
        %v1496 = vshrl.u32 %v1495, 7
        %v1497 = vsub.s32 %v1494, %v1496
        %v1498 = vrot.slane %v1491, %v1497
        %v1499 = vcombine.low %v1474, %v1482
        %v1500 = vcombine.high %v1474, %v1482
        %v1502 = vunpack.c.l.s4 1934713408
        %v1503 = vunpack.c.0.s8 %v1502
        %v1504 = vlaneseq
        %v1505 = vshrl.u32 %v1504, 7
        %v1506 = vsub.s32 %v1503, %v1505
        %v1507 = vrot.slane %v1499, %v1506
        %v1509 = vunpack.c.l.s4 1934713408
        %v1510 = vunpack.c.0.s8 %v1509
        %v1511 = vlaneseq
        %v1512 = vshrl.u32 %v1511, 7
        %v1513 = vsub.s32 %v1510, %v1512
        %v1514 = vrot.slane %v1500, %v1513
        %v1515 = vcombine.low %v1490, %v1498
        %v1516 = vcombine.high %v1490, %v1498
        %v1518 = vunpack.c.l.s4 1934713408
        %v1519 = vunpack.c.0.s8 %v1518
        %v1520 = vlaneseq
        %v1521 = vshrl.u32 %v1520, 7
        %v1522 = vsub.s32 %v1519, %v1521
        %v1523 = vrot.slane %v1515, %v1522
        %v1525 = vunpack.c.l.s4 1934713408
        %v1526 = vunpack.c.0.s8 %v1525
        %v1527 = vlaneseq
        %v1528 = vshrl.u32 %v1527, 7
        %v1529 = vsub.s32 %v1526, %v1528
        %v1530 = vrot.slane %v1516, %v1529
        %v1531 = vcombine.low %v1507, %v1523
        %v1532 = vcombine.high %v1507, %v1523
        %v1533 = vcombine.low %v1514, %v1530
        %v1534 = vcombine.high %v1514, %v1530
        %v1535 = vpack.c.bf16 %v1237, %v1237
        %v1536 = vpack.c.bf16 %v1238, %v1238
        %v1537 = vpack.c.bf16 %v1239, %v1239
        %v1538 = vpack.c.bf16 %v1240, %v1240
        %v1539 = vpack.c.bf16 %v1383, %v1383
        %v1540 = vpack.c.bf16 %v1384, %v1384
        %v1541 = vpack.c.bf16 %v1385, %v1385
        %v1542 = vpack.c.bf16 %v1386, %v1386
        %v1544 = vlaneseq
        %v1545 = vshrl.u32 %v1544, 7
        %v1546 = vsub.s32 0, %v1545
        %v1547 = vrot.slane %v954, %v1546
        %vm1549 = vcmask 64512
        %v1551 = vsel %vm1549, %v1535, 0
        %v1554 = vsel %vm1549, %v1539, 0
        %1556 = vmatprep.subr.bf16.mxu0 0
        %1557 = vmatpush1.bf16.xpose.msra.mxu0 0
        %1558 = vmatprep.subr.bf16.mxu0 0
        %1559 = vmatpush1.bf16.xpose.msra.mxu0 0
        %1560 = vmatprep.subr.bf16.mxu0 0
        %1561 = vmatpush1.bf16.xpose.msra.mxu0 0
        %1562 = vmatprep.subr.bf16.mxu0 0
        %1563 = vmatpush1.bf16.xpose.msra.mxu0 0
        %1564 = vmatprep.subr.bf16.mxu0 0
        %1565 = vmatpush1.bf16.xpose.msra.mxu0 0
        %1566 = vmatprep.subr.bf16.mxu0 0
        %1567 = vmatpush1.bf16.xpose.msra.mxu0 0
        %1568 = vmatprep.subr.bf16.mxu0 0
        %1569 = vmatpush1.bf16.xpose.msra.mxu0 0
        %1570 = vmatprep.subr.bf16.mxu0 0
        %1571 = vmatpush1.bf16.xpose.msra.mxu0 %v1554
        %1572 = vmatprep.subr.bf16.mxu0 0
        %1573 = vmatpush2.bf16.xpose.msra.mxu0 0
        %1574 = vmatprep.subr.bf16.mxu0 0
        %1575 = vmatpush2.bf16.xpose.msra.mxu0 0
        %1576 = vmatprep.subr.bf16.mxu0 0
        %1577 = vmatpush2.bf16.xpose.msra.mxu0 0
        %1578 = vmatprep.subr.bf16.mxu0 0
        %1579 = vmatpush2.bf16.xpose.msra.mxu0 0
        %1580 = vmatprep.subr.bf16.mxu0 0
        %1581 = vmatpush2.bf16.xpose.msra.mxu0 0
        %1582 = vmatprep.subr.bf16.mxu0 0
        %1583 = vmatpush2.bf16.xpose.msra.mxu0 0
        %1584 = vmatprep.subr.bf16.mxu0 0
        %1585 = vmatpush2.bf16.xpose.msra.mxu0 0
        %1586 = vmatprep.subr.bf16.mxu0 0
        %1587 = vmatpush2.bf16.xpose.msra.mxu0 0
        %1588 = vmatprep.mubr.bf16.mxu0 0
        %1589 = vmatmul.mubr.bf16.gmra.mxu0 %v1551
        %v1590 = vpop.f32.mrf.mxu0
        %v1591 = vadd.f32 %v1547, %v1590
        %v1592 = vpop.f32.mrf.mxu0
        %v1593 = vpop.f32.mrf.mxu0
        %v1594 = vpop.f32.mrf.mxu0
        %1595 = vdwg.mxu0
        %v1597 = vsel %vm1549, %v1536, 0
        %v1600 = vsel %vm1549, %v1540, 0
        %1602 = vmatprep.subr.bf16.mxu0 0
        %1603 = vmatpush1.bf16.xpose.msra.mxu0 0
        %1604 = vmatprep.subr.bf16.mxu0 0
        %1605 = vmatpush1.bf16.xpose.msra.mxu0 0
        %1606 = vmatprep.subr.bf16.mxu0 0
        %1607 = vmatpush1.bf16.xpose.msra.mxu0 0
        %1608 = vmatprep.subr.bf16.mxu0 0
        %1609 = vmatpush1.bf16.xpose.msra.mxu0 0
        %1610 = vmatprep.subr.bf16.mxu0 0
        %1611 = vmatpush1.bf16.xpose.msra.mxu0 0
        %1612 = vmatprep.subr.bf16.mxu0 0
        %1613 = vmatpush1.bf16.xpose.msra.mxu0 0
        %1614 = vmatprep.subr.bf16.mxu0 0
        %1615 = vmatpush1.bf16.xpose.msra.mxu0 0
        %1616 = vmatprep.subr.bf16.mxu0 0
        %1617 = vmatpush1.bf16.xpose.msra.mxu0 %v1600
        %1618 = vmatprep.subr.bf16.mxu0 0
        %1619 = vmatpush2.bf16.xpose.msra.mxu0 0
        %1620 = vmatprep.subr.bf16.mxu0 0
        %1621 = vmatpush2.bf16.xpose.msra.mxu0 0
        %1622 = vmatprep.subr.bf16.mxu0 0
        %1623 = vmatpush2.bf16.xpose.msra.mxu0 0
        %1624 = vmatprep.subr.bf16.mxu0 0
        %1625 = vmatpush2.bf16.xpose.msra.mxu0 0
        %1626 = vmatprep.subr.bf16.mxu0 0
        %1627 = vmatpush2.bf16.xpose.msra.mxu0 0
        %1628 = vmatprep.subr.bf16.mxu0 0
        %1629 = vmatpush2.bf16.xpose.msra.mxu0 0
        %1630 = vmatprep.subr.bf16.mxu0 0
        %1631 = vmatpush2.bf16.xpose.msra.mxu0 0
        %1632 = vmatprep.subr.bf16.mxu0 0
        %1633 = vmatpush2.bf16.xpose.msra.mxu0 0
        %1634 = vmatprep.mubr.bf16.mxu0 0
        %1635 = vmatmul.mubr.bf16.gmra.mxu0 %v1597
        %v1636 = vpop.f32.mrf.mxu0
        %v1637 = vadd.f32 %v1547, %v1636
        %v1638 = vpop.f32.mrf.mxu0
        %v1639 = vpop.f32.mrf.mxu0
        %v1640 = vpop.f32.mrf.mxu0
        %1641 = vdwg.mxu0
        %v1643 = vsel %vm1549, %v1537, 0
        %v1646 = vsel %vm1549, %v1541, 0
        %1648 = vmatprep.subr.bf16.mxu0 0
        %1649 = vmatpush1.bf16.xpose.msra.mxu0 0
        %1650 = vmatprep.subr.bf16.mxu0 0
        %1651 = vmatpush1.bf16.xpose.msra.mxu0 0
        %1652 = vmatprep.subr.bf16.mxu0 0
        %1653 = vmatpush1.bf16.xpose.msra.mxu0 0
        %1654 = vmatprep.subr.bf16.mxu0 0
        %1655 = vmatpush1.bf16.xpose.msra.mxu0 0
        %1656 = vmatprep.subr.bf16.mxu0 0
        %1657 = vmatpush1.bf16.xpose.msra.mxu0 0
        %1658 = vmatprep.subr.bf16.mxu0 0
        %1659 = vmatpush1.bf16.xpose.msra.mxu0 0
        %1660 = vmatprep.subr.bf16.mxu0 0
        %1661 = vmatpush1.bf16.xpose.msra.mxu0 0
        %1662 = vmatprep.subr.bf16.mxu0 0
        %1663 = vmatpush1.bf16.xpose.msra.mxu0 %v1646
        %1664 = vmatprep.subr.bf16.mxu0 0
        %1665 = vmatpush2.bf16.xpose.msra.mxu0 0
        %1666 = vmatprep.subr.bf16.mxu0 0
        %1667 = vmatpush2.bf16.xpose.msra.mxu0 0
        %1668 = vmatprep.subr.bf16.mxu0 0
        %1669 = vmatpush2.bf16.xpose.msra.mxu0 0
        %1670 = vmatprep.subr.bf16.mxu0 0
        %1671 = vmatpush2.bf16.xpose.msra.mxu0 0
        %1672 = vmatprep.subr.bf16.mxu0 0
        %1673 = vmatpush2.bf16.xpose.msra.mxu0 0
        %1674 = vmatprep.subr.bf16.mxu0 0
        %1675 = vmatpush2.bf16.xpose.msra.mxu0 0
        %1676 = vmatprep.subr.bf16.mxu0 0
        %1677 = vmatpush2.bf16.xpose.msra.mxu0 0
        %1678 = vmatprep.subr.bf16.mxu0 0
        %1679 = vmatpush2.bf16.xpose.msra.mxu0 0
        %1680 = vmatprep.mubr.bf16.mxu0 0
        %1681 = vmatmul.mubr.bf16.gmra.mxu0 %v1643
        %v1682 = vpop.f32.mrf.mxu0
        %v1683 = vadd.f32 %v1547, %v1682
        %v1684 = vpop.f32.mrf.mxu0
        %v1685 = vpop.f32.mrf.mxu0
        %v1686 = vpop.f32.mrf.mxu0
        %1687 = vdwg.mxu0
        %v1689 = vsel %vm1549, %v1538, 0
        %v1692 = vsel %vm1549, %v1542, 0
        %1694 = vmatprep.subr.bf16.mxu0 0
        %1695 = vmatpush1.bf16.xpose.msra.mxu0 0
        %1696 = vmatprep.subr.bf16.mxu0 0
        %1697 = vmatpush1.bf16.xpose.msra.mxu0 0
        %1698 = vmatprep.subr.bf16.mxu0 0
        %1699 = vmatpush1.bf16.xpose.msra.mxu0 0
        %1700 = vmatprep.subr.bf16.mxu0 0
        %1701 = vmatpush1.bf16.xpose.msra.mxu0 0
        %1702 = vmatprep.subr.bf16.mxu0 0
        %1703 = vmatpush1.bf16.xpose.msra.mxu0 0
        %1704 = vmatprep.subr.bf16.mxu0 0
        %1705 = vmatpush1.bf16.xpose.msra.mxu0 0
        %1706 = vmatprep.subr.bf16.mxu0 0
        %1707 = vmatpush1.bf16.xpose.msra.mxu0 0
        %1708 = vmatprep.subr.bf16.mxu0 0
        %1709 = vmatpush1.bf16.xpose.msra.mxu0 %v1692
        %1710 = vmatprep.subr.bf16.mxu0 0
        %1711 = vmatpush2.bf16.xpose.msra.mxu0 0
        %1712 = vmatprep.subr.bf16.mxu0 0
        %1713 = vmatpush2.bf16.xpose.msra.mxu0 0
        %1714 = vmatprep.subr.bf16.mxu0 0
        %1715 = vmatpush2.bf16.xpose.msra.mxu0 0
        %1716 = vmatprep.subr.bf16.mxu0 0
        %1717 = vmatpush2.bf16.xpose.msra.mxu0 0
        %1718 = vmatprep.subr.bf16.mxu0 0
        %1719 = vmatpush2.bf16.xpose.msra.mxu0 0
        %1720 = vmatprep.subr.bf16.mxu0 0
        %1721 = vmatpush2.bf16.xpose.msra.mxu0 0
        %1722 = vmatprep.subr.bf16.mxu0 0
        %1723 = vmatpush2.bf16.xpose.msra.mxu0 0
        %1724 = vmatprep.subr.bf16.mxu0 0
        %1725 = vmatpush2.bf16.xpose.msra.mxu0 0
        %1726 = vmatprep.mubr.bf16.mxu0 0
        %1727 = vmatmul.mubr.bf16.gmra.mxu0 %v1689
        %v1728 = vpop.f32.mrf.mxu0
        %v1729 = vadd.f32 %v1547, %v1728
        %v1730 = vpop.f32.mrf.mxu0
        %v1731 = vpop.f32.mrf.mxu0
        %v1732 = vpop.f32.mrf.mxu0
        %1733 = vdwg.mxu0
        %v1734 = vsel %vm1549, %v1591, -inf
        %1735 = vmax.xlane.f32.xlu0 %v1734
        %v1736 = vpop.xlane.xlu0 %1735
        %v1737 = vsel %vm1549, %v1637, -inf
        %1738 = vmax.xlane.f32.xlu0 %v1737
        %v1739 = vpop.xlane.xlu0 %1738
        %v1740 = vsel %vm1549, %v1683, -inf
        %1741 = vmax.xlane.f32.xlu0 %v1740
        %v1742 = vpop.xlane.xlu0 %1741
        %v1743 = vsel %vm1549, %v1729, -inf
        %1744 = vmax.xlane.f32.xlu0 %v1743
        %v1745 = vpop.xlane.xlu0 %1744
        %v1746 = vsub.f32 %v1591, %v1736
        %v1747 = vsub.f32 %v1637, %v1739
        %v1748 = vsub.f32 %v1683, %v1742
        %v1749 = vsub.f32 %v1729, %v1745
        %v1750 = vmul.f32 %v1746, 1.442695
        %v1751 = vpow.pop %v1750
        %v1752 = vmul.f32 %v1747, 1.442695
        %v1753 = vpow.pop %v1752
        %v1754 = vmul.f32 %v1748, 1.442695
        %v1755 = vpow.pop %v1754
        %v1756 = vmul.f32 %v1749, 1.442695
        %v1757 = vpow.pop %v1756
        %v1758 = vsel %vm1549, %v1751, 0.0
        %1759 = vadd.xlane.f32.xlu0 %v1758
        %v1760 = vpop.xlane.xlu0 %1759
        %v1761 = vsel %vm1549, %v1753, 0.0
        %1762 = vadd.xlane.f32.xlu0 %v1761
        %v1763 = vpop.xlane.xlu0 %1762
        %v1764 = vsel %vm1549, %v1755, 0.0
        %1765 = vadd.xlane.f32.xlu0 %v1764
        %v1766 = vpop.xlane.xlu0 %1765
        %v1767 = vsel %vm1549, %v1757, 0.0
        %1768 = vadd.xlane.f32.xlu0 %v1767
        %v1769 = vpop.xlane.xlu0 %1768
        %v1770 = vrcp.pop %v1760
        %v1771 = vrcp.pop %v1763
        %v1772 = vrcp.pop %v1766
        %v1773 = vrcp.pop %v1769
        %v1774 = vmul.f32 %v1751, %v1770
        %v1775 = vmul.f32 %v1753, %v1771
        %v1776 = vmul.f32 %v1755, %v1772
        %v1777 = vmul.f32 %v1757, %v1773
        %v1778 = vpack.c.bf16 %v1774, %v1774
        %v1779 = vpack.c.bf16 %v1775, %v1775
        %v1780 = vpack.c.bf16 %v1776, %v1776
        %v1781 = vpack.c.bf16 %v1777, %v1777
        %v1782 = vpack.c.bf16 %v1531, %v1531
        %v1783 = vpack.c.bf16 %v1532, %v1532
        %v1784 = vpack.c.bf16 %v1533, %v1533
        %v1785 = vpack.c.bf16 %v1534, %v1534
        %v1787 = vsel %vm1549, %v1778, 0
        %vm1789 = vcmask 1043456
        %v1791 = vsel %vm1789, %v1782, 0
        %1793 = vmatprep.subr.bf16.mxu0 0
        %1794 = vmatpush1.bf16.msra.mxu0 0
        %1795 = vmatprep.subr.bf16.mxu0 0
        %1796 = vmatpush1.bf16.msra.mxu0 0
        %1797 = vmatprep.subr.bf16.mxu0 0
        %1798 = vmatpush1.bf16.msra.mxu0 0
        %1799 = vmatprep.subr.bf16.mxu0 0
        %1800 = vmatpush1.bf16.msra.mxu0 0
        %1801 = vmatprep.subr.bf16.mxu0 0
        %1802 = vmatpush1.bf16.msra.mxu0 0
        %1803 = vmatprep.subr.bf16.mxu0 0
        %1804 = vmatpush1.bf16.msra.mxu0 0
        %1805 = vmatprep.subr.bf16.mxu0 0
        %1806 = vmatpush1.bf16.msra.mxu0 0
        %1807 = vmatprep.subr.bf16.mxu0 0
        %1808 = vmatpush1.bf16.msra.mxu0 %v1791
        %1809 = vmatprep.subr.bf16.mxu0 0
        %1810 = vmatpush2.bf16.msra.mxu0 0
        %1811 = vmatprep.subr.bf16.mxu0 0
        %1812 = vmatpush2.bf16.msra.mxu0 0
        %1813 = vmatprep.subr.bf16.mxu0 0
        %1814 = vmatpush2.bf16.msra.mxu0 0
        %1815 = vmatprep.subr.bf16.mxu0 0
        %1816 = vmatpush2.bf16.msra.mxu0 0
        %1817 = vmatprep.subr.bf16.mxu0 0
        %1818 = vmatpush2.bf16.msra.mxu0 0
        %1819 = vmatprep.subr.bf16.mxu0 0
        %1820 = vmatpush2.bf16.msra.mxu0 0
        %1821 = vmatprep.subr.bf16.mxu0 0
        %1822 = vmatpush2.bf16.msra.mxu0 0
        %1823 = vmatprep.subr.bf16.mxu0 0
        %1824 = vmatpush2.bf16.msra.mxu0 0
        %1825 = vmatprep.mubr.bf16.mxu0 0
        %1826 = vmatmul.mubr.bf16.gmra.mxu0 %v1787
        %v1827 = vpop.f32.mrf.mxu0
        %v1828 = vadd.f32 0.0, %v1827
        %v1829 = vpop.f32.mrf.mxu0
        %v1830 = vpop.f32.mrf.mxu0
        %v1831 = vpop.f32.mrf.mxu0
        %1832 = vdwg.mxu0
        %v1834 = vsel %vm1549, %v1779, 0
        %v1837 = vsel %vm1789, %v1783, 0
        %1839 = vmatprep.subr.bf16.mxu0 0
        %1840 = vmatpush1.bf16.msra.mxu0 0
        %1841 = vmatprep.subr.bf16.mxu0 0
        %1842 = vmatpush1.bf16.msra.mxu0 0
        %1843 = vmatprep.subr.bf16.mxu0 0
        %1844 = vmatpush1.bf16.msra.mxu0 0
        %1845 = vmatprep.subr.bf16.mxu0 0
        %1846 = vmatpush1.bf16.msra.mxu0 0
        %1847 = vmatprep.subr.bf16.mxu0 0
        %1848 = vmatpush1.bf16.msra.mxu0 0
        %1849 = vmatprep.subr.bf16.mxu0 0
        %1850 = vmatpush1.bf16.msra.mxu0 0
        %1851 = vmatprep.subr.bf16.mxu0 0
        %1852 = vmatpush1.bf16.msra.mxu0 0
        %1853 = vmatprep.subr.bf16.mxu0 0
        %1854 = vmatpush1.bf16.msra.mxu0 %v1837
        %1855 = vmatprep.subr.bf16.mxu0 0
        %1856 = vmatpush2.bf16.msra.mxu0 0
        %1857 = vmatprep.subr.bf16.mxu0 0
        %1858 = vmatpush2.bf16.msra.mxu0 0
        %1859 = vmatprep.subr.bf16.mxu0 0
        %1860 = vmatpush2.bf16.msra.mxu0 0
        %1861 = vmatprep.subr.bf16.mxu0 0
        %1862 = vmatpush2.bf16.msra.mxu0 0
        %1863 = vmatprep.subr.bf16.mxu0 0
        %1864 = vmatpush2.bf16.msra.mxu0 0
        %1865 = vmatprep.subr.bf16.mxu0 0
        %1866 = vmatpush2.bf16.msra.mxu0 0
        %1867 = vmatprep.subr.bf16.mxu0 0
        %1868 = vmatpush2.bf16.msra.mxu0 0
        %1869 = vmatprep.subr.bf16.mxu0 0
        %1870 = vmatpush2.bf16.msra.mxu0 0
        %1871 = vmatprep.mubr.bf16.mxu0 0
        %1872 = vmatmul.mubr.bf16.gmra.mxu0 %v1834
        %v1873 = vpop.f32.mrf.mxu0
        %v1874 = vadd.f32 0.0, %v1873
        %v1875 = vpop.f32.mrf.mxu0
        %v1876 = vpop.f32.mrf.mxu0
        %v1877 = vpop.f32.mrf.mxu0
        %1878 = vdwg.mxu0
        %v1880 = vsel %vm1549, %v1780, 0
        %v1883 = vsel %vm1789, %v1784, 0
        %1885 = vmatprep.subr.bf16.mxu0 0
        %1886 = vmatpush1.bf16.msra.mxu0 0
        %1887 = vmatprep.subr.bf16.mxu0 0
        %1888 = vmatpush1.bf16.msra.mxu0 0
        %1889 = vmatprep.subr.bf16.mxu0 0
        %1890 = vmatpush1.bf16.msra.mxu0 0
        %1891 = vmatprep.subr.bf16.mxu0 0
        %1892 = vmatpush1.bf16.msra.mxu0 0
        %1893 = vmatprep.subr.bf16.mxu0 0
        %1894 = vmatpush1.bf16.msra.mxu0 0
        %1895 = vmatprep.subr.bf16.mxu0 0
        %1896 = vmatpush1.bf16.msra.mxu0 0
        %1897 = vmatprep.subr.bf16.mxu0 0
        %1898 = vmatpush1.bf16.msra.mxu0 0
        %1899 = vmatprep.subr.bf16.mxu0 0
        %1900 = vmatpush1.bf16.msra.mxu0 %v1883
        %1901 = vmatprep.subr.bf16.mxu0 0
        %1902 = vmatpush2.bf16.msra.mxu0 0
        %1903 = vmatprep.subr.bf16.mxu0 0
        %1904 = vmatpush2.bf16.msra.mxu0 0
        %1905 = vmatprep.subr.bf16.mxu0 0
        %1906 = vmatpush2.bf16.msra.mxu0 0
        %1907 = vmatprep.subr.bf16.mxu0 0
        %1908 = vmatpush2.bf16.msra.mxu0 0
        %1909 = vmatprep.subr.bf16.mxu0 0
        %1910 = vmatpush2.bf16.msra.mxu0 0
        %1911 = vmatprep.subr.bf16.mxu0 0
        %1912 = vmatpush2.bf16.msra.mxu0 0
        %1913 = vmatprep.subr.bf16.mxu0 0
        %1914 = vmatpush2.bf16.msra.mxu0 0
        %1915 = vmatprep.subr.bf16.mxu0 0
        %1916 = vmatpush2.bf16.msra.mxu0 0
        %1917 = vmatprep.mubr.bf16.mxu0 0
        %1918 = vmatmul.mubr.bf16.gmra.mxu0 %v1880
        %v1919 = vpop.f32.mrf.mxu0
        %v1920 = vadd.f32 0.0, %v1919
        %v1921 = vpop.f32.mrf.mxu0
        %v1922 = vpop.f32.mrf.mxu0
        %v1923 = vpop.f32.mrf.mxu0
        %1924 = vdwg.mxu0
        %v1926 = vsel %vm1549, %v1781, 0
        %v1929 = vsel %vm1789, %v1785, 0
        %1931 = vmatprep.subr.bf16.mxu0 0
        %1932 = vmatpush1.bf16.msra.mxu0 0
        %1933 = vmatprep.subr.bf16.mxu0 0
        %1934 = vmatpush1.bf16.msra.mxu0 0
        %1935 = vmatprep.subr.bf16.mxu0 0
        %1936 = vmatpush1.bf16.msra.mxu0 0
        %1937 = vmatprep.subr.bf16.mxu0 0
        %1938 = vmatpush1.bf16.msra.mxu0 0
        %1939 = vmatprep.subr.bf16.mxu0 0
        %1940 = vmatpush1.bf16.msra.mxu0 0
        %1941 = vmatprep.subr.bf16.mxu0 0
        %1942 = vmatpush1.bf16.msra.mxu0 0
        %1943 = vmatprep.subr.bf16.mxu0 0
        %1944 = vmatpush1.bf16.msra.mxu0 0
        %1945 = vmatprep.subr.bf16.mxu0 0
        %1946 = vmatpush1.bf16.msra.mxu0 %v1929
        %1947 = vmatprep.subr.bf16.mxu0 0
        %1948 = vmatpush2.bf16.msra.mxu0 0
        %1949 = vmatprep.subr.bf16.mxu0 0
        %1950 = vmatpush2.bf16.msra.mxu0 0
        %1951 = vmatprep.subr.bf16.mxu0 0
        %1952 = vmatpush2.bf16.msra.mxu0 0
        %1953 = vmatprep.subr.bf16.mxu0 0
        %1954 = vmatpush2.bf16.msra.mxu0 0
        %1955 = vmatprep.subr.bf16.mxu0 0
        %1956 = vmatpush2.bf16.msra.mxu0 0
        %1957 = vmatprep.subr.bf16.mxu0 0
        %1958 = vmatpush2.bf16.msra.mxu0 0
        %1959 = vmatprep.subr.bf16.mxu0 0
        %1960 = vmatpush2.bf16.msra.mxu0 0
        %1961 = vmatprep.subr.bf16.mxu0 0
        %1962 = vmatpush2.bf16.msra.mxu0 0
        %1963 = vmatprep.mubr.bf16.mxu0 0
        %1964 = vmatmul.mubr.bf16.gmra.mxu0 %v1926
        %v1965 = vpop.f32.mrf.mxu0
        %v1966 = vadd.f32 0.0, %v1965
        %v1967 = vpop.f32.mrf.mxu0
        %v1968 = vpop.f32.mrf.mxu0
        %v1969 = vpop.f32.mrf.mxu0
        %1970 = vdwg.mxu0
        %v1971 = vcombine.low %v1828, %v1920
        %v1972 = vcombine.high %v1828, %v1920
        %v1974 = vunpack.c.l.s4 1983009808
        %v1975 = vunpack.c.0.s8 %v1974
        %v1976 = vlaneseq
        %v1977 = vshrl.u32 %v1976, 7
        %v1978 = vsub.s32 %v1975, %v1977
        %v1979 = vrot.slane %v1971, %v1978
        %v1981 = vunpack.c.l.s4 1983009808
        %v1982 = vunpack.c.0.s8 %v1981
        %v1983 = vlaneseq
        %v1984 = vshrl.u32 %v1983, 7
        %v1985 = vsub.s32 %v1982, %v1984
        %v1986 = vrot.slane %v1972, %v1985
        %v1987 = vcombine.low %v1874, %v1966
        %v1988 = vcombine.high %v1874, %v1966
        %v1990 = vunpack.c.l.s4 1983009808
        %v1991 = vunpack.c.0.s8 %v1990
        %v1992 = vlaneseq
        %v1993 = vshrl.u32 %v1992, 7
        %v1994 = vsub.s32 %v1991, %v1993
        %v1995 = vrot.slane %v1987, %v1994
        %v1997 = vunpack.c.l.s4 1983009808
        %v1998 = vunpack.c.0.s8 %v1997
        %v1999 = vlaneseq
        %v2000 = vshrl.u32 %v1999, 7
        %v2001 = vsub.s32 %v1998, %v2000
        %v2002 = vrot.slane %v1988, %v2001
        %v2003 = vcombine.low %v1979, %v1995
        %v2004 = vcombine.high %v1979, %v1995
        %v2006 = vunpack.c.l.s4 1934713408
        %v2007 = vunpack.c.0.s8 %v2006
        %v2008 = vlaneseq
        %v2009 = vshrl.u32 %v2008, 7
        %v2010 = vsub.s32 %v2007, %v2009
        %v2011 = vrot.slane %v2003, %v2010
        %v2013 = vunpack.c.l.s4 1934713408
        %v2014 = vunpack.c.0.s8 %v2013
        %v2015 = vlaneseq
        %v2016 = vshrl.u32 %v2015, 7
        %v2017 = vsub.s32 %v2014, %v2016
        %v2018 = vrot.slane %v2004, %v2017
        %v2019 = vcombine.low %v1986, %v2002
        %v2020 = vcombine.high %v1986, %v2002
        %v2022 = vunpack.c.l.s4 1934713408
        %v2023 = vunpack.c.0.s8 %v2022
        %v2024 = vlaneseq
        %v2025 = vshrl.u32 %v2024, 7
        %v2026 = vsub.s32 %v2023, %v2025
        %v2027 = vrot.slane %v2019, %v2026
        %v2029 = vunpack.c.l.s4 1934713408
        %v2030 = vunpack.c.0.s8 %v2029
        %v2031 = vlaneseq
        %v2032 = vshrl.u32 %v2031, 7
        %v2033 = vsub.s32 %v2030, %v2032
        %v2034 = vrot.slane %v2020, %v2033
        %v2035 = vcombine.high %v2011, 0.0
        %v2036 = vcombine.high %v2018, 0.0
        %v2037 = vcombine.high %v2027, 0.0
        %v2038 = vcombine.high %v2034, 0.0
        %v2039 = vcombine.low %v2011, %v2018
        %v2041 = vunpack.c.l.s4 1983009808
        %v2042 = vunpack.c.0.s8 %v2041
        %v2043 = vlaneseq
        %v2044 = vshrl.u32 %v2043, 7
        %v2045 = vsub.s32 %v2042, %v2044
        %v2046 = vrot.slane %v2039, %v2045
        %v2047 = vcombine.low %v2035, %v2036
        %v2049 = vunpack.c.l.s4 1983009808
        %v2050 = vunpack.c.0.s8 %v2049
        %v2051 = vlaneseq
        %v2052 = vshrl.u32 %v2051, 7
        %v2053 = vsub.s32 %v2050, %v2052
        %v2054 = vrot.slane %v2047, %v2053
        %v2055 = vcombine.low %v2027, %v2034
        %v2057 = vunpack.c.l.s4 1983009808
        %v2058 = vunpack.c.0.s8 %v2057
        %v2059 = vlaneseq
        %v2060 = vshrl.u32 %v2059, 7
        %v2061 = vsub.s32 %v2058, %v2060
        %v2062 = vrot.slane %v2055, %v2061
        %v2063 = vcombine.low %v2037, %v2038
        %v2065 = vunpack.c.l.s4 1983009808
        %v2066 = vunpack.c.0.s8 %v2065
        %v2067 = vlaneseq
        %v2068 = vshrl.u32 %v2067, 7
        %v2069 = vsub.s32 %v2066, %v2068
        %v2070 = vrot.slane %v2063, %v2069
        %v2071 = vcombine.low %v2046, %v2054
        %v2072 = vcombine.high %v2046, %v2054
        %v2074 = vunpack.c.l.s4 1934713408
        %v2075 = vunpack.c.0.s8 %v2074
        %v2076 = vlaneseq
        %v2077 = vshrl.u32 %v2076, 7
        %v2078 = vsub.s32 %v2075, %v2077
        %v2079 = vrot.slane %v2071, %v2078
        %v2081 = vunpack.c.l.s4 1934713408
        %v2082 = vunpack.c.0.s8 %v2081
        %v2083 = vlaneseq
        %v2084 = vshrl.u32 %v2083, 7
        %v2085 = vsub.s32 %v2082, %v2084
        %v2086 = vrot.slane %v2072, %v2085
        %v2087 = vcombine.low %v2062, %v2070
        %v2088 = vcombine.high %v2062, %v2070
        %v2090 = vunpack.c.l.s4 1934713408
        %v2091 = vunpack.c.0.s8 %v2090
        %v2092 = vlaneseq
        %v2093 = vshrl.u32 %v2092, 7
        %v2094 = vsub.s32 %v2091, %v2093
        %v2095 = vrot.slane %v2087, %v2094
        %v2097 = vunpack.c.l.s4 1934713408
        %v2098 = vunpack.c.0.s8 %v2097
        %v2099 = vlaneseq
        %v2100 = vshrl.u32 %v2099, 7
        %v2101 = vsub.s32 %v2098, %v2100
        %v2102 = vrot.slane %v2088, %v2101
        %v2103 = vcombine.low %v2079, %v2095
        %v2104 = vcombine.high %v2079, %v2095
        %v2105 = vcombine.low %v2086, %v2102
        %v2106 = vcombine.high %v2086, %v2102
        %2108 = vrot.lane.b32.xlu0 %v2104, 8
        %v2109 = vpop.permute.xlu0 %2108
        %2112 = vrot.lane.b32.xlu0 %v2105, 16
        %v2113 = vpop.permute.xlu0 %2112
        %2116 = vrot.lane.b32.xlu0 %v2106, 24
        %v2117 = vpop.permute.xlu0 %2116
        %v2119 = vsel %vm1549, %v2103, %v2109
        %vm2120 = vcmask 130048
        %v2121 = vsel %vm2120, %v2119, %v2113
        %vm2122 = vcmask 195584
        %v2123 = vsel %vm2122, %v2121, %v2117
        %v2124 = vpack.c.bf16 %v2123, %v2123
        %v2126 = vlaneseq
        %v2127 = vshrl.u32 %v2126, 7
        %v2128 = vsub.s32 0, %v2127
        %v2129 = vrot.slane %v1093, %v2128
        %v2135 = vunpack.c.l.b16 %v1089
        %v2136 = vunpack.c.l.b16 %v1090
        %v2137 = vunpack.c.l.b16 %v1091
        %v2138 = vunpack.c.l.b16 %v1092
        %v2139 = vpack.c.b16 %v2136, %v2135
        %v2140 = vpack.c.b16 %v2138, %v2137
        %v2144 = vsel %vm979, %v2124, 0
        %2146 = vmatprep.subr.bf16.mxu0 0
        %2147 = vmatpush1.bf16.msra.mxu0 0
        %2148 = vmatprep.subr.bf16.mxu0 0
        %2149 = vmatpush1.bf16.msra.mxu0 0
        %2150 = vmatprep.subr.bf16.mxu0 0
        %2151 = vmatpush1.bf16.msra.mxu0 0
        %2152 = vmatprep.subr.bf16.mxu0 0
        %2153 = vmatpush1.bf16.msra.mxu0 0
        %2154 = vmatprep.subr.bf16.mxu0 0
        %2155 = vmatpush1.bf16.msra.mxu0 0
        %2156 = vmatprep.subr.bf16.mxu0 0
        %2157 = vmatpush1.bf16.msra.mxu0 0
        %2158 = vmatprep.subr.bf16.mxu0 0
        %2159 = vmatpush1.bf16.msra.mxu0 %v2140
        %2160 = vmatprep.subr.bf16.mxu0 0
        %2161 = vmatpush1.bf16.msra.mxu0 %v2139
        %2162 = vmatprep.subr.bf16.mxu0 0
        %2163 = vmatpush2.bf16.msra.mxu0 0
        %2164 = vmatprep.subr.bf16.mxu0 0
        %2165 = vmatpush2.bf16.msra.mxu0 0
        %2166 = vmatprep.subr.bf16.mxu0 0
        %2167 = vmatpush2.bf16.msra.mxu0 0
        %2168 = vmatprep.subr.bf16.mxu0 0
        %2169 = vmatpush2.bf16.msra.mxu0 0
        %2170 = vmatprep.subr.bf16.mxu0 0
        %2171 = vmatpush2.bf16.msra.mxu0 0
        %2172 = vmatprep.subr.bf16.mxu0 0
        %2173 = vmatpush2.bf16.msra.mxu0 0
        %2174 = vmatprep.subr.bf16.mxu0 0
        %2175 = vmatpush2.bf16.msra.mxu0 0
        %2176 = vmatprep.subr.bf16.mxu0 0
        %2177 = vmatpush2.bf16.msra.mxu0 0
        %2178 = vmatprep.mubr.bf16.mxu0 0
        %2179 = vmatmul.mubr.bf16.gmra.mxu0 %v2144
        %v2180 = vpop.f32.mrf.mxu0
        %v2181 = vadd.f32 %v2129, %v2180
        %v2182 = vpop.f32.mrf.mxu0
        %v2183 = vpop.f32.mrf.mxu0
        %v2184 = vpop.f32.mrf.mxu0
        %2185 = vdwg.mxu0
        %v2186 = vadd.f32 %v951, %v2181
        %v2187 = vld [vmem:[%s12] sm:$0x1]
        %v2188 = vld [vmem:[%s13] sm:$0x1]
        %v2189 = vsel %vm979, %v2186, 0.0
        %2190 = vadd.xlane.f32.xlu0 %v2189
        %v2191 = vpop.xlane.xlu0 %2190
        %v2192 = vrcp.pop 32.0
        %v2193 = vmul.f32 %v2191, %v2192
        %v2194 = vsub.f32 %v2186, %v2193
        %v2195 = vmul.f32 %v2194, %v2194
        %v2196 = vsel %vm979, %v2195, 0.0
        %2197 = vadd.xlane.f32.xlu0 %v2196
        %v2198 = vpop.xlane.xlu0 %2197
        %v2199 = vmul.f32 %v2198, %v2192
        %v2200 = vadd.f32 %v2199, 1e-05
        %v2201 = vrsqrt.pop %v2200
        %v2202 = vmul.f32 %v2194, %v2201
        %v2204 = vlaneseq
        %v2205 = vshrl.u32 %v2204, 7
        %v2206 = vsub.s32 0, %v2205
        %v2207 = vrot.slane %v2187, %v2206
        %v2209 = vmul.f32 %v2202, %v2207
        %v2211 = vlaneseq
        %v2212 = vshrl.u32 %v2211, 7
        %v2213 = vsub.s32 0, %v2212
        %v2214 = vrot.slane %v2188, %v2213
        %v2216 = vadd.f32 %v2209, %v2214
        %v2217 = vadd.f32 %v2216, %v952
        %v2218 = vpack.c.bf16 %v2217, %v2217
        %v2219 = vld [vmem:[%s14] sm:$0xf]
        %v2220 = vld [vmem:[%s14 + $0x4] sm:$0xf]
        %v2221 = vld [vmem:[%s14 + $0x8] sm:$0xf]
        %v2222 = vld [vmem:[%s14 + $0xc] sm:$0xf]
        %v2223 = vld [vmem:[%s15] sm:$0x1]
        %v2225 = vlaneseq
        %v2226 = vshrl.u32 %v2225, 7
        %v2227 = vsub.s32 0, %v2226
        %v2228 = vrot.slane %v2223, %v2227
        %v2234 = vunpack.c.l.b16 %v2219
        %v2235 = vunpack.c.l.b16 %v2220
        %v2236 = vunpack.c.l.b16 %v2221
        %v2237 = vunpack.c.l.b16 %v2222
        %v2238 = vpack.c.b16 %v2235, %v2234
        %v2239 = vpack.c.b16 %v2237, %v2236
        %v2243 = vsel %vm979, %v2218, 0
        %2245 = vmatprep.subr.bf16.mxu0 0
        %2246 = vmatpush1.bf16.msra.mxu0 0
        %2247 = vmatprep.subr.bf16.mxu0 0
        %2248 = vmatpush1.bf16.msra.mxu0 0
        %2249 = vmatprep.subr.bf16.mxu0 0
        %2250 = vmatpush1.bf16.msra.mxu0 0
        %2251 = vmatprep.subr.bf16.mxu0 0
        %2252 = vmatpush1.bf16.msra.mxu0 0
        %2253 = vmatprep.subr.bf16.mxu0 0
        %2254 = vmatpush1.bf16.msra.mxu0 0
        %2255 = vmatprep.subr.bf16.mxu0 0
        %2256 = vmatpush1.bf16.msra.mxu0 0
        %2257 = vmatprep.subr.bf16.mxu0 0
        %2258 = vmatpush1.bf16.msra.mxu0 %v2239
        %2259 = vmatprep.subr.bf16.mxu0 0
        %2260 = vmatpush1.bf16.msra.mxu0 %v2238
        %2261 = vmatprep.subr.bf16.mxu0 0
        %2262 = vmatpush2.bf16.msra.mxu0 0
        %2263 = vmatprep.subr.bf16.mxu0 0
        %2264 = vmatpush2.bf16.msra.mxu0 0
        %2265 = vmatprep.subr.bf16.mxu0 0
        %2266 = vmatpush2.bf16.msra.mxu0 0
        %2267 = vmatprep.subr.bf16.mxu0 0
        %2268 = vmatpush2.bf16.msra.mxu0 0
        %2269 = vmatprep.subr.bf16.mxu0 0
        %2270 = vmatpush2.bf16.msra.mxu0 0
        %2271 = vmatprep.subr.bf16.mxu0 0
        %2272 = vmatpush2.bf16.msra.mxu0 0
        %2273 = vmatprep.subr.bf16.mxu0 0
        %2274 = vmatpush2.bf16.msra.mxu0 0
        %2275 = vmatprep.subr.bf16.mxu0 0
        %2276 = vmatpush2.bf16.msra.mxu0 0
        %2277 = vmatprep.mubr.bf16.mxu0 0
        %2278 = vmatmul.mubr.bf16.gmra.mxu0 %v2243
        %v2279 = vpop.f32.mrf.mxu0
        %v2280 = vadd.f32 %v2228, %v2279
        %v2281 = vpop.f32.mrf.mxu0
        %v2282 = vpop.f32.mrf.mxu0
        %v2283 = vpop.f32.mrf.mxu0
        %2284 = vdwg.mxu0
        %v2285 = vpack.c.bf16 %v2216, %v2216
        %v2286 = vld [vmem:[%s16] sm:$0xf]
        %v2287 = vld [vmem:[%s16 + $0x4] sm:$0xf]
        %v2288 = vld [vmem:[%s16 + $0x8] sm:$0xf]
        %v2289 = vld [vmem:[%s16 + $0xc] sm:$0xf]
        %v2290 = vld [vmem:[%s17] sm:$0x1]
        %v2292 = vlaneseq
        %v2293 = vshrl.u32 %v2292, 7
        %v2294 = vsub.s32 0, %v2293
        %v2295 = vrot.slane %v2290, %v2294
        %v2301 = vunpack.c.l.b16 %v2286
        %v2302 = vunpack.c.l.b16 %v2287
        %v2303 = vunpack.c.l.b16 %v2288
        %v2304 = vunpack.c.l.b16 %v2289
        %v2305 = vpack.c.b16 %v2302, %v2301
        %v2306 = vpack.c.b16 %v2304, %v2303
        %v2310 = vsel %vm979, %v2285, 0
        %2312 = vmatprep.subr.bf16.mxu0 0
        %2313 = vmatpush1.bf16.msra.mxu0 0
        %2314 = vmatprep.subr.bf16.mxu0 0
        %2315 = vmatpush1.bf16.msra.mxu0 0
        %2316 = vmatprep.subr.bf16.mxu0 0
        %2317 = vmatpush1.bf16.msra.mxu0 0
        %2318 = vmatprep.subr.bf16.mxu0 0
        %2319 = vmatpush1.bf16.msra.mxu0 0
        %2320 = vmatprep.subr.bf16.mxu0 0
        %2321 = vmatpush1.bf16.msra.mxu0 0
        %2322 = vmatprep.subr.bf16.mxu0 0
        %2323 = vmatpush1.bf16.msra.mxu0 0
        %2324 = vmatprep.subr.bf16.mxu0 0
        %2325 = vmatpush1.bf16.msra.mxu0 %v2306
        %2326 = vmatprep.subr.bf16.mxu0 0
        %2327 = vmatpush1.bf16.msra.mxu0 %v2305
        %2328 = vmatprep.subr.bf16.mxu0 0
        %2329 = vmatpush2.bf16.msra.mxu0 0
        %2330 = vmatprep.subr.bf16.mxu0 0
        %2331 = vmatpush2.bf16.msra.mxu0 0
        %2332 = vmatprep.subr.bf16.mxu0 0
        %2333 = vmatpush2.bf16.msra.mxu0 0
        %2334 = vmatprep.subr.bf16.mxu0 0
        %2335 = vmatpush2.bf16.msra.mxu0 0
        %2336 = vmatprep.subr.bf16.mxu0 0
        %2337 = vmatpush2.bf16.msra.mxu0 0
        %2338 = vmatprep.subr.bf16.mxu0 0
        %2339 = vmatpush2.bf16.msra.mxu0 0
        %2340 = vmatprep.subr.bf16.mxu0 0
        %2341 = vmatpush2.bf16.msra.mxu0 0
        %2342 = vmatprep.subr.bf16.mxu0 0
        %2343 = vmatpush2.bf16.msra.mxu0 0
        %2344 = vmatprep.mubr.bf16.mxu0 0
        %2345 = vmatmul.mubr.bf16.gmra.mxu0 %v2310
        %v2346 = vpop.f32.mrf.mxu0
        %v2347 = vadd.f32 %v2295, %v2346
        %v2348 = vpop.f32.mrf.mxu0
        %v2349 = vpop.f32.mrf.mxu0
        %v2350 = vpop.f32.mrf.mxu0
        %2351 = vdwg.mxu0
        %v2352 = vld [vmem:[%s18] sm:$0xf]
        %v2353 = vld [vmem:[%s18 + $0x4] sm:$0xf]
        %v2354 = vld [vmem:[%s18 + $0x8] sm:$0xf]
        %v2355 = vld [vmem:[%s18 + $0xc] sm:$0xf]
        %v2356 = vld [vmem:[%s19] sm:$0x1]
        %v2357 = vmul.f32 %v2280, 0.35355338
        %2359 = vrot.lane.b32.xlu0 %v2357, 120
        %v2360 = vpop.permute.xlu0 %2359
        %2362 = vrot.lane.b32.xlu0 %v2357, 112
        %v2363 = vpop.permute.xlu0 %2362
        %2365 = vrot.lane.b32.xlu0 %v2357, 104
        %v2366 = vpop.permute.xlu0 %2365
        %v2368 = vcombine.low %v2357, %v2363
        %v2369 = vcombine.high %v2357, %v2363
        %v2371 = vunpack.c.l.s4 1983009808
        %v2372 = vunpack.c.0.s8 %v2371
        %v2373 = vlaneseq
        %v2374 = vshrl.u32 %v2373, 7
        %v2375 = vsub.s32 %v2372, %v2374
        %v2376 = vrot.slane %v2368, %v2375
        %v2378 = vunpack.c.l.s4 1983009808
        %v2379 = vunpack.c.0.s8 %v2378
        %v2380 = vlaneseq
        %v2381 = vshrl.u32 %v2380, 7
        %v2382 = vsub.s32 %v2379, %v2381
        %v2383 = vrot.slane %v2369, %v2382
        %v2384 = vcombine.low %v2360, %v2366
        %v2385 = vcombine.high %v2360, %v2366
        %v2387 = vunpack.c.l.s4 1983009808
        %v2388 = vunpack.c.0.s8 %v2387
        %v2389 = vlaneseq
        %v2390 = vshrl.u32 %v2389, 7
        %v2391 = vsub.s32 %v2388, %v2390
        %v2392 = vrot.slane %v2384, %v2391
        %v2394 = vunpack.c.l.s4 1983009808
        %v2395 = vunpack.c.0.s8 %v2394
        %v2396 = vlaneseq
        %v2397 = vshrl.u32 %v2396, 7
        %v2398 = vsub.s32 %v2395, %v2397
        %v2399 = vrot.slane %v2385, %v2398
        %v2400 = vcombine.low %v2376, %v2392
        %v2401 = vcombine.high %v2376, %v2392
        %v2403 = vunpack.c.l.s4 1934713408
        %v2404 = vunpack.c.0.s8 %v2403
        %v2405 = vlaneseq
        %v2406 = vshrl.u32 %v2405, 7
        %v2407 = vsub.s32 %v2404, %v2406
        %v2408 = vrot.slane %v2400, %v2407
        %v2410 = vunpack.c.l.s4 1934713408
        %v2411 = vunpack.c.0.s8 %v2410
        %v2412 = vlaneseq
        %v2413 = vshrl.u32 %v2412, 7
        %v2414 = vsub.s32 %v2411, %v2413
        %v2415 = vrot.slane %v2401, %v2414
        %v2416 = vcombine.low %v2383, %v2399
        %v2417 = vcombine.high %v2383, %v2399
        %v2419 = vunpack.c.l.s4 1934713408
        %v2420 = vunpack.c.0.s8 %v2419
        %v2421 = vlaneseq
        %v2422 = vshrl.u32 %v2421, 7
        %v2423 = vsub.s32 %v2420, %v2422
        %v2424 = vrot.slane %v2416, %v2423
        %v2426 = vunpack.c.l.s4 1934713408
        %v2427 = vunpack.c.0.s8 %v2426
        %v2428 = vlaneseq
        %v2429 = vshrl.u32 %v2428, 7
        %v2430 = vsub.s32 %v2427, %v2429
        %v2431 = vrot.slane %v2417, %v2430
        %v2432 = vcombine.high %v2408, 0.0
        %v2433 = vcombine.high %v2415, 0.0
        %v2434 = vcombine.high %v2424, 0.0
        %v2435 = vcombine.high %v2431, 0.0
        %v2436 = vcombine.low %v2408, %v2415
        %v2438 = vunpack.c.l.s4 1983009808
        %v2439 = vunpack.c.0.s8 %v2438
        %v2440 = vlaneseq
        %v2441 = vshrl.u32 %v2440, 7
        %v2442 = vsub.s32 %v2439, %v2441
        %v2443 = vrot.slane %v2436, %v2442
        %v2444 = vcombine.low %v2432, %v2433
        %v2446 = vunpack.c.l.s4 1983009808
        %v2447 = vunpack.c.0.s8 %v2446
        %v2448 = vlaneseq
        %v2449 = vshrl.u32 %v2448, 7
        %v2450 = vsub.s32 %v2447, %v2449
        %v2451 = vrot.slane %v2444, %v2450
        %v2452 = vcombine.low %v2424, %v2431
        %v2454 = vunpack.c.l.s4 1983009808
        %v2455 = vunpack.c.0.s8 %v2454
        %v2456 = vlaneseq
        %v2457 = vshrl.u32 %v2456, 7
        %v2458 = vsub.s32 %v2455, %v2457
        %v2459 = vrot.slane %v2452, %v2458
        %v2460 = vcombine.low %v2434, %v2435
        %v2462 = vunpack.c.l.s4 1983009808
        %v2463 = vunpack.c.0.s8 %v2462
        %v2464 = vlaneseq
        %v2465 = vshrl.u32 %v2464, 7
        %v2466 = vsub.s32 %v2463, %v2465
        %v2467 = vrot.slane %v2460, %v2466
        %v2468 = vcombine.low %v2443, %v2451
        %v2469 = vcombine.high %v2443, %v2451
        %v2471 = vunpack.c.l.s4 1934713408
        %v2472 = vunpack.c.0.s8 %v2471
        %v2473 = vlaneseq
        %v2474 = vshrl.u32 %v2473, 7
        %v2475 = vsub.s32 %v2472, %v2474
        %v2476 = vrot.slane %v2468, %v2475
        %v2478 = vunpack.c.l.s4 1934713408
        %v2479 = vunpack.c.0.s8 %v2478
        %v2480 = vlaneseq
        %v2481 = vshrl.u32 %v2480, 7
        %v2482 = vsub.s32 %v2479, %v2481
        %v2483 = vrot.slane %v2469, %v2482
        %v2484 = vcombine.low %v2459, %v2467
        %v2485 = vcombine.high %v2459, %v2467
        %v2487 = vunpack.c.l.s4 1934713408
        %v2488 = vunpack.c.0.s8 %v2487
        %v2489 = vlaneseq
        %v2490 = vshrl.u32 %v2489, 7
        %v2491 = vsub.s32 %v2488, %v2490
        %v2492 = vrot.slane %v2484, %v2491
        %v2494 = vunpack.c.l.s4 1934713408
        %v2495 = vunpack.c.0.s8 %v2494
        %v2496 = vlaneseq
        %v2497 = vshrl.u32 %v2496, 7
        %v2498 = vsub.s32 %v2495, %v2497
        %v2499 = vrot.slane %v2485, %v2498
        %v2500 = vcombine.low %v2476, %v2492
        %v2501 = vcombine.high %v2476, %v2492
        %v2502 = vcombine.low %v2483, %v2499
        %v2503 = vcombine.high %v2483, %v2499
        %2505 = vrot.lane.b32.xlu0 %v2280, 120
        %v2506 = vpop.permute.xlu0 %2505
        %2507 = vrot.lane.b32.xlu0 %v2280, 112
        %v2508 = vpop.permute.xlu0 %2507
        %2509 = vrot.lane.b32.xlu0 %v2280, 104
        %v2510 = vpop.permute.xlu0 %2509
        %2511 = vrot.lane.b32.xlu0 %v2280, 96
        %v2512 = vpop.permute.xlu0 %2511
        %2513 = vrot.lane.b32.xlu0 %v2506, 96
        %v2514 = vpop.permute.xlu0 %2513
        %2515 = vrot.lane.b32.xlu0 %v2508, 96
        %v2516 = vpop.permute.xlu0 %2515
        %2517 = vrot.lane.b32.xlu0 %v2510, 96
        %v2518 = vpop.permute.xlu0 %2517
        %v2523 = vcombine.low %v2512, %v2516
        %v2524 = vcombine.high %v2512, %v2516
        %v2526 = vunpack.c.l.s4 1983009808
        %v2527 = vunpack.c.0.s8 %v2526
        %v2528 = vlaneseq
        %v2529 = vshrl.u32 %v2528, 7
        %v2530 = vsub.s32 %v2527, %v2529
        %v2531 = vrot.slane %v2523, %v2530
        %v2533 = vunpack.c.l.s4 1983009808
        %v2534 = vunpack.c.0.s8 %v2533
        %v2535 = vlaneseq
        %v2536 = vshrl.u32 %v2535, 7
        %v2537 = vsub.s32 %v2534, %v2536
        %v2538 = vrot.slane %v2524, %v2537
        %v2539 = vcombine.low %v2514, %v2518
        %v2540 = vcombine.high %v2514, %v2518
        %v2542 = vunpack.c.l.s4 1983009808
        %v2543 = vunpack.c.0.s8 %v2542
        %v2544 = vlaneseq
        %v2545 = vshrl.u32 %v2544, 7
        %v2546 = vsub.s32 %v2543, %v2545
        %v2547 = vrot.slane %v2539, %v2546
        %v2549 = vunpack.c.l.s4 1983009808
        %v2550 = vunpack.c.0.s8 %v2549
        %v2551 = vlaneseq
        %v2552 = vshrl.u32 %v2551, 7
        %v2553 = vsub.s32 %v2550, %v2552
        %v2554 = vrot.slane %v2540, %v2553
        %v2555 = vcombine.low %v2531, %v2547
        %v2556 = vcombine.high %v2531, %v2547
        %v2558 = vunpack.c.l.s4 1934713408
        %v2559 = vunpack.c.0.s8 %v2558
        %v2560 = vlaneseq
        %v2561 = vshrl.u32 %v2560, 7
        %v2562 = vsub.s32 %v2559, %v2561
        %v2563 = vrot.slane %v2555, %v2562
        %v2565 = vunpack.c.l.s4 1934713408
        %v2566 = vunpack.c.0.s8 %v2565
        %v2567 = vlaneseq
        %v2568 = vshrl.u32 %v2567, 7
        %v2569 = vsub.s32 %v2566, %v2568
        %v2570 = vrot.slane %v2556, %v2569
        %v2571 = vcombine.low %v2538, %v2554
        %v2572 = vcombine.high %v2538, %v2554
        %v2574 = vunpack.c.l.s4 1934713408
        %v2575 = vunpack.c.0.s8 %v2574
        %v2576 = vlaneseq
        %v2577 = vshrl.u32 %v2576, 7
        %v2578 = vsub.s32 %v2575, %v2577
        %v2579 = vrot.slane %v2571, %v2578
        %v2581 = vunpack.c.l.s4 1934713408
        %v2582 = vunpack.c.0.s8 %v2581
        %v2583 = vlaneseq
        %v2584 = vshrl.u32 %v2583, 7
        %v2585 = vsub.s32 %v2582, %v2584
        %v2586 = vrot.slane %v2572, %v2585
        %v2587 = vcombine.high %v2563, 0.0
        %v2588 = vcombine.high %v2570, 0.0
        %v2589 = vcombine.high %v2579, 0.0
        %v2590 = vcombine.high %v2586, 0.0
        %v2591 = vcombine.low %v2563, %v2570
        %v2593 = vunpack.c.l.s4 1983009808
        %v2594 = vunpack.c.0.s8 %v2593
        %v2595 = vlaneseq
        %v2596 = vshrl.u32 %v2595, 7
        %v2597 = vsub.s32 %v2594, %v2596
        %v2598 = vrot.slane %v2591, %v2597
        %v2599 = vcombine.low %v2587, %v2588
        %v2601 = vunpack.c.l.s4 1983009808
        %v2602 = vunpack.c.0.s8 %v2601
        %v2603 = vlaneseq
        %v2604 = vshrl.u32 %v2603, 7
        %v2605 = vsub.s32 %v2602, %v2604
        %v2606 = vrot.slane %v2599, %v2605
        %v2607 = vcombine.low %v2579, %v2586
        %v2609 = vunpack.c.l.s4 1983009808
        %v2610 = vunpack.c.0.s8 %v2609
        %v2611 = vlaneseq
        %v2612 = vshrl.u32 %v2611, 7
        %v2613 = vsub.s32 %v2610, %v2612
        %v2614 = vrot.slane %v2607, %v2613
        %v2615 = vcombine.low %v2589, %v2590
        %v2617 = vunpack.c.l.s4 1983009808
        %v2618 = vunpack.c.0.s8 %v2617
        %v2619 = vlaneseq
        %v2620 = vshrl.u32 %v2619, 7
        %v2621 = vsub.s32 %v2618, %v2620
        %v2622 = vrot.slane %v2615, %v2621
        %v2623 = vcombine.low %v2598, %v2606
        %v2624 = vcombine.high %v2598, %v2606
        %v2626 = vunpack.c.l.s4 1934713408
        %v2627 = vunpack.c.0.s8 %v2626
        %v2628 = vlaneseq
        %v2629 = vshrl.u32 %v2628, 7
        %v2630 = vsub.s32 %v2627, %v2629
        %v2631 = vrot.slane %v2623, %v2630
        %v2633 = vunpack.c.l.s4 1934713408
        %v2634 = vunpack.c.0.s8 %v2633
        %v2635 = vlaneseq
        %v2636 = vshrl.u32 %v2635, 7
        %v2637 = vsub.s32 %v2634, %v2636
        %v2638 = vrot.slane %v2624, %v2637
        %v2639 = vcombine.low %v2614, %v2622
        %v2640 = vcombine.high %v2614, %v2622
        %v2642 = vunpack.c.l.s4 1934713408
        %v2643 = vunpack.c.0.s8 %v2642
        %v2644 = vlaneseq
        %v2645 = vshrl.u32 %v2644, 7
        %v2646 = vsub.s32 %v2643, %v2645
        %v2647 = vrot.slane %v2639, %v2646
        %v2649 = vunpack.c.l.s4 1934713408
        %v2650 = vunpack.c.0.s8 %v2649
        %v2651 = vlaneseq
        %v2652 = vshrl.u32 %v2651, 7
        %v2653 = vsub.s32 %v2650, %v2652
        %v2654 = vrot.slane %v2640, %v2653
        %v2655 = vcombine.low %v2631, %v2647
        %v2656 = vcombine.high %v2631, %v2647
        %v2657 = vcombine.low %v2638, %v2654
        %v2658 = vcombine.high %v2638, %v2654
        %2660 = vrot.lane.b32.xlu0 %v2347, 120
        %v2661 = vpop.permute.xlu0 %2660
        %2663 = vrot.lane.b32.xlu0 %v2347, 112
        %v2664 = vpop.permute.xlu0 %2663
        %2666 = vrot.lane.b32.xlu0 %v2347, 104
        %v2667 = vpop.permute.xlu0 %2666
        %v2669 = vcombine.low %v2347, %v2664
        %v2670 = vcombine.high %v2347, %v2664
        %v2672 = vunpack.c.l.s4 1983009808
        %v2673 = vunpack.c.0.s8 %v2672
        %v2674 = vlaneseq
        %v2675 = vshrl.u32 %v2674, 7
        %v2676 = vsub.s32 %v2673, %v2675
        %v2677 = vrot.slane %v2669, %v2676
        %v2679 = vunpack.c.l.s4 1983009808
        %v2680 = vunpack.c.0.s8 %v2679
        %v2681 = vlaneseq
        %v2682 = vshrl.u32 %v2681, 7
        %v2683 = vsub.s32 %v2680, %v2682
        %v2684 = vrot.slane %v2670, %v2683
        %v2685 = vcombine.low %v2661, %v2667
        %v2686 = vcombine.high %v2661, %v2667
        %v2688 = vunpack.c.l.s4 1983009808
        %v2689 = vunpack.c.0.s8 %v2688
        %v2690 = vlaneseq
        %v2691 = vshrl.u32 %v2690, 7
        %v2692 = vsub.s32 %v2689, %v2691
        %v2693 = vrot.slane %v2685, %v2692
        %v2695 = vunpack.c.l.s4 1983009808
        %v2696 = vunpack.c.0.s8 %v2695
        %v2697 = vlaneseq
        %v2698 = vshrl.u32 %v2697, 7
        %v2699 = vsub.s32 %v2696, %v2698
        %v2700 = vrot.slane %v2686, %v2699
        %v2701 = vcombine.low %v2677, %v2693
        %v2702 = vcombine.high %v2677, %v2693
        %v2704 = vunpack.c.l.s4 1934713408
        %v2705 = vunpack.c.0.s8 %v2704
        %v2706 = vlaneseq
        %v2707 = vshrl.u32 %v2706, 7
        %v2708 = vsub.s32 %v2705, %v2707
        %v2709 = vrot.slane %v2701, %v2708
        %v2711 = vunpack.c.l.s4 1934713408
        %v2712 = vunpack.c.0.s8 %v2711
        %v2713 = vlaneseq
        %v2714 = vshrl.u32 %v2713, 7
        %v2715 = vsub.s32 %v2712, %v2714
        %v2716 = vrot.slane %v2702, %v2715
        %v2717 = vcombine.low %v2684, %v2700
        %v2718 = vcombine.high %v2684, %v2700
        %v2720 = vunpack.c.l.s4 1934713408
        %v2721 = vunpack.c.0.s8 %v2720
        %v2722 = vlaneseq
        %v2723 = vshrl.u32 %v2722, 7
        %v2724 = vsub.s32 %v2721, %v2723
        %v2725 = vrot.slane %v2717, %v2724
        %v2727 = vunpack.c.l.s4 1934713408
        %v2728 = vunpack.c.0.s8 %v2727
        %v2729 = vlaneseq
        %v2730 = vshrl.u32 %v2729, 7
        %v2731 = vsub.s32 %v2728, %v2730
        %v2732 = vrot.slane %v2718, %v2731
        %v2733 = vcombine.high %v2709, 0.0
        %v2734 = vcombine.high %v2716, 0.0
        %v2735 = vcombine.high %v2725, 0.0
        %v2736 = vcombine.high %v2732, 0.0
        %v2737 = vcombine.low %v2709, %v2716
        %v2739 = vunpack.c.l.s4 1983009808
        %v2740 = vunpack.c.0.s8 %v2739
        %v2741 = vlaneseq
        %v2742 = vshrl.u32 %v2741, 7
        %v2743 = vsub.s32 %v2740, %v2742
        %v2744 = vrot.slane %v2737, %v2743
        %v2745 = vcombine.low %v2733, %v2734
        %v2747 = vunpack.c.l.s4 1983009808
        %v2748 = vunpack.c.0.s8 %v2747
        %v2749 = vlaneseq
        %v2750 = vshrl.u32 %v2749, 7
        %v2751 = vsub.s32 %v2748, %v2750
        %v2752 = vrot.slane %v2745, %v2751
        %v2753 = vcombine.low %v2725, %v2732
        %v2755 = vunpack.c.l.s4 1983009808
        %v2756 = vunpack.c.0.s8 %v2755
        %v2757 = vlaneseq
        %v2758 = vshrl.u32 %v2757, 7
        %v2759 = vsub.s32 %v2756, %v2758
        %v2760 = vrot.slane %v2753, %v2759
        %v2761 = vcombine.low %v2735, %v2736
        %v2763 = vunpack.c.l.s4 1983009808
        %v2764 = vunpack.c.0.s8 %v2763
        %v2765 = vlaneseq
        %v2766 = vshrl.u32 %v2765, 7
        %v2767 = vsub.s32 %v2764, %v2766
        %v2768 = vrot.slane %v2761, %v2767
        %v2769 = vcombine.low %v2744, %v2752
        %v2770 = vcombine.high %v2744, %v2752
        %v2772 = vunpack.c.l.s4 1934713408
        %v2773 = vunpack.c.0.s8 %v2772
        %v2774 = vlaneseq
        %v2775 = vshrl.u32 %v2774, 7
        %v2776 = vsub.s32 %v2773, %v2775
        %v2777 = vrot.slane %v2769, %v2776
        %v2779 = vunpack.c.l.s4 1934713408
        %v2780 = vunpack.c.0.s8 %v2779
        %v2781 = vlaneseq
        %v2782 = vshrl.u32 %v2781, 7
        %v2783 = vsub.s32 %v2780, %v2782
        %v2784 = vrot.slane %v2770, %v2783
        %v2785 = vcombine.low %v2760, %v2768
        %v2786 = vcombine.high %v2760, %v2768
        %v2788 = vunpack.c.l.s4 1934713408
        %v2789 = vunpack.c.0.s8 %v2788
        %v2790 = vlaneseq
        %v2791 = vshrl.u32 %v2790, 7
        %v2792 = vsub.s32 %v2789, %v2791
        %v2793 = vrot.slane %v2785, %v2792
        %v2795 = vunpack.c.l.s4 1934713408
        %v2796 = vunpack.c.0.s8 %v2795
        %v2797 = vlaneseq
        %v2798 = vshrl.u32 %v2797, 7
        %v2799 = vsub.s32 %v2796, %v2798
        %v2800 = vrot.slane %v2786, %v2799
        %v2801 = vcombine.low %v2777, %v2793
        %v2802 = vcombine.high %v2777, %v2793
        %v2803 = vcombine.low %v2784, %v2800
        %v2804 = vcombine.high %v2784, %v2800
        %v2805 = vpack.c.bf16 %v2500, %v2500
        %v2806 = vpack.c.bf16 %v2501, %v2501
        %v2807 = vpack.c.bf16 %v2502, %v2502
        %v2808 = vpack.c.bf16 %v2503, %v2503
        %v2809 = vpack.c.bf16 %v2655, %v2655
        %v2810 = vpack.c.bf16 %v2656, %v2656
        %v2811 = vpack.c.bf16 %v2657, %v2657
        %v2812 = vpack.c.bf16 %v2658, %v2658
        %v2814 = vsel %vm1549, %v2805, 0
        %v2817 = vsel %vm1549, %v2809, 0
        %2819 = vmatprep.subr.bf16.mxu0 0
        %2820 = vmatpush1.bf16.xpose.msra.mxu0 0
        %2821 = vmatprep.subr.bf16.mxu0 0
        %2822 = vmatpush1.bf16.xpose.msra.mxu0 0
        %2823 = vmatprep.subr.bf16.mxu0 0
        %2824 = vmatpush1.bf16.xpose.msra.mxu0 0
        %2825 = vmatprep.subr.bf16.mxu0 0
        %2826 = vmatpush1.bf16.xpose.msra.mxu0 0
        %2827 = vmatprep.subr.bf16.mxu0 0
        %2828 = vmatpush1.bf16.xpose.msra.mxu0 0
        %2829 = vmatprep.subr.bf16.mxu0 0
        %2830 = vmatpush1.bf16.xpose.msra.mxu0 0
        %2831 = vmatprep.subr.bf16.mxu0 0
        %2832 = vmatpush1.bf16.xpose.msra.mxu0 0
        %2833 = vmatprep.subr.bf16.mxu0 0
        %2834 = vmatpush1.bf16.xpose.msra.mxu0 %v2817
        %2835 = vmatprep.subr.bf16.mxu0 0
        %2836 = vmatpush2.bf16.xpose.msra.mxu0 0
        %2837 = vmatprep.subr.bf16.mxu0 0
        %2838 = vmatpush2.bf16.xpose.msra.mxu0 0
        %2839 = vmatprep.subr.bf16.mxu0 0
        %2840 = vmatpush2.bf16.xpose.msra.mxu0 0
        %2841 = vmatprep.subr.bf16.mxu0 0
        %2842 = vmatpush2.bf16.xpose.msra.mxu0 0
        %2843 = vmatprep.subr.bf16.mxu0 0
        %2844 = vmatpush2.bf16.xpose.msra.mxu0 0
        %2845 = vmatprep.subr.bf16.mxu0 0
        %2846 = vmatpush2.bf16.xpose.msra.mxu0 0
        %2847 = vmatprep.subr.bf16.mxu0 0
        %2848 = vmatpush2.bf16.xpose.msra.mxu0 0
        %2849 = vmatprep.subr.bf16.mxu0 0
        %2850 = vmatpush2.bf16.xpose.msra.mxu0 0
        %2851 = vmatprep.mubr.bf16.mxu0 0
        %2852 = vmatmul.mubr.bf16.gmra.mxu0 %v2814
        %v2853 = vpop.f32.mrf.mxu0
        %v2854 = vadd.f32 0.0, %v2853
        %v2855 = vpop.f32.mrf.mxu0
        %v2856 = vpop.f32.mrf.mxu0
        %v2857 = vpop.f32.mrf.mxu0
        %2858 = vdwg.mxu0
        %v2860 = vsel %vm1549, %v2806, 0
        %v2863 = vsel %vm1549, %v2810, 0
        %2865 = vmatprep.subr.bf16.mxu0 0
        %2866 = vmatpush1.bf16.xpose.msra.mxu0 0
        %2867 = vmatprep.subr.bf16.mxu0 0
        %2868 = vmatpush1.bf16.xpose.msra.mxu0 0
        %2869 = vmatprep.subr.bf16.mxu0 0
        %2870 = vmatpush1.bf16.xpose.msra.mxu0 0
        %2871 = vmatprep.subr.bf16.mxu0 0
        %2872 = vmatpush1.bf16.xpose.msra.mxu0 0
        %2873 = vmatprep.subr.bf16.mxu0 0
        %2874 = vmatpush1.bf16.xpose.msra.mxu0 0
        %2875 = vmatprep.subr.bf16.mxu0 0
        %2876 = vmatpush1.bf16.xpose.msra.mxu0 0
        %2877 = vmatprep.subr.bf16.mxu0 0
        %2878 = vmatpush1.bf16.xpose.msra.mxu0 0
        %2879 = vmatprep.subr.bf16.mxu0 0
        %2880 = vmatpush1.bf16.xpose.msra.mxu0 %v2863
        %2881 = vmatprep.subr.bf16.mxu0 0
        %2882 = vmatpush2.bf16.xpose.msra.mxu0 0
        %2883 = vmatprep.subr.bf16.mxu0 0
        %2884 = vmatpush2.bf16.xpose.msra.mxu0 0
        %2885 = vmatprep.subr.bf16.mxu0 0
        %2886 = vmatpush2.bf16.xpose.msra.mxu0 0
        %2887 = vmatprep.subr.bf16.mxu0 0
        %2888 = vmatpush2.bf16.xpose.msra.mxu0 0
        %2889 = vmatprep.subr.bf16.mxu0 0
        %2890 = vmatpush2.bf16.xpose.msra.mxu0 0
        %2891 = vmatprep.subr.bf16.mxu0 0
        %2892 = vmatpush2.bf16.xpose.msra.mxu0 0
        %2893 = vmatprep.subr.bf16.mxu0 0
        %2894 = vmatpush2.bf16.xpose.msra.mxu0 0
        %2895 = vmatprep.subr.bf16.mxu0 0
        %2896 = vmatpush2.bf16.xpose.msra.mxu0 0
        %2897 = vmatprep.mubr.bf16.mxu0 0
        %2898 = vmatmul.mubr.bf16.gmra.mxu0 %v2860
        %v2899 = vpop.f32.mrf.mxu0
        %v2900 = vadd.f32 0.0, %v2899
        %v2901 = vpop.f32.mrf.mxu0
        %v2902 = vpop.f32.mrf.mxu0
        %v2903 = vpop.f32.mrf.mxu0
        %2904 = vdwg.mxu0
        %v2906 = vsel %vm1549, %v2807, 0
        %v2909 = vsel %vm1549, %v2811, 0
        %2911 = vmatprep.subr.bf16.mxu0 0
        %2912 = vmatpush1.bf16.xpose.msra.mxu0 0
        %2913 = vmatprep.subr.bf16.mxu0 0
        %2914 = vmatpush1.bf16.xpose.msra.mxu0 0
        %2915 = vmatprep.subr.bf16.mxu0 0
        %2916 = vmatpush1.bf16.xpose.msra.mxu0 0
        %2917 = vmatprep.subr.bf16.mxu0 0
        %2918 = vmatpush1.bf16.xpose.msra.mxu0 0
        %2919 = vmatprep.subr.bf16.mxu0 0
        %2920 = vmatpush1.bf16.xpose.msra.mxu0 0
        %2921 = vmatprep.subr.bf16.mxu0 0
        %2922 = vmatpush1.bf16.xpose.msra.mxu0 0
        %2923 = vmatprep.subr.bf16.mxu0 0
        %2924 = vmatpush1.bf16.xpose.msra.mxu0 0
        %2925 = vmatprep.subr.bf16.mxu0 0
        %2926 = vmatpush1.bf16.xpose.msra.mxu0 %v2909
        %2927 = vmatprep.subr.bf16.mxu0 0
        %2928 = vmatpush2.bf16.xpose.msra.mxu0 0
        %2929 = vmatprep.subr.bf16.mxu0 0
        %2930 = vmatpush2.bf16.xpose.msra.mxu0 0
        %2931 = vmatprep.subr.bf16.mxu0 0
        %2932 = vmatpush2.bf16.xpose.msra.mxu0 0
        %2933 = vmatprep.subr.bf16.mxu0 0
        %2934 = vmatpush2.bf16.xpose.msra.mxu0 0
        %2935 = vmatprep.subr.bf16.mxu0 0
        %2936 = vmatpush2.bf16.xpose.msra.mxu0 0
        %2937 = vmatprep.subr.bf16.mxu0 0
        %2938 = vmatpush2.bf16.xpose.msra.mxu0 0
        %2939 = vmatprep.subr.bf16.mxu0 0
        %2940 = vmatpush2.bf16.xpose.msra.mxu0 0
        %2941 = vmatprep.subr.bf16.mxu0 0
        %2942 = vmatpush2.bf16.xpose.msra.mxu0 0
        %2943 = vmatprep.mubr.bf16.mxu0 0
        %2944 = vmatmul.mubr.bf16.gmra.mxu0 %v2906
        %v2945 = vpop.f32.mrf.mxu0
        %v2946 = vadd.f32 0.0, %v2945
        %v2947 = vpop.f32.mrf.mxu0
        %v2948 = vpop.f32.mrf.mxu0
        %v2949 = vpop.f32.mrf.mxu0
        %2950 = vdwg.mxu0
        %v2952 = vsel %vm1549, %v2808, 0
        %v2955 = vsel %vm1549, %v2812, 0
        %2957 = vmatprep.subr.bf16.mxu0 0
        %2958 = vmatpush1.bf16.xpose.msra.mxu0 0
        %2959 = vmatprep.subr.bf16.mxu0 0
        %2960 = vmatpush1.bf16.xpose.msra.mxu0 0
        %2961 = vmatprep.subr.bf16.mxu0 0
        %2962 = vmatpush1.bf16.xpose.msra.mxu0 0
        %2963 = vmatprep.subr.bf16.mxu0 0
        %2964 = vmatpush1.bf16.xpose.msra.mxu0 0
        %2965 = vmatprep.subr.bf16.mxu0 0
        %2966 = vmatpush1.bf16.xpose.msra.mxu0 0
        %2967 = vmatprep.subr.bf16.mxu0 0
        %2968 = vmatpush1.bf16.xpose.msra.mxu0 0
        %2969 = vmatprep.subr.bf16.mxu0 0
        %2970 = vmatpush1.bf16.xpose.msra.mxu0 0
        %2971 = vmatprep.subr.bf16.mxu0 0
        %2972 = vmatpush1.bf16.xpose.msra.mxu0 %v2955
        %2973 = vmatprep.subr.bf16.mxu0 0
        %2974 = vmatpush2.bf16.xpose.msra.mxu0 0
        %2975 = vmatprep.subr.bf16.mxu0 0
        %2976 = vmatpush2.bf16.xpose.msra.mxu0 0
        %2977 = vmatprep.subr.bf16.mxu0 0
        %2978 = vmatpush2.bf16.xpose.msra.mxu0 0
        %2979 = vmatprep.subr.bf16.mxu0 0
        %2980 = vmatpush2.bf16.xpose.msra.mxu0 0
        %2981 = vmatprep.subr.bf16.mxu0 0
        %2982 = vmatpush2.bf16.xpose.msra.mxu0 0
        %2983 = vmatprep.subr.bf16.mxu0 0
        %2984 = vmatpush2.bf16.xpose.msra.mxu0 0
        %2985 = vmatprep.subr.bf16.mxu0 0
        %2986 = vmatpush2.bf16.xpose.msra.mxu0 0
        %2987 = vmatprep.subr.bf16.mxu0 0
        %2988 = vmatpush2.bf16.xpose.msra.mxu0 0
        %2989 = vmatprep.mubr.bf16.mxu0 0
        %2990 = vmatmul.mubr.bf16.gmra.mxu0 %v2952
        %v2991 = vpop.f32.mrf.mxu0
        %v2992 = vadd.f32 0.0, %v2991
        %v2993 = vpop.f32.mrf.mxu0
        %v2994 = vpop.f32.mrf.mxu0
        %v2995 = vpop.f32.mrf.mxu0
        %2996 = vdwg.mxu0
        %v2997 = vsel %vm1549, %v2854, -inf
        %2998 = vmax.xlane.f32.xlu0 %v2997
        %v2999 = vpop.xlane.xlu0 %2998
        %v3000 = vsel %vm1549, %v2900, -inf
        %3001 = vmax.xlane.f32.xlu0 %v3000
        %v3002 = vpop.xlane.xlu0 %3001
        %v3003 = vsel %vm1549, %v2946, -inf
        %3004 = vmax.xlane.f32.xlu0 %v3003
        %v3005 = vpop.xlane.xlu0 %3004
        %v3006 = vsel %vm1549, %v2992, -inf
        %3007 = vmax.xlane.f32.xlu0 %v3006
        %v3008 = vpop.xlane.xlu0 %3007
        %v3009 = vsub.f32 %v2854, %v2999
        %v3010 = vsub.f32 %v2900, %v3002
        %v3011 = vsub.f32 %v2946, %v3005
        %v3012 = vsub.f32 %v2992, %v3008
        %v3013 = vmul.f32 %v3009, 1.442695
        %v3014 = vpow.pop %v3013
        %v3015 = vmul.f32 %v3010, 1.442695
        %v3016 = vpow.pop %v3015
        %v3017 = vmul.f32 %v3011, 1.442695
        %v3018 = vpow.pop %v3017
        %v3019 = vmul.f32 %v3012, 1.442695
        %v3020 = vpow.pop %v3019
        %v3021 = vsel %vm1549, %v3014, 0.0
        %3022 = vadd.xlane.f32.xlu0 %v3021
        %v3023 = vpop.xlane.xlu0 %3022
        %v3024 = vsel %vm1549, %v3016, 0.0
        %3025 = vadd.xlane.f32.xlu0 %v3024
        %v3026 = vpop.xlane.xlu0 %3025
        %v3027 = vsel %vm1549, %v3018, 0.0
        %3028 = vadd.xlane.f32.xlu0 %v3027
        %v3029 = vpop.xlane.xlu0 %3028
        %v3030 = vsel %vm1549, %v3020, 0.0
        %3031 = vadd.xlane.f32.xlu0 %v3030
        %v3032 = vpop.xlane.xlu0 %3031
        %v3033 = vrcp.pop %v3023
        %v3034 = vrcp.pop %v3026
        %v3035 = vrcp.pop %v3029
        %v3036 = vrcp.pop %v3032
        %v3037 = vmul.f32 %v3014, %v3033
        %v3038 = vmul.f32 %v3016, %v3034
        %v3039 = vmul.f32 %v3018, %v3035
        %v3040 = vmul.f32 %v3020, %v3036
        %v3041 = vpack.c.bf16 %v3037, %v3037
        %v3042 = vpack.c.bf16 %v3038, %v3038
        %v3043 = vpack.c.bf16 %v3039, %v3039
        %v3044 = vpack.c.bf16 %v3040, %v3040
        %v3045 = vpack.c.bf16 %v2801, %v2801
        %v3046 = vpack.c.bf16 %v2802, %v2802
        %v3047 = vpack.c.bf16 %v2803, %v2803
        %v3048 = vpack.c.bf16 %v2804, %v2804
        %v3050 = vsel %vm1549, %v3041, 0
        %v3053 = vsel %vm1789, %v3045, 0
        %3055 = vmatprep.subr.bf16.mxu0 0
        %3056 = vmatpush1.bf16.msra.mxu0 0
        %3057 = vmatprep.subr.bf16.mxu0 0
        %3058 = vmatpush1.bf16.msra.mxu0 0
        %3059 = vmatprep.subr.bf16.mxu0 0
        %3060 = vmatpush1.bf16.msra.mxu0 0
        %3061 = vmatprep.subr.bf16.mxu0 0
        %3062 = vmatpush1.bf16.msra.mxu0 0
        %3063 = vmatprep.subr.bf16.mxu0 0
        %3064 = vmatpush1.bf16.msra.mxu0 0
        %3065 = vmatprep.subr.bf16.mxu0 0
        %3066 = vmatpush1.bf16.msra.mxu0 0
        %3067 = vmatprep.subr.bf16.mxu0 0
        %3068 = vmatpush1.bf16.msra.mxu0 0
        %3069 = vmatprep.subr.bf16.mxu0 0
        %3070 = vmatpush1.bf16.msra.mxu0 %v3053
        %3071 = vmatprep.subr.bf16.mxu0 0
        %3072 = vmatpush2.bf16.msra.mxu0 0
        %3073 = vmatprep.subr.bf16.mxu0 0
        %3074 = vmatpush2.bf16.msra.mxu0 0
        %3075 = vmatprep.subr.bf16.mxu0 0
        %3076 = vmatpush2.bf16.msra.mxu0 0
        %3077 = vmatprep.subr.bf16.mxu0 0
        %3078 = vmatpush2.bf16.msra.mxu0 0
        %3079 = vmatprep.subr.bf16.mxu0 0
        %3080 = vmatpush2.bf16.msra.mxu0 0
        %3081 = vmatprep.subr.bf16.mxu0 0
        %3082 = vmatpush2.bf16.msra.mxu0 0
        %3083 = vmatprep.subr.bf16.mxu0 0
        %3084 = vmatpush2.bf16.msra.mxu0 0
        %3085 = vmatprep.subr.bf16.mxu0 0
        %3086 = vmatpush2.bf16.msra.mxu0 0
        %3087 = vmatprep.mubr.bf16.mxu0 0
        %3088 = vmatmul.mubr.bf16.gmra.mxu0 %v3050
        %v3089 = vpop.f32.mrf.mxu0
        %v3090 = vadd.f32 0.0, %v3089
        %v3091 = vpop.f32.mrf.mxu0
        %v3092 = vpop.f32.mrf.mxu0
        %v3093 = vpop.f32.mrf.mxu0
        %3094 = vdwg.mxu0
        %v3096 = vsel %vm1549, %v3042, 0
        %v3099 = vsel %vm1789, %v3046, 0
        %3101 = vmatprep.subr.bf16.mxu0 0
        %3102 = vmatpush1.bf16.msra.mxu0 0
        %3103 = vmatprep.subr.bf16.mxu0 0
        %3104 = vmatpush1.bf16.msra.mxu0 0
        %3105 = vmatprep.subr.bf16.mxu0 0
        %3106 = vmatpush1.bf16.msra.mxu0 0
        %3107 = vmatprep.subr.bf16.mxu0 0
        %3108 = vmatpush1.bf16.msra.mxu0 0
        %3109 = vmatprep.subr.bf16.mxu0 0
        %3110 = vmatpush1.bf16.msra.mxu0 0
        %3111 = vmatprep.subr.bf16.mxu0 0
        %3112 = vmatpush1.bf16.msra.mxu0 0
        %3113 = vmatprep.subr.bf16.mxu0 0
        %3114 = vmatpush1.bf16.msra.mxu0 0
        %3115 = vmatprep.subr.bf16.mxu0 0
        %3116 = vmatpush1.bf16.msra.mxu0 %v3099
        %3117 = vmatprep.subr.bf16.mxu0 0
        %3118 = vmatpush2.bf16.msra.mxu0 0
        %3119 = vmatprep.subr.bf16.mxu0 0
        %3120 = vmatpush2.bf16.msra.mxu0 0
        %3121 = vmatprep.subr.bf16.mxu0 0
        %3122 = vmatpush2.bf16.msra.mxu0 0
        %3123 = vmatprep.subr.bf16.mxu0 0
        %3124 = vmatpush2.bf16.msra.mxu0 0
        %3125 = vmatprep.subr.bf16.mxu0 0
        %3126 = vmatpush2.bf16.msra.mxu0 0
        %3127 = vmatprep.subr.bf16.mxu0 0
        %3128 = vmatpush2.bf16.msra.mxu0 0
        %3129 = vmatprep.subr.bf16.mxu0 0
        %3130 = vmatpush2.bf16.msra.mxu0 0
        %3131 = vmatprep.subr.bf16.mxu0 0
        %3132 = vmatpush2.bf16.msra.mxu0 0
        %3133 = vmatprep.mubr.bf16.mxu0 0
        %3134 = vmatmul.mubr.bf16.gmra.mxu0 %v3096
        %v3135 = vpop.f32.mrf.mxu0
        %v3136 = vadd.f32 0.0, %v3135
        %v3137 = vpop.f32.mrf.mxu0
        %v3138 = vpop.f32.mrf.mxu0
        %v3139 = vpop.f32.mrf.mxu0
        %3140 = vdwg.mxu0
        %v3142 = vsel %vm1549, %v3043, 0
        %v3145 = vsel %vm1789, %v3047, 0
        %3147 = vmatprep.subr.bf16.mxu0 0
        %3148 = vmatpush1.bf16.msra.mxu0 0
        %3149 = vmatprep.subr.bf16.mxu0 0
        %3150 = vmatpush1.bf16.msra.mxu0 0
        %3151 = vmatprep.subr.bf16.mxu0 0
        %3152 = vmatpush1.bf16.msra.mxu0 0
        %3153 = vmatprep.subr.bf16.mxu0 0
        %3154 = vmatpush1.bf16.msra.mxu0 0
        %3155 = vmatprep.subr.bf16.mxu0 0
        %3156 = vmatpush1.bf16.msra.mxu0 0
        %3157 = vmatprep.subr.bf16.mxu0 0
        %3158 = vmatpush1.bf16.msra.mxu0 0
        %3159 = vmatprep.subr.bf16.mxu0 0
        %3160 = vmatpush1.bf16.msra.mxu0 0
        %3161 = vmatprep.subr.bf16.mxu0 0
        %3162 = vmatpush1.bf16.msra.mxu0 %v3145
        %3163 = vmatprep.subr.bf16.mxu0 0
        %3164 = vmatpush2.bf16.msra.mxu0 0
        %3165 = vmatprep.subr.bf16.mxu0 0
        %3166 = vmatpush2.bf16.msra.mxu0 0
        %3167 = vmatprep.subr.bf16.mxu0 0
        %3168 = vmatpush2.bf16.msra.mxu0 0
        %3169 = vmatprep.subr.bf16.mxu0 0
        %3170 = vmatpush2.bf16.msra.mxu0 0
        %3171 = vmatprep.subr.bf16.mxu0 0
        %3172 = vmatpush2.bf16.msra.mxu0 0
        %3173 = vmatprep.subr.bf16.mxu0 0
        %3174 = vmatpush2.bf16.msra.mxu0 0
        %3175 = vmatprep.subr.bf16.mxu0 0
        %3176 = vmatpush2.bf16.msra.mxu0 0
        %3177 = vmatprep.subr.bf16.mxu0 0
        %3178 = vmatpush2.bf16.msra.mxu0 0
        %3179 = vmatprep.mubr.bf16.mxu0 0
        %3180 = vmatmul.mubr.bf16.gmra.mxu0 %v3142
        %v3181 = vpop.f32.mrf.mxu0
        %v3182 = vadd.f32 0.0, %v3181
        %v3183 = vpop.f32.mrf.mxu0
        %v3184 = vpop.f32.mrf.mxu0
        %v3185 = vpop.f32.mrf.mxu0
        %3186 = vdwg.mxu0
        %v3188 = vsel %vm1549, %v3044, 0
        %v3191 = vsel %vm1789, %v3048, 0
        %3193 = vmatprep.subr.bf16.mxu0 0
        %3194 = vmatpush1.bf16.msra.mxu0 0
        %3195 = vmatprep.subr.bf16.mxu0 0
        %3196 = vmatpush1.bf16.msra.mxu0 0
        %3197 = vmatprep.subr.bf16.mxu0 0
        %3198 = vmatpush1.bf16.msra.mxu0 0
        %3199 = vmatprep.subr.bf16.mxu0 0
        %3200 = vmatpush1.bf16.msra.mxu0 0
        %3201 = vmatprep.subr.bf16.mxu0 0
        %3202 = vmatpush1.bf16.msra.mxu0 0
        %3203 = vmatprep.subr.bf16.mxu0 0
        %3204 = vmatpush1.bf16.msra.mxu0 0
        %3205 = vmatprep.subr.bf16.mxu0 0
        %3206 = vmatpush1.bf16.msra.mxu0 0
        %3207 = vmatprep.subr.bf16.mxu0 0
        %3208 = vmatpush1.bf16.msra.mxu0 %v3191
        %3209 = vmatprep.subr.bf16.mxu0 0
        %3210 = vmatpush2.bf16.msra.mxu0 0
        %3211 = vmatprep.subr.bf16.mxu0 0
        %3212 = vmatpush2.bf16.msra.mxu0 0
        %3213 = vmatprep.subr.bf16.mxu0 0
        %3214 = vmatpush2.bf16.msra.mxu0 0
        %3215 = vmatprep.subr.bf16.mxu0 0
        %3216 = vmatpush2.bf16.msra.mxu0 0
        %3217 = vmatprep.subr.bf16.mxu0 0
        %3218 = vmatpush2.bf16.msra.mxu0 0
        %3219 = vmatprep.subr.bf16.mxu0 0
        %3220 = vmatpush2.bf16.msra.mxu0 0
        %3221 = vmatprep.subr.bf16.mxu0 0
        %3222 = vmatpush2.bf16.msra.mxu0 0
        %3223 = vmatprep.subr.bf16.mxu0 0
        %3224 = vmatpush2.bf16.msra.mxu0 0
        %3225 = vmatprep.mubr.bf16.mxu0 0
        %3226 = vmatmul.mubr.bf16.gmra.mxu0 %v3188
        %v3227 = vpop.f32.mrf.mxu0
        %v3228 = vadd.f32 0.0, %v3227
        %v3229 = vpop.f32.mrf.mxu0
        %v3230 = vpop.f32.mrf.mxu0
        %v3231 = vpop.f32.mrf.mxu0
        %3232 = vdwg.mxu0
        %v3233 = vcombine.low %v3090, %v3182
        %v3234 = vcombine.high %v3090, %v3182
        %v3236 = vunpack.c.l.s4 1983009808
        %v3237 = vunpack.c.0.s8 %v3236
        %v3238 = vlaneseq
        %v3239 = vshrl.u32 %v3238, 7
        %v3240 = vsub.s32 %v3237, %v3239
        %v3241 = vrot.slane %v3233, %v3240
        %v3243 = vunpack.c.l.s4 1983009808
        %v3244 = vunpack.c.0.s8 %v3243
        %v3245 = vlaneseq
        %v3246 = vshrl.u32 %v3245, 7
        %v3247 = vsub.s32 %v3244, %v3246
        %v3248 = vrot.slane %v3234, %v3247
        %v3249 = vcombine.low %v3136, %v3228
        %v3250 = vcombine.high %v3136, %v3228
        %v3252 = vunpack.c.l.s4 1983009808
        %v3253 = vunpack.c.0.s8 %v3252
        %v3254 = vlaneseq
        %v3255 = vshrl.u32 %v3254, 7
        %v3256 = vsub.s32 %v3253, %v3255
        %v3257 = vrot.slane %v3249, %v3256
        %v3259 = vunpack.c.l.s4 1983009808
        %v3260 = vunpack.c.0.s8 %v3259
        %v3261 = vlaneseq
        %v3262 = vshrl.u32 %v3261, 7
        %v3263 = vsub.s32 %v3260, %v3262
        %v3264 = vrot.slane %v3250, %v3263
        %v3265 = vcombine.low %v3241, %v3257
        %v3266 = vcombine.high %v3241, %v3257
        %v3268 = vunpack.c.l.s4 1934713408
        %v3269 = vunpack.c.0.s8 %v3268
        %v3270 = vlaneseq
        %v3271 = vshrl.u32 %v3270, 7
        %v3272 = vsub.s32 %v3269, %v3271
        %v3273 = vrot.slane %v3265, %v3272
        %v3275 = vunpack.c.l.s4 1934713408
        %v3276 = vunpack.c.0.s8 %v3275
        %v3277 = vlaneseq
        %v3278 = vshrl.u32 %v3277, 7
        %v3279 = vsub.s32 %v3276, %v3278
        %v3280 = vrot.slane %v3266, %v3279
        %v3281 = vcombine.low %v3248, %v3264
        %v3282 = vcombine.high %v3248, %v3264
        %v3284 = vunpack.c.l.s4 1934713408
        %v3285 = vunpack.c.0.s8 %v3284
        %v3286 = vlaneseq
        %v3287 = vshrl.u32 %v3286, 7
        %v3288 = vsub.s32 %v3285, %v3287
        %v3289 = vrot.slane %v3281, %v3288
        %v3291 = vunpack.c.l.s4 1934713408
        %v3292 = vunpack.c.0.s8 %v3291
        %v3293 = vlaneseq
        %v3294 = vshrl.u32 %v3293, 7
        %v3295 = vsub.s32 %v3292, %v3294
        %v3296 = vrot.slane %v3282, %v3295
        %v3297 = vcombine.high %v3273, 0.0
        %v3298 = vcombine.high %v3280, 0.0
        %v3299 = vcombine.high %v3289, 0.0
        %v3300 = vcombine.high %v3296, 0.0
        %v3301 = vcombine.low %v3273, %v3280
        %v3303 = vunpack.c.l.s4 1983009808
        %v3304 = vunpack.c.0.s8 %v3303
        %v3305 = vlaneseq
        %v3306 = vshrl.u32 %v3305, 7
        %v3307 = vsub.s32 %v3304, %v3306
        %v3308 = vrot.slane %v3301, %v3307
        %v3309 = vcombine.low %v3297, %v3298
        %v3311 = vunpack.c.l.s4 1983009808
        %v3312 = vunpack.c.0.s8 %v3311
        %v3313 = vlaneseq
        %v3314 = vshrl.u32 %v3313, 7
        %v3315 = vsub.s32 %v3312, %v3314
        %v3316 = vrot.slane %v3309, %v3315
        %v3317 = vcombine.low %v3289, %v3296
        %v3319 = vunpack.c.l.s4 1983009808
        %v3320 = vunpack.c.0.s8 %v3319
        %v3321 = vlaneseq
        %v3322 = vshrl.u32 %v3321, 7
        %v3323 = vsub.s32 %v3320, %v3322
        %v3324 = vrot.slane %v3317, %v3323
        %v3325 = vcombine.low %v3299, %v3300
        %v3327 = vunpack.c.l.s4 1983009808
        %v3328 = vunpack.c.0.s8 %v3327
        %v3329 = vlaneseq
        %v3330 = vshrl.u32 %v3329, 7
        %v3331 = vsub.s32 %v3328, %v3330
        %v3332 = vrot.slane %v3325, %v3331
        %v3333 = vcombine.low %v3308, %v3316
        %v3334 = vcombine.high %v3308, %v3316
        %v3336 = vunpack.c.l.s4 1934713408
        %v3337 = vunpack.c.0.s8 %v3336
        %v3338 = vlaneseq
        %v3339 = vshrl.u32 %v3338, 7
        %v3340 = vsub.s32 %v3337, %v3339
        %v3341 = vrot.slane %v3333, %v3340
        %v3343 = vunpack.c.l.s4 1934713408
        %v3344 = vunpack.c.0.s8 %v3343
        %v3345 = vlaneseq
        %v3346 = vshrl.u32 %v3345, 7
        %v3347 = vsub.s32 %v3344, %v3346
        %v3348 = vrot.slane %v3334, %v3347
        %v3349 = vcombine.low %v3324, %v3332
        %v3350 = vcombine.high %v3324, %v3332
        %v3352 = vunpack.c.l.s4 1934713408
        %v3353 = vunpack.c.0.s8 %v3352
        %v3354 = vlaneseq
        %v3355 = vshrl.u32 %v3354, 7
        %v3356 = vsub.s32 %v3353, %v3355
        %v3357 = vrot.slane %v3349, %v3356
        %v3359 = vunpack.c.l.s4 1934713408
        %v3360 = vunpack.c.0.s8 %v3359
        %v3361 = vlaneseq
        %v3362 = vshrl.u32 %v3361, 7
        %v3363 = vsub.s32 %v3360, %v3362
        %v3364 = vrot.slane %v3350, %v3363
        %v3365 = vcombine.low %v3341, %v3357
        %v3366 = vcombine.high %v3341, %v3357
        %v3367 = vcombine.low %v3348, %v3364
        %v3368 = vcombine.high %v3348, %v3364
        %3370 = vrot.lane.b32.xlu0 %v3366, 8
        %v3371 = vpop.permute.xlu0 %3370
        %3374 = vrot.lane.b32.xlu0 %v3367, 16
        %v3375 = vpop.permute.xlu0 %3374
        %3378 = vrot.lane.b32.xlu0 %v3368, 24
        %v3379 = vpop.permute.xlu0 %3378
        %v3381 = vsel %vm1549, %v3365, %v3371
        %v3382 = vsel %vm2120, %v3381, %v3375
        %v3383 = vsel %vm2122, %v3382, %v3379
        %v3384 = vpack.c.bf16 %v3383, %v3383
        %v3386 = vlaneseq
        %v3387 = vshrl.u32 %v3386, 7
        %v3388 = vsub.s32 0, %v3387
        %v3389 = vrot.slane %v2356, %v3388
        %v3395 = vunpack.c.l.b16 %v2352
        %v3396 = vunpack.c.l.b16 %v2353
        %v3397 = vunpack.c.l.b16 %v2354
        %v3398 = vunpack.c.l.b16 %v2355
        %v3399 = vpack.c.b16 %v3396, %v3395
        %v3400 = vpack.c.b16 %v3398, %v3397
        %v3404 = vsel %vm979, %v3384, 0
        %3406 = vmatprep.subr.bf16.mxu0 0
        %3407 = vmatpush1.bf16.msra.mxu0 0
        %3408 = vmatprep.subr.bf16.mxu0 0
        %3409 = vmatpush1.bf16.msra.mxu0 0
        %3410 = vmatprep.subr.bf16.mxu0 0
        %3411 = vmatpush1.bf16.msra.mxu0 0
        %3412 = vmatprep.subr.bf16.mxu0 0
        %3413 = vmatpush1.bf16.msra.mxu0 0
        %3414 = vmatprep.subr.bf16.mxu0 0
        %3415 = vmatpush1.bf16.msra.mxu0 0
        %3416 = vmatprep.subr.bf16.mxu0 0
        %3417 = vmatpush1.bf16.msra.mxu0 0
        %3418 = vmatprep.subr.bf16.mxu0 0
        %3419 = vmatpush1.bf16.msra.mxu0 %v3400
        %3420 = vmatprep.subr.bf16.mxu0 0
        %3421 = vmatpush1.bf16.msra.mxu0 %v3399
        %3422 = vmatprep.subr.bf16.mxu0 0
        %3423 = vmatpush2.bf16.msra.mxu0 0
        %3424 = vmatprep.subr.bf16.mxu0 0
        %3425 = vmatpush2.bf16.msra.mxu0 0
        %3426 = vmatprep.subr.bf16.mxu0 0
        %3427 = vmatpush2.bf16.msra.mxu0 0
        %3428 = vmatprep.subr.bf16.mxu0 0
        %3429 = vmatpush2.bf16.msra.mxu0 0
        %3430 = vmatprep.subr.bf16.mxu0 0
        %3431 = vmatpush2.bf16.msra.mxu0 0
        %3432 = vmatprep.subr.bf16.mxu0 0
        %3433 = vmatpush2.bf16.msra.mxu0 0
        %3434 = vmatprep.subr.bf16.mxu0 0
        %3435 = vmatpush2.bf16.msra.mxu0 0
        %3436 = vmatprep.subr.bf16.mxu0 0
        %3437 = vmatpush2.bf16.msra.mxu0 0
        %3438 = vmatprep.mubr.bf16.mxu0 0
        %3439 = vmatmul.mubr.bf16.gmra.mxu0 %v3404
        %v3440 = vpop.f32.mrf.mxu0
        %v3441 = vadd.f32 %v3389, %v3440
        %v3442 = vpop.f32.mrf.mxu0
        %v3443 = vpop.f32.mrf.mxu0
        %v3444 = vpop.f32.mrf.mxu0
        %3445 = vdwg.mxu0
        %v3446 = vadd.f32 %v2216, %v3441
        %v3447 = vld [vmem:[%s20] sm:$0x1]
        %v3448 = vld [vmem:[%s21] sm:$0x1]
        %v3449 = vsel %vm979, %v3446, 0.0
        %3450 = vadd.xlane.f32.xlu0 %v3449
        %v3451 = vpop.xlane.xlu0 %3450
        %v3452 = vmul.f32 %v3451, %v2192
        %v3453 = vsub.f32 %v3446, %v3452
        %v3454 = vmul.f32 %v3453, %v3453
        %v3455 = vsel %vm979, %v3454, 0.0
        %3456 = vadd.xlane.f32.xlu0 %v3455
        %v3457 = vpop.xlane.xlu0 %3456
        %v3458 = vmul.f32 %v3457, %v2192
        %v3459 = vadd.f32 %v3458, 1e-05
        %v3460 = vrsqrt.pop %v3459
        %v3461 = vmul.f32 %v3453, %v3460
        %v3463 = vlaneseq
        %v3464 = vshrl.u32 %v3463, 7
        %v3465 = vsub.s32 0, %v3464
        %v3466 = vrot.slane %v3447, %v3465
        %v3468 = vmul.f32 %v3461, %v3466
        %v3470 = vlaneseq
        %v3471 = vshrl.u32 %v3470, 7
        %v3472 = vsub.s32 0, %v3471
        %v3473 = vrot.slane %v3448, %v3472
        %v3475 = vadd.f32 %v3468, %v3473
        %v3476 = vadd.f32 %v3475, %v952
        %v3477 = vpack.c.bf16 %v3476, %v3476
        %v3478 = vld [vmem:[%s24] sm:$0xf]
        %v3479 = vld [vmem:[%s24 + $0x4] sm:$0xf]
        %v3480 = vld [vmem:[%s24 + $0x8] sm:$0xf]
        %v3481 = vld [vmem:[%s24 + $0xc] sm:$0xf]
        %v3482 = vld [vmem:[%s25] sm:$0x1]
        %v3484 = vlaneseq
        %v3485 = vshrl.u32 %v3484, 7
        %v3486 = vsub.s32 0, %v3485
        %v3487 = vrot.slane %v3482, %v3486
        %v3493 = vunpack.c.l.b16 %v3478
        %v3494 = vunpack.c.l.b16 %v3479
        %v3495 = vunpack.c.l.b16 %v3480
        %v3496 = vunpack.c.l.b16 %v3481
        %v3497 = vpack.c.b16 %v3494, %v3493
        %v3498 = vpack.c.b16 %v3496, %v3495
        %v3502 = vsel %vm979, %v3477, 0
        %3504 = vmatprep.subr.bf16.mxu0 0
        %3505 = vmatpush1.bf16.msra.mxu0 0
        %3506 = vmatprep.subr.bf16.mxu0 0
        %3507 = vmatpush1.bf16.msra.mxu0 0
        %3508 = vmatprep.subr.bf16.mxu0 0
        %3509 = vmatpush1.bf16.msra.mxu0 0
        %3510 = vmatprep.subr.bf16.mxu0 0
        %3511 = vmatpush1.bf16.msra.mxu0 0
        %3512 = vmatprep.subr.bf16.mxu0 0
        %3513 = vmatpush1.bf16.msra.mxu0 0
        %3514 = vmatprep.subr.bf16.mxu0 0
        %3515 = vmatpush1.bf16.msra.mxu0 0
        %3516 = vmatprep.subr.bf16.mxu0 0
        %3517 = vmatpush1.bf16.msra.mxu0 %v3498
        %3518 = vmatprep.subr.bf16.mxu0 0
        %3519 = vmatpush1.bf16.msra.mxu0 %v3497
        %3520 = vmatprep.subr.bf16.mxu0 0
        %3521 = vmatpush2.bf16.msra.mxu0 0
        %3522 = vmatprep.subr.bf16.mxu0 0
        %3523 = vmatpush2.bf16.msra.mxu0 0
        %3524 = vmatprep.subr.bf16.mxu0 0
        %3525 = vmatpush2.bf16.msra.mxu0 0
        %3526 = vmatprep.subr.bf16.mxu0 0
        %3527 = vmatpush2.bf16.msra.mxu0 0
        %3528 = vmatprep.subr.bf16.mxu0 0
        %3529 = vmatpush2.bf16.msra.mxu0 0
        %3530 = vmatprep.subr.bf16.mxu0 0
        %3531 = vmatpush2.bf16.msra.mxu0 0
        %3532 = vmatprep.subr.bf16.mxu0 0
        %3533 = vmatpush2.bf16.msra.mxu0 0
        %3534 = vmatprep.subr.bf16.mxu0 0
        %3535 = vmatpush2.bf16.msra.mxu0 0
        %3536 = vmatprep.mubr.bf16.mxu0 0
        %3537 = vmatmul.mubr.bf16.gmra.mxu0 %v3502
        %v3538 = vpop.f32.mrf.mxu0
        %v3539 = vadd.f32 %v3487, %v3538
        %v3540 = vpop.f32.mrf.mxu0
        %v3541 = vpop.f32.mrf.mxu0
        %v3542 = vpop.f32.mrf.mxu0
        %3543 = vdwg.mxu0
        %v3544 = vld [vmem:[%s940] sm:$0xf]
        %v3545 = vld [vmem:[%s940 + $0x4] sm:$0xf]
        %v3546 = vld [vmem:[%s940 + $0x8] sm:$0xf]
        %v3547 = vld [vmem:[%s940 + $0xc] sm:$0xf]
        %v3548 = vld [vmem:[%s940 + $0x10] sm:$0xf]
        %v3549 = vld [vmem:[%s940 + $0x14] sm:$0xf]
        %v3550 = vld [vmem:[%s940 + $0x18] sm:$0xf]
        %v3551 = vld [vmem:[%s940 + $0x1c] sm:$0xf]
        %v3552 = vld [vmem:[%s940 + $0x20] sm:$0xf]
        %v3553 = vld [vmem:[%s940 + $0x24] sm:$0xf]
        %v3554 = vld [vmem:[%s940 + $0x28] sm:$0xf]
        %v3555 = vld [vmem:[%s940 + $0x2c] sm:$0xf]
        %v3556 = vld [vmem:[%s940 + $0x30] sm:$0xf]
        %v3557 = vld [vmem:[%s940 + $0x34] sm:$0xf]
        %v3558 = vld [vmem:[%s940 + $0x38] sm:$0xf]
        %v3559 = vld [vmem:[%s940 + $0x3c] sm:$0xf]
        %v3560 = vld [vmem:[%s22] sm:$0xf]
        %v3561 = vld [vmem:[%s22 + $0x4] sm:$0xf]
        %v3562 = vld [vmem:[%s22 + $0x8] sm:$0xf]
        %v3563 = vld [vmem:[%s22 + $0xc] sm:$0xf]
        %v3564 = vld [vmem:[%s23] sm:$0x1]
        %v3566 = vlaneseq
        %v3567 = vshrl.u32 %v3566, 7
        %v3568 = vsub.s32 0, %v3567
        %v3569 = vrot.slane %v3564, %v3568
        %v3587 = vunpack.c.l.b16 %v3544
        %v3588 = vunpack.c.l.b16 %v3545
        %v3589 = vunpack.c.l.b16 %v3546
        %v3590 = vunpack.c.l.b16 %v3547
        %v3591 = vunpack.c.l.b16 %v3548
        %v3592 = vunpack.c.l.b16 %v3549
        %v3593 = vunpack.c.l.b16 %v3550
        %v3594 = vunpack.c.l.b16 %v3551
        %v3595 = vunpack.c.l.b16 %v3552
        %v3596 = vunpack.c.l.b16 %v3553
        %v3597 = vunpack.c.l.b16 %v3554
        %v3598 = vunpack.c.l.b16 %v3555
        %v3599 = vunpack.c.l.b16 %v3556
        %v3600 = vunpack.c.l.b16 %v3557
        %v3601 = vunpack.c.l.b16 %v3558
        %v3602 = vunpack.c.l.b16 %v3559
        %v3603 = vpack.c.b16 %v3588, %v3587
        %v3604 = vpack.c.b16 %v3590, %v3589
        %v3605 = vpack.c.b16 %v3592, %v3591
        %v3606 = vpack.c.b16 %v3594, %v3593
        %v3607 = vpack.c.b16 %v3596, %v3595
        %v3608 = vpack.c.b16 %v3598, %v3597
        %v3609 = vpack.c.b16 %v3600, %v3599
        %v3610 = vpack.c.b16 %v3602, %v3601
        %v3615 = vunpack.c.l.b16 %v3560
        %v3616 = vunpack.c.l.b16 %v3561
        %v3617 = vunpack.c.l.b16 %v3562
        %v3618 = vunpack.c.l.b16 %v3563
        %v3619 = vpack.c.b16 %v3616, %v3615
        %v3620 = vpack.c.b16 %v3618, %v3617
        %v3624 = vsel %vm979, %v3603, 0
        %v3627 = vsel %vm979, %v3604, 0
        %v3630 = vsel %vm979, %v3605, 0
        %v3633 = vsel %vm979, %v3606, 0
        %v3636 = vsel %vm979, %v3607, 0
        %v3639 = vsel %vm979, %v3608, 0
        %v3642 = vsel %vm979, %v3609, 0
        %v3645 = vsel %vm979, %v3610, 0
        %3647 = vmatprep.subr.bf16.mxu0 0
        %3648 = vmatpush1.bf16.msra.mxu0 0
        %3649 = vmatprep.subr.bf16.mxu0 0
        %3650 = vmatpush1.bf16.msra.mxu0 0
        %3651 = vmatprep.subr.bf16.mxu0 0
        %3652 = vmatpush1.bf16.msra.mxu0 0
        %3653 = vmatprep.subr.bf16.mxu0 0
        %3654 = vmatpush1.bf16.msra.mxu0 0
        %3655 = vmatprep.subr.bf16.mxu0 0
        %3656 = vmatpush1.bf16.msra.mxu0 0
        %3657 = vmatprep.subr.bf16.mxu0 0
        %3658 = vmatpush1.bf16.msra.mxu0 0
        %3659 = vmatprep.subr.bf16.mxu0 0
        %3660 = vmatpush1.bf16.msra.mxu0 %v3620
        %3661 = vmatprep.subr.bf16.mxu0 0
        %3662 = vmatpush1.bf16.msra.mxu0 %v3619
        %3663 = vmatprep.subr.bf16.mxu0 0
        %3664 = vmatpush2.bf16.msra.mxu0 0
        %3665 = vmatprep.subr.bf16.mxu0 0
        %3666 = vmatpush2.bf16.msra.mxu0 0
        %3667 = vmatprep.subr.bf16.mxu0 0
        %3668 = vmatpush2.bf16.msra.mxu0 0
        %3669 = vmatprep.subr.bf16.mxu0 0
        %3670 = vmatpush2.bf16.msra.mxu0 0
        %3671 = vmatprep.subr.bf16.mxu0 0
        %3672 = vmatpush2.bf16.msra.mxu0 0
        %3673 = vmatprep.subr.bf16.mxu0 0
        %3674 = vmatpush2.bf16.msra.mxu0 0
        %3675 = vmatprep.subr.bf16.mxu0 0
        %3676 = vmatpush2.bf16.msra.mxu0 0
        %3677 = vmatprep.subr.bf16.mxu0 0
        %3678 = vmatpush2.bf16.msra.mxu0 0
        %3679 = vmatprep.mubr.bf16.mxu0 0
        %3680 = vmatmul.mubr.bf16.gmra.mxu0 %v3624
        %v3681 = vpop.f32.mrf.mxu0
        %v3682 = vadd.f32 %v3569, %v3681
        %v3683 = vpop.f32.mrf.mxu0
        %v3684 = vpop.f32.mrf.mxu0
        %v3685 = vadd.f32 %v3569, %v3684
        %v3686 = vpop.f32.mrf.mxu0
        %3687 = vmatprep.mubr.bf16.mxu0 0
        %3688 = vmatmul.mubr.bf16.gmra.mxu0 %v3627
        %v3689 = vpop.f32.mrf.mxu0
        %v3690 = vadd.f32 %v3569, %v3689
        %v3691 = vpop.f32.mrf.mxu0
        %v3692 = vpop.f32.mrf.mxu0
        %v3693 = vadd.f32 %v3569, %v3692
        %v3694 = vpop.f32.mrf.mxu0
        %3695 = vmatprep.mubr.bf16.mxu0 0
        %3696 = vmatmul.mubr.bf16.gmra.mxu0 %v3630
        %v3697 = vpop.f32.mrf.mxu0
        %v3698 = vadd.f32 %v3569, %v3697
        %v3699 = vpop.f32.mrf.mxu0
        %v3700 = vpop.f32.mrf.mxu0
        %v3701 = vadd.f32 %v3569, %v3700
        %v3702 = vpop.f32.mrf.mxu0
        %3703 = vmatprep.mubr.bf16.mxu0 0
        %3704 = vmatmul.mubr.bf16.gmra.mxu0 %v3633
        %v3705 = vpop.f32.mrf.mxu0
        %v3706 = vadd.f32 %v3569, %v3705
        %v3707 = vpop.f32.mrf.mxu0
        %v3708 = vpop.f32.mrf.mxu0
        %v3709 = vadd.f32 %v3569, %v3708
        %v3710 = vpop.f32.mrf.mxu0
        %3711 = vmatprep.mubr.bf16.mxu0 0
        %3712 = vmatmul.mubr.bf16.gmra.mxu0 %v3636
        %v3713 = vpop.f32.mrf.mxu0
        %v3714 = vadd.f32 %v3569, %v3713
        %v3715 = vpop.f32.mrf.mxu0
        %v3716 = vpop.f32.mrf.mxu0
        %v3717 = vadd.f32 %v3569, %v3716
        %v3718 = vpop.f32.mrf.mxu0
        %3719 = vmatprep.mubr.bf16.mxu0 0
        %3720 = vmatmul.mubr.bf16.gmra.mxu0 %v3639
        %v3721 = vpop.f32.mrf.mxu0
        %v3722 = vadd.f32 %v3569, %v3721
        %v3723 = vpop.f32.mrf.mxu0
        %v3724 = vpop.f32.mrf.mxu0
        %v3725 = vadd.f32 %v3569, %v3724
        %v3726 = vpop.f32.mrf.mxu0
        %3727 = vmatprep.mubr.bf16.mxu0 0
        %3728 = vmatmul.mubr.bf16.gmra.mxu0 %v3642
        %v3729 = vpop.f32.mrf.mxu0
        %v3730 = vadd.f32 %v3569, %v3729
        %v3731 = vpop.f32.mrf.mxu0
        %v3732 = vpop.f32.mrf.mxu0
        %v3733 = vadd.f32 %v3569, %v3732
        %v3734 = vpop.f32.mrf.mxu0
        %3735 = vmatprep.mubr.bf16.mxu0 0
        %3736 = vmatmul.mubr.bf16.gmra.mxu0 %v3645
        %v3737 = vpop.f32.mrf.mxu0
        %v3738 = vadd.f32 %v3569, %v3737
        %v3739 = vpop.f32.mrf.mxu0
        %v3740 = vpop.f32.mrf.mxu0
        %v3741 = vadd.f32 %v3569, %v3740
        %v3742 = vpop.f32.mrf.mxu0
        %3743 = vdwg.mxu0
        %v3744 = vld [vmem:[%s945] sm:$0xff]
        %v3745 = vld [vmem:[%s945 + $0x8] sm:$0xff]
        %v3746 = vld [vmem:[%s945 + $0x10] sm:$0xff]
        %v3747 = vld [vmem:[%s945 + $0x18] sm:$0xff]
        %v3748 = vld [vmem:[%s945 + $0x20] sm:$0xff]
        %v3749 = vld [vmem:[%s945 + $0x28] sm:$0xff]
        %v3750 = vld [vmem:[%s945 + $0x30] sm:$0xff]
        %v3751 = vld [vmem:[%s945 + $0x38] sm:$0xff]
        %v3752 = vld [vmem:[%s945 + $0x40] sm:$0xff]
        %v3753 = vld [vmem:[%s945 + $0x48] sm:$0xff]
        %v3754 = vld [vmem:[%s945 + $0x50] sm:$0xff]
        %v3755 = vld [vmem:[%s945 + $0x58] sm:$0xff]
        %v3756 = vld [vmem:[%s945 + $0x60] sm:$0xff]
        %v3757 = vld [vmem:[%s945 + $0x68] sm:$0xff]
        %v3758 = vld [vmem:[%s945 + $0x70] sm:$0xff]
        %v3759 = vld [vmem:[%s945 + $0x78] sm:$0xff]
        %3761 = vset.pattern.permute.xlu0 0
        %3762 = vperm.xlu0 %3761, %v3744
        %v3763 = vpop.permute.xlu0 %3762
        %3766 = vset.pattern.permute.xlu0 0
        %3767 = vperm.xlu0 %3766, %v3745
        %v3768 = vpop.permute.xlu0 %3767
        %3771 = vset.pattern.permute.xlu0 0
        %3772 = vperm.xlu0 %3771, %v3746
        %v3773 = vpop.permute.xlu0 %3772
        %3776 = vset.pattern.permute.xlu0 0
        %3777 = vperm.xlu0 %3776, %v3747
        %v3778 = vpop.permute.xlu0 %3777
        %3781 = vset.pattern.permute.xlu0 0
        %3782 = vperm.xlu0 %3781, %v3748
        %v3783 = vpop.permute.xlu0 %3782
        %3786 = vset.pattern.permute.xlu0 0
        %3787 = vperm.xlu0 %3786, %v3749
        %v3788 = vpop.permute.xlu0 %3787
        %3791 = vset.pattern.permute.xlu0 0
        %3792 = vperm.xlu0 %3791, %v3750
        %v3793 = vpop.permute.xlu0 %3792
        %3796 = vset.pattern.permute.xlu0 0
        %3797 = vperm.xlu0 %3796, %v3751
        %v3798 = vpop.permute.xlu0 %3797
        %3801 = vset.pattern.permute.xlu0 0
        %3802 = vperm.xlu0 %3801, %v3752
        %v3803 = vpop.permute.xlu0 %3802
        %3806 = vset.pattern.permute.xlu0 0
        %3807 = vperm.xlu0 %3806, %v3753
        %v3808 = vpop.permute.xlu0 %3807
        %3811 = vset.pattern.permute.xlu0 0
        %3812 = vperm.xlu0 %3811, %v3754
        %v3813 = vpop.permute.xlu0 %3812
        %3816 = vset.pattern.permute.xlu0 0
        %3817 = vperm.xlu0 %3816, %v3755
        %v3818 = vpop.permute.xlu0 %3817
        %3821 = vset.pattern.permute.xlu0 0
        %3822 = vperm.xlu0 %3821, %v3756
        %v3823 = vpop.permute.xlu0 %3822
        %3826 = vset.pattern.permute.xlu0 0
        %3827 = vperm.xlu0 %3826, %v3757
        %v3828 = vpop.permute.xlu0 %3827
        %3831 = vset.pattern.permute.xlu0 0
        %3832 = vperm.xlu0 %3831, %v3758
        %v3833 = vpop.permute.xlu0 %3832
        %3836 = vset.pattern.permute.xlu0 0
        %3837 = vperm.xlu0 %3836, %v3759
        %v3838 = vpop.permute.xlu0 %3837
        %v3840 = vmul.f32 %v3682, %v3763
        %v3841 = vmul.f32 %v3685, %v3768
        %v3842 = vmul.f32 %v3690, %v3773
        %v3843 = vmul.f32 %v3693, %v3778
        %v3844 = vmul.f32 %v3698, %v3783
        %v3845 = vmul.f32 %v3701, %v3788
        %v3846 = vmul.f32 %v3706, %v3793
        %v3847 = vmul.f32 %v3709, %v3798
        %v3848 = vmul.f32 %v3714, %v3803
        %v3849 = vmul.f32 %v3717, %v3808
        %v3850 = vmul.f32 %v3722, %v3813
        %v3851 = vmul.f32 %v3725, %v3818
        %v3852 = vmul.f32 %v3730, %v3823
        %v3853 = vmul.f32 %v3733, %v3828
        %v3854 = vmul.f32 %v3738, %v3833
        %v3855 = vmul.f32 %v3741, %v3838
        %3856 = vst.msk [vmem:[%s907] sm:$0xff] %vm979, %v3475
        %vm3857 = vcmask 392192
        %3858 = vst.msk [vmem:[%s949] sm:$0xff] %vm3857, %v3539
        %v3859 = vpack.c.bf16 %v3841, %v3840
        %v3860 = vpack.c.bf16 %v3843, %v3842
        %v3861 = vpack.c.bf16 %v3845, %v3844
        %v3862 = vpack.c.bf16 %v3847, %v3846
        %v3863 = vpack.c.bf16 %v3849, %v3848
        %v3864 = vpack.c.bf16 %v3851, %v3850
        %v3865 = vpack.c.bf16 %v3853, %v3852
        %v3866 = vpack.c.bf16 %v3855, %v3854
        %v3875 = vunpack.c.l.b16 %v3859
        %v3876 = vunpack.c.h.b16 %v3859
        %v3877 = vunpack.c.l.b16 %v3860
        %v3878 = vunpack.c.h.b16 %v3860
        %v3879 = vunpack.c.l.b16 %v3861
        %v3880 = vunpack.c.h.b16 %v3861
        %v3881 = vunpack.c.l.b16 %v3862
        %v3882 = vunpack.c.h.b16 %v3862
        %v3883 = vunpack.c.l.b16 %v3863
        %v3884 = vunpack.c.h.b16 %v3863
        %v3885 = vunpack.c.l.b16 %v3864
        %v3886 = vunpack.c.h.b16 %v3864
        %v3887 = vunpack.c.l.b16 %v3865
        %v3888 = vunpack.c.h.b16 %v3865
        %v3889 = vunpack.c.l.b16 %v3866
        %v3890 = vunpack.c.h.b16 %v3866
        %v3891 = vpack.c.b16 %v3875, %v3875
        %v3892 = vpack.c.b16 %v3876, %v3876
        %v3893 = vpack.c.b16 %v3877, %v3877
        %v3894 = vpack.c.b16 %v3878, %v3878
        %v3895 = vpack.c.b16 %v3879, %v3879
        %v3896 = vpack.c.b16 %v3880, %v3880
        %v3897 = vpack.c.b16 %v3881, %v3881
        %v3898 = vpack.c.b16 %v3882, %v3882
        %v3899 = vpack.c.b16 %v3883, %v3883
        %v3900 = vpack.c.b16 %v3884, %v3884
        %v3901 = vpack.c.b16 %v3885, %v3885
        %v3902 = vpack.c.b16 %v3886, %v3886
        %v3903 = vpack.c.b16 %v3887, %v3887
        %v3904 = vpack.c.b16 %v3888, %v3888
        %v3905 = vpack.c.b16 %v3889, %v3889
        %v3906 = vpack.c.b16 %v3890, %v3890
        %vm3923 = vcmask 257024
        %3924 = vst.msk [vmem:[%s920] sm:$0xf] %vm3923, %v3891
        %3925 = vst.msk [vmem:[%s920 + $0x4] sm:$0xf] %vm3923, %v3892
        %3926 = vst.msk [vmem:[%s920 + $0x8] sm:$0xf] %vm3923, %v3893
        %3927 = vst.msk [vmem:[%s920 + $0xc] sm:$0xf] %vm3923, %v3894
        %3928 = vst.msk [vmem:[%s920 + $0x10] sm:$0xf] %vm3923, %v3895
        %3929 = vst.msk [vmem:[%s920 + $0x14] sm:$0xf] %vm3923, %v3896
        %3930 = vst.msk [vmem:[%s920 + $0x18] sm:$0xf] %vm3923, %v3897
        %3931 = vst.msk [vmem:[%s920 + $0x1c] sm:$0xf] %vm3923, %v3898
        %3932 = vst.msk [vmem:[%s920 + $0x20] sm:$0xf] %vm3923, %v3899
        %3933 = vst.msk [vmem:[%s920 + $0x24] sm:$0xf] %vm3923, %v3900
        %3934 = vst.msk [vmem:[%s920 + $0x28] sm:$0xf] %vm3923, %v3901
        %3935 = vst.msk [vmem:[%s920 + $0x2c] sm:$0xf] %vm3923, %v3902
        %3936 = vst.msk [vmem:[%s920 + $0x30] sm:$0xf] %vm3923, %v3903
        %3937 = vst.msk [vmem:[%s920 + $0x34] sm:$0xf] %vm3923, %v3904
        %3938 = vst.msk [vmem:[%s920 + $0x38] sm:$0xf] %vm3923, %v3905
        %3939 = vst.msk [vmem:[%s920 + $0x3c] sm:$0xf] %vm3923, %v3906
        %s3940 = sand.u32 %s630, 1
        %s3941 = scalar_lea.sflag [#allocation3], %s3940
        %s3942 = sand.u32 %s630, 1
        %s3943 = smul.addr %s3942, 8
        %s3944 = scalar_lea.vmem [#allocation2], %s3943
        %p3945 = scmp.lt.s32.totalorder %s46, 1
        %s3946 = scalar_select %p3945, %s46, 1
        %s3947 = smul.addr %s3946, 8
        %s3948 = scalar_lea.vmem %s27, %s3947
        %s3949 = sand.u32 %s682, 1
        %s3950 = scalar_lea.sflag [#allocation5], %s3949
        %s3951 = sand.u32 %s682, 1
        %s3952 = smul.addr %s3951, 64
        %s3953 = scalar_lea.vmem [#allocation4], %s3952
        // Predicated region
        $region125: #{decoder_layer_forward.2} parent=123 // pred_check
          %p3954 = pneg %p640
        $region126: #{decoder_layer_forward.2} parent=123 // pred_check_branch
          %3956 = sbr.rel (%p3954) target = $region128
        $region127: #{decoder_layer_forward.2} parent=123 // pred_region
          %s3958 = ssub.s32 128, 128
          %3959 = vsyncadd %s3941, %s3958
          %s3960 = smul.addr %s46, 128
          %s3961 = scalar_lea.hbm %s26, %s3960
          %s3963 = sshll.u32 %s3944, 4
          %s3964 = int_to_ptr.vmem [resolvable:$true] %s3963
          %3966 = dma.vmem_to_hbm [thread:$0]  %s3964, 128, %s3961, %s3941
        $region128: #{decoder_layer_forward.2} parent=123 // pred_fallthru
          _
        // Predicated region
        $region129: #{decoder_layer_forward.2} parent=123 // pred_check
          %p3967 = pneg %p666
        $region130: #{decoder_layer_forward.2} parent=123 // pred_check_branch
          %3969 = sbr.rel (%p3967) target = $region132
        $region131: #{decoder_layer_forward.2} parent=123 // pred_region
          _
        $region132: #{decoder_layer_forward.2} parent=123 // pred_fallthru
          _
        // Predicated region
        $region133: #{decoder_layer_forward.2} parent=123 // pred_check
          %p3970 = pneg %p692
        $region134: #{decoder_layer_forward.2} parent=123 // pred_check_branch
          %3972 = sbr.rel (%p3970) target = $region136
        $region135: #{decoder_layer_forward.2} parent=123 // pred_region
          %s3974 = ssub.s32 1024, 1024
          %3975 = vsyncadd %s3950, %s3974
          %s3976 = smul.addr %s46, 16
          %s3977 = smul.addr %s3976, 64
          %s3978 = scalar_lea.hbm %s28, %s3977
          %s3979 = sshll.u32 %s3953, 4
          %s3980 = int_to_ptr.vmem [resolvable:$true] %s3979
          %3985 = dma.vmem_to_hbm [thread:$0]  %s3980, 1024, %s3978, %s3950, 64, 64, 4
        $region136: #{decoder_layer_forward.2} parent=123 // pred_fallthru
          _
      $region124: #{decoder_layer_forward.2} parent=5 // pred_fallthru
        _
      %p3986 = scmp.le.s32.totalorder 2, %s41
      // Predicated region
      $region137: #{decoder_layer_forward.2} parent=5 // pred_check
        %p3987 = pneg %p3986
      $region138: #{decoder_layer_forward.2} parent=5 // pred_check_branch
        %3989 = sbr.rel (%p3987) target = $region140
      $region139: #{decoder_layer_forward.2} parent=5 // pred_region
        %s3990 = ssub.s32 %s41, 2
        // Predicated region
        $region141: #{decoder_layer_forward.2} parent=139 // pred_check
          %p3991 = pneg %p646
        $region142: #{decoder_layer_forward.2} parent=139 // pred_check_branch
          %3993 = sbr.rel (%p3991) target = $region144
        $region143: #{decoder_layer_forward.2} parent=139 // pred_region
          %s3994 = sand.u32 %s631, 1
          %s3995 = scalar_lea.sflag [#allocation3], %s3994
          %s3996 = sand.u32 %s631, 1
          %s3997 = smul.addr %s3996, 8
          %s3998 = scalar_lea.vmem [#allocation2], %s3997
          %3999 = dma.done %s3995, 128
        $region144: #{decoder_layer_forward.2} parent=139 // pred_fallthru
          _
        // Predicated region
        $region145: #{decoder_layer_forward.2} parent=139 // pred_check
          %p4000 = pneg %p672
        $region146: #{decoder_layer_forward.2} parent=139 // pred_check_branch
          %4002 = sbr.rel (%p4000) target = $region148
        $region147: #{decoder_layer_forward.2} parent=139 // pred_region
          %p4003 = scmp.lt.s32.totalorder %s47, 1
          %s4004 = scalar_select %p4003, %s47, 1
          %s4005 = smul.addr %s4004, 8
          %s4006 = scalar_lea.vmem %s27, %s4005
        $region148: #{decoder_layer_forward.2} parent=139 // pred_fallthru
          _
        // Predicated region
        $region149: #{decoder_layer_forward.2} parent=139 // pred_check
          %p4007 = pneg %p698
        $region150: #{decoder_layer_forward.2} parent=139 // pred_check_branch
          %4009 = sbr.rel (%p4007) target = $region152
        $region151: #{decoder_layer_forward.2} parent=139 // pred_region
          %s4010 = sand.u32 %s683, 1
          %s4011 = scalar_lea.sflag [#allocation5], %s4010
          %s4012 = sand.u32 %s683, 1
          %s4013 = smul.addr %s4012, 64
          %s4014 = scalar_lea.vmem [#allocation4], %s4013
          %4015 = dma.done %s4011, 1024
        $region152: #{decoder_layer_forward.2} parent=139 // pred_fallthru
          _
      $region140: #{decoder_layer_forward.2} parent=5 // pred_fallthru
        _
    $region6: #{decoder_layer_forward.2} parent=1 // loop_footer
      %s45 = sadd.s32 1, %s41
    $region7: #{decoder_layer_forward.2} parent=1 // loop_footer_branch
      %40 = sbr.rel target = $region3
    $region8: #{decoder_layer_forward.2} parent=1 // loop_exit
      _
    %4016 = vsyncpa [#allocation3], 1
    %s4017 = scalar_lea.sflag [#allocation3], 1
    %4018 = vsyncpa %s4017, 1
    %4019 = vsyncpa [#allocation5], 1
    %s4020 = scalar_lea.sflag [#allocation5], 1
    %4021 = vsyncpa %s4020, 1

// kernel: decoder_layer_forward.3
$region0: #{decoder_layer_forward.3}
  #allocation0 [shape = 'u32[]', space=smem, size = 0x4, offset = 0x4, fixed_abs, tag = 'smem constant byte address 0x4 - core index']
  #allocation1 [shape = 'u32[144,128]{1,0:T(1,128)}', space=vmem, size = 0x12000, scoped, tag = 'internal scratch']
  %s0 = inlined_call_operand.hbm [shape: f32[2,8,32], index: 0, kind: input, shape index: {}]
  %s1 = inlined_call_operand.vmem [shape: bf16[2,4,8,128], index: 1, kind: input, shape index: {}]
  %s2 = inlined_call_operand.vmem [shape: bf16[2,128,32], index: 2, kind: input, shape index: {}]
  %s3 = inlined_call_operand.vmem [shape: bf16[32,32], index: 3, kind: input, shape index: {}]
  %s4 = inlined_call_operand.vmem [shape: f32[1,32], index: 4, kind: input, shape index: {}]
  %s5 = inlined_call_operand.vmem [shape: f32[1,32], index: 5, kind: input, shape index: {}]
  %s6 = inlined_call_operand.vmem [shape: f32[1,32], index: 6, kind: input, shape index: {}]
  %s7 = inlined_call_operand.vmem [shape: bf16[32,128], index: 7, kind: input, shape index: {}]
  %s8 = inlined_call_operand.vmem [shape: f32[1,128], index: 8, kind: input, shape index: {}]
  %s9 = inlined_call_operand.vmem [shape: bf16[128,32], index: 9, kind: input, shape index: {}]
  %s10 = inlined_call_operand.vmem [shape: f32[1,32], index: 10, kind: input, shape index: {}]
  %s11 = inlined_call_operand.hbm [shape: f32[1,32], index: 11, kind: input, shape index: {}]
  %s12 = inlined_call_operand.hbm [shape: f32[1,32], index: 12, kind: input, shape index: {}]
  %s13 = inlined_call_operand.hbm [shape: f32[2,8,32], index: 13, kind: output, shape index: {}]
  %s14 = sld [smem:[#allocation0]]
  $region97: #{decoder_layer_forward.3} parent=0
    _
  %s16 = ssub.s32 1, %s14
  %s17 = scalar_select 0, %s16, %s14
  $region1: #{decoder_layer_forward.3} parent=0
    #allocation2 [shape = 'u8[8192]{0}', space=vmem, size = 0x2000, scoped, tag = 'input window, operand 0']
    #allocation3 [shape = 's32[2]{0}', space=sflag, size = 0x8, scoped, tag = 'scoped memory for decoder_layer_forward.3']
    #allocation4 [shape = 's32[2]{0}', space=sflag, size = 0x8, scoped, tag = 'scoped memory for decoder_layer_forward.3']
    #allocation5 [shape = 'u8[512]{0}', space=vmem, size = 0x400, scoped, tag = 'input window, operand 11, single buffered']
    #allocation6 [shape = 's32[1]{0}', space=sflag, size = 0x4, scoped, tag = 'scoped memory for decoder_layer_forward.3']
    #allocation7 [shape = 'u8[512]{0}', space=vmem, size = 0x400, scoped, tag = 'input window, operand 12, single buffered']
    #allocation8 [shape = 'u8[8192]{0}', space=vmem, size = 0x2000, scoped, tag = 'output window, operand 0']
    %18 = vsyncpa [#allocation3], 0
    %s19 = scalar_lea.sflag [#allocation3], 1
    %20 = vsyncpa %s19, 0
    %21 = vsyncpa [#allocation6], 0
    %22 = vsyncpa [#allocation4], 0
    %s23 = scalar_lea.sflag [#allocation4], 1
    %24 = vsyncpa %s23, 0
    loop: start=0, step=1, limit=4
    $region2: #{decoder_layer_forward.3} parent=1 // loop_pre_header
      _
    $region3: #{decoder_layer_forward.3} parent=1 // loop_header
      %s26 = sphi 0, %s30
      %p27 = scmp.ge.s32.totalorder %s26, 4
      %s36 = sphi 0, %s38
      %s39 = sphi 0, %s36
      %s40 = sphi 0, %s39
      %s56 = sphi 0, %s40
      %s62 = sphi 0, %s64
      %s65 = sphi 0, %s62
      %s66 = sphi 0, %s65
      %s82 = sphi 0, %s66
      %s88 = sphi 0, %s90
      %s91 = sphi 0, %s88
      %s92 = sphi 0, %s91
      %s108 = sphi 0, %s92
      %s112 = sphi 0, %s112
      %s114 = sphi 0, %s112
      %s115 = sphi 0, %s114
      %s129 = sphi 0, %s115
      %s133 = sphi 0, %s133
      %s135 = sphi 0, %s133
      %s136 = sphi 0, %s135
      %s150 = sphi 0, %s136
      %s154 = sphi 0, %s154
      %s156 = sphi 0, %s154
      %s157 = sphi 0, %s156
      %s171 = sphi 0, %s157
      %s175 = sphi 0, %s175
      %s177 = sphi 0, %s175
      %s178 = sphi 0, %s177
      %s192 = sphi 0, %s178
      %s196 = sphi 0, %s196
      %s198 = sphi 0, %s196
      %s199 = sphi 0, %s198
      %s213 = sphi 0, %s199
      %s217 = sphi 0, %s217
      %s219 = sphi 0, %s217
      %s220 = sphi 0, %s219
      %s234 = sphi 0, %s220
      %s238 = sphi 0, %s238
      %s240 = sphi 0, %s238
      %s241 = sphi 0, %s240
      %s255 = sphi 0, %s241
      %s259 = sphi 0, %s259
      %s261 = sphi 0, %s259
      %s262 = sphi 0, %s261
      %s276 = sphi 0, %s262
      %s280 = sphi 0, %s280
      %s282 = sphi 0, %s280
      %s283 = sphi 0, %s282
      %s297 = sphi 0, %s283
      %s301 = sphi 0, %s301
      %s303 = sphi 0, %s301
      %s304 = sphi 0, %s303
      %s318 = sphi 0, %s304
      %s324 = sphi 0, %s326
      %s327 = sphi 0, %s324
      %s328 = sphi 0, %s327
      %s344 = sphi 0, %s328
    $region4: #{decoder_layer_forward.3} parent=1 // loop_header_branch
      %29 = sbr.rel (%p27) target = $region8
    $region5: #{decoder_layer_forward.3} parent=1 // loop_body
      %s31 = ssub.s32 %s26, 1
      %s32 = ssub.s32 %s26, 2
      %s33 = sadd.s32 %s26, 1
      %s34 = ssub.s32 %s26, %s33
      %p35 = scmp.eq.s32.totalorder %s34, 0
      %s37 = sadd.s32 %s36, 1
      %s38 = scalar_select %p35, %s36, %s37
      %p41 = pneg %p35
      %p42 = scmp.eq.s32.totalorder %s26, 1
      %p43 = por %p41, %p42
      %p44 = scmp.ne.s32.totalorder %s36, %s39
      %p45 = scmp.eq.s32.totalorder %s26, 0
      %p46 = por %p44, %p45
      %p47 = scmp.ne.s32.totalorder %s36, %s39
      %p48 = scmp.eq.s32.totalorder %s31, 1
      %p49 = por %p47, %p48
      %p50 = scmp.ne.s32.totalorder %s39, %s40
      %p51 = scmp.eq.s32.totalorder %s31, 0
      %p52 = por %p50, %p51
      %p53 = scmp.ne.s32.totalorder %s39, %s40
      %p54 = scmp.eq.s32.totalorder %s32, 1
      %p55 = por %p53, %p54
      %p57 = scmp.ne.s32.totalorder %s40, %s56
      %p58 = scmp.eq.s32.totalorder %s32, 0
      %p59 = por %p57, %p58
      %s60 = ssub.s32 %s26, %s33
      %p61 = scmp.eq.s32.totalorder %s60, 0
      %s63 = sadd.s32 %s62, 1
      %s64 = scalar_select %p61, %s62, %s63
      %p67 = pneg %p61
      %p68 = scmp.eq.s32.totalorder %s26, 1
      %p69 = por %p67, %p68
      %p70 = scmp.ne.s32.totalorder %s62, %s65
      %p71 = scmp.eq.s32.totalorder %s26, 0
      %p72 = por %p70, %p71
      %p73 = scmp.ne.s32.totalorder %s62, %s65
      %p74 = scmp.eq.s32.totalorder %s31, 1
      %p75 = por %p73, %p74
      %p76 = scmp.ne.s32.totalorder %s65, %s66
      %p77 = scmp.eq.s32.totalorder %s31, 0
      %p78 = por %p76, %p77
      %p79 = scmp.ne.s32.totalorder %s65, %s66
      %p80 = scmp.eq.s32.totalorder %s32, 1
      %p81 = por %p79, %p80
      %p83 = scmp.ne.s32.totalorder %s66, %s82
      %p84 = scmp.eq.s32.totalorder %s32, 0
      %p85 = por %p83, %p84
      %s86 = ssub.s32 %s26, %s33
      %p87 = scmp.eq.s32.totalorder %s86, 0
      %s89 = sadd.s32 %s88, 1
      %s90 = scalar_select %p87, %s88, %s89
      %p93 = pneg %p87
      %p94 = scmp.eq.s32.totalorder %s26, 1
      %p95 = por %p93, %p94
      %p96 = scmp.ne.s32.totalorder %s88, %s91
      %p97 = scmp.eq.s32.totalorder %s26, 0
      %p98 = por %p96, %p97
      %p99 = scmp.ne.s32.totalorder %s88, %s91
      %p100 = scmp.eq.s32.totalorder %s31, 1
      %p101 = por %p99, %p100
      %p102 = scmp.ne.s32.totalorder %s91, %s92
      %p103 = scmp.eq.s32.totalorder %s31, 0
      %p104 = por %p102, %p103
      %p105 = scmp.ne.s32.totalorder %s91, %s92
      %p106 = scmp.eq.s32.totalorder %s32, 1
      %p107 = por %p105, %p106
      %p109 = scmp.ne.s32.totalorder %s92, %s108
      %p110 = scmp.eq.s32.totalorder %s32, 0
      %p111 = por %p109, %p110
      %s113 = sadd.s32 %s112, 1
      %p116 = scmp.eq.s32.totalorder %s26, 1
      %p117 = scmp.ne.s32.totalorder %s112, %s114
      %p118 = scmp.eq.s32.totalorder %s26, 0
      %p119 = por %p117, %p118
      %p120 = scmp.ne.s32.totalorder %s112, %s114
      %p121 = scmp.eq.s32.totalorder %s31, 1
      %p122 = por %p120, %p121
      %p123 = scmp.ne.s32.totalorder %s114, %s115
      %p124 = scmp.eq.s32.totalorder %s31, 0
      %p125 = por %p123, %p124
      %p126 = scmp.ne.s32.totalorder %s114, %s115
      %p127 = scmp.eq.s32.totalorder %s32, 1
      %p128 = por %p126, %p127
      %p130 = scmp.ne.s32.totalorder %s115, %s129
      %p131 = scmp.eq.s32.totalorder %s32, 0
      %p132 = por %p130, %p131
      %s134 = sadd.s32 %s133, 1
      %p137 = scmp.eq.s32.totalorder %s26, 1
      %p138 = scmp.ne.s32.totalorder %s133, %s135
      %p139 = scmp.eq.s32.totalorder %s26, 0
      %p140 = por %p138, %p139
      %p141 = scmp.ne.s32.totalorder %s133, %s135
      %p142 = scmp.eq.s32.totalorder %s31, 1
      %p143 = por %p141, %p142
      %p144 = scmp.ne.s32.totalorder %s135, %s136
      %p145 = scmp.eq.s32.totalorder %s31, 0
      %p146 = por %p144, %p145
      %p147 = scmp.ne.s32.totalorder %s135, %s136
      %p148 = scmp.eq.s32.totalorder %s32, 1
      %p149 = por %p147, %p148
      %p151 = scmp.ne.s32.totalorder %s136, %s150
      %p152 = scmp.eq.s32.totalorder %s32, 0
      %p153 = por %p151, %p152
      %s155 = sadd.s32 %s154, 1
      %p158 = scmp.eq.s32.totalorder %s26, 1
      %p159 = scmp.ne.s32.totalorder %s154, %s156
      %p160 = scmp.eq.s32.totalorder %s26, 0
      %p161 = por %p159, %p160
      %p162 = scmp.ne.s32.totalorder %s154, %s156
      %p163 = scmp.eq.s32.totalorder %s31, 1
      %p164 = por %p162, %p163
      %p165 = scmp.ne.s32.totalorder %s156, %s157
      %p166 = scmp.eq.s32.totalorder %s31, 0
      %p167 = por %p165, %p166
      %p168 = scmp.ne.s32.totalorder %s156, %s157
      %p169 = scmp.eq.s32.totalorder %s32, 1
      %p170 = por %p168, %p169
      %p172 = scmp.ne.s32.totalorder %s157, %s171
      %p173 = scmp.eq.s32.totalorder %s32, 0
      %p174 = por %p172, %p173
      %s176 = sadd.s32 %s175, 1
      %p179 = scmp.eq.s32.totalorder %s26, 1
      %p180 = scmp.ne.s32.totalorder %s175, %s177
      %p181 = scmp.eq.s32.totalorder %s26, 0
      %p182 = por %p180, %p181
      %p183 = scmp.ne.s32.totalorder %s175, %s177
      %p184 = scmp.eq.s32.totalorder %s31, 1
      %p185 = por %p183, %p184
      %p186 = scmp.ne.s32.totalorder %s177, %s178
      %p187 = scmp.eq.s32.totalorder %s31, 0
      %p188 = por %p186, %p187
      %p189 = scmp.ne.s32.totalorder %s177, %s178
      %p190 = scmp.eq.s32.totalorder %s32, 1
      %p191 = por %p189, %p190
      %p193 = scmp.ne.s32.totalorder %s178, %s192
      %p194 = scmp.eq.s32.totalorder %s32, 0
      %p195 = por %p193, %p194
      %s197 = sadd.s32 %s196, 1
      %p200 = scmp.eq.s32.totalorder %s26, 1
      %p201 = scmp.ne.s32.totalorder %s196, %s198
      %p202 = scmp.eq.s32.totalorder %s26, 0
      %p203 = por %p201, %p202
      %p204 = scmp.ne.s32.totalorder %s196, %s198
      %p205 = scmp.eq.s32.totalorder %s31, 1
      %p206 = por %p204, %p205
      %p207 = scmp.ne.s32.totalorder %s198, %s199
      %p208 = scmp.eq.s32.totalorder %s31, 0
      %p209 = por %p207, %p208
      %p210 = scmp.ne.s32.totalorder %s198, %s199
      %p211 = scmp.eq.s32.totalorder %s32, 1
      %p212 = por %p210, %p211
      %p214 = scmp.ne.s32.totalorder %s199, %s213
      %p215 = scmp.eq.s32.totalorder %s32, 0
      %p216 = por %p214, %p215
      %s218 = sadd.s32 %s217, 1
      %p221 = scmp.eq.s32.totalorder %s26, 1
      %p222 = scmp.ne.s32.totalorder %s217, %s219
      %p223 = scmp.eq.s32.totalorder %s26, 0
      %p224 = por %p222, %p223
      %p225 = scmp.ne.s32.totalorder %s217, %s219
      %p226 = scmp.eq.s32.totalorder %s31, 1
      %p227 = por %p225, %p226
      %p228 = scmp.ne.s32.totalorder %s219, %s220
      %p229 = scmp.eq.s32.totalorder %s31, 0
      %p230 = por %p228, %p229
      %p231 = scmp.ne.s32.totalorder %s219, %s220
      %p232 = scmp.eq.s32.totalorder %s32, 1
      %p233 = por %p231, %p232
      %p235 = scmp.ne.s32.totalorder %s220, %s234
      %p236 = scmp.eq.s32.totalorder %s32, 0
      %p237 = por %p235, %p236
      %s239 = sadd.s32 %s238, 1
      %p242 = scmp.eq.s32.totalorder %s26, 1
      %p243 = scmp.ne.s32.totalorder %s238, %s240
      %p244 = scmp.eq.s32.totalorder %s26, 0
      %p245 = por %p243, %p244
      %p246 = scmp.ne.s32.totalorder %s238, %s240
      %p247 = scmp.eq.s32.totalorder %s31, 1
      %p248 = por %p246, %p247
      %p249 = scmp.ne.s32.totalorder %s240, %s241
      %p250 = scmp.eq.s32.totalorder %s31, 0
      %p251 = por %p249, %p250
      %p252 = scmp.ne.s32.totalorder %s240, %s241
      %p253 = scmp.eq.s32.totalorder %s32, 1
      %p254 = por %p252, %p253
      %p256 = scmp.ne.s32.totalorder %s241, %s255
      %p257 = scmp.eq.s32.totalorder %s32, 0
      %p258 = por %p256, %p257
      %s260 = sadd.s32 %s259, 1
      %p263 = scmp.eq.s32.totalorder %s26, 1
      %p264 = scmp.ne.s32.totalorder %s259, %s261
      %p265 = scmp.eq.s32.totalorder %s26, 0
      %p266 = por %p264, %p265
      %p267 = scmp.ne.s32.totalorder %s259, %s261
      %p268 = scmp.eq.s32.totalorder %s31, 1
      %p269 = por %p267, %p268
      %p270 = scmp.ne.s32.totalorder %s261, %s262
      %p271 = scmp.eq.s32.totalorder %s31, 0
      %p272 = por %p270, %p271
      %p273 = scmp.ne.s32.totalorder %s261, %s262
      %p274 = scmp.eq.s32.totalorder %s32, 1
      %p275 = por %p273, %p274
      %p277 = scmp.ne.s32.totalorder %s262, %s276
      %p278 = scmp.eq.s32.totalorder %s32, 0
      %p279 = por %p277, %p278
      %s281 = sadd.s32 %s280, 1
      %p284 = scmp.eq.s32.totalorder %s26, 1
      %p285 = scmp.ne.s32.totalorder %s280, %s282
      %p286 = scmp.eq.s32.totalorder %s26, 0
      %p287 = por %p285, %p286
      %p288 = scmp.ne.s32.totalorder %s280, %s282
      %p289 = scmp.eq.s32.totalorder %s31, 1
      %p290 = por %p288, %p289
      %p291 = scmp.ne.s32.totalorder %s282, %s283
      %p292 = scmp.eq.s32.totalorder %s31, 0
      %p293 = por %p291, %p292
      %p294 = scmp.ne.s32.totalorder %s282, %s283
      %p295 = scmp.eq.s32.totalorder %s32, 1
      %p296 = por %p294, %p295
      %p298 = scmp.ne.s32.totalorder %s283, %s297
      %p299 = scmp.eq.s32.totalorder %s32, 0
      %p300 = por %p298, %p299
      %s302 = sadd.s32 %s301, 1
      %p305 = scmp.eq.s32.totalorder %s26, 1
      %p306 = scmp.ne.s32.totalorder %s301, %s303
      %p307 = scmp.eq.s32.totalorder %s26, 0
      %p308 = por %p306, %p307
      %p309 = scmp.ne.s32.totalorder %s301, %s303
      %p310 = scmp.eq.s32.totalorder %s31, 1
      %p311 = por %p309, %p310
      %p312 = scmp.ne.s32.totalorder %s303, %s304
      %p313 = scmp.eq.s32.totalorder %s31, 0
      %p314 = por %p312, %p313
      %p315 = scmp.ne.s32.totalorder %s303, %s304
      %p316 = scmp.eq.s32.totalorder %s32, 1
      %p317 = por %p315, %p316
      %p319 = scmp.ne.s32.totalorder %s304, %s318
      %p320 = scmp.eq.s32.totalorder %s32, 0
      %p321 = por %p319, %p320
      %s322 = ssub.s32 %s26, %s33
      %p323 = scmp.eq.s32.totalorder %s322, 0
      %s325 = sadd.s32 %s324, 1
      %s326 = scalar_select %p323, %s324, %s325
      %p329 = pneg %p323
      %p330 = scmp.eq.s32.totalorder %s26, 1
      %p331 = por %p329, %p330
      %p332 = scmp.ne.s32.totalorder %s324, %s327
      %p333 = scmp.eq.s32.totalorder %s26, 0
      %p334 = por %p332, %p333
      %p335 = scmp.ne.s32.totalorder %s324, %s327
      %p336 = scmp.eq.s32.totalorder %s31, 1
      %p337 = por %p335, %p336
      %p338 = scmp.ne.s32.totalorder %s327, %s328
      %p339 = scmp.eq.s32.totalorder %s31, 0
      %p340 = por %p338, %p339
      %p341 = scmp.ne.s32.totalorder %s327, %s328
      %p342 = scmp.eq.s32.totalorder %s32, 1
      %p343 = por %p341, %p342
      %p345 = scmp.ne.s32.totalorder %s328, %s344
      %p346 = scmp.eq.s32.totalorder %s32, 0
      %p347 = por %p345, %p346
      %p348 = scmp.le.s32.totalorder 1, %s26
      %p349 = scmp.lt.s32.totalorder %s26, 3
      %p350 = pnand %p348, %p349
      %p351 = pneg %p350
      // Predicated region
      $region9: #{decoder_layer_forward.3} parent=5 // pred_check
        _
      $region10: #{decoder_layer_forward.3} parent=5 // pred_check_branch
        %353 = sbr.rel (%p350) target = $region12
      $region11: #{decoder_layer_forward.3} parent=5 // pred_region
        %s354 = ssub.s32 %s26, 1
        // Predicated region
        $region13: #{decoder_layer_forward.3} parent=11 // pred_check
          %p355 = pneg %p125
        $region14: #{decoder_layer_forward.3} parent=11 // pred_check_branch
          %357 = sbr.rel (%p355) target = $region16
        $region15: #{decoder_layer_forward.3} parent=11 // pred_region
          _
        $region16: #{decoder_layer_forward.3} parent=11 // pred_fallthru
          _
        // Predicated region
        $region17: #{decoder_layer_forward.3} parent=11 // pred_check
          %p358 = pneg %p146
        $region18: #{decoder_layer_forward.3} parent=11 // pred_check_branch
          %360 = sbr.rel (%p358) target = $region20
        $region19: #{decoder_layer_forward.3} parent=11 // pred_region
          _
        $region20: #{decoder_layer_forward.3} parent=11 // pred_fallthru
          _
        // Predicated region
        $region21: #{decoder_layer_forward.3} parent=11 // pred_check
          %p361 = pneg %p167
        $region22: #{decoder_layer_forward.3} parent=11 // pred_check_branch
          %363 = sbr.rel (%p361) target = $region24
        $region23: #{decoder_layer_forward.3} parent=11 // pred_region
          _
        $region24: #{decoder_layer_forward.3} parent=11 // pred_fallthru
          _
        // Predicated region
        $region25: #{decoder_layer_forward.3} parent=11 // pred_check
          %p364 = pneg %p188
        $region26: #{decoder_layer_forward.3} parent=11 // pred_check_branch
          %366 = sbr.rel (%p364) target = $region28
        $region27: #{decoder_layer_forward.3} parent=11 // pred_region
          _
        $region28: #{decoder_layer_forward.3} parent=11 // pred_fallthru
          _
        // Predicated region
        $region29: #{decoder_layer_forward.3} parent=11 // pred_check
          %p367 = pneg %p209
        $region30: #{decoder_layer_forward.3} parent=11 // pred_check_branch
          %369 = sbr.rel (%p367) target = $region32
        $region31: #{decoder_layer_forward.3} parent=11 // pred_region
          _
        $region32: #{decoder_layer_forward.3} parent=11 // pred_fallthru
          _
        // Predicated region
        $region33: #{decoder_layer_forward.3} parent=11 // pred_check
          %p370 = pneg %p230
        $region34: #{decoder_layer_forward.3} parent=11 // pred_check_branch
          %372 = sbr.rel (%p370) target = $region36
        $region35: #{decoder_layer_forward.3} parent=11 // pred_region
          _
        $region36: #{decoder_layer_forward.3} parent=11 // pred_fallthru
          _
        // Predicated region
        $region37: #{decoder_layer_forward.3} parent=11 // pred_check
          %p373 = pneg %p251
        $region38: #{decoder_layer_forward.3} parent=11 // pred_check_branch
          %375 = sbr.rel (%p373) target = $region40
        $region39: #{decoder_layer_forward.3} parent=11 // pred_region
          _
        $region40: #{decoder_layer_forward.3} parent=11 // pred_fallthru
          _
        // Predicated region
        $region41: #{decoder_layer_forward.3} parent=11 // pred_check
          %p376 = pneg %p272
        $region42: #{decoder_layer_forward.3} parent=11 // pred_check_branch
          %378 = sbr.rel (%p376) target = $region44
        $region43: #{decoder_layer_forward.3} parent=11 // pred_region
          _
        $region44: #{decoder_layer_forward.3} parent=11 // pred_fallthru
          _
        // Predicated region
        $region45: #{decoder_layer_forward.3} parent=11 // pred_check
          %p379 = pneg %p293
        $region46: #{decoder_layer_forward.3} parent=11 // pred_check_branch
          %381 = sbr.rel (%p379) target = $region48
        $region47: #{decoder_layer_forward.3} parent=11 // pred_region
          %s383 = ssub.s32 16, 16
          %384 = vsyncadd [#allocation6], %s383
          %s386 = sshll.u32 [#allocation5], 4
          %s387 = int_to_ptr.vmem [resolvable:$true] %s386
          %389 = dma.hbm_to_vmem [thread:$0]  %s11, 16, %s387, [#allocation6]
        $region48: #{decoder_layer_forward.3} parent=11 // pred_fallthru
          _
        // Predicated region
        $region49: #{decoder_layer_forward.3} parent=11 // pred_check
          %p390 = pneg %p314
        $region50: #{decoder_layer_forward.3} parent=11 // pred_check_branch
          %392 = sbr.rel (%p390) target = $region52
        $region51: #{decoder_layer_forward.3} parent=11 // pred_region
          %s394 = ssub.s32 16, 16
          %395 = vsyncadd [#allocation6], %s394
          %s397 = sshll.u32 [#allocation7], 4
          %s398 = int_to_ptr.vmem [resolvable:$true] %s397
          %400 = dma.hbm_to_vmem [thread:$0]  %s12, 16, %s398, [#allocation6]
        $region52: #{decoder_layer_forward.3} parent=11 // pred_fallthru
          _
      $region12: #{decoder_layer_forward.3} parent=5 // pred_fallthru
        _
      %p401 = scmp.lt.s32.totalorder %s26, 2
      // Predicated region
      $region53: #{decoder_layer_forward.3} parent=5 // pred_check
        %p402 = pneg %p401
      $region54: #{decoder_layer_forward.3} parent=5 // pred_check_branch
        %404 = sbr.rel (%p402) target = $region56
      $region55: #{decoder_layer_forward.3} parent=5 // pred_region
        // Predicated region
        $region57: #{decoder_layer_forward.3} parent=55 // pred_check
          %p405 = pneg %p46
        $region58: #{decoder_layer_forward.3} parent=55 // pred_check_branch
          %407 = sbr.rel (%p405) target = $region60
        $region59: #{decoder_layer_forward.3} parent=55 // pred_region
          %s408 = sand.u32 %s36, 1
          %s409 = scalar_lea.sflag [#allocation3], %s408
          %s410 = sand.u32 %s36, 1
          %s411 = smul.addr %s410, 8
          %s412 = scalar_lea.vmem [#allocation2], %s411
          %s414 = ssub.s32 128, 128
          %415 = vsyncadd %s409, %s414
          %s416 = smul.addr %s26, 128
          %s417 = scalar_lea.hbm %s0, %s416
          %s419 = sshll.u32 %s412, 4
          %s420 = int_to_ptr.vmem [resolvable:$true] %s419
          %422 = dma.hbm_to_vmem [thread:$0]  %s417, 128, %s420, %s409
        $region60: #{decoder_layer_forward.3} parent=55 // pred_fallthru
          _
        // Predicated region
        $region61: #{decoder_layer_forward.3} parent=55 // pred_check
          %p423 = pneg %p72
        $region62: #{decoder_layer_forward.3} parent=55 // pred_check_branch
          %425 = sbr.rel (%p423) target = $region64
        $region63: #{decoder_layer_forward.3} parent=55 // pred_region
          %p426 = scmp.lt.s32.totalorder %s26, 1
          %s427 = scalar_select %p426, %s26, 1
          %s428 = smul.addr %s427, 4
          %s429 = smul.addr %s428, 4
          %s430 = scalar_lea.vmem %s1, %s429
        $region64: #{decoder_layer_forward.3} parent=55 // pred_fallthru
          _
        // Predicated region
        $region65: #{decoder_layer_forward.3} parent=55 // pred_check
          %p431 = pneg %p98
        $region66: #{decoder_layer_forward.3} parent=55 // pred_check_branch
          %433 = sbr.rel (%p431) target = $region68
        $region67: #{decoder_layer_forward.3} parent=55 // pred_region
          %p434 = scmp.lt.s32.totalorder %s26, 1
          %s435 = scalar_select %p434, %s26, 1
          %s436 = smul.addr %s435, 16
          %s437 = smul.addr %s436, 4
          %s438 = scalar_lea.vmem %s2, %s437
        $region68: #{decoder_layer_forward.3} parent=55 // pred_fallthru
          _
      $region56: #{decoder_layer_forward.3} parent=5 // pred_fallthru
        _
      %p439 = scmp.le.s32.totalorder 1, %s26
      %p440 = scmp.lt.s32.totalorder %s26, 3
      %p441 = pnand %p439, %p440
      %p442 = pneg %p441
      // Predicated region
      $region69: #{decoder_layer_forward.3} parent=5 // pred_check
        _
      $region70: #{decoder_layer_forward.3} parent=5 // pred_check_branch
        %444 = sbr.rel (%p441) target = $region72
      $region71: #{decoder_layer_forward.3} parent=5 // pred_region
        %s445 = ssub.s32 %s26, 1
        %s446 = sand.u32 %s39, 1
        %s447 = scalar_lea.sflag [#allocation3], %s446
        %s448 = sand.u32 %s39, 1
        %s449 = smul.addr %s448, 8
        %s450 = scalar_lea.vmem [#allocation2], %s449
        // Predicated region
        $region73: #{decoder_layer_forward.3} parent=71 // pred_check
          %p451 = pneg %p52
        $region74: #{decoder_layer_forward.3} parent=71 // pred_check_branch
          %453 = sbr.rel (%p451) target = $region76
        $region75: #{decoder_layer_forward.3} parent=71 // pred_region
          %454 = dma.done %s447, 128
        $region76: #{decoder_layer_forward.3} parent=71 // pred_fallthru
          _
        // Predicated region
        $region77: #{decoder_layer_forward.3} parent=71 // pred_check
          %p455 = pneg %p293
        $region78: #{decoder_layer_forward.3} parent=71 // pred_check_branch
          %457 = sbr.rel (%p455) target = $region80
        $region79: #{decoder_layer_forward.3} parent=71 // pred_region
          %458 = dma.done [#allocation6], 16
        $region80: #{decoder_layer_forward.3} parent=71 // pred_fallthru
          _
        // Predicated region
        $region81: #{decoder_layer_forward.3} parent=71 // pred_check
          %p459 = pneg %p314
        $region82: #{decoder_layer_forward.3} parent=71 // pred_check_branch
          %461 = sbr.rel (%p459) target = $region84
        $region83: #{decoder_layer_forward.3} parent=71 // pred_region
          %462 = dma.done [#allocation6], 16
        $region84: #{decoder_layer_forward.3} parent=71 // pred_fallthru
          _
        %s463 = sand.u32 %s39, 1
        %s464 = scalar_lea.sflag [#allocation3], %s463
        %s465 = sand.u32 %s39, 1
        %s466 = smul.addr %s465, 8
        %s467 = scalar_lea.vmem [#allocation2], %s466
        %p468 = pneg %p52
        %p469 = pneg %p49
        %p470 = scmp.lt.s32.totalorder %s31, 1
        %s471 = scalar_select %p470, %s31, 1
        %s472 = smul.addr %s471, 4
        %s473 = smul.addr %s472, 4
        %s474 = scalar_lea.vmem %s1, %s473
        %p475 = pneg %p78
        %p476 = pneg %p75
        %p477 = scmp.lt.s32.totalorder %s31, 1
        %s478 = scalar_select %p477, %s31, 1
        %s479 = smul.addr %s478, 16
        %s480 = smul.addr %s479, 4
        %s481 = scalar_lea.vmem %s2, %s480
        %p482 = pneg %p104
        %p483 = pneg %p101
        %p484 = pneg %p125
        %p485 = pneg %p122
        %p486 = pneg %p146
        %p487 = pneg %p143
        %p488 = pneg %p167
        %p489 = pneg %p164
        %p490 = pneg %p188
        %p491 = pneg %p185
        %p492 = pneg %p209
        %p493 = pneg %p206
        %p494 = pneg %p230
        %p495 = pneg %p227
        %p496 = pneg %p251
        %p497 = pneg %p248
        %p498 = pneg %p272
        %p499 = pneg %p269
        %p500 = pneg %p293
        %p501 = pneg %p290
        %p502 = pneg %p314
        %p503 = pneg %p311
        %p504 = pneg %p340
        %p505 = pneg %p337
        %s506 = sand.u32 %s327, 1
        %s507 = scalar_lea.sflag [#allocation4], %s506
        %s508 = sand.u32 %s327, 1
        %s509 = smul.addr %s508, 8
        %s510 = scalar_lea.vmem [#allocation8], %s509
        %p511 = scmp.lt.s32.totalorder %s31, 1
        %s512 = scalar_select %p511, %s31, 1
        %s513 = smul.addr %s512, 4
        %s514 = smul.addr %s513, 4
        %s515 = scalar_lea.vmem %s1, %s514
        %p516 = scmp.lt.s32.totalorder %s31, 1
        %s517 = scalar_select %p516, %s31, 1
        %s518 = smul.addr %s517, 16
        %s519 = smul.addr %s518, 4
        %s520 = scalar_lea.vmem %s2, %s519
        %v522 = vld [vmem:[%s450] sm:$0xff]
        %v523 = vld [vmem:[%s515] sm:$0xf]
        %v524 = vld [vmem:[%s515 + $0x4] sm:$0xf]
        %v525 = vld [vmem:[%s515 + $0x8] sm:$0xf]
        %v526 = vld [vmem:[%s515 + $0xc] sm:$0xf]
        %v527 = vld [vmem:[%s520] sm:$0xf]
        %v528 = vld [vmem:[%s520 + $0x4] sm:$0xf]
        %v529 = vld [vmem:[%s520 + $0x8] sm:$0xf]
        %v530 = vld [vmem:[%s520 + $0xc] sm:$0xf]
        %v531 = vld [vmem:[%s520 + $0x10] sm:$0xf]
        %v532 = vld [vmem:[%s520 + $0x14] sm:$0xf]
        %v533 = vld [vmem:[%s520 + $0x18] sm:$0xf]
        %v534 = vld [vmem:[%s520 + $0x1c] sm:$0xf]
        %v535 = vld [vmem:[%s520 + $0x20] sm:$0xf]
        %v536 = vld [vmem:[%s520 + $0x24] sm:$0xf]
        %v537 = vld [vmem:[%s520 + $0x28] sm:$0xf]
        %v538 = vld [vmem:[%s520 + $0x2c] sm:$0xf]
        %v539 = vld [vmem:[%s520 + $0x30] sm:$0xf]
        %v540 = vld [vmem:[%s520 + $0x34] sm:$0xf]
        %v541 = vld [vmem:[%s520 + $0x38] sm:$0xf]
        %v542 = vld [vmem:[%s520 + $0x3c] sm:$0xf]
        %559 = vrot.lane.b32.xlu0 %v527, 120
        %v560 = vpop.permute.xlu0 %559
        %561 = vrot.lane.b32.xlu0 %v528, 120
        %v562 = vpop.permute.xlu0 %561
        %563 = vrot.lane.b32.xlu0 %v529, 120
        %v564 = vpop.permute.xlu0 %563
        %565 = vrot.lane.b32.xlu0 %v530, 120
        %v566 = vpop.permute.xlu0 %565
        %567 = vrot.lane.b32.xlu0 %v531, 120
        %v568 = vpop.permute.xlu0 %567
        %569 = vrot.lane.b32.xlu0 %v532, 120
        %v570 = vpop.permute.xlu0 %569
        %571 = vrot.lane.b32.xlu0 %v533, 120
        %v572 = vpop.permute.xlu0 %571
        %573 = vrot.lane.b32.xlu0 %v534, 120
        %v574 = vpop.permute.xlu0 %573
        %575 = vrot.lane.b32.xlu0 %v535, 120
        %v576 = vpop.permute.xlu0 %575
        %577 = vrot.lane.b32.xlu0 %v536, 120
        %v578 = vpop.permute.xlu0 %577
        %579 = vrot.lane.b32.xlu0 %v537, 120
        %v580 = vpop.permute.xlu0 %579
        %581 = vrot.lane.b32.xlu0 %v538, 120
        %v582 = vpop.permute.xlu0 %581
        %583 = vrot.lane.b32.xlu0 %v539, 120
        %v584 = vpop.permute.xlu0 %583
        %585 = vrot.lane.b32.xlu0 %v540, 120
        %v586 = vpop.permute.xlu0 %585
        %587 = vrot.lane.b32.xlu0 %v541, 120
        %v588 = vpop.permute.xlu0 %587
        %589 = vrot.lane.b32.xlu0 %v542, 120
        %v590 = vpop.permute.xlu0 %589
        %591 = vrot.lane.b32.xlu0 %v527, 112
        %v592 = vpop.permute.xlu0 %591
        %593 = vrot.lane.b32.xlu0 %v528, 112
        %v594 = vpop.permute.xlu0 %593
        %595 = vrot.lane.b32.xlu0 %v529, 112
        %v596 = vpop.permute.xlu0 %595
        %597 = vrot.lane.b32.xlu0 %v530, 112
        %v598 = vpop.permute.xlu0 %597
        %599 = vrot.lane.b32.xlu0 %v531, 112
        %v600 = vpop.permute.xlu0 %599
        %601 = vrot.lane.b32.xlu0 %v532, 112
        %v602 = vpop.permute.xlu0 %601
        %603 = vrot.lane.b32.xlu0 %v533, 112
        %v604 = vpop.permute.xlu0 %603
        %605 = vrot.lane.b32.xlu0 %v534, 112
        %v606 = vpop.permute.xlu0 %605
        %607 = vrot.lane.b32.xlu0 %v535, 112
        %v608 = vpop.permute.xlu0 %607
        %609 = vrot.lane.b32.xlu0 %v536, 112
        %v610 = vpop.permute.xlu0 %609
        %611 = vrot.lane.b32.xlu0 %v537, 112
        %v612 = vpop.permute.xlu0 %611
        %613 = vrot.lane.b32.xlu0 %v538, 112
        %v614 = vpop.permute.xlu0 %613
        %615 = vrot.lane.b32.xlu0 %v539, 112
        %v616 = vpop.permute.xlu0 %615
        %617 = vrot.lane.b32.xlu0 %v540, 112
        %v618 = vpop.permute.xlu0 %617
        %619 = vrot.lane.b32.xlu0 %v541, 112
        %v620 = vpop.permute.xlu0 %619
        %621 = vrot.lane.b32.xlu0 %v542, 112
        %v622 = vpop.permute.xlu0 %621
        %623 = vrot.lane.b32.xlu0 %v527, 104
        %v624 = vpop.permute.xlu0 %623
        %625 = vrot.lane.b32.xlu0 %v528, 104
        %v626 = vpop.permute.xlu0 %625
        %627 = vrot.lane.b32.xlu0 %v529, 104
        %v628 = vpop.permute.xlu0 %627
        %629 = vrot.lane.b32.xlu0 %v530, 104
        %v630 = vpop.permute.xlu0 %629
        %631 = vrot.lane.b32.xlu0 %v531, 104
        %v632 = vpop.permute.xlu0 %631
        %633 = vrot.lane.b32.xlu0 %v532, 104
        %v634 = vpop.permute.xlu0 %633
        %635 = vrot.lane.b32.xlu0 %v533, 104
        %v636 = vpop.permute.xlu0 %635
        %637 = vrot.lane.b32.xlu0 %v534, 104
        %v638 = vpop.permute.xlu0 %637
        %639 = vrot.lane.b32.xlu0 %v535, 104
        %v640 = vpop.permute.xlu0 %639
        %641 = vrot.lane.b32.xlu0 %v536, 104
        %v642 = vpop.permute.xlu0 %641
        %643 = vrot.lane.b32.xlu0 %v537, 104
        %v644 = vpop.permute.xlu0 %643
        %645 = vrot.lane.b32.xlu0 %v538, 104
        %v646 = vpop.permute.xlu0 %645
        %647 = vrot.lane.b32.xlu0 %v539, 104
        %v648 = vpop.permute.xlu0 %647
        %649 = vrot.lane.b32.xlu0 %v540, 104
        %v650 = vpop.permute.xlu0 %649
        %651 = vrot.lane.b32.xlu0 %v541, 104
        %v652 = vpop.permute.xlu0 %651
        %653 = vrot.lane.b32.xlu0 %v542, 104
        %v654 = vpop.permute.xlu0 %653
        %v657 = vpack.i.b16 %v560, %v527
        %v658 = vshrl.u32 %v527, 16
        %v659 = vshrl.u32 %v560, 16
        %v660 = vpack.i.b16 %v659, %v658
        %v663 = vpack.i.b16 %v624, %v592
        %v664 = vshrl.u32 %v592, 16
        %v665 = vshrl.u32 %v624, 16
        %v666 = vpack.i.b16 %v665, %v664
        %v669 = vpack.i.b16 %v562, %v528
        %v670 = vshrl.u32 %v528, 16
        %v671 = vshrl.u32 %v562, 16
        %v672 = vpack.i.b16 %v671, %v670
        %v675 = vpack.i.b16 %v626, %v594
        %v676 = vshrl.u32 %v594, 16
        %v677 = vshrl.u32 %v626, 16
        %v678 = vpack.i.b16 %v677, %v676
        %v681 = vpack.i.b16 %v564, %v529
        %v682 = vshrl.u32 %v529, 16
        %v683 = vshrl.u32 %v564, 16
        %v684 = vpack.i.b16 %v683, %v682
        %v687 = vpack.i.b16 %v628, %v596
        %v688 = vshrl.u32 %v596, 16
        %v689 = vshrl.u32 %v628, 16
        %v690 = vpack.i.b16 %v689, %v688
        %v693 = vpack.i.b16 %v566, %v530
        %v694 = vshrl.u32 %v530, 16
        %v695 = vshrl.u32 %v566, 16
        %v696 = vpack.i.b16 %v695, %v694
        %v699 = vpack.i.b16 %v630, %v598
        %v700 = vshrl.u32 %v598, 16
        %v701 = vshrl.u32 %v630, 16
        %v702 = vpack.i.b16 %v701, %v700
        %v705 = vpack.i.b16 %v568, %v531
        %v706 = vshrl.u32 %v531, 16
        %v707 = vshrl.u32 %v568, 16
        %v708 = vpack.i.b16 %v707, %v706
        %v711 = vpack.i.b16 %v632, %v600
        %v712 = vshrl.u32 %v600, 16
        %v713 = vshrl.u32 %v632, 16
        %v714 = vpack.i.b16 %v713, %v712
        %v717 = vpack.i.b16 %v570, %v532
        %v718 = vshrl.u32 %v532, 16
        %v719 = vshrl.u32 %v570, 16
        %v720 = vpack.i.b16 %v719, %v718
        %v723 = vpack.i.b16 %v634, %v602
        %v724 = vshrl.u32 %v602, 16
        %v725 = vshrl.u32 %v634, 16
        %v726 = vpack.i.b16 %v725, %v724
        %v729 = vpack.i.b16 %v572, %v533
        %v730 = vshrl.u32 %v533, 16
        %v731 = vshrl.u32 %v572, 16
        %v732 = vpack.i.b16 %v731, %v730
        %v735 = vpack.i.b16 %v636, %v604
        %v736 = vshrl.u32 %v604, 16
        %v737 = vshrl.u32 %v636, 16
        %v738 = vpack.i.b16 %v737, %v736
        %v741 = vpack.i.b16 %v574, %v534
        %v742 = vshrl.u32 %v534, 16
        %v743 = vshrl.u32 %v574, 16
        %v744 = vpack.i.b16 %v743, %v742
        %v747 = vpack.i.b16 %v638, %v606
        %v748 = vshrl.u32 %v606, 16
        %v749 = vshrl.u32 %v638, 16
        %v750 = vpack.i.b16 %v749, %v748
        %v753 = vpack.i.b16 %v576, %v535
        %v754 = vshrl.u32 %v535, 16
        %v755 = vshrl.u32 %v576, 16
        %v756 = vpack.i.b16 %v755, %v754
        %v759 = vpack.i.b16 %v640, %v608
        %v760 = vshrl.u32 %v608, 16
        %v761 = vshrl.u32 %v640, 16
        %v762 = vpack.i.b16 %v761, %v760
        %v765 = vpack.i.b16 %v578, %v536
        %v766 = vshrl.u32 %v536, 16
        %v767 = vshrl.u32 %v578, 16
        %v768 = vpack.i.b16 %v767, %v766
        %v771 = vpack.i.b16 %v642, %v610
        %v772 = vshrl.u32 %v610, 16
        %v773 = vshrl.u32 %v642, 16
        %v774 = vpack.i.b16 %v773, %v772
        %v777 = vpack.i.b16 %v580, %v537
        %v778 = vshrl.u32 %v537, 16
        %v779 = vshrl.u32 %v580, 16
        %v780 = vpack.i.b16 %v779, %v778
        %v783 = vpack.i.b16 %v644, %v612
        %v784 = vshrl.u32 %v612, 16
        %v785 = vshrl.u32 %v644, 16
        %v786 = vpack.i.b16 %v785, %v784
        %v789 = vpack.i.b16 %v582, %v538
        %v790 = vshrl.u32 %v538, 16
        %v791 = vshrl.u32 %v582, 16
        %v792 = vpack.i.b16 %v791, %v790
        %v795 = vpack.i.b16 %v646, %v614
        %v796 = vshrl.u32 %v614, 16
        %v797 = vshrl.u32 %v646, 16
        %v798 = vpack.i.b16 %v797, %v796
        %v801 = vpack.i.b16 %v584, %v539
        %v802 = vshrl.u32 %v539, 16
        %v803 = vshrl.u32 %v584, 16
        %v804 = vpack.i.b16 %v803, %v802
        %v807 = vpack.i.b16 %v648, %v616
        %v808 = vshrl.u32 %v616, 16
        %v809 = vshrl.u32 %v648, 16
        %v810 = vpack.i.b16 %v809, %v808
        %v813 = vpack.i.b16 %v586, %v540
        %v814 = vshrl.u32 %v540, 16
        %v815 = vshrl.u32 %v586, 16
        %v816 = vpack.i.b16 %v815, %v814
        %v819 = vpack.i.b16 %v650, %v618
        %v820 = vshrl.u32 %v618, 16
        %v821 = vshrl.u32 %v650, 16
        %v822 = vpack.i.b16 %v821, %v820
        %v825 = vpack.i.b16 %v588, %v541
        %v826 = vshrl.u32 %v541, 16
        %v827 = vshrl.u32 %v588, 16
        %v828 = vpack.i.b16 %v827, %v826
        %v831 = vpack.i.b16 %v652, %v620
        %v832 = vshrl.u32 %v620, 16
        %v833 = vshrl.u32 %v652, 16
        %v834 = vpack.i.b16 %v833, %v832
        %v837 = vpack.i.b16 %v590, %v542
        %v838 = vshrl.u32 %v542, 16
        %v839 = vshrl.u32 %v590, 16
        %v840 = vpack.i.b16 %v839, %v838
        %v843 = vpack.i.b16 %v654, %v622
        %v844 = vshrl.u32 %v622, 16
        %v845 = vshrl.u32 %v654, 16
        %v846 = vpack.i.b16 %v845, %v844
        %v849 = vunpack.c.l.s4 1983009808
        %v850 = vunpack.c.0.s8 %v849
        %v851 = vlaneseq
        %v852 = vshrl.u32 %v851, 7
        %v853 = vsub.s32 %v850, %v852
        %v854 = vrot.slane %v657, %v853
        %v857 = vunpack.c.l.s4 1983009808
        %v858 = vunpack.c.0.s8 %v857
        %v859 = vlaneseq
        %v860 = vshrl.u32 %v859, 7
        %v861 = vsub.s32 %v858, %v860
        %v862 = vrot.slane %v663, %v861
        %v863 = vcombine.low %v854, %v862
        %v864 = vcombine.high %v854, %v862
        %v866 = vunpack.c.l.s4 1934713408
        %v867 = vunpack.c.0.s8 %v866
        %v868 = vlaneseq
        %v869 = vshrl.u32 %v868, 7
        %v870 = vsub.s32 %v867, %v869
        %v871 = vrot.slane %v863, %v870
        %v873 = vunpack.c.l.s4 1934713408
        %v874 = vunpack.c.0.s8 %v873
        %v875 = vlaneseq
        %v876 = vshrl.u32 %v875, 7
        %v877 = vsub.s32 %v874, %v876
        %v878 = vrot.slane %v864, %v877
        %v879 = vcombine.high %v871, 0
        %v880 = vcombine.high %v878, 0
        %v883 = vunpack.c.l.s4 1983009808
        %v884 = vunpack.c.0.s8 %v883
        %v885 = vlaneseq
        %v886 = vshrl.u32 %v885, 7
        %v887 = vsub.s32 %v884, %v886
        %v888 = vrot.slane %v660, %v887
        %v891 = vunpack.c.l.s4 1983009808
        %v892 = vunpack.c.0.s8 %v891
        %v893 = vlaneseq
        %v894 = vshrl.u32 %v893, 7
        %v895 = vsub.s32 %v892, %v894
        %v896 = vrot.slane %v666, %v895
        %v897 = vcombine.low %v888, %v896
        %v898 = vcombine.high %v888, %v896
        %v900 = vunpack.c.l.s4 1934713408
        %v901 = vunpack.c.0.s8 %v900
        %v902 = vlaneseq
        %v903 = vshrl.u32 %v902, 7
        %v904 = vsub.s32 %v901, %v903
        %v905 = vrot.slane %v897, %v904
        %v907 = vunpack.c.l.s4 1934713408
        %v908 = vunpack.c.0.s8 %v907
        %v909 = vlaneseq
        %v910 = vshrl.u32 %v909, 7
        %v911 = vsub.s32 %v908, %v910
        %v912 = vrot.slane %v898, %v911
        %v913 = vcombine.high %v905, 0
        %v914 = vcombine.high %v912, 0
        %v917 = vunpack.c.l.s4 1983009808
        %v918 = vunpack.c.0.s8 %v917
        %v919 = vlaneseq
        %v920 = vshrl.u32 %v919, 7
        %v921 = vsub.s32 %v918, %v920
        %v922 = vrot.slane %v669, %v921
        %v925 = vunpack.c.l.s4 1983009808
        %v926 = vunpack.c.0.s8 %v925
        %v927 = vlaneseq
        %v928 = vshrl.u32 %v927, 7
        %v929 = vsub.s32 %v926, %v928
        %v930 = vrot.slane %v675, %v929
        %v931 = vcombine.low %v922, %v930
        %v932 = vcombine.high %v922, %v930
        %v934 = vunpack.c.l.s4 1934713408
        %v935 = vunpack.c.0.s8 %v934
        %v936 = vlaneseq
        %v937 = vshrl.u32 %v936, 7
        %v938 = vsub.s32 %v935, %v937
        %v939 = vrot.slane %v931, %v938
        %v941 = vunpack.c.l.s4 1934713408
        %v942 = vunpack.c.0.s8 %v941
        %v943 = vlaneseq
        %v944 = vshrl.u32 %v943, 7
        %v945 = vsub.s32 %v942, %v944
        %v946 = vrot.slane %v932, %v945
        %v947 = vcombine.high %v939, 0
        %v948 = vcombine.high %v946, 0
        %v951 = vunpack.c.l.s4 1983009808
        %v952 = vunpack.c.0.s8 %v951
        %v953 = vlaneseq
        %v954 = vshrl.u32 %v953, 7
        %v955 = vsub.s32 %v952, %v954
        %v956 = vrot.slane %v672, %v955
        %v959 = vunpack.c.l.s4 1983009808
        %v960 = vunpack.c.0.s8 %v959
        %v961 = vlaneseq
        %v962 = vshrl.u32 %v961, 7
        %v963 = vsub.s32 %v960, %v962
        %v964 = vrot.slane %v678, %v963
        %v965 = vcombine.low %v956, %v964
        %v966 = vcombine.high %v956, %v964
        %v968 = vunpack.c.l.s4 1934713408
        %v969 = vunpack.c.0.s8 %v968
        %v970 = vlaneseq
        %v971 = vshrl.u32 %v970, 7
        %v972 = vsub.s32 %v969, %v971
        %v973 = vrot.slane %v965, %v972
        %v975 = vunpack.c.l.s4 1934713408
        %v976 = vunpack.c.0.s8 %v975
        %v977 = vlaneseq
        %v978 = vshrl.u32 %v977, 7
        %v979 = vsub.s32 %v976, %v978
        %v980 = vrot.slane %v966, %v979
        %v981 = vcombine.high %v973, 0
        %v982 = vcombine.high %v980, 0
        %v985 = vunpack.c.l.s4 1983009808
        %v986 = vunpack.c.0.s8 %v985
        %v987 = vlaneseq
        %v988 = vshrl.u32 %v987, 7
        %v989 = vsub.s32 %v986, %v988
        %v990 = vrot.slane %v681, %v989
        %v993 = vunpack.c.l.s4 1983009808
        %v994 = vunpack.c.0.s8 %v993
        %v995 = vlaneseq
        %v996 = vshrl.u32 %v995, 7
        %v997 = vsub.s32 %v994, %v996
        %v998 = vrot.slane %v687, %v997
        %v999 = vcombine.low %v990, %v998
        %v1000 = vcombine.high %v990, %v998
        %v1002 = vunpack.c.l.s4 1934713408
        %v1003 = vunpack.c.0.s8 %v1002
        %v1004 = vlaneseq
        %v1005 = vshrl.u32 %v1004, 7
        %v1006 = vsub.s32 %v1003, %v1005
        %v1007 = vrot.slane %v999, %v1006
        %v1009 = vunpack.c.l.s4 1934713408
        %v1010 = vunpack.c.0.s8 %v1009
        %v1011 = vlaneseq
        %v1012 = vshrl.u32 %v1011, 7
        %v1013 = vsub.s32 %v1010, %v1012
        %v1014 = vrot.slane %v1000, %v1013
        %v1015 = vcombine.high %v1007, 0
        %v1016 = vcombine.high %v1014, 0
        %v1019 = vunpack.c.l.s4 1983009808
        %v1020 = vunpack.c.0.s8 %v1019
        %v1021 = vlaneseq
        %v1022 = vshrl.u32 %v1021, 7
        %v1023 = vsub.s32 %v1020, %v1022
        %v1024 = vrot.slane %v684, %v1023
        %v1027 = vunpack.c.l.s4 1983009808
        %v1028 = vunpack.c.0.s8 %v1027
        %v1029 = vlaneseq
        %v1030 = vshrl.u32 %v1029, 7
        %v1031 = vsub.s32 %v1028, %v1030
        %v1032 = vrot.slane %v690, %v1031
        %v1033 = vcombine.low %v1024, %v1032
        %v1034 = vcombine.high %v1024, %v1032
        %v1036 = vunpack.c.l.s4 1934713408
        %v1037 = vunpack.c.0.s8 %v1036
        %v1038 = vlaneseq
        %v1039 = vshrl.u32 %v1038, 7
        %v1040 = vsub.s32 %v1037, %v1039
        %v1041 = vrot.slane %v1033, %v1040
        %v1043 = vunpack.c.l.s4 1934713408
        %v1044 = vunpack.c.0.s8 %v1043
        %v1045 = vlaneseq
        %v1046 = vshrl.u32 %v1045, 7
        %v1047 = vsub.s32 %v1044, %v1046
        %v1048 = vrot.slane %v1034, %v1047
        %v1049 = vcombine.high %v1041, 0
        %v1050 = vcombine.high %v1048, 0
        %v1053 = vunpack.c.l.s4 1983009808
        %v1054 = vunpack.c.0.s8 %v1053
        %v1055 = vlaneseq
        %v1056 = vshrl.u32 %v1055, 7
        %v1057 = vsub.s32 %v1054, %v1056
        %v1058 = vrot.slane %v693, %v1057
        %v1061 = vunpack.c.l.s4 1983009808
        %v1062 = vunpack.c.0.s8 %v1061
        %v1063 = vlaneseq
        %v1064 = vshrl.u32 %v1063, 7
        %v1065 = vsub.s32 %v1062, %v1064
        %v1066 = vrot.slane %v699, %v1065
        %v1067 = vcombine.low %v1058, %v1066
        %v1068 = vcombine.high %v1058, %v1066
        %v1070 = vunpack.c.l.s4 1934713408
        %v1071 = vunpack.c.0.s8 %v1070
        %v1072 = vlaneseq
        %v1073 = vshrl.u32 %v1072, 7
        %v1074 = vsub.s32 %v1071, %v1073
        %v1075 = vrot.slane %v1067, %v1074
        %v1077 = vunpack.c.l.s4 1934713408
        %v1078 = vunpack.c.0.s8 %v1077
        %v1079 = vlaneseq
        %v1080 = vshrl.u32 %v1079, 7
        %v1081 = vsub.s32 %v1078, %v1080
        %v1082 = vrot.slane %v1068, %v1081
        %v1083 = vcombine.high %v1075, 0
        %v1084 = vcombine.high %v1082, 0
        %v1087 = vunpack.c.l.s4 1983009808
        %v1088 = vunpack.c.0.s8 %v1087
        %v1089 = vlaneseq
        %v1090 = vshrl.u32 %v1089, 7
        %v1091 = vsub.s32 %v1088, %v1090
        %v1092 = vrot.slane %v696, %v1091
        %v1095 = vunpack.c.l.s4 1983009808
        %v1096 = vunpack.c.0.s8 %v1095
        %v1097 = vlaneseq
        %v1098 = vshrl.u32 %v1097, 7
        %v1099 = vsub.s32 %v1096, %v1098
        %v1100 = vrot.slane %v702, %v1099
        %v1101 = vcombine.low %v1092, %v1100
        %v1102 = vcombine.high %v1092, %v1100
        %v1104 = vunpack.c.l.s4 1934713408
        %v1105 = vunpack.c.0.s8 %v1104
        %v1106 = vlaneseq
        %v1107 = vshrl.u32 %v1106, 7
        %v1108 = vsub.s32 %v1105, %v1107
        %v1109 = vrot.slane %v1101, %v1108
        %v1111 = vunpack.c.l.s4 1934713408
        %v1112 = vunpack.c.0.s8 %v1111
        %v1113 = vlaneseq
        %v1114 = vshrl.u32 %v1113, 7
        %v1115 = vsub.s32 %v1112, %v1114
        %v1116 = vrot.slane %v1102, %v1115
        %v1117 = vcombine.high %v1109, 0
        %v1118 = vcombine.high %v1116, 0
        %v1121 = vunpack.c.l.s4 1983009808
        %v1122 = vunpack.c.0.s8 %v1121
        %v1123 = vlaneseq
        %v1124 = vshrl.u32 %v1123, 7
        %v1125 = vsub.s32 %v1122, %v1124
        %v1126 = vrot.slane %v705, %v1125
        %v1129 = vunpack.c.l.s4 1983009808
        %v1130 = vunpack.c.0.s8 %v1129
        %v1131 = vlaneseq
        %v1132 = vshrl.u32 %v1131, 7
        %v1133 = vsub.s32 %v1130, %v1132
        %v1134 = vrot.slane %v711, %v1133
        %v1135 = vcombine.low %v1126, %v1134
        %v1136 = vcombine.high %v1126, %v1134
        %v1138 = vunpack.c.l.s4 1934713408
        %v1139 = vunpack.c.0.s8 %v1138
        %v1140 = vlaneseq
        %v1141 = vshrl.u32 %v1140, 7
        %v1142 = vsub.s32 %v1139, %v1141
        %v1143 = vrot.slane %v1135, %v1142
        %v1145 = vunpack.c.l.s4 1934713408
        %v1146 = vunpack.c.0.s8 %v1145
        %v1147 = vlaneseq
        %v1148 = vshrl.u32 %v1147, 7
        %v1149 = vsub.s32 %v1146, %v1148
        %v1150 = vrot.slane %v1136, %v1149
        %v1151 = vcombine.high %v1143, 0
        %v1152 = vcombine.high %v1150, 0
        %v1155 = vunpack.c.l.s4 1983009808
        %v1156 = vunpack.c.0.s8 %v1155
        %v1157 = vlaneseq
        %v1158 = vshrl.u32 %v1157, 7
        %v1159 = vsub.s32 %v1156, %v1158
        %v1160 = vrot.slane %v708, %v1159
        %v1163 = vunpack.c.l.s4 1983009808
        %v1164 = vunpack.c.0.s8 %v1163
        %v1165 = vlaneseq
        %v1166 = vshrl.u32 %v1165, 7
        %v1167 = vsub.s32 %v1164, %v1166
        %v1168 = vrot.slane %v714, %v1167
        %v1169 = vcombine.low %v1160, %v1168
        %v1170 = vcombine.high %v1160, %v1168
        %v1172 = vunpack.c.l.s4 1934713408
        %v1173 = vunpack.c.0.s8 %v1172
        %v1174 = vlaneseq
        %v1175 = vshrl.u32 %v1174, 7
        %v1176 = vsub.s32 %v1173, %v1175
        %v1177 = vrot.slane %v1169, %v1176
        %v1179 = vunpack.c.l.s4 1934713408
        %v1180 = vunpack.c.0.s8 %v1179
        %v1181 = vlaneseq
        %v1182 = vshrl.u32 %v1181, 7
        %v1183 = vsub.s32 %v1180, %v1182
        %v1184 = vrot.slane %v1170, %v1183
        %v1185 = vcombine.high %v1177, 0
        %v1186 = vcombine.high %v1184, 0
        %v1189 = vunpack.c.l.s4 1983009808
        %v1190 = vunpack.c.0.s8 %v1189
        %v1191 = vlaneseq
        %v1192 = vshrl.u32 %v1191, 7
        %v1193 = vsub.s32 %v1190, %v1192
        %v1194 = vrot.slane %v717, %v1193
        %v1197 = vunpack.c.l.s4 1983009808
        %v1198 = vunpack.c.0.s8 %v1197
        %v1199 = vlaneseq
        %v1200 = vshrl.u32 %v1199, 7
        %v1201 = vsub.s32 %v1198, %v1200
        %v1202 = vrot.slane %v723, %v1201
        %v1203 = vcombine.low %v1194, %v1202
        %v1204 = vcombine.high %v1194, %v1202
        %v1206 = vunpack.c.l.s4 1934713408
        %v1207 = vunpack.c.0.s8 %v1206
        %v1208 = vlaneseq
        %v1209 = vshrl.u32 %v1208, 7
        %v1210 = vsub.s32 %v1207, %v1209
        %v1211 = vrot.slane %v1203, %v1210
        %v1213 = vunpack.c.l.s4 1934713408
        %v1214 = vunpack.c.0.s8 %v1213
        %v1215 = vlaneseq
        %v1216 = vshrl.u32 %v1215, 7
        %v1217 = vsub.s32 %v1214, %v1216
        %v1218 = vrot.slane %v1204, %v1217
        %v1219 = vcombine.high %v1211, 0
        %v1220 = vcombine.high %v1218, 0
        %v1223 = vunpack.c.l.s4 1983009808
        %v1224 = vunpack.c.0.s8 %v1223
        %v1225 = vlaneseq
        %v1226 = vshrl.u32 %v1225, 7
        %v1227 = vsub.s32 %v1224, %v1226
        %v1228 = vrot.slane %v720, %v1227
        %v1231 = vunpack.c.l.s4 1983009808
        %v1232 = vunpack.c.0.s8 %v1231
        %v1233 = vlaneseq
        %v1234 = vshrl.u32 %v1233, 7
        %v1235 = vsub.s32 %v1232, %v1234
        %v1236 = vrot.slane %v726, %v1235
        %v1237 = vcombine.low %v1228, %v1236
        %v1238 = vcombine.high %v1228, %v1236
        %v1240 = vunpack.c.l.s4 1934713408
        %v1241 = vunpack.c.0.s8 %v1240
        %v1242 = vlaneseq
        %v1243 = vshrl.u32 %v1242, 7
        %v1244 = vsub.s32 %v1241, %v1243
        %v1245 = vrot.slane %v1237, %v1244
        %v1247 = vunpack.c.l.s4 1934713408
        %v1248 = vunpack.c.0.s8 %v1247
        %v1249 = vlaneseq
        %v1250 = vshrl.u32 %v1249, 7
        %v1251 = vsub.s32 %v1248, %v1250
        %v1252 = vrot.slane %v1238, %v1251
        %v1253 = vcombine.high %v1245, 0
        %v1254 = vcombine.high %v1252, 0
        %v1257 = vunpack.c.l.s4 1983009808
        %v1258 = vunpack.c.0.s8 %v1257
        %v1259 = vlaneseq
        %v1260 = vshrl.u32 %v1259, 7
        %v1261 = vsub.s32 %v1258, %v1260
        %v1262 = vrot.slane %v729, %v1261
        %v1265 = vunpack.c.l.s4 1983009808
        %v1266 = vunpack.c.0.s8 %v1265
        %v1267 = vlaneseq
        %v1268 = vshrl.u32 %v1267, 7
        %v1269 = vsub.s32 %v1266, %v1268
        %v1270 = vrot.slane %v735, %v1269
        %v1271 = vcombine.low %v1262, %v1270
        %v1272 = vcombine.high %v1262, %v1270
        %v1274 = vunpack.c.l.s4 1934713408
        %v1275 = vunpack.c.0.s8 %v1274
        %v1276 = vlaneseq
        %v1277 = vshrl.u32 %v1276, 7
        %v1278 = vsub.s32 %v1275, %v1277
        %v1279 = vrot.slane %v1271, %v1278
        %v1281 = vunpack.c.l.s4 1934713408
        %v1282 = vunpack.c.0.s8 %v1281
        %v1283 = vlaneseq
        %v1284 = vshrl.u32 %v1283, 7
        %v1285 = vsub.s32 %v1282, %v1284
        %v1286 = vrot.slane %v1272, %v1285
        %v1287 = vcombine.high %v1279, 0
        %v1288 = vcombine.high %v1286, 0
        %v1291 = vunpack.c.l.s4 1983009808
        %v1292 = vunpack.c.0.s8 %v1291
        %v1293 = vlaneseq
        %v1294 = vshrl.u32 %v1293, 7
        %v1295 = vsub.s32 %v1292, %v1294
        %v1296 = vrot.slane %v732, %v1295
        %v1299 = vunpack.c.l.s4 1983009808
        %v1300 = vunpack.c.0.s8 %v1299
        %v1301 = vlaneseq
        %v1302 = vshrl.u32 %v1301, 7
        %v1303 = vsub.s32 %v1300, %v1302
        %v1304 = vrot.slane %v738, %v1303
        %v1305 = vcombine.low %v1296, %v1304
        %v1306 = vcombine.high %v1296, %v1304
        %v1308 = vunpack.c.l.s4 1934713408
        %v1309 = vunpack.c.0.s8 %v1308
        %v1310 = vlaneseq
        %v1311 = vshrl.u32 %v1310, 7
        %v1312 = vsub.s32 %v1309, %v1311
        %v1313 = vrot.slane %v1305, %v1312
        %v1315 = vunpack.c.l.s4 1934713408
        %v1316 = vunpack.c.0.s8 %v1315
        %v1317 = vlaneseq
        %v1318 = vshrl.u32 %v1317, 7
        %v1319 = vsub.s32 %v1316, %v1318
        %v1320 = vrot.slane %v1306, %v1319
        %v1321 = vcombine.high %v1313, 0
        %v1322 = vcombine.high %v1320, 0
        %v1325 = vunpack.c.l.s4 1983009808
        %v1326 = vunpack.c.0.s8 %v1325
        %v1327 = vlaneseq
        %v1328 = vshrl.u32 %v1327, 7
        %v1329 = vsub.s32 %v1326, %v1328
        %v1330 = vrot.slane %v741, %v1329
        %v1333 = vunpack.c.l.s4 1983009808
        %v1334 = vunpack.c.0.s8 %v1333
        %v1335 = vlaneseq
        %v1336 = vshrl.u32 %v1335, 7
        %v1337 = vsub.s32 %v1334, %v1336
        %v1338 = vrot.slane %v747, %v1337
        %v1339 = vcombine.low %v1330, %v1338
        %v1340 = vcombine.high %v1330, %v1338
        %v1342 = vunpack.c.l.s4 1934713408
        %v1343 = vunpack.c.0.s8 %v1342
        %v1344 = vlaneseq
        %v1345 = vshrl.u32 %v1344, 7
        %v1346 = vsub.s32 %v1343, %v1345
        %v1347 = vrot.slane %v1339, %v1346
        %v1349 = vunpack.c.l.s4 1934713408
        %v1350 = vunpack.c.0.s8 %v1349
        %v1351 = vlaneseq
        %v1352 = vshrl.u32 %v1351, 7
        %v1353 = vsub.s32 %v1350, %v1352
        %v1354 = vrot.slane %v1340, %v1353
        %v1355 = vcombine.high %v1347, 0
        %v1356 = vcombine.high %v1354, 0
        %v1359 = vunpack.c.l.s4 1983009808
        %v1360 = vunpack.c.0.s8 %v1359
        %v1361 = vlaneseq
        %v1362 = vshrl.u32 %v1361, 7
        %v1363 = vsub.s32 %v1360, %v1362
        %v1364 = vrot.slane %v744, %v1363
        %v1367 = vunpack.c.l.s4 1983009808
        %v1368 = vunpack.c.0.s8 %v1367
        %v1369 = vlaneseq
        %v1370 = vshrl.u32 %v1369, 7
        %v1371 = vsub.s32 %v1368, %v1370
        %v1372 = vrot.slane %v750, %v1371
        %v1373 = vcombine.low %v1364, %v1372
        %v1374 = vcombine.high %v1364, %v1372
        %v1376 = vunpack.c.l.s4 1934713408
        %v1377 = vunpack.c.0.s8 %v1376
        %v1378 = vlaneseq
        %v1379 = vshrl.u32 %v1378, 7
        %v1380 = vsub.s32 %v1377, %v1379
        %v1381 = vrot.slane %v1373, %v1380
        %v1383 = vunpack.c.l.s4 1934713408
        %v1384 = vunpack.c.0.s8 %v1383
        %v1385 = vlaneseq
        %v1386 = vshrl.u32 %v1385, 7
        %v1387 = vsub.s32 %v1384, %v1386
        %v1388 = vrot.slane %v1374, %v1387
        %v1389 = vcombine.high %v1381, 0
        %v1390 = vcombine.high %v1388, 0
        %v1393 = vunpack.c.l.s4 1983009808
        %v1394 = vunpack.c.0.s8 %v1393
        %v1395 = vlaneseq
        %v1396 = vshrl.u32 %v1395, 7
        %v1397 = vsub.s32 %v1394, %v1396
        %v1398 = vrot.slane %v753, %v1397
        %v1401 = vunpack.c.l.s4 1983009808
        %v1402 = vunpack.c.0.s8 %v1401
        %v1403 = vlaneseq
        %v1404 = vshrl.u32 %v1403, 7
        %v1405 = vsub.s32 %v1402, %v1404
        %v1406 = vrot.slane %v759, %v1405
        %v1407 = vcombine.low %v1398, %v1406
        %v1408 = vcombine.high %v1398, %v1406
        %v1410 = vunpack.c.l.s4 1934713408
        %v1411 = vunpack.c.0.s8 %v1410
        %v1412 = vlaneseq
        %v1413 = vshrl.u32 %v1412, 7
        %v1414 = vsub.s32 %v1411, %v1413
        %v1415 = vrot.slane %v1407, %v1414
        %v1417 = vunpack.c.l.s4 1934713408
        %v1418 = vunpack.c.0.s8 %v1417
        %v1419 = vlaneseq
        %v1420 = vshrl.u32 %v1419, 7
        %v1421 = vsub.s32 %v1418, %v1420
        %v1422 = vrot.slane %v1408, %v1421
        %v1423 = vcombine.high %v1415, 0
        %v1424 = vcombine.high %v1422, 0
        %v1427 = vunpack.c.l.s4 1983009808
        %v1428 = vunpack.c.0.s8 %v1427
        %v1429 = vlaneseq
        %v1430 = vshrl.u32 %v1429, 7
        %v1431 = vsub.s32 %v1428, %v1430
        %v1432 = vrot.slane %v756, %v1431
        %v1435 = vunpack.c.l.s4 1983009808
        %v1436 = vunpack.c.0.s8 %v1435
        %v1437 = vlaneseq
        %v1438 = vshrl.u32 %v1437, 7
        %v1439 = vsub.s32 %v1436, %v1438
        %v1440 = vrot.slane %v762, %v1439
        %v1441 = vcombine.low %v1432, %v1440
        %v1442 = vcombine.high %v1432, %v1440
        %v1444 = vunpack.c.l.s4 1934713408
        %v1445 = vunpack.c.0.s8 %v1444
        %v1446 = vlaneseq
        %v1447 = vshrl.u32 %v1446, 7
        %v1448 = vsub.s32 %v1445, %v1447
        %v1449 = vrot.slane %v1441, %v1448
        %v1451 = vunpack.c.l.s4 1934713408
        %v1452 = vunpack.c.0.s8 %v1451
        %v1453 = vlaneseq
        %v1454 = vshrl.u32 %v1453, 7
        %v1455 = vsub.s32 %v1452, %v1454
        %v1456 = vrot.slane %v1442, %v1455
        %v1457 = vcombine.high %v1449, 0
        %v1458 = vcombine.high %v1456, 0
        %v1461 = vunpack.c.l.s4 1983009808
        %v1462 = vunpack.c.0.s8 %v1461
        %v1463 = vlaneseq
        %v1464 = vshrl.u32 %v1463, 7
        %v1465 = vsub.s32 %v1462, %v1464
        %v1466 = vrot.slane %v765, %v1465
        %v1469 = vunpack.c.l.s4 1983009808
        %v1470 = vunpack.c.0.s8 %v1469
        %v1471 = vlaneseq
        %v1472 = vshrl.u32 %v1471, 7
        %v1473 = vsub.s32 %v1470, %v1472
        %v1474 = vrot.slane %v771, %v1473
        %v1475 = vcombine.low %v1466, %v1474
        %v1476 = vcombine.high %v1466, %v1474
        %v1478 = vunpack.c.l.s4 1934713408
        %v1479 = vunpack.c.0.s8 %v1478
        %v1480 = vlaneseq
        %v1481 = vshrl.u32 %v1480, 7
        %v1482 = vsub.s32 %v1479, %v1481
        %v1483 = vrot.slane %v1475, %v1482
        %v1485 = vunpack.c.l.s4 1934713408
        %v1486 = vunpack.c.0.s8 %v1485
        %v1487 = vlaneseq
        %v1488 = vshrl.u32 %v1487, 7
        %v1489 = vsub.s32 %v1486, %v1488
        %v1490 = vrot.slane %v1476, %v1489
        %v1491 = vcombine.high %v1483, 0
        %v1492 = vcombine.high %v1490, 0
        %v1495 = vunpack.c.l.s4 1983009808
        %v1496 = vunpack.c.0.s8 %v1495
        %v1497 = vlaneseq
        %v1498 = vshrl.u32 %v1497, 7
        %v1499 = vsub.s32 %v1496, %v1498
        %v1500 = vrot.slane %v768, %v1499
        %v1503 = vunpack.c.l.s4 1983009808
        %v1504 = vunpack.c.0.s8 %v1503
        %v1505 = vlaneseq
        %v1506 = vshrl.u32 %v1505, 7
        %v1507 = vsub.s32 %v1504, %v1506
        %v1508 = vrot.slane %v774, %v1507
        %v1509 = vcombine.low %v1500, %v1508
        %v1510 = vcombine.high %v1500, %v1508
        %v1512 = vunpack.c.l.s4 1934713408
        %v1513 = vunpack.c.0.s8 %v1512
        %v1514 = vlaneseq
        %v1515 = vshrl.u32 %v1514, 7
        %v1516 = vsub.s32 %v1513, %v1515
        %v1517 = vrot.slane %v1509, %v1516
        %v1519 = vunpack.c.l.s4 1934713408
        %v1520 = vunpack.c.0.s8 %v1519
        %v1521 = vlaneseq
        %v1522 = vshrl.u32 %v1521, 7
        %v1523 = vsub.s32 %v1520, %v1522
        %v1524 = vrot.slane %v1510, %v1523
        %v1525 = vcombine.high %v1517, 0
        %v1526 = vcombine.high %v1524, 0
        %v1529 = vunpack.c.l.s4 1983009808
        %v1530 = vunpack.c.0.s8 %v1529
        %v1531 = vlaneseq
        %v1532 = vshrl.u32 %v1531, 7
        %v1533 = vsub.s32 %v1530, %v1532
        %v1534 = vrot.slane %v777, %v1533
        %v1537 = vunpack.c.l.s4 1983009808
        %v1538 = vunpack.c.0.s8 %v1537
        %v1539 = vlaneseq
        %v1540 = vshrl.u32 %v1539, 7
        %v1541 = vsub.s32 %v1538, %v1540
        %v1542 = vrot.slane %v783, %v1541
        %v1543 = vcombine.low %v1534, %v1542
        %v1544 = vcombine.high %v1534, %v1542
        %v1546 = vunpack.c.l.s4 1934713408
        %v1547 = vunpack.c.0.s8 %v1546
        %v1548 = vlaneseq
        %v1549 = vshrl.u32 %v1548, 7
        %v1550 = vsub.s32 %v1547, %v1549
        %v1551 = vrot.slane %v1543, %v1550
        %v1553 = vunpack.c.l.s4 1934713408
        %v1554 = vunpack.c.0.s8 %v1553
        %v1555 = vlaneseq
        %v1556 = vshrl.u32 %v1555, 7
        %v1557 = vsub.s32 %v1554, %v1556
        %v1558 = vrot.slane %v1544, %v1557
        %v1559 = vcombine.high %v1551, 0
        %v1560 = vcombine.high %v1558, 0
        %v1563 = vunpack.c.l.s4 1983009808
        %v1564 = vunpack.c.0.s8 %v1563
        %v1565 = vlaneseq
        %v1566 = vshrl.u32 %v1565, 7
        %v1567 = vsub.s32 %v1564, %v1566
        %v1568 = vrot.slane %v780, %v1567
        %v1571 = vunpack.c.l.s4 1983009808
        %v1572 = vunpack.c.0.s8 %v1571
        %v1573 = vlaneseq
        %v1574 = vshrl.u32 %v1573, 7
        %v1575 = vsub.s32 %v1572, %v1574
        %v1576 = vrot.slane %v786, %v1575
        %v1577 = vcombine.low %v1568, %v1576
        %v1578 = vcombine.high %v1568, %v1576
        %v1580 = vunpack.c.l.s4 1934713408
        %v1581 = vunpack.c.0.s8 %v1580
        %v1582 = vlaneseq
        %v1583 = vshrl.u32 %v1582, 7
        %v1584 = vsub.s32 %v1581, %v1583
        %v1585 = vrot.slane %v1577, %v1584
        %v1587 = vunpack.c.l.s4 1934713408
        %v1588 = vunpack.c.0.s8 %v1587
        %v1589 = vlaneseq
        %v1590 = vshrl.u32 %v1589, 7
        %v1591 = vsub.s32 %v1588, %v1590
        %v1592 = vrot.slane %v1578, %v1591
        %v1593 = vcombine.high %v1585, 0
        %v1594 = vcombine.high %v1592, 0
        %v1597 = vunpack.c.l.s4 1983009808
        %v1598 = vunpack.c.0.s8 %v1597
        %v1599 = vlaneseq
        %v1600 = vshrl.u32 %v1599, 7
        %v1601 = vsub.s32 %v1598, %v1600
        %v1602 = vrot.slane %v789, %v1601
        %v1605 = vunpack.c.l.s4 1983009808
        %v1606 = vunpack.c.0.s8 %v1605
        %v1607 = vlaneseq
        %v1608 = vshrl.u32 %v1607, 7
        %v1609 = vsub.s32 %v1606, %v1608
        %v1610 = vrot.slane %v795, %v1609
        %v1611 = vcombine.low %v1602, %v1610
        %v1612 = vcombine.high %v1602, %v1610
        %v1614 = vunpack.c.l.s4 1934713408
        %v1615 = vunpack.c.0.s8 %v1614
        %v1616 = vlaneseq
        %v1617 = vshrl.u32 %v1616, 7
        %v1618 = vsub.s32 %v1615, %v1617
        %v1619 = vrot.slane %v1611, %v1618
        %v1621 = vunpack.c.l.s4 1934713408
        %v1622 = vunpack.c.0.s8 %v1621
        %v1623 = vlaneseq
        %v1624 = vshrl.u32 %v1623, 7
        %v1625 = vsub.s32 %v1622, %v1624
        %v1626 = vrot.slane %v1612, %v1625
        %v1627 = vcombine.high %v1619, 0
        %v1628 = vcombine.high %v1626, 0
        %v1631 = vunpack.c.l.s4 1983009808
        %v1632 = vunpack.c.0.s8 %v1631
        %v1633 = vlaneseq
        %v1634 = vshrl.u32 %v1633, 7
        %v1635 = vsub.s32 %v1632, %v1634
        %v1636 = vrot.slane %v792, %v1635
        %v1639 = vunpack.c.l.s4 1983009808
        %v1640 = vunpack.c.0.s8 %v1639
        %v1641 = vlaneseq
        %v1642 = vshrl.u32 %v1641, 7
        %v1643 = vsub.s32 %v1640, %v1642
        %v1644 = vrot.slane %v798, %v1643
        %v1645 = vcombine.low %v1636, %v1644
        %v1646 = vcombine.high %v1636, %v1644
        %v1648 = vunpack.c.l.s4 1934713408
        %v1649 = vunpack.c.0.s8 %v1648
        %v1650 = vlaneseq
        %v1651 = vshrl.u32 %v1650, 7
        %v1652 = vsub.s32 %v1649, %v1651
        %v1653 = vrot.slane %v1645, %v1652
        %v1655 = vunpack.c.l.s4 1934713408
        %v1656 = vunpack.c.0.s8 %v1655
        %v1657 = vlaneseq
        %v1658 = vshrl.u32 %v1657, 7
        %v1659 = vsub.s32 %v1656, %v1658
        %v1660 = vrot.slane %v1646, %v1659
        %v1661 = vcombine.high %v1653, 0
        %v1662 = vcombine.high %v1660, 0
        %v1665 = vunpack.c.l.s4 1983009808
        %v1666 = vunpack.c.0.s8 %v1665
        %v1667 = vlaneseq
        %v1668 = vshrl.u32 %v1667, 7
        %v1669 = vsub.s32 %v1666, %v1668
        %v1670 = vrot.slane %v801, %v1669
        %v1673 = vunpack.c.l.s4 1983009808
        %v1674 = vunpack.c.0.s8 %v1673
        %v1675 = vlaneseq
        %v1676 = vshrl.u32 %v1675, 7
        %v1677 = vsub.s32 %v1674, %v1676
        %v1678 = vrot.slane %v807, %v1677
        %v1679 = vcombine.low %v1670, %v1678
        %v1680 = vcombine.high %v1670, %v1678
        %v1682 = vunpack.c.l.s4 1934713408
        %v1683 = vunpack.c.0.s8 %v1682
        %v1684 = vlaneseq
        %v1685 = vshrl.u32 %v1684, 7
        %v1686 = vsub.s32 %v1683, %v1685
        %v1687 = vrot.slane %v1679, %v1686
        %v1689 = vunpack.c.l.s4 1934713408
        %v1690 = vunpack.c.0.s8 %v1689
        %v1691 = vlaneseq
        %v1692 = vshrl.u32 %v1691, 7
        %v1693 = vsub.s32 %v1690, %v1692
        %v1694 = vrot.slane %v1680, %v1693
        %v1695 = vcombine.high %v1687, 0
        %v1696 = vcombine.high %v1694, 0
        %v1699 = vunpack.c.l.s4 1983009808
        %v1700 = vunpack.c.0.s8 %v1699
        %v1701 = vlaneseq
        %v1702 = vshrl.u32 %v1701, 7
        %v1703 = vsub.s32 %v1700, %v1702
        %v1704 = vrot.slane %v804, %v1703
        %v1707 = vunpack.c.l.s4 1983009808
        %v1708 = vunpack.c.0.s8 %v1707
        %v1709 = vlaneseq
        %v1710 = vshrl.u32 %v1709, 7
        %v1711 = vsub.s32 %v1708, %v1710
        %v1712 = vrot.slane %v810, %v1711
        %v1713 = vcombine.low %v1704, %v1712
        %v1714 = vcombine.high %v1704, %v1712
        %v1716 = vunpack.c.l.s4 1934713408
        %v1717 = vunpack.c.0.s8 %v1716
        %v1718 = vlaneseq
        %v1719 = vshrl.u32 %v1718, 7
        %v1720 = vsub.s32 %v1717, %v1719
        %v1721 = vrot.slane %v1713, %v1720
        %v1723 = vunpack.c.l.s4 1934713408
        %v1724 = vunpack.c.0.s8 %v1723
        %v1725 = vlaneseq
        %v1726 = vshrl.u32 %v1725, 7
        %v1727 = vsub.s32 %v1724, %v1726
        %v1728 = vrot.slane %v1714, %v1727
        %v1729 = vcombine.high %v1721, 0
        %v1730 = vcombine.high %v1728, 0
        %v1733 = vunpack.c.l.s4 1983009808
        %v1734 = vunpack.c.0.s8 %v1733
        %v1735 = vlaneseq
        %v1736 = vshrl.u32 %v1735, 7
        %v1737 = vsub.s32 %v1734, %v1736
        %v1738 = vrot.slane %v813, %v1737
        %v1741 = vunpack.c.l.s4 1983009808
        %v1742 = vunpack.c.0.s8 %v1741
        %v1743 = vlaneseq
        %v1744 = vshrl.u32 %v1743, 7
        %v1745 = vsub.s32 %v1742, %v1744
        %v1746 = vrot.slane %v819, %v1745
        %v1747 = vcombine.low %v1738, %v1746
        %v1748 = vcombine.high %v1738, %v1746
        %v1750 = vunpack.c.l.s4 1934713408
        %v1751 = vunpack.c.0.s8 %v1750
        %v1752 = vlaneseq
        %v1753 = vshrl.u32 %v1752, 7
        %v1754 = vsub.s32 %v1751, %v1753
        %v1755 = vrot.slane %v1747, %v1754
        %v1757 = vunpack.c.l.s4 1934713408
        %v1758 = vunpack.c.0.s8 %v1757
        %v1759 = vlaneseq
        %v1760 = vshrl.u32 %v1759, 7
        %v1761 = vsub.s32 %v1758, %v1760
        %v1762 = vrot.slane %v1748, %v1761
        %v1763 = vcombine.high %v1755, 0
        %v1764 = vcombine.high %v1762, 0
        %v1767 = vunpack.c.l.s4 1983009808
        %v1768 = vunpack.c.0.s8 %v1767
        %v1769 = vlaneseq
        %v1770 = vshrl.u32 %v1769, 7
        %v1771 = vsub.s32 %v1768, %v1770
        %v1772 = vrot.slane %v816, %v1771
        %v1775 = vunpack.c.l.s4 1983009808
        %v1776 = vunpack.c.0.s8 %v1775
        %v1777 = vlaneseq
        %v1778 = vshrl.u32 %v1777, 7
        %v1779 = vsub.s32 %v1776, %v1778
        %v1780 = vrot.slane %v822, %v1779
        %v1781 = vcombine.low %v1772, %v1780
        %v1782 = vcombine.high %v1772, %v1780
        %v1784 = vunpack.c.l.s4 1934713408
        %v1785 = vunpack.c.0.s8 %v1784
        %v1786 = vlaneseq
        %v1787 = vshrl.u32 %v1786, 7
        %v1788 = vsub.s32 %v1785, %v1787
        %v1789 = vrot.slane %v1781, %v1788
        %v1791 = vunpack.c.l.s4 1934713408
        %v1792 = vunpack.c.0.s8 %v1791
        %v1793 = vlaneseq
        %v1794 = vshrl.u32 %v1793, 7
        %v1795 = vsub.s32 %v1792, %v1794
        %v1796 = vrot.slane %v1782, %v1795
        %v1797 = vcombine.high %v1789, 0
        %v1798 = vcombine.high %v1796, 0
        %v1801 = vunpack.c.l.s4 1983009808
        %v1802 = vunpack.c.0.s8 %v1801
        %v1803 = vlaneseq
        %v1804 = vshrl.u32 %v1803, 7
        %v1805 = vsub.s32 %v1802, %v1804
        %v1806 = vrot.slane %v825, %v1805
        %v1809 = vunpack.c.l.s4 1983009808
        %v1810 = vunpack.c.0.s8 %v1809
        %v1811 = vlaneseq
        %v1812 = vshrl.u32 %v1811, 7
        %v1813 = vsub.s32 %v1810, %v1812
        %v1814 = vrot.slane %v831, %v1813
        %v1815 = vcombine.low %v1806, %v1814
        %v1816 = vcombine.high %v1806, %v1814
        %v1818 = vunpack.c.l.s4 1934713408
        %v1819 = vunpack.c.0.s8 %v1818
        %v1820 = vlaneseq
        %v1821 = vshrl.u32 %v1820, 7
        %v1822 = vsub.s32 %v1819, %v1821
        %v1823 = vrot.slane %v1815, %v1822
        %v1825 = vunpack.c.l.s4 1934713408
        %v1826 = vunpack.c.0.s8 %v1825
        %v1827 = vlaneseq
        %v1828 = vshrl.u32 %v1827, 7
        %v1829 = vsub.s32 %v1826, %v1828
        %v1830 = vrot.slane %v1816, %v1829
        %v1831 = vcombine.high %v1823, 0
        %v1832 = vcombine.high %v1830, 0
        %v1835 = vunpack.c.l.s4 1983009808
        %v1836 = vunpack.c.0.s8 %v1835
        %v1837 = vlaneseq
        %v1838 = vshrl.u32 %v1837, 7
        %v1839 = vsub.s32 %v1836, %v1838
        %v1840 = vrot.slane %v828, %v1839
        %v1843 = vunpack.c.l.s4 1983009808
        %v1844 = vunpack.c.0.s8 %v1843
        %v1845 = vlaneseq
        %v1846 = vshrl.u32 %v1845, 7
        %v1847 = vsub.s32 %v1844, %v1846
        %v1848 = vrot.slane %v834, %v1847
        %v1849 = vcombine.low %v1840, %v1848
        %v1850 = vcombine.high %v1840, %v1848
        %v1852 = vunpack.c.l.s4 1934713408
        %v1853 = vunpack.c.0.s8 %v1852
        %v1854 = vlaneseq
        %v1855 = vshrl.u32 %v1854, 7
        %v1856 = vsub.s32 %v1853, %v1855
        %v1857 = vrot.slane %v1849, %v1856
        %v1859 = vunpack.c.l.s4 1934713408
        %v1860 = vunpack.c.0.s8 %v1859
        %v1861 = vlaneseq
        %v1862 = vshrl.u32 %v1861, 7
        %v1863 = vsub.s32 %v1860, %v1862
        %v1864 = vrot.slane %v1850, %v1863
        %v1865 = vcombine.high %v1857, 0
        %v1866 = vcombine.high %v1864, 0
        %v1869 = vunpack.c.l.s4 1983009808
        %v1870 = vunpack.c.0.s8 %v1869
        %v1871 = vlaneseq
        %v1872 = vshrl.u32 %v1871, 7
        %v1873 = vsub.s32 %v1870, %v1872
        %v1874 = vrot.slane %v837, %v1873
        %v1877 = vunpack.c.l.s4 1983009808
        %v1878 = vunpack.c.0.s8 %v1877
        %v1879 = vlaneseq
        %v1880 = vshrl.u32 %v1879, 7
        %v1881 = vsub.s32 %v1878, %v1880
        %v1882 = vrot.slane %v843, %v1881
        %v1883 = vcombine.low %v1874, %v1882
        %v1884 = vcombine.high %v1874, %v1882
        %v1886 = vunpack.c.l.s4 1934713408
        %v1887 = vunpack.c.0.s8 %v1886
        %v1888 = vlaneseq
        %v1889 = vshrl.u32 %v1888, 7
        %v1890 = vsub.s32 %v1887, %v1889
        %v1891 = vrot.slane %v1883, %v1890
        %v1893 = vunpack.c.l.s4 1934713408
        %v1894 = vunpack.c.0.s8 %v1893
        %v1895 = vlaneseq
        %v1896 = vshrl.u32 %v1895, 7
        %v1897 = vsub.s32 %v1894, %v1896
        %v1898 = vrot.slane %v1884, %v1897
        %v1899 = vcombine.high %v1891, 0
        %v1900 = vcombine.high %v1898, 0
        %v1903 = vunpack.c.l.s4 1983009808
        %v1904 = vunpack.c.0.s8 %v1903
        %v1905 = vlaneseq
        %v1906 = vshrl.u32 %v1905, 7
        %v1907 = vsub.s32 %v1904, %v1906
        %v1908 = vrot.slane %v840, %v1907
        %v1911 = vunpack.c.l.s4 1983009808
        %v1912 = vunpack.c.0.s8 %v1911
        %v1913 = vlaneseq
        %v1914 = vshrl.u32 %v1913, 7
        %v1915 = vsub.s32 %v1912, %v1914
        %v1916 = vrot.slane %v846, %v1915
        %v1917 = vcombine.low %v1908, %v1916
        %v1918 = vcombine.high %v1908, %v1916
        %v1920 = vunpack.c.l.s4 1934713408
        %v1921 = vunpack.c.0.s8 %v1920
        %v1922 = vlaneseq
        %v1923 = vshrl.u32 %v1922, 7
        %v1924 = vsub.s32 %v1921, %v1923
        %v1925 = vrot.slane %v1917, %v1924
        %v1927 = vunpack.c.l.s4 1934713408
        %v1928 = vunpack.c.0.s8 %v1927
        %v1929 = vlaneseq
        %v1930 = vshrl.u32 %v1929, 7
        %v1931 = vsub.s32 %v1928, %v1930
        %v1932 = vrot.slane %v1918, %v1931
        %v1933 = vcombine.high %v1925, 0
        %v1934 = vcombine.high %v1932, 0
        %v1935 = vcombine.low %v871, %v878
        %v1937 = vunpack.c.l.s4 1983009808
        %v1938 = vunpack.c.0.s8 %v1937
        %v1939 = vlaneseq
        %v1940 = vshrl.u32 %v1939, 7
        %v1941 = vsub.s32 %v1938, %v1940
        %v1942 = vrot.slane %v1935, %v1941
        %v1943 = vcombine.low %v879, %v880
        %v1945 = vunpack.c.l.s4 1983009808
        %v1946 = vunpack.c.0.s8 %v1945
        %v1947 = vlaneseq
        %v1948 = vshrl.u32 %v1947, 7
        %v1949 = vsub.s32 %v1946, %v1948
        %v1950 = vrot.slane %v1943, %v1949
        %v1951 = vcombine.low %v1942, %v1950
        %v1953 = vunpack.c.l.s4 1934713408
        %v1954 = vunpack.c.0.s8 %v1953
        %v1955 = vlaneseq
        %v1956 = vshrl.u32 %v1955, 7
        %v1957 = vsub.s32 %v1954, %v1956
        %v1958 = vrot.slane %v1951, %v1957
        %v1959 = vcombine.high %v1958, 0
        %v1960 = vcombine.low %v905, %v912
        %v1962 = vunpack.c.l.s4 1983009808
        %v1963 = vunpack.c.0.s8 %v1962
        %v1964 = vlaneseq
        %v1965 = vshrl.u32 %v1964, 7
        %v1966 = vsub.s32 %v1963, %v1965
        %v1967 = vrot.slane %v1960, %v1966
        %v1968 = vcombine.low %v913, %v914
        %v1970 = vunpack.c.l.s4 1983009808
        %v1971 = vunpack.c.0.s8 %v1970
        %v1972 = vlaneseq
        %v1973 = vshrl.u32 %v1972, 7
        %v1974 = vsub.s32 %v1971, %v1973
        %v1975 = vrot.slane %v1968, %v1974
        %v1976 = vcombine.low %v1967, %v1975
        %v1978 = vunpack.c.l.s4 1934713408
        %v1979 = vunpack.c.0.s8 %v1978
        %v1980 = vlaneseq
        %v1981 = vshrl.u32 %v1980, 7
        %v1982 = vsub.s32 %v1979, %v1981
        %v1983 = vrot.slane %v1976, %v1982
        %v1984 = vcombine.high %v1983, 0
        %v1985 = vcombine.low %v939, %v946
        %v1987 = vunpack.c.l.s4 1983009808
        %v1988 = vunpack.c.0.s8 %v1987
        %v1989 = vlaneseq
        %v1990 = vshrl.u32 %v1989, 7
        %v1991 = vsub.s32 %v1988, %v1990
        %v1992 = vrot.slane %v1985, %v1991
        %v1993 = vcombine.low %v947, %v948
        %v1995 = vunpack.c.l.s4 1983009808
        %v1996 = vunpack.c.0.s8 %v1995
        %v1997 = vlaneseq
        %v1998 = vshrl.u32 %v1997, 7
        %v1999 = vsub.s32 %v1996, %v1998
        %v2000 = vrot.slane %v1993, %v1999
        %v2001 = vcombine.low %v1992, %v2000
        %v2003 = vunpack.c.l.s4 1934713408
        %v2004 = vunpack.c.0.s8 %v2003
        %v2005 = vlaneseq
        %v2006 = vshrl.u32 %v2005, 7
        %v2007 = vsub.s32 %v2004, %v2006
        %v2008 = vrot.slane %v2001, %v2007
        %v2009 = vcombine.high %v2008, 0
        %v2010 = vcombine.low %v973, %v980
        %v2012 = vunpack.c.l.s4 1983009808
        %v2013 = vunpack.c.0.s8 %v2012
        %v2014 = vlaneseq
        %v2015 = vshrl.u32 %v2014, 7
        %v2016 = vsub.s32 %v2013, %v2015
        %v2017 = vrot.slane %v2010, %v2016
        %v2018 = vcombine.low %v981, %v982
        %v2020 = vunpack.c.l.s4 1983009808
        %v2021 = vunpack.c.0.s8 %v2020
        %v2022 = vlaneseq
        %v2023 = vshrl.u32 %v2022, 7
        %v2024 = vsub.s32 %v2021, %v2023
        %v2025 = vrot.slane %v2018, %v2024
        %v2026 = vcombine.low %v2017, %v2025
        %v2028 = vunpack.c.l.s4 1934713408
        %v2029 = vunpack.c.0.s8 %v2028
        %v2030 = vlaneseq
        %v2031 = vshrl.u32 %v2030, 7
        %v2032 = vsub.s32 %v2029, %v2031
        %v2033 = vrot.slane %v2026, %v2032
        %v2034 = vcombine.high %v2033, 0
        %v2035 = vcombine.low %v1007, %v1014
        %v2037 = vunpack.c.l.s4 1983009808
        %v2038 = vunpack.c.0.s8 %v2037
        %v2039 = vlaneseq
        %v2040 = vshrl.u32 %v2039, 7
        %v2041 = vsub.s32 %v2038, %v2040
        %v2042 = vrot.slane %v2035, %v2041
        %v2043 = vcombine.low %v1015, %v1016
        %v2045 = vunpack.c.l.s4 1983009808
        %v2046 = vunpack.c.0.s8 %v2045
        %v2047 = vlaneseq
        %v2048 = vshrl.u32 %v2047, 7
        %v2049 = vsub.s32 %v2046, %v2048
        %v2050 = vrot.slane %v2043, %v2049
        %v2051 = vcombine.low %v2042, %v2050
        %v2053 = vunpack.c.l.s4 1934713408
        %v2054 = vunpack.c.0.s8 %v2053
        %v2055 = vlaneseq
        %v2056 = vshrl.u32 %v2055, 7
        %v2057 = vsub.s32 %v2054, %v2056
        %v2058 = vrot.slane %v2051, %v2057
        %v2059 = vcombine.high %v2058, 0
        %v2060 = vcombine.low %v1041, %v1048
        %v2062 = vunpack.c.l.s4 1983009808
        %v2063 = vunpack.c.0.s8 %v2062
        %v2064 = vlaneseq
        %v2065 = vshrl.u32 %v2064, 7
        %v2066 = vsub.s32 %v2063, %v2065
        %v2067 = vrot.slane %v2060, %v2066
        %v2068 = vcombine.low %v1049, %v1050
        %v2070 = vunpack.c.l.s4 1983009808
        %v2071 = vunpack.c.0.s8 %v2070
        %v2072 = vlaneseq
        %v2073 = vshrl.u32 %v2072, 7
        %v2074 = vsub.s32 %v2071, %v2073
        %v2075 = vrot.slane %v2068, %v2074
        %v2076 = vcombine.low %v2067, %v2075
        %v2078 = vunpack.c.l.s4 1934713408
        %v2079 = vunpack.c.0.s8 %v2078
        %v2080 = vlaneseq
        %v2081 = vshrl.u32 %v2080, 7
        %v2082 = vsub.s32 %v2079, %v2081
        %v2083 = vrot.slane %v2076, %v2082
        %v2084 = vcombine.high %v2083, 0
        %v2085 = vcombine.low %v1075, %v1082
        %v2087 = vunpack.c.l.s4 1983009808
        %v2088 = vunpack.c.0.s8 %v2087
        %v2089 = vlaneseq
        %v2090 = vshrl.u32 %v2089, 7
        %v2091 = vsub.s32 %v2088, %v2090
        %v2092 = vrot.slane %v2085, %v2091
        %v2093 = vcombine.low %v1083, %v1084
        %v2095 = vunpack.c.l.s4 1983009808
        %v2096 = vunpack.c.0.s8 %v2095
        %v2097 = vlaneseq
        %v2098 = vshrl.u32 %v2097, 7
        %v2099 = vsub.s32 %v2096, %v2098
        %v2100 = vrot.slane %v2093, %v2099
        %v2101 = vcombine.low %v2092, %v2100
        %v2103 = vunpack.c.l.s4 1934713408
        %v2104 = vunpack.c.0.s8 %v2103
        %v2105 = vlaneseq
        %v2106 = vshrl.u32 %v2105, 7
        %v2107 = vsub.s32 %v2104, %v2106
        %v2108 = vrot.slane %v2101, %v2107
        %v2109 = vcombine.high %v2108, 0
        %v2110 = vcombine.low %v1109, %v1116
        %v2112 = vunpack.c.l.s4 1983009808
        %v2113 = vunpack.c.0.s8 %v2112
        %v2114 = vlaneseq
        %v2115 = vshrl.u32 %v2114, 7
        %v2116 = vsub.s32 %v2113, %v2115
        %v2117 = vrot.slane %v2110, %v2116
        %v2118 = vcombine.low %v1117, %v1118
        %v2120 = vunpack.c.l.s4 1983009808
        %v2121 = vunpack.c.0.s8 %v2120
        %v2122 = vlaneseq
        %v2123 = vshrl.u32 %v2122, 7
        %v2124 = vsub.s32 %v2121, %v2123
        %v2125 = vrot.slane %v2118, %v2124
        %v2126 = vcombine.low %v2117, %v2125
        %v2128 = vunpack.c.l.s4 1934713408
        %v2129 = vunpack.c.0.s8 %v2128
        %v2130 = vlaneseq
        %v2131 = vshrl.u32 %v2130, 7
        %v2132 = vsub.s32 %v2129, %v2131
        %v2133 = vrot.slane %v2126, %v2132
        %v2134 = vcombine.high %v2133, 0
        %v2135 = vcombine.low %v1143, %v1150
        %v2137 = vunpack.c.l.s4 1983009808
        %v2138 = vunpack.c.0.s8 %v2137
        %v2139 = vlaneseq
        %v2140 = vshrl.u32 %v2139, 7
        %v2141 = vsub.s32 %v2138, %v2140
        %v2142 = vrot.slane %v2135, %v2141
        %v2143 = vcombine.low %v1151, %v1152
        %v2145 = vunpack.c.l.s4 1983009808
        %v2146 = vunpack.c.0.s8 %v2145
        %v2147 = vlaneseq
        %v2148 = vshrl.u32 %v2147, 7
        %v2149 = vsub.s32 %v2146, %v2148
        %v2150 = vrot.slane %v2143, %v2149
        %v2151 = vcombine.low %v2142, %v2150
        %v2153 = vunpack.c.l.s4 1934713408
        %v2154 = vunpack.c.0.s8 %v2153
        %v2155 = vlaneseq
        %v2156 = vshrl.u32 %v2155, 7
        %v2157 = vsub.s32 %v2154, %v2156
        %v2158 = vrot.slane %v2151, %v2157
        %v2159 = vcombine.high %v2158, 0
        %v2160 = vcombine.low %v1177, %v1184
        %v2162 = vunpack.c.l.s4 1983009808
        %v2163 = vunpack.c.0.s8 %v2162
        %v2164 = vlaneseq
        %v2165 = vshrl.u32 %v2164, 7
        %v2166 = vsub.s32 %v2163, %v2165
        %v2167 = vrot.slane %v2160, %v2166
        %v2168 = vcombine.low %v1185, %v1186
        %v2170 = vunpack.c.l.s4 1983009808
        %v2171 = vunpack.c.0.s8 %v2170
        %v2172 = vlaneseq
        %v2173 = vshrl.u32 %v2172, 7
        %v2174 = vsub.s32 %v2171, %v2173
        %v2175 = vrot.slane %v2168, %v2174
        %v2176 = vcombine.low %v2167, %v2175
        %v2178 = vunpack.c.l.s4 1934713408
        %v2179 = vunpack.c.0.s8 %v2178
        %v2180 = vlaneseq
        %v2181 = vshrl.u32 %v2180, 7
        %v2182 = vsub.s32 %v2179, %v2181
        %v2183 = vrot.slane %v2176, %v2182
        %v2184 = vcombine.high %v2183, 0
        %v2185 = vcombine.low %v1211, %v1218
        %v2187 = vunpack.c.l.s4 1983009808
        %v2188 = vunpack.c.0.s8 %v2187
        %v2189 = vlaneseq
        %v2190 = vshrl.u32 %v2189, 7
        %v2191 = vsub.s32 %v2188, %v2190
        %v2192 = vrot.slane %v2185, %v2191
        %v2193 = vcombine.low %v1219, %v1220
        %v2195 = vunpack.c.l.s4 1983009808
        %v2196 = vunpack.c.0.s8 %v2195
        %v2197 = vlaneseq
        %v2198 = vshrl.u32 %v2197, 7
        %v2199 = vsub.s32 %v2196, %v2198
        %v2200 = vrot.slane %v2193, %v2199
        %v2201 = vcombine.low %v2192, %v2200
        %v2203 = vunpack.c.l.s4 1934713408
        %v2204 = vunpack.c.0.s8 %v2203
        %v2205 = vlaneseq
        %v2206 = vshrl.u32 %v2205, 7
        %v2207 = vsub.s32 %v2204, %v2206
        %v2208 = vrot.slane %v2201, %v2207
        %v2209 = vcombine.high %v2208, 0
        %v2210 = vcombine.low %v1245, %v1252
        %v2212 = vunpack.c.l.s4 1983009808
        %v2213 = vunpack.c.0.s8 %v2212
        %v2214 = vlaneseq
        %v2215 = vshrl.u32 %v2214, 7
        %v2216 = vsub.s32 %v2213, %v2215
        %v2217 = vrot.slane %v2210, %v2216
        %v2218 = vcombine.low %v1253, %v1254
        %v2220 = vunpack.c.l.s4 1983009808
        %v2221 = vunpack.c.0.s8 %v2220
        %v2222 = vlaneseq
        %v2223 = vshrl.u32 %v2222, 7
        %v2224 = vsub.s32 %v2221, %v2223
        %v2225 = vrot.slane %v2218, %v2224
        %v2226 = vcombine.low %v2217, %v2225
        %v2228 = vunpack.c.l.s4 1934713408
        %v2229 = vunpack.c.0.s8 %v2228
        %v2230 = vlaneseq
        %v2231 = vshrl.u32 %v2230, 7
        %v2232 = vsub.s32 %v2229, %v2231
        %v2233 = vrot.slane %v2226, %v2232
        %v2234 = vcombine.high %v2233, 0
        %v2235 = vcombine.low %v1279, %v1286
        %v2237 = vunpack.c.l.s4 1983009808
        %v2238 = vunpack.c.0.s8 %v2237
        %v2239 = vlaneseq
        %v2240 = vshrl.u32 %v2239, 7
        %v2241 = vsub.s32 %v2238, %v2240
        %v2242 = vrot.slane %v2235, %v2241
        %v2243 = vcombine.low %v1287, %v1288
        %v2245 = vunpack.c.l.s4 1983009808
        %v2246 = vunpack.c.0.s8 %v2245
        %v2247 = vlaneseq
        %v2248 = vshrl.u32 %v2247, 7
        %v2249 = vsub.s32 %v2246, %v2248
        %v2250 = vrot.slane %v2243, %v2249
        %v2251 = vcombine.low %v2242, %v2250
        %v2253 = vunpack.c.l.s4 1934713408
        %v2254 = vunpack.c.0.s8 %v2253
        %v2255 = vlaneseq
        %v2256 = vshrl.u32 %v2255, 7
        %v2257 = vsub.s32 %v2254, %v2256
        %v2258 = vrot.slane %v2251, %v2257
        %v2259 = vcombine.high %v2258, 0
        %v2260 = vcombine.low %v1313, %v1320
        %v2262 = vunpack.c.l.s4 1983009808
        %v2263 = vunpack.c.0.s8 %v2262
        %v2264 = vlaneseq
        %v2265 = vshrl.u32 %v2264, 7
        %v2266 = vsub.s32 %v2263, %v2265
        %v2267 = vrot.slane %v2260, %v2266
        %v2268 = vcombine.low %v1321, %v1322
        %v2270 = vunpack.c.l.s4 1983009808
        %v2271 = vunpack.c.0.s8 %v2270
        %v2272 = vlaneseq
        %v2273 = vshrl.u32 %v2272, 7
        %v2274 = vsub.s32 %v2271, %v2273
        %v2275 = vrot.slane %v2268, %v2274
        %v2276 = vcombine.low %v2267, %v2275
        %v2278 = vunpack.c.l.s4 1934713408
        %v2279 = vunpack.c.0.s8 %v2278
        %v2280 = vlaneseq
        %v2281 = vshrl.u32 %v2280, 7
        %v2282 = vsub.s32 %v2279, %v2281
        %v2283 = vrot.slane %v2276, %v2282
        %v2284 = vcombine.high %v2283, 0
        %v2285 = vcombine.low %v1347, %v1354
        %v2287 = vunpack.c.l.s4 1983009808
        %v2288 = vunpack.c.0.s8 %v2287
        %v2289 = vlaneseq
        %v2290 = vshrl.u32 %v2289, 7
        %v2291 = vsub.s32 %v2288, %v2290
        %v2292 = vrot.slane %v2285, %v2291
        %v2293 = vcombine.low %v1355, %v1356
        %v2295 = vunpack.c.l.s4 1983009808
        %v2296 = vunpack.c.0.s8 %v2295
        %v2297 = vlaneseq
        %v2298 = vshrl.u32 %v2297, 7
        %v2299 = vsub.s32 %v2296, %v2298
        %v2300 = vrot.slane %v2293, %v2299
        %v2301 = vcombine.low %v2292, %v2300
        %v2303 = vunpack.c.l.s4 1934713408
        %v2304 = vunpack.c.0.s8 %v2303
        %v2305 = vlaneseq
        %v2306 = vshrl.u32 %v2305, 7
        %v2307 = vsub.s32 %v2304, %v2306
        %v2308 = vrot.slane %v2301, %v2307
        %v2309 = vcombine.high %v2308, 0
        %v2310 = vcombine.low %v1381, %v1388
        %v2312 = vunpack.c.l.s4 1983009808
        %v2313 = vunpack.c.0.s8 %v2312
        %v2314 = vlaneseq
        %v2315 = vshrl.u32 %v2314, 7
        %v2316 = vsub.s32 %v2313, %v2315
        %v2317 = vrot.slane %v2310, %v2316
        %v2318 = vcombine.low %v1389, %v1390
        %v2320 = vunpack.c.l.s4 1983009808
        %v2321 = vunpack.c.0.s8 %v2320
        %v2322 = vlaneseq
        %v2323 = vshrl.u32 %v2322, 7
        %v2324 = vsub.s32 %v2321, %v2323
        %v2325 = vrot.slane %v2318, %v2324
        %v2326 = vcombine.low %v2317, %v2325
        %v2328 = vunpack.c.l.s4 1934713408
        %v2329 = vunpack.c.0.s8 %v2328
        %v2330 = vlaneseq
        %v2331 = vshrl.u32 %v2330, 7
        %v2332 = vsub.s32 %v2329, %v2331
        %v2333 = vrot.slane %v2326, %v2332
        %v2334 = vcombine.high %v2333, 0
        %v2335 = vcombine.low %v1415, %v1422
        %v2337 = vunpack.c.l.s4 1983009808
        %v2338 = vunpack.c.0.s8 %v2337
        %v2339 = vlaneseq
        %v2340 = vshrl.u32 %v2339, 7
        %v2341 = vsub.s32 %v2338, %v2340
        %v2342 = vrot.slane %v2335, %v2341
        %v2343 = vcombine.low %v1423, %v1424
        %v2345 = vunpack.c.l.s4 1983009808
        %v2346 = vunpack.c.0.s8 %v2345
        %v2347 = vlaneseq
        %v2348 = vshrl.u32 %v2347, 7
        %v2349 = vsub.s32 %v2346, %v2348
        %v2350 = vrot.slane %v2343, %v2349
        %v2351 = vcombine.low %v2342, %v2350
        %v2353 = vunpack.c.l.s4 1934713408
        %v2354 = vunpack.c.0.s8 %v2353
        %v2355 = vlaneseq
        %v2356 = vshrl.u32 %v2355, 7
        %v2357 = vsub.s32 %v2354, %v2356
        %v2358 = vrot.slane %v2351, %v2357
        %v2359 = vcombine.high %v2358, 0
        %v2360 = vcombine.low %v1449, %v1456
        %v2362 = vunpack.c.l.s4 1983009808
        %v2363 = vunpack.c.0.s8 %v2362
        %v2364 = vlaneseq
        %v2365 = vshrl.u32 %v2364, 7
        %v2366 = vsub.s32 %v2363, %v2365
        %v2367 = vrot.slane %v2360, %v2366
        %v2368 = vcombine.low %v1457, %v1458
        %v2370 = vunpack.c.l.s4 1983009808
        %v2371 = vunpack.c.0.s8 %v2370
        %v2372 = vlaneseq
        %v2373 = vshrl.u32 %v2372, 7
        %v2374 = vsub.s32 %v2371, %v2373
        %v2375 = vrot.slane %v2368, %v2374
        %v2376 = vcombine.low %v2367, %v2375
        %v2378 = vunpack.c.l.s4 1934713408
        %v2379 = vunpack.c.0.s8 %v2378
        %v2380 = vlaneseq
        %v2381 = vshrl.u32 %v2380, 7
        %v2382 = vsub.s32 %v2379, %v2381
        %v2383 = vrot.slane %v2376, %v2382
        %v2384 = vcombine.high %v2383, 0
        %v2385 = vcombine.low %v1483, %v1490
        %v2387 = vunpack.c.l.s4 1983009808
        %v2388 = vunpack.c.0.s8 %v2387
        %v2389 = vlaneseq
        %v2390 = vshrl.u32 %v2389, 7
        %v2391 = vsub.s32 %v2388, %v2390
        %v2392 = vrot.slane %v2385, %v2391
        %v2393 = vcombine.low %v1491, %v1492
        %v2395 = vunpack.c.l.s4 1983009808
        %v2396 = vunpack.c.0.s8 %v2395
        %v2397 = vlaneseq
        %v2398 = vshrl.u32 %v2397, 7
        %v2399 = vsub.s32 %v2396, %v2398
        %v2400 = vrot.slane %v2393, %v2399
        %v2401 = vcombine.low %v2392, %v2400
        %v2403 = vunpack.c.l.s4 1934713408
        %v2404 = vunpack.c.0.s8 %v2403
        %v2405 = vlaneseq
        %v2406 = vshrl.u32 %v2405, 7
        %v2407 = vsub.s32 %v2404, %v2406
        %v2408 = vrot.slane %v2401, %v2407
        %v2409 = vcombine.high %v2408, 0
        %v2410 = vcombine.low %v1517, %v1524
        %v2412 = vunpack.c.l.s4 1983009808
        %v2413 = vunpack.c.0.s8 %v2412
        %v2414 = vlaneseq
        %v2415 = vshrl.u32 %v2414, 7
        %v2416 = vsub.s32 %v2413, %v2415
        %v2417 = vrot.slane %v2410, %v2416
        %v2418 = vcombine.low %v1525, %v1526
        %v2420 = vunpack.c.l.s4 1983009808
        %v2421 = vunpack.c.0.s8 %v2420
        %v2422 = vlaneseq
        %v2423 = vshrl.u32 %v2422, 7
        %v2424 = vsub.s32 %v2421, %v2423
        %v2425 = vrot.slane %v2418, %v2424
        %v2426 = vcombine.low %v2417, %v2425
        %v2428 = vunpack.c.l.s4 1934713408
        %v2429 = vunpack.c.0.s8 %v2428
        %v2430 = vlaneseq
        %v2431 = vshrl.u32 %v2430, 7
        %v2432 = vsub.s32 %v2429, %v2431
        %v2433 = vrot.slane %v2426, %v2432
        %v2434 = vcombine.high %v2433, 0
        %v2435 = vcombine.low %v1551, %v1558
        %v2437 = vunpack.c.l.s4 1983009808
        %v2438 = vunpack.c.0.s8 %v2437
        %v2439 = vlaneseq
        %v2440 = vshrl.u32 %v2439, 7
        %v2441 = vsub.s32 %v2438, %v2440
        %v2442 = vrot.slane %v2435, %v2441
        %v2443 = vcombine.low %v1559, %v1560
        %v2445 = vunpack.c.l.s4 1983009808
        %v2446 = vunpack.c.0.s8 %v2445
        %v2447 = vlaneseq
        %v2448 = vshrl.u32 %v2447, 7
        %v2449 = vsub.s32 %v2446, %v2448
        %v2450 = vrot.slane %v2443, %v2449
        %v2451 = vcombine.low %v2442, %v2450
        %v2453 = vunpack.c.l.s4 1934713408
        %v2454 = vunpack.c.0.s8 %v2453
        %v2455 = vlaneseq
        %v2456 = vshrl.u32 %v2455, 7
        %v2457 = vsub.s32 %v2454, %v2456
        %v2458 = vrot.slane %v2451, %v2457
        %v2459 = vcombine.high %v2458, 0
        %v2460 = vcombine.low %v1585, %v1592
        %v2462 = vunpack.c.l.s4 1983009808
        %v2463 = vunpack.c.0.s8 %v2462
        %v2464 = vlaneseq
        %v2465 = vshrl.u32 %v2464, 7
        %v2466 = vsub.s32 %v2463, %v2465
        %v2467 = vrot.slane %v2460, %v2466
        %v2468 = vcombine.low %v1593, %v1594
        %v2470 = vunpack.c.l.s4 1983009808
        %v2471 = vunpack.c.0.s8 %v2470
        %v2472 = vlaneseq
        %v2473 = vshrl.u32 %v2472, 7
        %v2474 = vsub.s32 %v2471, %v2473
        %v2475 = vrot.slane %v2468, %v2474
        %v2476 = vcombine.low %v2467, %v2475
        %v2478 = vunpack.c.l.s4 1934713408
        %v2479 = vunpack.c.0.s8 %v2478
        %v2480 = vlaneseq
        %v2481 = vshrl.u32 %v2480, 7
        %v2482 = vsub.s32 %v2479, %v2481
        %v2483 = vrot.slane %v2476, %v2482
        %v2484 = vcombine.high %v2483, 0
        %v2485 = vcombine.low %v1619, %v1626
        %v2487 = vunpack.c.l.s4 1983009808
        %v2488 = vunpack.c.0.s8 %v2487
        %v2489 = vlaneseq
        %v2490 = vshrl.u32 %v2489, 7
        %v2491 = vsub.s32 %v2488, %v2490
        %v2492 = vrot.slane %v2485, %v2491
        %v2493 = vcombine.low %v1627, %v1628
        %v2495 = vunpack.c.l.s4 1983009808
        %v2496 = vunpack.c.0.s8 %v2495
        %v2497 = vlaneseq
        %v2498 = vshrl.u32 %v2497, 7
        %v2499 = vsub.s32 %v2496, %v2498
        %v2500 = vrot.slane %v2493, %v2499
        %v2501 = vcombine.low %v2492, %v2500
        %v2503 = vunpack.c.l.s4 1934713408
        %v2504 = vunpack.c.0.s8 %v2503
        %v2505 = vlaneseq
        %v2506 = vshrl.u32 %v2505, 7
        %v2507 = vsub.s32 %v2504, %v2506
        %v2508 = vrot.slane %v2501, %v2507
        %v2509 = vcombine.high %v2508, 0
        %v2510 = vcombine.low %v1653, %v1660
        %v2512 = vunpack.c.l.s4 1983009808
        %v2513 = vunpack.c.0.s8 %v2512
        %v2514 = vlaneseq
        %v2515 = vshrl.u32 %v2514, 7
        %v2516 = vsub.s32 %v2513, %v2515
        %v2517 = vrot.slane %v2510, %v2516
        %v2518 = vcombine.low %v1661, %v1662
        %v2520 = vunpack.c.l.s4 1983009808
        %v2521 = vunpack.c.0.s8 %v2520
        %v2522 = vlaneseq
        %v2523 = vshrl.u32 %v2522, 7
        %v2524 = vsub.s32 %v2521, %v2523
        %v2525 = vrot.slane %v2518, %v2524
        %v2526 = vcombine.low %v2517, %v2525
        %v2528 = vunpack.c.l.s4 1934713408
        %v2529 = vunpack.c.0.s8 %v2528
        %v2530 = vlaneseq
        %v2531 = vshrl.u32 %v2530, 7
        %v2532 = vsub.s32 %v2529, %v2531
        %v2533 = vrot.slane %v2526, %v2532
        %v2534 = vcombine.high %v2533, 0
        %v2535 = vcombine.low %v1687, %v1694
        %v2537 = vunpack.c.l.s4 1983009808
        %v2538 = vunpack.c.0.s8 %v2537
        %v2539 = vlaneseq
        %v2540 = vshrl.u32 %v2539, 7
        %v2541 = vsub.s32 %v2538, %v2540
        %v2542 = vrot.slane %v2535, %v2541
        %v2543 = vcombine.low %v1695, %v1696
        %v2545 = vunpack.c.l.s4 1983009808
        %v2546 = vunpack.c.0.s8 %v2545
        %v2547 = vlaneseq
        %v2548 = vshrl.u32 %v2547, 7
        %v2549 = vsub.s32 %v2546, %v2548
        %v2550 = vrot.slane %v2543, %v2549
        %v2551 = vcombine.low %v2542, %v2550
        %v2553 = vunpack.c.l.s4 1934713408
        %v2554 = vunpack.c.0.s8 %v2553
        %v2555 = vlaneseq
        %v2556 = vshrl.u32 %v2555, 7
        %v2557 = vsub.s32 %v2554, %v2556
        %v2558 = vrot.slane %v2551, %v2557
        %v2559 = vcombine.high %v2558, 0
        %v2560 = vcombine.low %v1721, %v1728
        %v2562 = vunpack.c.l.s4 1983009808
        %v2563 = vunpack.c.0.s8 %v2562
        %v2564 = vlaneseq
        %v2565 = vshrl.u32 %v2564, 7
        %v2566 = vsub.s32 %v2563, %v2565
        %v2567 = vrot.slane %v2560, %v2566
        %v2568 = vcombine.low %v1729, %v1730
        %v2570 = vunpack.c.l.s4 1983009808
        %v2571 = vunpack.c.0.s8 %v2570
        %v2572 = vlaneseq
        %v2573 = vshrl.u32 %v2572, 7
        %v2574 = vsub.s32 %v2571, %v2573
        %v2575 = vrot.slane %v2568, %v2574
        %v2576 = vcombine.low %v2567, %v2575
        %v2578 = vunpack.c.l.s4 1934713408
        %v2579 = vunpack.c.0.s8 %v2578
        %v2580 = vlaneseq
        %v2581 = vshrl.u32 %v2580, 7
        %v2582 = vsub.s32 %v2579, %v2581
        %v2583 = vrot.slane %v2576, %v2582
        %v2584 = vcombine.high %v2583, 0
        %v2585 = vcombine.low %v1755, %v1762
        %v2587 = vunpack.c.l.s4 1983009808
        %v2588 = vunpack.c.0.s8 %v2587
        %v2589 = vlaneseq
        %v2590 = vshrl.u32 %v2589, 7
        %v2591 = vsub.s32 %v2588, %v2590
        %v2592 = vrot.slane %v2585, %v2591
        %v2593 = vcombine.low %v1763, %v1764
        %v2595 = vunpack.c.l.s4 1983009808
        %v2596 = vunpack.c.0.s8 %v2595
        %v2597 = vlaneseq
        %v2598 = vshrl.u32 %v2597, 7
        %v2599 = vsub.s32 %v2596, %v2598
        %v2600 = vrot.slane %v2593, %v2599
        %v2601 = vcombine.low %v2592, %v2600
        %v2603 = vunpack.c.l.s4 1934713408
        %v2604 = vunpack.c.0.s8 %v2603
        %v2605 = vlaneseq
        %v2606 = vshrl.u32 %v2605, 7
        %v2607 = vsub.s32 %v2604, %v2606
        %v2608 = vrot.slane %v2601, %v2607
        %v2609 = vcombine.high %v2608, 0
        %v2610 = vcombine.low %v1789, %v1796
        %v2612 = vunpack.c.l.s4 1983009808
        %v2613 = vunpack.c.0.s8 %v2612
        %v2614 = vlaneseq
        %v2615 = vshrl.u32 %v2614, 7
        %v2616 = vsub.s32 %v2613, %v2615
        %v2617 = vrot.slane %v2610, %v2616
        %v2618 = vcombine.low %v1797, %v1798
        %v2620 = vunpack.c.l.s4 1983009808
        %v2621 = vunpack.c.0.s8 %v2620
        %v2622 = vlaneseq
        %v2623 = vshrl.u32 %v2622, 7
        %v2624 = vsub.s32 %v2621, %v2623
        %v2625 = vrot.slane %v2618, %v2624
        %v2626 = vcombine.low %v2617, %v2625
        %v2628 = vunpack.c.l.s4 1934713408
        %v2629 = vunpack.c.0.s8 %v2628
        %v2630 = vlaneseq
        %v2631 = vshrl.u32 %v2630, 7
        %v2632 = vsub.s32 %v2629, %v2631
        %v2633 = vrot.slane %v2626, %v2632
        %v2634 = vcombine.high %v2633, 0
        %v2635 = vcombine.low %v1823, %v1830
        %v2637 = vunpack.c.l.s4 1983009808
        %v2638 = vunpack.c.0.s8 %v2637
        %v2639 = vlaneseq
        %v2640 = vshrl.u32 %v2639, 7
        %v2641 = vsub.s32 %v2638, %v2640
        %v2642 = vrot.slane %v2635, %v2641
        %v2643 = vcombine.low %v1831, %v1832
        %v2645 = vunpack.c.l.s4 1983009808
        %v2646 = vunpack.c.0.s8 %v2645
        %v2647 = vlaneseq
        %v2648 = vshrl.u32 %v2647, 7
        %v2649 = vsub.s32 %v2646, %v2648
        %v2650 = vrot.slane %v2643, %v2649
        %v2651 = vcombine.low %v2642, %v2650
        %v2653 = vunpack.c.l.s4 1934713408
        %v2654 = vunpack.c.0.s8 %v2653
        %v2655 = vlaneseq
        %v2656 = vshrl.u32 %v2655, 7
        %v2657 = vsub.s32 %v2654, %v2656
        %v2658 = vrot.slane %v2651, %v2657
        %v2659 = vcombine.high %v2658, 0
        %v2660 = vcombine.low %v1857, %v1864
        %v2662 = vunpack.c.l.s4 1983009808
        %v2663 = vunpack.c.0.s8 %v2662
        %v2664 = vlaneseq
        %v2665 = vshrl.u32 %v2664, 7
        %v2666 = vsub.s32 %v2663, %v2665
        %v2667 = vrot.slane %v2660, %v2666
        %v2668 = vcombine.low %v1865, %v1866
        %v2670 = vunpack.c.l.s4 1983009808
        %v2671 = vunpack.c.0.s8 %v2670
        %v2672 = vlaneseq
        %v2673 = vshrl.u32 %v2672, 7
        %v2674 = vsub.s32 %v2671, %v2673
        %v2675 = vrot.slane %v2668, %v2674
        %v2676 = vcombine.low %v2667, %v2675
        %v2678 = vunpack.c.l.s4 1934713408
        %v2679 = vunpack.c.0.s8 %v2678
        %v2680 = vlaneseq
        %v2681 = vshrl.u32 %v2680, 7
        %v2682 = vsub.s32 %v2679, %v2681
        %v2683 = vrot.slane %v2676, %v2682
        %v2684 = vcombine.high %v2683, 0
        %v2685 = vcombine.low %v1891, %v1898
        %v2687 = vunpack.c.l.s4 1983009808
        %v2688 = vunpack.c.0.s8 %v2687
        %v2689 = vlaneseq
        %v2690 = vshrl.u32 %v2689, 7
        %v2691 = vsub.s32 %v2688, %v2690
        %v2692 = vrot.slane %v2685, %v2691
        %v2693 = vcombine.low %v1899, %v1900
        %v2695 = vunpack.c.l.s4 1983009808
        %v2696 = vunpack.c.0.s8 %v2695
        %v2697 = vlaneseq
        %v2698 = vshrl.u32 %v2697, 7
        %v2699 = vsub.s32 %v2696, %v2698
        %v2700 = vrot.slane %v2693, %v2699
        %v2701 = vcombine.low %v2692, %v2700
        %v2703 = vunpack.c.l.s4 1934713408
        %v2704 = vunpack.c.0.s8 %v2703
        %v2705 = vlaneseq
        %v2706 = vshrl.u32 %v2705, 7
        %v2707 = vsub.s32 %v2704, %v2706
        %v2708 = vrot.slane %v2701, %v2707
        %v2709 = vcombine.high %v2708, 0
        %v2710 = vcombine.low %v1925, %v1932
        %v2712 = vunpack.c.l.s4 1983009808
        %v2713 = vunpack.c.0.s8 %v2712
        %v2714 = vlaneseq
        %v2715 = vshrl.u32 %v2714, 7
        %v2716 = vsub.s32 %v2713, %v2715
        %v2717 = vrot.slane %v2710, %v2716
        %v2718 = vcombine.low %v1933, %v1934
        %v2720 = vunpack.c.l.s4 1983009808
        %v2721 = vunpack.c.0.s8 %v2720
        %v2722 = vlaneseq
        %v2723 = vshrl.u32 %v2722, 7
        %v2724 = vsub.s32 %v2721, %v2723
        %v2725 = vrot.slane %v2718, %v2724
        %v2726 = vcombine.low %v2717, %v2725
        %v2728 = vunpack.c.l.s4 1934713408
        %v2729 = vunpack.c.0.s8 %v2728
        %v2730 = vlaneseq
        %v2731 = vshrl.u32 %v2730, 7
        %v2732 = vsub.s32 %v2729, %v2731
        %v2733 = vrot.slane %v2726, %v2732
        %v2734 = vcombine.high %v2733, 0
        %v2737 = vpack.i.b16 %v1983, %v1958
        %v2738 = vshrl.u32 %v1958, 16
        %v2739 = vshrl.u32 %v1983, 16
        %v2740 = vpack.i.b16 %v2739, %v2738
        %v2743 = vpack.i.b16 %v1984, %v1959
        %v2744 = vshrl.u32 %v1959, 16
        %v2745 = vshrl.u32 %v1984, 16
        %v2746 = vpack.i.b16 %v2745, %v2744
        %v2749 = vpack.i.b16 %v2033, %v2008
        %v2750 = vshrl.u32 %v2008, 16
        %v2751 = vshrl.u32 %v2033, 16
        %v2752 = vpack.i.b16 %v2751, %v2750
        %v2755 = vpack.i.b16 %v2034, %v2009
        %v2756 = vshrl.u32 %v2009, 16
        %v2757 = vshrl.u32 %v2034, 16
        %v2758 = vpack.i.b16 %v2757, %v2756
        %v2761 = vpack.i.b16 %v2083, %v2058
        %v2762 = vshrl.u32 %v2058, 16
        %v2763 = vshrl.u32 %v2083, 16
        %v2764 = vpack.i.b16 %v2763, %v2762
        %v2767 = vpack.i.b16 %v2084, %v2059
        %v2768 = vshrl.u32 %v2059, 16
        %v2769 = vshrl.u32 %v2084, 16
        %v2770 = vpack.i.b16 %v2769, %v2768
        %v2773 = vpack.i.b16 %v2133, %v2108
        %v2774 = vshrl.u32 %v2108, 16
        %v2775 = vshrl.u32 %v2133, 16
        %v2776 = vpack.i.b16 %v2775, %v2774
        %v2779 = vpack.i.b16 %v2134, %v2109
        %v2780 = vshrl.u32 %v2109, 16
        %v2781 = vshrl.u32 %v2134, 16
        %v2782 = vpack.i.b16 %v2781, %v2780
        %v2785 = vpack.i.b16 %v2183, %v2158
        %v2786 = vshrl.u32 %v2158, 16
        %v2787 = vshrl.u32 %v2183, 16
        %v2788 = vpack.i.b16 %v2787, %v2786
        %v2791 = vpack.i.b16 %v2184, %v2159
        %v2792 = vshrl.u32 %v2159, 16
        %v2793 = vshrl.u32 %v2184, 16
        %v2794 = vpack.i.b16 %v2793, %v2792
        %v2797 = vpack.i.b16 %v2233, %v2208
        %v2798 = vshrl.u32 %v2208, 16
        %v2799 = vshrl.u32 %v2233, 16
        %v2800 = vpack.i.b16 %v2799, %v2798
        %v2803 = vpack.i.b16 %v2234, %v2209
        %v2804 = vshrl.u32 %v2209, 16
        %v2805 = vshrl.u32 %v2234, 16
        %v2806 = vpack.i.b16 %v2805, %v2804
        %v2809 = vpack.i.b16 %v2283, %v2258
        %v2810 = vshrl.u32 %v2258, 16
        %v2811 = vshrl.u32 %v2283, 16
        %v2812 = vpack.i.b16 %v2811, %v2810
        %v2815 = vpack.i.b16 %v2284, %v2259
        %v2816 = vshrl.u32 %v2259, 16
        %v2817 = vshrl.u32 %v2284, 16
        %v2818 = vpack.i.b16 %v2817, %v2816
        %v2821 = vpack.i.b16 %v2333, %v2308
        %v2822 = vshrl.u32 %v2308, 16
        %v2823 = vshrl.u32 %v2333, 16
        %v2824 = vpack.i.b16 %v2823, %v2822
        %v2827 = vpack.i.b16 %v2334, %v2309
        %v2828 = vshrl.u32 %v2309, 16
        %v2829 = vshrl.u32 %v2334, 16
        %v2830 = vpack.i.b16 %v2829, %v2828
        %v2833 = vpack.i.b16 %v2383, %v2358
        %v2834 = vshrl.u32 %v2358, 16
        %v2835 = vshrl.u32 %v2383, 16
        %v2836 = vpack.i.b16 %v2835, %v2834
        %v2839 = vpack.i.b16 %v2384, %v2359
        %v2840 = vshrl.u32 %v2359, 16
        %v2841 = vshrl.u32 %v2384, 16
        %v2842 = vpack.i.b16 %v2841, %v2840
        %v2845 = vpack.i.b16 %v2433, %v2408
        %v2846 = vshrl.u32 %v2408, 16
        %v2847 = vshrl.u32 %v2433, 16
        %v2848 = vpack.i.b16 %v2847, %v2846
        %v2851 = vpack.i.b16 %v2434, %v2409
        %v2852 = vshrl.u32 %v2409, 16
        %v2853 = vshrl.u32 %v2434, 16
        %v2854 = vpack.i.b16 %v2853, %v2852
        %v2857 = vpack.i.b16 %v2483, %v2458
        %v2858 = vshrl.u32 %v2458, 16
        %v2859 = vshrl.u32 %v2483, 16
        %v2860 = vpack.i.b16 %v2859, %v2858
        %v2863 = vpack.i.b16 %v2484, %v2459
        %v2864 = vshrl.u32 %v2459, 16
        %v2865 = vshrl.u32 %v2484, 16
        %v2866 = vpack.i.b16 %v2865, %v2864
        %v2869 = vpack.i.b16 %v2533, %v2508
        %v2870 = vshrl.u32 %v2508, 16
        %v2871 = vshrl.u32 %v2533, 16
        %v2872 = vpack.i.b16 %v2871, %v2870
        %v2875 = vpack.i.b16 %v2534, %v2509
        %v2876 = vshrl.u32 %v2509, 16
        %v2877 = vshrl.u32 %v2534, 16
        %v2878 = vpack.i.b16 %v2877, %v2876
        %v2881 = vpack.i.b16 %v2583, %v2558
        %v2882 = vshrl.u32 %v2558, 16
        %v2883 = vshrl.u32 %v2583, 16
        %v2884 = vpack.i.b16 %v2883, %v2882
        %v2887 = vpack.i.b16 %v2584, %v2559
        %v2888 = vshrl.u32 %v2559, 16
        %v2889 = vshrl.u32 %v2584, 16
        %v2890 = vpack.i.b16 %v2889, %v2888
        %v2893 = vpack.i.b16 %v2633, %v2608
        %v2894 = vshrl.u32 %v2608, 16
        %v2895 = vshrl.u32 %v2633, 16
        %v2896 = vpack.i.b16 %v2895, %v2894
        %v2899 = vpack.i.b16 %v2634, %v2609
        %v2900 = vshrl.u32 %v2609, 16
        %v2901 = vshrl.u32 %v2634, 16
        %v2902 = vpack.i.b16 %v2901, %v2900
        %v2905 = vpack.i.b16 %v2683, %v2658
        %v2906 = vshrl.u32 %v2658, 16
        %v2907 = vshrl.u32 %v2683, 16
        %v2908 = vpack.i.b16 %v2907, %v2906
        %v2911 = vpack.i.b16 %v2684, %v2659
        %v2912 = vshrl.u32 %v2659, 16
        %v2913 = vshrl.u32 %v2684, 16
        %v2914 = vpack.i.b16 %v2913, %v2912
        %v2917 = vpack.i.b16 %v2733, %v2708
        %v2918 = vshrl.u32 %v2708, 16
        %v2919 = vshrl.u32 %v2733, 16
        %v2920 = vpack.i.b16 %v2919, %v2918
        %v2923 = vpack.i.b16 %v2734, %v2709
        %v2924 = vshrl.u32 %v2709, 16
        %v2925 = vshrl.u32 %v2734, 16
        %v2926 = vpack.i.b16 %v2925, %v2924
        %v2927 = vunpack.c.l.b16 %v2737
        %v2928 = vunpack.c.l.b16 %v2749
        %v2929 = vunpack.c.l.b16 %v2761
        %v2930 = vunpack.c.l.b16 %v2773
        %v2931 = vunpack.c.l.b16 %v2785
        %v2932 = vunpack.c.l.b16 %v2797
        %v2933 = vunpack.c.l.b16 %v2809
        %v2934 = vunpack.c.l.b16 %v2821
        %v2935 = vunpack.c.l.b16 %v2833
        %v2936 = vunpack.c.l.b16 %v2845
        %v2937 = vunpack.c.l.b16 %v2857
        %v2938 = vunpack.c.l.b16 %v2869
        %v2939 = vunpack.c.l.b16 %v2881
        %v2940 = vunpack.c.l.b16 %v2893
        %v2941 = vunpack.c.l.b16 %v2905
        %v2942 = vunpack.c.l.b16 %v2917
        %v2943 = vpack.c.b16 %v2928, %v2927
        %v2944 = vpack.c.b16 %v2930, %v2929
        %v2945 = vpack.c.b16 %v2932, %v2931
        %v2946 = vpack.c.b16 %v2934, %v2933
        %v2947 = vpack.c.b16 %v2936, %v2935
        %v2948 = vpack.c.b16 %v2938, %v2937
        %v2949 = vpack.c.b16 %v2940, %v2939
        %v2950 = vpack.c.b16 %v2942, %v2941
        %2959 = vmatprep.subr.bf16.mxu0 0
        %2960 = vmatpush1.bf16.msra.mxu0 %v2950
        %2961 = vmatprep.subr.bf16.mxu0 0
        %2962 = vmatpush1.bf16.msra.mxu0 %v2949
        %2963 = vmatprep.subr.bf16.mxu0 0
        %2964 = vmatpush1.bf16.msra.mxu0 %v2948
        %2965 = vmatprep.subr.bf16.mxu0 0
        %2966 = vmatpush1.bf16.msra.mxu0 %v2947
        %2967 = vmatprep.subr.bf16.mxu0 0
        %2968 = vmatpush1.bf16.msra.mxu0 %v2946
        %2969 = vmatprep.subr.bf16.mxu0 0
        %2970 = vmatpush1.bf16.msra.mxu0 %v2945
        %2971 = vmatprep.subr.bf16.mxu0 0
        %2972 = vmatpush1.bf16.msra.mxu0 %v2944
        %2973 = vmatprep.subr.bf16.mxu0 0
        %2974 = vmatpush1.bf16.msra.mxu0 %v2943
        %2975 = vmatprep.subr.bf16.mxu0 0
        %2976 = vmatpush2.bf16.msra.mxu0 0
        %2977 = vmatprep.subr.bf16.mxu0 0
        %2978 = vmatpush2.bf16.msra.mxu0 0
        %2979 = vmatprep.subr.bf16.mxu0 0
        %2980 = vmatpush2.bf16.msra.mxu0 0
        %2981 = vmatprep.subr.bf16.mxu0 0
        %2982 = vmatpush2.bf16.msra.mxu0 0
        %2983 = vmatprep.subr.bf16.mxu0 0
        %2984 = vmatpush2.bf16.msra.mxu0 0
        %2985 = vmatprep.subr.bf16.mxu0 0
        %2986 = vmatpush2.bf16.msra.mxu0 0
        %2987 = vmatprep.subr.bf16.mxu0 0
        %2988 = vmatpush2.bf16.msra.mxu0 0
        %2989 = vmatprep.subr.bf16.mxu0 0
        %2990 = vmatpush2.bf16.msra.mxu0 0
        %2991 = vmatprep.mubr.bf16.mxu0 0
        %2992 = vmatmul.mubr.bf16.gmra.mxu0 %v523
        %v2993 = vpop.f32.mrf.mxu0
        %v2994 = vadd.f32 0.0, %v2993
        %v2995 = vpop.f32.mrf.mxu0
        %v2996 = vpop.f32.mrf.mxu0
        %v2997 = vpop.f32.mrf.mxu0
        %2998 = vdwg.mxu0
        %v2999 = vunpack.c.l.b16 %v2740
        %v3000 = vunpack.c.l.b16 %v2752
        %v3001 = vunpack.c.l.b16 %v2764
        %v3002 = vunpack.c.l.b16 %v2776
        %v3003 = vunpack.c.l.b16 %v2788
        %v3004 = vunpack.c.l.b16 %v2800
        %v3005 = vunpack.c.l.b16 %v2812
        %v3006 = vunpack.c.l.b16 %v2824
        %v3007 = vunpack.c.l.b16 %v2836
        %v3008 = vunpack.c.l.b16 %v2848
        %v3009 = vunpack.c.l.b16 %v2860
        %v3010 = vunpack.c.l.b16 %v2872
        %v3011 = vunpack.c.l.b16 %v2884
        %v3012 = vunpack.c.l.b16 %v2896
        %v3013 = vunpack.c.l.b16 %v2908
        %v3014 = vunpack.c.l.b16 %v2920
        %v3015 = vpack.c.b16 %v3000, %v2999
        %v3016 = vpack.c.b16 %v3002, %v3001
        %v3017 = vpack.c.b16 %v3004, %v3003
        %v3018 = vpack.c.b16 %v3006, %v3005
        %v3019 = vpack.c.b16 %v3008, %v3007
        %v3020 = vpack.c.b16 %v3010, %v3009
        %v3021 = vpack.c.b16 %v3012, %v3011
        %v3022 = vpack.c.b16 %v3014, %v3013
        %3031 = vmatprep.subr.bf16.mxu0 0
        %3032 = vmatpush1.bf16.msra.mxu0 %v3022
        %3033 = vmatprep.subr.bf16.mxu0 0
        %3034 = vmatpush1.bf16.msra.mxu0 %v3021
        %3035 = vmatprep.subr.bf16.mxu0 0
        %3036 = vmatpush1.bf16.msra.mxu0 %v3020
        %3037 = vmatprep.subr.bf16.mxu0 0
        %3038 = vmatpush1.bf16.msra.mxu0 %v3019
        %3039 = vmatprep.subr.bf16.mxu0 0
        %3040 = vmatpush1.bf16.msra.mxu0 %v3018
        %3041 = vmatprep.subr.bf16.mxu0 0
        %3042 = vmatpush1.bf16.msra.mxu0 %v3017
        %3043 = vmatprep.subr.bf16.mxu0 0
        %3044 = vmatpush1.bf16.msra.mxu0 %v3016
        %3045 = vmatprep.subr.bf16.mxu0 0
        %3046 = vmatpush1.bf16.msra.mxu0 %v3015
        %3047 = vmatprep.subr.bf16.mxu0 0
        %3048 = vmatpush2.bf16.msra.mxu0 0
        %3049 = vmatprep.subr.bf16.mxu0 0
        %3050 = vmatpush2.bf16.msra.mxu0 0
        %3051 = vmatprep.subr.bf16.mxu0 0
        %3052 = vmatpush2.bf16.msra.mxu0 0
        %3053 = vmatprep.subr.bf16.mxu0 0
        %3054 = vmatpush2.bf16.msra.mxu0 0
        %3055 = vmatprep.subr.bf16.mxu0 0
        %3056 = vmatpush2.bf16.msra.mxu0 0
        %3057 = vmatprep.subr.bf16.mxu0 0
        %3058 = vmatpush2.bf16.msra.mxu0 0
        %3059 = vmatprep.subr.bf16.mxu0 0
        %3060 = vmatpush2.bf16.msra.mxu0 0
        %3061 = vmatprep.subr.bf16.mxu0 0
        %3062 = vmatpush2.bf16.msra.mxu0 0
        %3063 = vmatprep.mubr.bf16.mxu0 0
        %3064 = vmatmul.mubr.bf16.gmra.mxu0 %v524
        %v3065 = vpop.f32.mrf.mxu0
        %v3066 = vadd.f32 0.0, %v3065
        %v3067 = vpop.f32.mrf.mxu0
        %v3068 = vpop.f32.mrf.mxu0
        %v3069 = vpop.f32.mrf.mxu0
        %3070 = vdwg.mxu0
        %v3071 = vunpack.c.l.b16 %v2743
        %v3072 = vunpack.c.l.b16 %v2755
        %v3073 = vunpack.c.l.b16 %v2767
        %v3074 = vunpack.c.l.b16 %v2779
        %v3075 = vunpack.c.l.b16 %v2791
        %v3076 = vunpack.c.l.b16 %v2803
        %v3077 = vunpack.c.l.b16 %v2815
        %v3078 = vunpack.c.l.b16 %v2827
        %v3079 = vunpack.c.l.b16 %v2839
        %v3080 = vunpack.c.l.b16 %v2851
        %v3081 = vunpack.c.l.b16 %v2863
        %v3082 = vunpack.c.l.b16 %v2875
        %v3083 = vunpack.c.l.b16 %v2887
        %v3084 = vunpack.c.l.b16 %v2899
        %v3085 = vunpack.c.l.b16 %v2911
        %v3086 = vunpack.c.l.b16 %v2923
        %v3087 = vpack.c.b16 %v3072, %v3071
        %v3088 = vpack.c.b16 %v3074, %v3073
        %v3089 = vpack.c.b16 %v3076, %v3075
        %v3090 = vpack.c.b16 %v3078, %v3077
        %v3091 = vpack.c.b16 %v3080, %v3079
        %v3092 = vpack.c.b16 %v3082, %v3081
        %v3093 = vpack.c.b16 %v3084, %v3083
        %v3094 = vpack.c.b16 %v3086, %v3085
        %3103 = vmatprep.subr.bf16.mxu0 0
        %3104 = vmatpush1.bf16.msra.mxu0 %v3094
        %3105 = vmatprep.subr.bf16.mxu0 0
        %3106 = vmatpush1.bf16.msra.mxu0 %v3093
        %3107 = vmatprep.subr.bf16.mxu0 0
        %3108 = vmatpush1.bf16.msra.mxu0 %v3092
        %3109 = vmatprep.subr.bf16.mxu0 0
        %3110 = vmatpush1.bf16.msra.mxu0 %v3091
        %3111 = vmatprep.subr.bf16.mxu0 0
        %3112 = vmatpush1.bf16.msra.mxu0 %v3090
        %3113 = vmatprep.subr.bf16.mxu0 0
        %3114 = vmatpush1.bf16.msra.mxu0 %v3089
        %3115 = vmatprep.subr.bf16.mxu0 0
        %3116 = vmatpush1.bf16.msra.mxu0 %v3088
        %3117 = vmatprep.subr.bf16.mxu0 0
        %3118 = vmatpush1.bf16.msra.mxu0 %v3087
        %3119 = vmatprep.subr.bf16.mxu0 0
        %3120 = vmatpush2.bf16.msra.mxu0 0
        %3121 = vmatprep.subr.bf16.mxu0 0
        %3122 = vmatpush2.bf16.msra.mxu0 0
        %3123 = vmatprep.subr.bf16.mxu0 0
        %3124 = vmatpush2.bf16.msra.mxu0 0
        %3125 = vmatprep.subr.bf16.mxu0 0
        %3126 = vmatpush2.bf16.msra.mxu0 0
        %3127 = vmatprep.subr.bf16.mxu0 0
        %3128 = vmatpush2.bf16.msra.mxu0 0
        %3129 = vmatprep.subr.bf16.mxu0 0
        %3130 = vmatpush2.bf16.msra.mxu0 0
        %3131 = vmatprep.subr.bf16.mxu0 0
        %3132 = vmatpush2.bf16.msra.mxu0 0
        %3133 = vmatprep.subr.bf16.mxu0 0
        %3134 = vmatpush2.bf16.msra.mxu0 0
        %3135 = vmatprep.mubr.bf16.mxu0 0
        %3136 = vmatmul.mubr.bf16.gmra.mxu0 %v525
        %v3137 = vpop.f32.mrf.mxu0
        %v3138 = vadd.f32 0.0, %v3137
        %v3139 = vpop.f32.mrf.mxu0
        %v3140 = vpop.f32.mrf.mxu0
        %v3141 = vpop.f32.mrf.mxu0
        %3142 = vdwg.mxu0
        %v3143 = vunpack.c.l.b16 %v2746
        %v3144 = vunpack.c.l.b16 %v2758
        %v3145 = vunpack.c.l.b16 %v2770
        %v3146 = vunpack.c.l.b16 %v2782
        %v3147 = vunpack.c.l.b16 %v2794
        %v3148 = vunpack.c.l.b16 %v2806
        %v3149 = vunpack.c.l.b16 %v2818
        %v3150 = vunpack.c.l.b16 %v2830
        %v3151 = vunpack.c.l.b16 %v2842
        %v3152 = vunpack.c.l.b16 %v2854
        %v3153 = vunpack.c.l.b16 %v2866
        %v3154 = vunpack.c.l.b16 %v2878
        %v3155 = vunpack.c.l.b16 %v2890
        %v3156 = vunpack.c.l.b16 %v2902
        %v3157 = vunpack.c.l.b16 %v2914
        %v3158 = vunpack.c.l.b16 %v2926
        %v3159 = vpack.c.b16 %v3144, %v3143
        %v3160 = vpack.c.b16 %v3146, %v3145
        %v3161 = vpack.c.b16 %v3148, %v3147
        %v3162 = vpack.c.b16 %v3150, %v3149
        %v3163 = vpack.c.b16 %v3152, %v3151
        %v3164 = vpack.c.b16 %v3154, %v3153
        %v3165 = vpack.c.b16 %v3156, %v3155
        %v3166 = vpack.c.b16 %v3158, %v3157
        %3175 = vmatprep.subr.bf16.mxu0 0
        %3176 = vmatpush1.bf16.msra.mxu0 %v3166
        %3177 = vmatprep.subr.bf16.mxu0 0
        %3178 = vmatpush1.bf16.msra.mxu0 %v3165
        %3179 = vmatprep.subr.bf16.mxu0 0
        %3180 = vmatpush1.bf16.msra.mxu0 %v3164
        %3181 = vmatprep.subr.bf16.mxu0 0
        %3182 = vmatpush1.bf16.msra.mxu0 %v3163
        %3183 = vmatprep.subr.bf16.mxu0 0
        %3184 = vmatpush1.bf16.msra.mxu0 %v3162
        %3185 = vmatprep.subr.bf16.mxu0 0
        %3186 = vmatpush1.bf16.msra.mxu0 %v3161
        %3187 = vmatprep.subr.bf16.mxu0 0
        %3188 = vmatpush1.bf16.msra.mxu0 %v3160
        %3189 = vmatprep.subr.bf16.mxu0 0
        %3190 = vmatpush1.bf16.msra.mxu0 %v3159
        %3191 = vmatprep.subr.bf16.mxu0 0
        %3192 = vmatpush2.bf16.msra.mxu0 0
        %3193 = vmatprep.subr.bf16.mxu0 0
        %3194 = vmatpush2.bf16.msra.mxu0 0
        %3195 = vmatprep.subr.bf16.mxu0 0
        %3196 = vmatpush2.bf16.msra.mxu0 0
        %3197 = vmatprep.subr.bf16.mxu0 0
        %3198 = vmatpush2.bf16.msra.mxu0 0
        %3199 = vmatprep.subr.bf16.mxu0 0
        %3200 = vmatpush2.bf16.msra.mxu0 0
        %3201 = vmatprep.subr.bf16.mxu0 0
        %3202 = vmatpush2.bf16.msra.mxu0 0
        %3203 = vmatprep.subr.bf16.mxu0 0
        %3204 = vmatpush2.bf16.msra.mxu0 0
        %3205 = vmatprep.subr.bf16.mxu0 0
        %3206 = vmatpush2.bf16.msra.mxu0 0
        %3207 = vmatprep.mubr.bf16.mxu0 0
        %3208 = vmatmul.mubr.bf16.gmra.mxu0 %v526
        %v3209 = vpop.f32.mrf.mxu0
        %v3210 = vadd.f32 0.0, %v3209
        %v3211 = vpop.f32.mrf.mxu0
        %v3212 = vpop.f32.mrf.mxu0
        %v3213 = vpop.f32.mrf.mxu0
        %3214 = vdwg.mxu0
        %v3215 = vcombine.low %v2994, %v3138
        %v3216 = vcombine.high %v2994, %v3138
        %v3218 = vunpack.c.l.s4 1983009808
        %v3219 = vunpack.c.0.s8 %v3218
        %v3220 = vlaneseq
        %v3221 = vshrl.u32 %v3220, 7
        %v3222 = vsub.s32 %v3219, %v3221
        %v3223 = vrot.slane %v3215, %v3222
        %v3225 = vunpack.c.l.s4 1983009808
        %v3226 = vunpack.c.0.s8 %v3225
        %v3227 = vlaneseq
        %v3228 = vshrl.u32 %v3227, 7
        %v3229 = vsub.s32 %v3226, %v3228
        %v3230 = vrot.slane %v3216, %v3229
        %v3231 = vcombine.low %v3066, %v3210
        %v3232 = vcombine.high %v3066, %v3210
        %v3234 = vunpack.c.l.s4 1983009808
        %v3235 = vunpack.c.0.s8 %v3234
        %v3236 = vlaneseq
        %v3237 = vshrl.u32 %v3236, 7
        %v3238 = vsub.s32 %v3235, %v3237
        %v3239 = vrot.slane %v3231, %v3238
        %v3241 = vunpack.c.l.s4 1983009808
        %v3242 = vunpack.c.0.s8 %v3241
        %v3243 = vlaneseq
        %v3244 = vshrl.u32 %v3243, 7
        %v3245 = vsub.s32 %v3242, %v3244
        %v3246 = vrot.slane %v3232, %v3245
        %v3247 = vcombine.low %v3223, %v3239
        %v3248 = vcombine.high %v3223, %v3239
        %v3250 = vunpack.c.l.s4 1934713408
        %v3251 = vunpack.c.0.s8 %v3250
        %v3252 = vlaneseq
        %v3253 = vshrl.u32 %v3252, 7
        %v3254 = vsub.s32 %v3251, %v3253
        %v3255 = vrot.slane %v3247, %v3254
        %v3257 = vunpack.c.l.s4 1934713408
        %v3258 = vunpack.c.0.s8 %v3257
        %v3259 = vlaneseq
        %v3260 = vshrl.u32 %v3259, 7
        %v3261 = vsub.s32 %v3258, %v3260
        %v3262 = vrot.slane %v3248, %v3261
        %v3263 = vcombine.low %v3230, %v3246
        %v3264 = vcombine.high %v3230, %v3246
        %v3266 = vunpack.c.l.s4 1934713408
        %v3267 = vunpack.c.0.s8 %v3266
        %v3268 = vlaneseq
        %v3269 = vshrl.u32 %v3268, 7
        %v3270 = vsub.s32 %v3267, %v3269
        %v3271 = vrot.slane %v3263, %v3270
        %v3273 = vunpack.c.l.s4 1934713408
        %v3274 = vunpack.c.0.s8 %v3273
        %v3275 = vlaneseq
        %v3276 = vshrl.u32 %v3275, 7
        %v3277 = vsub.s32 %v3274, %v3276
        %v3278 = vrot.slane %v3264, %v3277
        %v3279 = vcombine.high %v3255, 0.0
        %v3280 = vcombine.high %v3262, 0.0
        %v3281 = vcombine.high %v3271, 0.0
        %v3282 = vcombine.high %v3278, 0.0
        %v3283 = vcombine.low %v3255, %v3262
        %v3285 = vunpack.c.l.s4 1983009808
        %v3286 = vunpack.c.0.s8 %v3285
        %v3287 = vlaneseq
        %v3288 = vshrl.u32 %v3287, 7
        %v3289 = vsub.s32 %v3286, %v3288
        %v3290 = vrot.slane %v3283, %v3289
        %v3291 = vcombine.low %v3279, %v3280
        %v3293 = vunpack.c.l.s4 1983009808
        %v3294 = vunpack.c.0.s8 %v3293
        %v3295 = vlaneseq
        %v3296 = vshrl.u32 %v3295, 7
        %v3297 = vsub.s32 %v3294, %v3296
        %v3298 = vrot.slane %v3291, %v3297
        %v3299 = vcombine.low %v3271, %v3278
        %v3301 = vunpack.c.l.s4 1983009808
        %v3302 = vunpack.c.0.s8 %v3301
        %v3303 = vlaneseq
        %v3304 = vshrl.u32 %v3303, 7
        %v3305 = vsub.s32 %v3302, %v3304
        %v3306 = vrot.slane %v3299, %v3305
        %v3307 = vcombine.low %v3281, %v3282
        %v3309 = vunpack.c.l.s4 1983009808
        %v3310 = vunpack.c.0.s8 %v3309
        %v3311 = vlaneseq
        %v3312 = vshrl.u32 %v3311, 7
        %v3313 = vsub.s32 %v3310, %v3312
        %v3314 = vrot.slane %v3307, %v3313
        %v3315 = vcombine.low %v3290, %v3298
        %v3316 = vcombine.high %v3290, %v3298
        %v3318 = vunpack.c.l.s4 1934713408
        %v3319 = vunpack.c.0.s8 %v3318
        %v3320 = vlaneseq
        %v3321 = vshrl.u32 %v3320, 7
        %v3322 = vsub.s32 %v3319, %v3321
        %v3323 = vrot.slane %v3315, %v3322
        %v3325 = vunpack.c.l.s4 1934713408
        %v3326 = vunpack.c.0.s8 %v3325
        %v3327 = vlaneseq
        %v3328 = vshrl.u32 %v3327, 7
        %v3329 = vsub.s32 %v3326, %v3328
        %v3330 = vrot.slane %v3316, %v3329
        %v3331 = vcombine.low %v3306, %v3314
        %v3332 = vcombine.high %v3306, %v3314
        %v3334 = vunpack.c.l.s4 1934713408
        %v3335 = vunpack.c.0.s8 %v3334
        %v3336 = vlaneseq
        %v3337 = vshrl.u32 %v3336, 7
        %v3338 = vsub.s32 %v3335, %v3337
        %v3339 = vrot.slane %v3331, %v3338
        %v3341 = vunpack.c.l.s4 1934713408
        %v3342 = vunpack.c.0.s8 %v3341
        %v3343 = vlaneseq
        %v3344 = vshrl.u32 %v3343, 7
        %v3345 = vsub.s32 %v3342, %v3344
        %v3346 = vrot.slane %v3332, %v3345
        %v3347 = vcombine.low %v3323, %v3339
        %v3348 = vcombine.high %v3323, %v3339
        %v3349 = vcombine.low %v3330, %v3346
        %v3350 = vcombine.high %v3330, %v3346
        %3352 = vrot.lane.b32.xlu0 %v3348, 8
        %v3353 = vpop.permute.xlu0 %3352
        %3356 = vrot.lane.b32.xlu0 %v3349, 16
        %v3357 = vpop.permute.xlu0 %3356
        %3360 = vrot.lane.b32.xlu0 %v3350, 24
        %v3361 = vpop.permute.xlu0 %3360
        %vm3363 = vcmask 64512
        %v3364 = vsel %vm3363, %v3347, %v3353
        %vm3365 = vcmask 130048
        %v3366 = vsel %vm3365, %v3364, %v3357
        %vm3367 = vcmask 195584
        %v3368 = vsel %vm3367, %v3366, %v3361
        %v3369 = vpack.c.bf16 %v3368, %v3368
        %v3370 = vld [vmem:[%s3] sm:$0xf]
        %v3371 = vld [vmem:[%s3 + $0x4] sm:$0xf]
        %v3372 = vld [vmem:[%s3 + $0x8] sm:$0xf]
        %v3373 = vld [vmem:[%s3 + $0xc] sm:$0xf]
        %v3374 = vld [vmem:[%s4] sm:$0x1]
        %v3376 = vlaneseq
        %v3377 = vshrl.u32 %v3376, 7
        %v3378 = vsub.s32 0, %v3377
        %v3379 = vrot.slane %v3374, %v3378
        %v3385 = vunpack.c.l.b16 %v3370
        %v3386 = vunpack.c.l.b16 %v3371
        %v3387 = vunpack.c.l.b16 %v3372
        %v3388 = vunpack.c.l.b16 %v3373
        %v3389 = vpack.c.b16 %v3386, %v3385
        %v3390 = vpack.c.b16 %v3388, %v3387
        %vm3393 = vcmask 261120
        %v3395 = vsel %vm3393, %v3369, 0
        %3397 = vmatprep.subr.bf16.mxu0 0
        %3398 = vmatpush1.bf16.msra.mxu0 0
        %3399 = vmatprep.subr.bf16.mxu0 0
        %3400 = vmatpush1.bf16.msra.mxu0 0
        %3401 = vmatprep.subr.bf16.mxu0 0
        %3402 = vmatpush1.bf16.msra.mxu0 0
        %3403 = vmatprep.subr.bf16.mxu0 0
        %3404 = vmatpush1.bf16.msra.mxu0 0
        %3405 = vmatprep.subr.bf16.mxu0 0
        %3406 = vmatpush1.bf16.msra.mxu0 0
        %3407 = vmatprep.subr.bf16.mxu0 0
        %3408 = vmatpush1.bf16.msra.mxu0 0
        %3409 = vmatprep.subr.bf16.mxu0 0
        %3410 = vmatpush1.bf16.msra.mxu0 %v3390
        %3411 = vmatprep.subr.bf16.mxu0 0
        %3412 = vmatpush1.bf16.msra.mxu0 %v3389
        %3413 = vmatprep.subr.bf16.mxu0 0
        %3414 = vmatpush2.bf16.msra.mxu0 0
        %3415 = vmatprep.subr.bf16.mxu0 0
        %3416 = vmatpush2.bf16.msra.mxu0 0
        %3417 = vmatprep.subr.bf16.mxu0 0
        %3418 = vmatpush2.bf16.msra.mxu0 0
        %3419 = vmatprep.subr.bf16.mxu0 0
        %3420 = vmatpush2.bf16.msra.mxu0 0
        %3421 = vmatprep.subr.bf16.mxu0 0
        %3422 = vmatpush2.bf16.msra.mxu0 0
        %3423 = vmatprep.subr.bf16.mxu0 0
        %3424 = vmatpush2.bf16.msra.mxu0 0
        %3425 = vmatprep.subr.bf16.mxu0 0
        %3426 = vmatpush2.bf16.msra.mxu0 0
        %3427 = vmatprep.subr.bf16.mxu0 0
        %3428 = vmatpush2.bf16.msra.mxu0 0
        %3429 = vmatprep.mubr.bf16.mxu0 0
        %3430 = vmatmul.mubr.bf16.gmra.mxu0 %v3395
        %v3431 = vpop.f32.mrf.mxu0
        %v3432 = vadd.f32 %v3379, %v3431
        %v3433 = vpop.f32.mrf.mxu0
        %v3434 = vpop.f32.mrf.mxu0
        %v3435 = vpop.f32.mrf.mxu0
        %3436 = vdwg.mxu0
        %v3437 = vadd.f32 %v522, %v3432
        %v3438 = vld [vmem:[%s5] sm:$0x1]
        %v3439 = vld [vmem:[%s6] sm:$0x1]
        %v3440 = vsel %vm3393, %v3437, 0.0
        %3441 = vadd.xlane.f32.xlu0 %v3440
        %v3442 = vpop.xlane.xlu0 %3441
        %v3443 = vrcp.pop 32.0
        %v3444 = vmul.f32 %v3442, %v3443
        %v3445 = vsub.f32 %v3437, %v3444
        %v3446 = vmul.f32 %v3445, %v3445
        %v3447 = vsel %vm3393, %v3446, 0.0
        %3448 = vadd.xlane.f32.xlu0 %v3447
        %v3449 = vpop.xlane.xlu0 %3448
        %v3450 = vmul.f32 %v3449, %v3443
        %v3451 = vadd.f32 %v3450, 1e-05
        %v3452 = vrsqrt.pop %v3451
        %v3453 = vmul.f32 %v3445, %v3452
        %v3455 = vlaneseq
        %v3456 = vshrl.u32 %v3455, 7
        %v3457 = vsub.s32 0, %v3456
        %v3458 = vrot.slane %v3438, %v3457
        %v3460 = vmul.f32 %v3453, %v3458
        %v3462 = vlaneseq
        %v3463 = vshrl.u32 %v3462, 7
        %v3464 = vsub.s32 0, %v3463
        %v3465 = vrot.slane %v3439, %v3464
        %v3467 = vadd.f32 %v3460, %v3465
        %v3468 = vpack.c.bf16 %v3467, %v3467
        %v3469 = vld [vmem:[%s7] sm:$0xf]
        %v3470 = vld [vmem:[%s7 + $0x4] sm:$0xf]
        %v3471 = vld [vmem:[%s7 + $0x8] sm:$0xf]
        %v3472 = vld [vmem:[%s7 + $0xc] sm:$0xf]
        %v3473 = vld [vmem:[%s8] sm:$0x1]
        %v3475 = vlaneseq
        %v3476 = vshrl.u32 %v3475, 7
        %v3477 = vsub.s32 0, %v3476
        %v3478 = vrot.slane %v3473, %v3477
        %v3484 = vunpack.c.l.b16 %v3469
        %v3485 = vunpack.c.l.b16 %v3470
        %v3486 = vunpack.c.l.b16 %v3471
        %v3487 = vunpack.c.l.b16 %v3472
        %v3488 = vpack.c.b16 %v3485, %v3484
        %v3489 = vpack.c.b16 %v3487, %v3486
        %v3493 = vsel %vm3393, %v3468, 0
        %3495 = vmatprep.subr.bf16.mxu0 0
        %3496 = vmatpush1.bf16.msra.mxu0 0
        %3497 = vmatprep.subr.bf16.mxu0 0
        %3498 = vmatpush1.bf16.msra.mxu0 0
        %3499 = vmatprep.subr.bf16.mxu0 0
        %3500 = vmatpush1.bf16.msra.mxu0 0
        %3501 = vmatprep.subr.bf16.mxu0 0
        %3502 = vmatpush1.bf16.msra.mxu0 0
        %3503 = vmatprep.subr.bf16.mxu0 0
        %3504 = vmatpush1.bf16.msra.mxu0 0
        %3505 = vmatprep.subr.bf16.mxu0 0
        %3506 = vmatpush1.bf16.msra.mxu0 0
        %3507 = vmatprep.subr.bf16.mxu0 0
        %3508 = vmatpush1.bf16.msra.mxu0 %v3489
        %3509 = vmatprep.subr.bf16.mxu0 0
        %3510 = vmatpush1.bf16.msra.mxu0 %v3488
        %3511 = vmatprep.subr.bf16.mxu0 0
        %3512 = vmatpush2.bf16.msra.mxu0 0
        %3513 = vmatprep.subr.bf16.mxu0 0
        %3514 = vmatpush2.bf16.msra.mxu0 0
        %3515 = vmatprep.subr.bf16.mxu0 0
        %3516 = vmatpush2.bf16.msra.mxu0 0
        %3517 = vmatprep.subr.bf16.mxu0 0
        %3518 = vmatpush2.bf16.msra.mxu0 0
        %3519 = vmatprep.subr.bf16.mxu0 0
        %3520 = vmatpush2.bf16.msra.mxu0 0
        %3521 = vmatprep.subr.bf16.mxu0 0
        %3522 = vmatpush2.bf16.msra.mxu0 0
        %3523 = vmatprep.subr.bf16.mxu0 0
        %3524 = vmatpush2.bf16.msra.mxu0 0
        %3525 = vmatprep.subr.bf16.mxu0 0
        %3526 = vmatpush2.bf16.msra.mxu0 0
        %3527 = vmatprep.mubr.bf16.mxu0 0
        %3528 = vmatmul.mubr.bf16.gmra.mxu0 %v3493
        %v3529 = vpop.f32.mrf.mxu0
        %v3530 = vadd.f32 %v3478, %v3529
        %v3531 = vpop.f32.mrf.mxu0
        %v3532 = vpop.f32.mrf.mxu0
        %v3533 = vpop.f32.mrf.mxu0
        %3534 = vdwg.mxu0
        %v3535 = vmax.f32 %v3530, 0.0
        %v3536 = vpack.c.bf16 %v3535, %v3535
        %v3537 = vld [vmem:[%s9] sm:$0xf]
        %v3538 = vld [vmem:[%s9 + $0x4] sm:$0xf]
        %v3539 = vld [vmem:[%s9 + $0x8] sm:$0xf]
        %v3540 = vld [vmem:[%s9 + $0xc] sm:$0xf]
        %v3541 = vld [vmem:[%s9 + $0x10] sm:$0xf]
        %v3542 = vld [vmem:[%s9 + $0x14] sm:$0xf]
        %v3543 = vld [vmem:[%s9 + $0x18] sm:$0xf]
        %v3544 = vld [vmem:[%s9 + $0x1c] sm:$0xf]
        %v3545 = vld [vmem:[%s9 + $0x20] sm:$0xf]
        %v3546 = vld [vmem:[%s9 + $0x24] sm:$0xf]
        %v3547 = vld [vmem:[%s9 + $0x28] sm:$0xf]
        %v3548 = vld [vmem:[%s9 + $0x2c] sm:$0xf]
        %v3549 = vld [vmem:[%s9 + $0x30] sm:$0xf]
        %v3550 = vld [vmem:[%s9 + $0x34] sm:$0xf]
        %v3551 = vld [vmem:[%s9 + $0x38] sm:$0xf]
        %v3552 = vld [vmem:[%s9 + $0x3c] sm:$0xf]
        %v3553 = vld [vmem:[%s10] sm:$0x1]
        %v3555 = vlaneseq
        %v3556 = vshrl.u32 %v3555, 7
        %v3557 = vsub.s32 0, %v3556
        %v3558 = vrot.slane %v3553, %v3557
        %v3576 = vunpack.c.l.b16 %v3537
        %v3577 = vunpack.c.l.b16 %v3538
        %v3578 = vunpack.c.l.b16 %v3539
        %v3579 = vunpack.c.l.b16 %v3540
        %v3580 = vunpack.c.l.b16 %v3541
        %v3581 = vunpack.c.l.b16 %v3542
        %v3582 = vunpack.c.l.b16 %v3543
        %v3583 = vunpack.c.l.b16 %v3544
        %v3584 = vunpack.c.l.b16 %v3545
        %v3585 = vunpack.c.l.b16 %v3546
        %v3586 = vunpack.c.l.b16 %v3547
        %v3587 = vunpack.c.l.b16 %v3548
        %v3588 = vunpack.c.l.b16 %v3549
        %v3589 = vunpack.c.l.b16 %v3550
        %v3590 = vunpack.c.l.b16 %v3551
        %v3591 = vunpack.c.l.b16 %v3552
        %v3592 = vpack.c.b16 %v3577, %v3576
        %v3593 = vpack.c.b16 %v3579, %v3578
        %v3594 = vpack.c.b16 %v3581, %v3580
        %v3595 = vpack.c.b16 %v3583, %v3582
        %v3596 = vpack.c.b16 %v3585, %v3584
        %v3597 = vpack.c.b16 %v3587, %v3586
        %v3598 = vpack.c.b16 %v3589, %v3588
        %v3599 = vpack.c.b16 %v3591, %v3590
        %3608 = vmatprep.subr.bf16.mxu0 0
        %3609 = vmatpush1.bf16.msra.mxu0 %v3599
        %3610 = vmatprep.subr.bf16.mxu0 0
        %3611 = vmatpush1.bf16.msra.mxu0 %v3598
        %3612 = vmatprep.subr.bf16.mxu0 0
        %3613 = vmatpush1.bf16.msra.mxu0 %v3597
        %3614 = vmatprep.subr.bf16.mxu0 0
        %3615 = vmatpush1.bf16.msra.mxu0 %v3596
        %3616 = vmatprep.subr.bf16.mxu0 0
        %3617 = vmatpush1.bf16.msra.mxu0 %v3595
        %3618 = vmatprep.subr.bf16.mxu0 0
        %3619 = vmatpush1.bf16.msra.mxu0 %v3594
        %3620 = vmatprep.subr.bf16.mxu0 0
        %3621 = vmatpush1.bf16.msra.mxu0 %v3593
        %3622 = vmatprep.subr.bf16.mxu0 0
        %3623 = vmatpush1.bf16.msra.mxu0 %v3592
        %3624 = vmatprep.subr.bf16.mxu0 0
        %3625 = vmatpush2.bf16.msra.mxu0 0
        %3626 = vmatprep.subr.bf16.mxu0 0
        %3627 = vmatpush2.bf16.msra.mxu0 0
        %3628 = vmatprep.subr.bf16.mxu0 0
        %3629 = vmatpush2.bf16.msra.mxu0 0
        %3630 = vmatprep.subr.bf16.mxu0 0
        %3631 = vmatpush2.bf16.msra.mxu0 0
        %3632 = vmatprep.subr.bf16.mxu0 0
        %3633 = vmatpush2.bf16.msra.mxu0 0
        %3634 = vmatprep.subr.bf16.mxu0 0
        %3635 = vmatpush2.bf16.msra.mxu0 0
        %3636 = vmatprep.subr.bf16.mxu0 0
        %3637 = vmatpush2.bf16.msra.mxu0 0
        %3638 = vmatprep.subr.bf16.mxu0 0
        %3639 = vmatpush2.bf16.msra.mxu0 0
        %3640 = vmatprep.mubr.bf16.mxu0 0
        %3641 = vmatmul.mubr.bf16.gmra.mxu0 %v3536
        %v3642 = vpop.f32.mrf.mxu0
        %v3643 = vadd.f32 %v3558, %v3642
        %v3644 = vpop.f32.mrf.mxu0
        %v3645 = vpop.f32.mrf.mxu0
        %v3646 = vpop.f32.mrf.mxu0
        %3647 = vdwg.mxu0
        %v3648 = vadd.f32 %v3467, %v3643
        %v3649 = vld [vmem:[#allocation5] sm:$0x1]
        %v3650 = vld [vmem:[#allocation7] sm:$0x1]
        %v3651 = vsel %vm3393, %v3648, 0.0
        %3652 = vadd.xlane.f32.xlu0 %v3651
        %v3653 = vpop.xlane.xlu0 %3652
        %v3654 = vmul.f32 %v3653, %v3443
        %v3655 = vsub.f32 %v3648, %v3654
        %v3656 = vmul.f32 %v3655, %v3655
        %v3657 = vsel %vm3393, %v3656, 0.0
        %3658 = vadd.xlane.f32.xlu0 %v3657
        %v3659 = vpop.xlane.xlu0 %3658
        %v3660 = vmul.f32 %v3659, %v3443
        %v3661 = vadd.f32 %v3660, 1e-05
        %v3662 = vrsqrt.pop %v3661
        %v3663 = vmul.f32 %v3655, %v3662
        %v3665 = vlaneseq
        %v3666 = vshrl.u32 %v3665, 7
        %v3667 = vsub.s32 0, %v3666
        %v3668 = vrot.slane %v3649, %v3667
        %v3670 = vmul.f32 %v3663, %v3668
        %v3672 = vlaneseq
        %v3673 = vshrl.u32 %v3672, 7
        %v3674 = vsub.s32 0, %v3673
        %v3675 = vrot.slane %v3650, %v3674
        %v3677 = vadd.f32 %v3670, %v3675
        %3678 = vst.msk [vmem:[%s510] sm:$0xff] %vm3393, %v3677
        %s3679 = sand.u32 %s327, 1
        %s3680 = scalar_lea.sflag [#allocation4], %s3679
        %s3681 = sand.u32 %s327, 1
        %s3682 = smul.addr %s3681, 8
        %s3683 = scalar_lea.vmem [#allocation8], %s3682
        // Predicated region
        $region85: #{decoder_layer_forward.3} parent=71 // pred_check
          %p3684 = pneg %p337
        $region86: #{decoder_layer_forward.3} parent=71 // pred_check_branch
          %3686 = sbr.rel (%p3684) target = $region88
        $region87: #{decoder_layer_forward.3} parent=71 // pred_region
          %s3688 = ssub.s32 128, 128
          %3689 = vsyncadd %s3680, %s3688
          %s3690 = smul.addr %s31, 128
          %s3691 = scalar_lea.hbm %s13, %s3690
          %s3693 = sshll.u32 %s3683, 4
          %s3694 = int_to_ptr.vmem [resolvable:$true] %s3693
          %3696 = dma.vmem_to_hbm [thread:$0]  %s3694, 128, %s3691, %s3680
        $region88: #{decoder_layer_forward.3} parent=71 // pred_fallthru
          _
      $region72: #{decoder_layer_forward.3} parent=5 // pred_fallthru
        _
      %p3697 = scmp.le.s32.totalorder 2, %s26
      // Predicated region
      $region89: #{decoder_layer_forward.3} parent=5 // pred_check
        %p3698 = pneg %p3697
      $region90: #{decoder_layer_forward.3} parent=5 // pred_check_branch
        %3700 = sbr.rel (%p3698) target = $region92
      $region91: #{decoder_layer_forward.3} parent=5 // pred_region
        %s3701 = ssub.s32 %s26, 2
        // Predicated region
        $region93: #{decoder_layer_forward.3} parent=91 // pred_check
          %p3702 = pneg %p343
        $region94: #{decoder_layer_forward.3} parent=91 // pred_check_branch
          %3704 = sbr.rel (%p3702) target = $region96
        $region95: #{decoder_layer_forward.3} parent=91 // pred_region
          %s3705 = sand.u32 %s328, 1
          %s3706 = scalar_lea.sflag [#allocation4], %s3705
          %s3707 = sand.u32 %s328, 1
          %s3708 = smul.addr %s3707, 8
          %s3709 = scalar_lea.vmem [#allocation8], %s3708
          %3710 = dma.done %s3706, 128
        $region96: #{decoder_layer_forward.3} parent=91 // pred_fallthru
          _
      $region92: #{decoder_layer_forward.3} parent=5 // pred_fallthru
        _
    $region6: #{decoder_layer_forward.3} parent=1 // loop_footer
      %s30 = sadd.s32 1, %s26
    $region7: #{decoder_layer_forward.3} parent=1 // loop_footer_branch
      %25 = sbr.rel target = $region3
    $region8: #{decoder_layer_forward.3} parent=1 // loop_exit
      _
    %3711 = vsyncpa [#allocation3], 1
    %s3712 = scalar_lea.sflag [#allocation3], 1
    %3713 = vsyncpa %s3712, 1
    %3714 = vsyncpa [#allocation6], 1
    %3715 = vsyncpa [#allocation4], 1
    %s3716 = scalar_lea.sflag [#allocation4], 1
    %3717 = vsyncpa %s3716, 1

</llo_original>
